<compile_context>
chip_gen: v5e
topology: v5e:2x2
jax: 0.10.0
libtpu: 0.0.40
codegen_flags: <defaults>
</compile_context>

<pallas_src>
import jax
import jax.numpy as jnp
from jax.experimental import pallas as pl
from jax.experimental.pallas import tpu as pltpu

HIDDEN = 1000
BN_EPS = 1e-5


# --------------------------------------------------------------------------
# Kernel: both heads fused, BN already folded into the linears.
# --------------------------------------------------------------------------
def _classify_kernel(x_ref,
                     sw1_ref, sb1_ref, sw2_ref, sb2_ref, sw3_ref, sb3_ref,
                     aw1_ref, ab1_ref, aw2_ref, ab2_ref, aw3_ref, ab3_ref,
                     sex_ref, age_ref):
    x = x_ref[...].astype(jnp.bfloat16)

    def head(w1, b1, w2, b2, w3, b3):
        h = jnp.dot(x, w1[...], preferred_element_type=jnp.float32) + b1[...]
        h = jnp.maximum(h, 0.0).astype(jnp.bfloat16)   # ReLU; Dropout == identity (eval)
        h = jnp.dot(h, w2[...], preferred_element_type=jnp.float32) + b2[...]
        h = jnp.maximum(h, 0.0).astype(jnp.bfloat16)
        return jnp.dot(h, w3[...], preferred_element_type=jnp.float32) + b3[...]

    sex_ref[...] = head(sw1_ref, sb1_ref, sw2_ref, sb2_ref,
                        sw3_ref, sb3_ref).astype(sex_ref.dtype)
    age_ref[...] = head(aw1_ref, ab1_ref, aw2_ref, ab2_ref,
                        aw3_ref, ab3_ref).astype(age_ref.dtype)


# --------------------------------------------------------------------------
# Host-side parameter preparation: BN fold (f32) -> zero-pad -> bf16 weights.
# --------------------------------------------------------------------------
def _round_up(n, m):
    return ((n + m - 1) // m) * m


def _fold_bn(w, b, g, be, m, v):
    """Fold eval-mode BatchNorm1d into the preceding Linear (all f32)."""
    scale = g * jax.lax.rsqrt(v + BN_EPS)          # (1, N)
    return w * scale, (b - m) * scale + be


def _pad2d(a, rows, cols):
    return jnp.pad(a, ((0, rows - a.shape[0]), (0, cols - a.shape[1])))


def prepare_head_params(raw, d_pad, h_pad):
    w1, b1 = _fold_bn(raw["w1"], raw["b1"], raw["g1"], raw["be1"], raw["m1"], raw["v1"])
    w2, b2 = _fold_bn(raw["w2"], raw["b2"], raw["g2"], raw["be2"], raw["m2"], raw["v2"])
    w3, b3 = raw["w3"], raw["b3"]
    return dict(
        w1=_pad2d(w1, d_pad, h_pad).astype(jnp.bfloat16),
        b1=_pad2d(b1, 1, h_pad),
        w2=_pad2d(w2, h_pad, h_pad).astype(jnp.bfloat16),
        b2=_pad2d(b2, 1, h_pad),
        w3=_pad2d(w3, h_pad, w3.shape[1]).astype(jnp.bfloat16),
        b3=b3,
    )


# --------------------------------------------------------------------------
# Forward pass: one fused pallas_call for both heads.
# --------------------------------------------------------------------------
def classify_forward(x, sex_params, age_params, *, tb=None):
    B, D = x.shape
    Dp, Hp = sex_params["w1"].shape
    if Dp != D:
        x = jnp.pad(x, ((0, 0), (0, Dp - D)))

    if tb is None:
        tb = min(B, 128)
    assert B % tb == 0, "batch must be a multiple of the row tile"

    param_list = []
    for p in (sex_params, age_params):
        param_list += [p["w1"], p["b1"], p["w2"], p["b2"], p["w3"], p["b3"]]

    in_specs = [pl.BlockSpec((tb, Dp), lambda i: (i, 0))]
    for arr in param_list:
        # Parameters are grid-invariant; each grid step sees the full array.
        in_specs.append(pl.BlockSpec(arr.shape, lambda i: (0, 0)))

    sex_out = sex_params["w3"].shape[1]
    age_out = age_params["w3"].shape[1]
    out_specs = [pl.BlockSpec((tb, sex_out), lambda i: (i, 0)),
                 pl.BlockSpec((tb, age_out), lambda i: (i, 0))]
    out_shape = (jax.ShapeDtypeStruct((B, sex_out), jnp.float32),
                 jax.ShapeDtypeStruct((B, age_out), jnp.float32))

    flops = (2 * B * (Dp * Hp + Hp * Hp + Hp * sex_out)
             + 2 * B * (Dp * Hp + Hp * Hp + Hp * age_out))
    bytes_accessed = (int(x.size) * x.dtype.itemsize
                      + sum(int(a.size) * a.dtype.itemsize for a in param_list)
                      + B * (sex_out + age_out) * 4)

    sex_logits, age_logits = pl.pallas_call(
        _classify_kernel,
        out_shape=out_shape,
        grid_spec=pltpu.PrefetchScalarGridSpec(
            num_scalar_prefetch=0,
            grid=(B // tb,),
            in_specs=in_specs,
            out_specs=out_specs,
        ),
        compiler_params=pltpu.CompilerParams(
            dimension_semantics=("parallel",),
            vmem_limit_bytes=32 << 20,
        ),
        cost_estimate=pl.CostEstimate(
            flops=flops, transcendentals=0, bytes_accessed=bytes_accessed),
    )(x, *param_list)

    return {"sex": sex_logits, "age": age_logits}


# --------------------------------------------------------------------------
# Deterministic synthetic parameters mirroring the PyTorch layer shapes.
# Linear weights are stored as [in_features, out_features] (x @ W + b).
# --------------------------------------------------------------------------
def _init_head_params(key, input_size, out_dim):
    ks = jax.random.split(key, 16)

    def lin(kw, kb, fan_in, fan_out):
        bound = 1.0 / jnp.sqrt(fan_in)
        w = jax.random.uniform(kw, (fan_in, fan_out), jnp.float32, -bound, bound)
        b = jax.random.uniform(kb, (1, fan_out), jnp.float32, -bound, bound)
        return w, b

    w1, b1 = lin(ks[0], ks[1], input_size, HIDDEN)
    w2, b2 = lin(ks[2], ks[3], HIDDEN, HIDDEN)
    w3, b3 = lin(ks[4], ks[5], HIDDEN, out_dim)

    def bn(kg, kb, km, kv, n):
        g = 1.0 + 0.1 * jax.random.normal(kg, (1, n), jnp.float32)
        be = 0.1 * jax.random.normal(kb, (1, n), jnp.float32)
        m = 0.1 * jax.random.normal(km, (1, n), jnp.float32)
        v = jax.random.uniform(kv, (1, n), jnp.float32, 0.5, 1.5)
        return g, be, m, v

    g1, be1, m1, v1 = bn(ks[6], ks[7], ks[8], ks[9], HIDDEN)
    g2, be2, m2, v2 = bn(ks[10], ks[11], ks[12], ks[13], HIDDEN)

    return dict(w1=w1, b1=b1, g1=g1, be1=be1, m1=m1, v1=v1,
                w2=w2, b2=b2, g2=g2, be2=be2, m2=m2, v2=v2,
                w3=w3, b3=b3)


# --------------------------------------------------------------------------
# Pure-JAX references.
# --------------------------------------------------------------------------
def _bn_reference(x, p):
    """Original eval-mode math (Linear + BatchNorm + ReLU) in f32."""
    h = x @ p["w1"] + p["b1"]
    h = (h - p["m1"]) * jax.lax.rsqrt(p["v1"] + BN_EPS) * p["g1"] + p["be1"]
    h = jnp.maximum(h, 0.0)
    h = h @ p["w2"] + p["b2"]
    h = (h - p["m2"]) * jax.lax.rsqrt(p["v2"] + BN_EPS) * p["g2"] + p["be2"]
    h = jnp.maximum(h, 0.0)
    return h @ p["w3"] + p["b3"]


def _folded_reference_f32(x, raw):
    """BN folded into linears, still full f32 (validates the fold algebra)."""
    w1, b1 = _fold_bn(raw["w1"], raw["b1"], raw["g1"], raw["be1"], raw["m1"], raw["v1"])
    w2, b2 = _fold_bn(raw["w2"], raw["b2"], raw["g2"], raw["be2"], raw["m2"], raw["v2"])
    h = jnp.maximum(x @ w1 + b1, 0.0)
    h = jnp.maximum(h @ w2 + b2, 0.0)
    return h @ raw["w3"] + raw["b3"]


def _prepared_reference(x_padded, p):
    """Same folded/padded/bf16 math as the kernel, in plain JAX."""
    xb = x_padded.astype(jnp.bfloat16)
    h = jnp.dot(xb, p["w1"], preferred_element_type=jnp.float32) + p["b1"]
    h = jnp.maximum(h, 0.0).astype(jnp.bfloat16)
    h = jnp.dot(h, p["w2"], preferred_element_type=jnp.float32) + p["b2"]
    h = jnp.maximum(h, 0.0).astype(jnp.bfloat16)
    return jnp.dot(h, p["w3"], preferred_element_type=jnp.float32) + p["b3"]


if __name__ == "__main__":
    key = jax.random.PRNGKey(0)
    k_x, k_sex, k_age = jax.random.split(key, 3)

    B, INPUT_SIZE = 8, 256   # Classify(input_size=256), batch of 8 feature vectors
    x = jax.random.normal(k_x, (B, INPUT_SIZE), jnp.float32)

    sex_raw = _init_head_params(k_sex, INPUT_SIZE, out_dim=2)
    age_raw = _init_head_params(k_age, INPUT_SIZE, out_dim=10)

    d_pad = _round_up(INPUT_SIZE, 128)
    h_pad = _round_up(HIDDEN, 128)      # 1000 -> 1024
    sex_p = prepare_head_params(sex_raw, d_pad, h_pad)
    age_p = prepare_head_params(age_raw, d_pad, h_pad)

    out = classify_forward(x, sex_p, age_p)
    jax.block_until_ready(out)

    assert out["sex"].shape == (B, 2) and out["age"].shape == (B, 10)

    # 1) BN folding is algebraically exact (checked in pure f32).
    for raw in (sex_raw, age_raw):
        assert jnp.allclose(_folded_reference_f32(x, raw), _bn_reference(x, raw),
                            rtol=1e-3, atol=1e-3)

    # 2) Kernel matches a pure-JAX reference of the same folded bf16 math.
    xp = jnp.pad(x, ((0, 0), (0, d_pad - INPUT_SIZE)))
    assert jnp.allclose(out["sex"], _prepared_reference(xp, sex_p), rtol=2e-3, atol=2e-3)
    assert jnp.allclose(out["age"], _prepared_reference(xp, age_p), rtol=2e-3, atol=2e-3)

    print("KERNEL_OK")
</pallas_src>

<mosaic_0001>
module attributes {stable_mosaic.version = 11 : i64} {
  func.func @_classify_kernel(%arg0: i32, %arg1: memref<8x256xf32, #tpu.memory_space<vmem>>, %arg2: memref<256x1024xbf16, #tpu.memory_space<vmem>>, %arg3: memref<1x1024xf32, #tpu.memory_space<vmem>>, %arg4: memref<1024x1024xbf16, #tpu.memory_space<vmem>>, %arg5: memref<1x1024xf32, #tpu.memory_space<vmem>>, %arg6: memref<1024x2xbf16, #tpu.memory_space<vmem>>, %arg7: memref<1x2xf32, #tpu.memory_space<vmem>>, %arg8: memref<256x1024xbf16, #tpu.memory_space<vmem>>, %arg9: memref<1x1024xf32, #tpu.memory_space<vmem>>, %arg10: memref<1024x1024xbf16, #tpu.memory_space<vmem>>, %arg11: memref<1x1024xf32, #tpu.memory_space<vmem>>, %arg12: memref<1024x10xbf16, #tpu.memory_space<vmem>>, %arg13: memref<1x10xf32, #tpu.memory_space<vmem>>, %arg14: memref<8x2xf32, #tpu.memory_space<vmem>>, %arg15: memref<8x10xf32, #tpu.memory_space<vmem>>) attributes {dimension_semantics = [#tpu.dimension_semantics<parallel>], iteration_bounds = array<i64: 1>, scalar_prefetch = 0 : i64, scratch_operands = 0 : i64, tpu.core_type = #tpu.core_type<tc>, window_params = [{transform_indices = @transform_0, window_bounds = array<i64: 8, 256>}, {pipeline_mode = #tpu.pipeline_mode<synchronous>, transform_indices = @transform_1, window_bounds = array<i64: 256, 1024>}, {pipeline_mode = #tpu.pipeline_mode<synchronous>, transform_indices = @transform_2, window_bounds = array<i64: 1, 1024>}, {pipeline_mode = #tpu.pipeline_mode<synchronous>, transform_indices = @transform_3, window_bounds = array<i64: 1024, 1024>}, {pipeline_mode = #tpu.pipeline_mode<synchronous>, transform_indices = @transform_4, window_bounds = array<i64: 1, 1024>}, {pipeline_mode = #tpu.pipeline_mode<synchronous>, transform_indices = @transform_5, window_bounds = array<i64: 1024, 2>}, {pipeline_mode = #tpu.pipeline_mode<synchronous>, transform_indices = @transform_6, window_bounds = array<i64: 1, 2>}, {pipeline_mode = #tpu.pipeline_mode<synchronous>, transform_indices = @transform_7, window_bounds = array<i64: 256, 1024>}, {pipeline_mode = #tpu.pipeline_mode<synchronous>, transform_indices = @transform_8, window_bounds = array<i64: 1, 1024>}, {pipeline_mode = #tpu.pipeline_mode<synchronous>, transform_indices = @transform_9, window_bounds = array<i64: 1024, 1024>}, {pipeline_mode = #tpu.pipeline_mode<synchronous>, transform_indices = @transform_10, window_bounds = array<i64: 1, 1024>}, {pipeline_mode = #tpu.pipeline_mode<synchronous>, transform_indices = @transform_11, window_bounds = array<i64: 1024, 10>}, {pipeline_mode = #tpu.pipeline_mode<synchronous>, transform_indices = @transform_12, window_bounds = array<i64: 1, 10>}, {transform_indices = @transform_13, window_bounds = array<i64: 8, 2>}, {transform_indices = @transform_14, window_bounds = array<i64: 8, 10>}]} {
    %c0 = arith.constant 0 : index
    %c0_0 = arith.constant 0 : index
    %0 = vector.load %arg1[%c0, %c0_0] : memref<8x256xf32, #tpu.memory_space<vmem>>, vector<8x256xf32>
    %1 = arith.truncf %0 : vector<8x256xf32> to vector<8x256xbf16>
    %c0_1 = arith.constant 0 : index
    %c0_2 = arith.constant 0 : index
    %2 = vector.load %arg2[%c0_1, %c0_2] : memref<256x1024xbf16, #tpu.memory_space<vmem>>, vector<256x1024xbf16>
    %cst = arith.constant dense<0.000000e+00> : vector<8x1024xf32>
    %3 = tpu.matmul %1, %2, %cst {dimension_numbers = #tpu.dot_dimension_numbers<[1], [0], [0], [1], [0, 0, 1, 1], [], []>} : vector<8x256xbf16>, vector<256x1024xbf16>, vector<8x1024xf32> -> vector<8x1024xf32>
    %c0_3 = arith.constant 0 : index
    %c0_4 = arith.constant 0 : index
    %4 = vector.load %arg3[%c0_3, %c0_4] : memref<1x1024xf32, #tpu.memory_space<vmem>>, vector<1x1024xf32>
    %5 = vector.broadcast %4 : vector<1x1024xf32> to vector<8x1024xf32>
    %6 = arith.addf %3, %5 : vector<8x1024xf32>
    %cst_5 = arith.constant 0.000000e+00 : f32
    %7 = vector.broadcast %cst_5 : f32 to vector<8x1024xf32>
    %8 = arith.maximumf %6, %7 : vector<8x1024xf32>
    %9 = arith.truncf %8 : vector<8x1024xf32> to vector<8x1024xbf16>
    %c0_6 = arith.constant 0 : index
    %c0_7 = arith.constant 0 : index
    %10 = vector.load %arg4[%c0_6, %c0_7] : memref<1024x1024xbf16, #tpu.memory_space<vmem>>, vector<1024x1024xbf16>
    %cst_8 = arith.constant dense<0.000000e+00> : vector<8x1024xf32>
    %11 = tpu.matmul %9, %10, %cst_8 {dimension_numbers = #tpu.dot_dimension_numbers<[1], [0], [0], [1], [0, 0, 1, 1], [], []>} : vector<8x1024xbf16>, vector<1024x1024xbf16>, vector<8x1024xf32> -> vector<8x1024xf32>
    %c0_9 = arith.constant 0 : index
    %c0_10 = arith.constant 0 : index
    %12 = vector.load %arg5[%c0_9, %c0_10] : memref<1x1024xf32, #tpu.memory_space<vmem>>, vector<1x1024xf32>
    %13 = vector.broadcast %12 : vector<1x1024xf32> to vector<8x1024xf32>
    %14 = arith.addf %11, %13 : vector<8x1024xf32>
    %cst_11 = arith.constant 0.000000e+00 : f32
    %15 = vector.broadcast %cst_11 : f32 to vector<8x1024xf32>
    %16 = arith.maximumf %14, %15 : vector<8x1024xf32>
    %17 = arith.truncf %16 : vector<8x1024xf32> to vector<8x1024xbf16>
    %c0_12 = arith.constant 0 : index
    %c0_13 = arith.constant 0 : index
    %18 = vector.load %arg6[%c0_12, %c0_13] : memref<1024x2xbf16, #tpu.memory_space<vmem>>, vector<1024x2xbf16>
    %cst_14 = arith.constant dense<0.000000e+00> : vector<8x2xf32>
    %19 = tpu.matmul %17, %18, %cst_14 {dimension_numbers = #tpu.dot_dimension_numbers<[1], [0], [0], [1], [0, 0, 1, 1], [], []>} : vector<8x1024xbf16>, vector<1024x2xbf16>, vector<8x2xf32> -> vector<8x2xf32>
    %c0_15 = arith.constant 0 : index
    %c0_16 = arith.constant 0 : index
    %20 = vector.load %arg7[%c0_15, %c0_16] : memref<1x2xf32, #tpu.memory_space<vmem>>, vector<1x2xf32>
    %21 = vector.broadcast %20 : vector<1x2xf32> to vector<8x2xf32>
    %22 = arith.addf %19, %21 : vector<8x2xf32>
    %c0_17 = arith.constant 0 : index
    %c0_18 = arith.constant 0 : index
    %23 = vector.load %arg14[%c0_17, %c0_18] : memref<8x2xf32, #tpu.memory_space<vmem>>, vector<8x2xf32>
    tpu.vector_store %arg14[%c0_17, %c0_18], %22 {strides = array<i32>} : memref<8x2xf32, #tpu.memory_space<vmem>>, vector<8x2xf32>,
    %c0_19 = arith.constant 0 : index
    %c0_20 = arith.constant 0 : index
    %24 = vector.load %arg8[%c0_19, %c0_20] : memref<256x1024xbf16, #tpu.memory_space<vmem>>, vector<256x1024xbf16>
    %cst_21 = arith.constant dense<0.000000e+00> : vector<8x1024xf32>
    %25 = tpu.matmul %1, %24, %cst_21 {dimension_numbers = #tpu.dot_dimension_numbers<[1], [0], [0], [1], [0, 0, 1, 1], [], []>} : vector<8x256xbf16>, vector<256x1024xbf16>, vector<8x1024xf32> -> vector<8x1024xf32>
    %c0_22 = arith.constant 0 : index
    %c0_23 = arith.constant 0 : index
    %26 = vector.load %arg9[%c0_22, %c0_23] : memref<1x1024xf32, #tpu.memory_space<vmem>>, vector<1x1024xf32>
    %27 = vector.broadcast %26 : vector<1x1024xf32> to vector<8x1024xf32>
    %28 = arith.addf %25, %27 : vector<8x1024xf32>
    %cst_24 = arith.constant 0.000000e+00 : f32
    %29 = vector.broadcast %cst_24 : f32 to vector<8x1024xf32>
    %30 = arith.maximumf %28, %29 : vector<8x1024xf32>
    %31 = arith.truncf %30 : vector<8x1024xf32> to vector<8x1024xbf16>
    %c0_25 = arith.constant 0 : index
    %c0_26 = arith.constant 0 : index
    %32 = vector.load %arg10[%c0_25, %c0_26] : memref<1024x1024xbf16, #tpu.memory_space<vmem>>, vector<1024x1024xbf16>
    %cst_27 = arith.constant dense<0.000000e+00> : vector<8x1024xf32>
    %33 = tpu.matmul %31, %32, %cst_27 {dimension_numbers = #tpu.dot_dimension_numbers<[1], [0], [0], [1], [0, 0, 1, 1], [], []>} : vector<8x1024xbf16>, vector<1024x1024xbf16>, vector<8x1024xf32> -> vector<8x1024xf32>
    %c0_28 = arith.constant 0 : index
    %c0_29 = arith.constant 0 : index
    %34 = vector.load %arg11[%c0_28, %c0_29] : memref<1x1024xf32, #tpu.memory_space<vmem>>, vector<1x1024xf32>
    %35 = vector.broadcast %34 : vector<1x1024xf32> to vector<8x1024xf32>
    %36 = arith.addf %33, %35 : vector<8x1024xf32>
    %cst_30 = arith.constant 0.000000e+00 : f32
    %37 = vector.broadcast %cst_30 : f32 to vector<8x1024xf32>
    %38 = arith.maximumf %36, %37 : vector<8x1024xf32>
    %39 = arith.truncf %38 : vector<8x1024xf32> to vector<8x1024xbf16>
    %c0_31 = arith.constant 0 : index
    %c0_32 = arith.constant 0 : index
    %40 = vector.load %arg12[%c0_31, %c0_32] : memref<1024x10xbf16, #tpu.memory_space<vmem>>, vector<1024x10xbf16>
    %cst_33 = arith.constant dense<0.000000e+00> : vector<8x10xf32>
    %41 = tpu.matmul %39, %40, %cst_33 {dimension_numbers = #tpu.dot_dimension_numbers<[1], [0], [0], [1], [0, 0, 1, 1], [], []>} : vector<8x1024xbf16>, vector<1024x10xbf16>, vector<8x10xf32> -> vector<8x10xf32>
    %c0_34 = arith.constant 0 : index
    %c0_35 = arith.constant 0 : index
    %42 = vector.load %arg13[%c0_34, %c0_35] : memref<1x10xf32, #tpu.memory_space<vmem>>, vector<1x10xf32>
    %43 = vector.broadcast %42 : vector<1x10xf32> to vector<8x10xf32>
    %44 = arith.addf %41, %43 : vector<8x10xf32>
    %c0_36 = arith.constant 0 : index
    %c0_37 = arith.constant 0 : index
    %45 = vector.load %arg15[%c0_36, %c0_37] : memref<8x10xf32, #tpu.memory_space<vmem>>, vector<8x10xf32>
    tpu.vector_store %arg15[%c0_36, %c0_37], %44 {strides = array<i32>} : memref<8x10xf32, #tpu.memory_space<vmem>>, vector<8x10xf32>,
    return
  }
  func.func @transform_0(%arg0: i32) -> (i32, i32) {
    %c0_i32 = arith.constant 0 : i32
    %c0_i32_0 = arith.constant 0 : i32
    return %arg0, %c0_i32 : i32, i32
  }
  func.func @transform_1(%arg0: i32) -> (i32, i32) {
    %c0_i32 = arith.constant 0 : i32
    %c0_i32_0 = arith.constant 0 : i32
    %c0_i32_1 = arith.constant 0 : i32
    return %c0_i32, %c0_i32_0 : i32, i32
  }
  func.func @transform_2(%arg0: i32) -> (i32, i32) {
    %c0_i32 = arith.constant 0 : i32
    %c0_i32_0 = arith.constant 0 : i32
    %c0_i32_1 = arith.constant 0 : i32
    return %c0_i32, %c0_i32_0 : i32, i32
  }
  func.func @transform_3(%arg0: i32) -> (i32, i32) {
    %c0_i32 = arith.constant 0 : i32
    %c0_i32_0 = arith.constant 0 : i32
    %c0_i32_1 = arith.constant 0 : i32
    return %c0_i32, %c0_i32_0 : i32, i32
  }
  func.func @transform_4(%arg0: i32) -> (i32, i32) {
    %c0_i32 = arith.constant 0 : i32
    %c0_i32_0 = arith.constant 0 : i32
    %c0_i32_1 = arith.constant 0 : i32
    return %c0_i32, %c0_i32_0 : i32, i32
  }
  func.func @transform_5(%arg0: i32) -> (i32, i32) {
    %c0_i32 = arith.constant 0 : i32
    %c0_i32_0 = arith.constant 0 : i32
    %c0_i32_1 = arith.constant 0 : i32
    return %c0_i32, %c0_i32_0 : i32, i32
  }
  func.func @transform_6(%arg0: i32) -> (i32, i32) {
    %c0_i32 = arith.constant 0 : i32
    %c0_i32_0 = arith.constant 0 : i32
    %c0_i32_1 = arith.constant 0 : i32
    return %c0_i32, %c0_i32_0 : i32, i32
  }
  func.func @transform_7(%arg0: i32) -> (i32, i32) {
    %c0_i32 = arith.constant 0 : i32
    %c0_i32_0 = arith.constant 0 : i32
    %c0_i32_1 = arith.constant 0 : i32
    return %c0_i32, %c0_i32_0 : i32, i32
  }
  func.func @transform_8(%arg0: i32) -> (i32, i32) {
    %c0_i32 = arith.constant 0 : i32
    %c0_i32_0 = arith.constant 0 : i32
    %c0_i32_1 = arith.constant 0 : i32
    return %c0_i32, %c0_i32_0 : i32, i32
  }
  func.func @transform_9(%arg0: i32) -> (i32, i32) {
    %c0_i32 = arith.constant 0 : i32
    %c0_i32_0 = arith.constant 0 : i32
    %c0_i32_1 = arith.constant 0 : i32
    return %c0_i32, %c0_i32_0 : i32, i32
  }
  func.func @transform_10(%arg0: i32) -> (i32, i32) {
    %c0_i32 = arith.constant 0 : i32
    %c0_i32_0 = arith.constant 0 : i32
    %c0_i32_1 = arith.constant 0 : i32
    return %c0_i32, %c0_i32_0 : i32, i32
  }
  func.func @transform_11(%arg0: i32) -> (i32, i32) {
    %c0_i32 = arith.constant 0 : i32
    %c0_i32_0 = arith.constant 0 : i32
    %c0_i32_1 = arith.constant 0 : i32
    return %c0_i32, %c0_i32_0 : i32, i32
  }
  func.func @transform_12(%arg0: i32) -> (i32, i32) {
    %c0_i32 = arith.constant 0 : i32
    %c0_i32_0 = arith.constant 0 : i32
    %c0_i32_1 = arith.constant 0 : i32
    return %c0_i32, %c0_i32_0 : i32, i32
  }
  func.func @transform_13(%arg0: i32) -> (i32, i32) {
    %c0_i32 = arith.constant 0 : i32
    %c0_i32_0 = arith.constant 0 : i32
    return %arg0, %c0_i32 : i32, i32
  }
  func.func @transform_14(%arg0: i32) -> (i32, i32) {
    %c0_i32 = arith.constant 0 : i32
    %c0_i32_0 = arith.constant 0 : i32
    return %arg0, %c0_i32 : i32, i32
  }
}

</mosaic_0001>

<llo_original>
// kernel: tpu_custom_call.1
$region0: #{tpu_custom_call.1}
  #allocation0 [shape = 'u32[]', space=smem, size = 0x4, offset = 0x4, fixed_abs, tag = 'smem constant byte address 0x4 - core index']
  #allocation1 [shape = 'u32[72,128]{1,0:T(1,128)}', space=vmem, size = 0x9000, scoped, tag = 'internal scratch']
  %s0 = inlined_call_operand.hbm [shape: f32[8,256], index: 0, kind: input, shape index: {}]
  %s1 = inlined_call_operand.hbm [shape: bf16[256,1024], index: 1, kind: input, shape index: {}]
  %s2 = inlined_call_operand.hbm [shape: f32[1,1024], index: 2, kind: input, shape index: {}]
  %s3 = inlined_call_operand.hbm [shape: bf16[1024,1024], index: 3, kind: input, shape index: {}]
  %s4 = inlined_call_operand.hbm [shape: f32[1,1024], index: 4, kind: input, shape index: {}]
  %s5 = inlined_call_operand.vmem [shape: bf16[1024,2], index: 5, kind: input, shape index: {}]
  %s6 = inlined_call_operand.hbm [shape: f32[1,2], index: 6, kind: input, shape index: {}]
  %s7 = inlined_call_operand.hbm [shape: bf16[256,1024], index: 7, kind: input, shape index: {}]
  %s8 = inlined_call_operand.hbm [shape: f32[1,1024], index: 8, kind: input, shape index: {}]
  %s9 = inlined_call_operand.hbm [shape: bf16[1024,1024], index: 9, kind: input, shape index: {}]
  %s10 = inlined_call_operand.hbm [shape: f32[1,1024], index: 10, kind: input, shape index: {}]
  %s11 = inlined_call_operand.vmem [shape: bf16[1024,10], index: 11, kind: input, shape index: {}]
  %s12 = inlined_call_operand.hbm [shape: f32[1,10], index: 12, kind: input, shape index: {}]
  %s13 = inlined_call_operand.vmem [shape: f32[8,2], index: 13, kind: output, shape index: {0}]
  %s14 = inlined_call_operand.hbm [shape: f32[8,10], index: 14, kind: output, shape index: {1}]
  %15 = xla_tuple %s13, %s14
  %s16 = sld [smem:[#allocation0]]
  $region114: #{tpu_custom_call.1} parent=0
    _
  %s18 = ssub.s32 1, %s16
  %s19 = scalar_select 0, %s18, %s16
  $region1: #{tpu_custom_call.1} parent=0
    #allocation2 [shape = 'u8[8192]{0}', space=vmem, size = 0x2000, scoped, tag = 'input window, operand 0, single buffered']
    #allocation3 [shape = 's32[1]{0}', space=sflag, size = 0x4, scoped, tag = 'scoped memory for tpu_custom_call.1']
    #allocation4 [shape = 's32[1]{0}', space=sflag, size = 0x4, scoped, tag = 'scoped memory for tpu_custom_call.1']
    #allocation5 [shape = 'u8[524288]{0}', space=vmem, size = 0x80000, scoped, tag = 'input window, operand 1, single buffered']
    #allocation6 [shape = 's32[1]{0}', space=sflag, size = 0x4, scoped, tag = 'scoped memory for tpu_custom_call.1']
    #allocation7 [shape = 'u8[4096]{0}', space=vmem, size = 0x1000, scoped, tag = 'input window, operand 2, single buffered']
    #allocation8 [shape = 'u8[2097152]{0}', space=vmem, size = 0x200000, scoped, tag = 'input window, operand 3, single buffered']
    #allocation9 [shape = 's32[1]{0}', space=sflag, size = 0x4, scoped, tag = 'scoped memory for tpu_custom_call.1']
    #allocation10 [shape = 'u8[4096]{0}', space=vmem, size = 0x1000, scoped, tag = 'input window, operand 4, single buffered']
    #allocation11 [shape = 'u8[512]{0}', space=vmem, size = 0x400, scoped, tag = 'input window, operand 6, single buffered']
    #allocation12 [shape = 's32[1]{0}', space=sflag, size = 0x4, scoped, tag = 'scoped memory for tpu_custom_call.1']
    #allocation13 [shape = 'u8[524288]{0}', space=vmem, size = 0x80000, scoped, tag = 'input window, operand 7, single buffered']
    #allocation14 [shape = 'u8[4096]{0}', space=vmem, size = 0x1000, scoped, tag = 'input window, operand 8, single buffered']
    #allocation15 [shape = 's32[1]{0}', space=sflag, size = 0x4, scoped, tag = 'scoped memory for tpu_custom_call.1']
    #allocation16 [shape = 'u8[2097152]{0}', space=vmem, size = 0x200000, scoped, tag = 'input window, operand 9, single buffered']
    #allocation17 [shape = 'u8[4096]{0}', space=vmem, size = 0x1000, scoped, tag = 'input window, operand 10, single buffered']
    #allocation18 [shape = 's32[1]{0}', space=sflag, size = 0x4, scoped, tag = 'scoped memory for tpu_custom_call.1']
    #allocation19 [shape = 'u8[512]{0}', space=vmem, size = 0x400, scoped, tag = 'input window, operand 12, single buffered']
    #allocation20 [shape = 'u8[4096]{0}', space=vmem, size = 0x1000, scoped, tag = 'output window, operand 1, single buffered']
    %20 = vsyncpa [#allocation3], 0
    %21 = vsyncpa [#allocation6], 0
    %22 = vsyncpa [#allocation9], 0
    %23 = vsyncpa [#allocation12], 0
    %24 = vsyncpa [#allocation15], 0
    %25 = vsyncpa [#allocation18], 0
    %26 = vsyncpa [#allocation4], 0
    // Predicated region
    $region2: #{tpu_custom_call.1} parent=1 // pred_check
      _
    $region3: #{tpu_custom_call.1} parent=1 // pred_check_branch
      %28 = sbr.rel (0) target = $region5
    $region4: #{tpu_custom_call.1} parent=1 // pred_region
      %30 = vsyncadd [#allocation3], 0
      %s32 = sshll.u32 %s0, 4
      %s33 = int_to_ptr.hbm [resolvable:$true] %s32
      %s34 = sshll.u32 [#allocation2], 4
      %s35 = int_to_ptr.vmem [resolvable:$true] %s34
      %37 = dma.hbm_to_vmem [thread:$0]  %s33, 256, %s35, [#allocation3]
    $region5: #{tpu_custom_call.1} parent=1 // pred_fallthru
      _
    // Predicated region
    $region6: #{tpu_custom_call.1} parent=1 // pred_check
      _
    $region7: #{tpu_custom_call.1} parent=1 // pred_check_branch
      %39 = sbr.rel (0) target = $region9
    $region8: #{tpu_custom_call.1} parent=1 // pred_region
      %41 = vsyncadd [#allocation6], 0
      %s42 = sshll.u32 %s1, 4
      %s43 = int_to_ptr.hbm [resolvable:$true] %s42
      %s44 = sshll.u32 [#allocation5], 4
      %s45 = int_to_ptr.vmem [resolvable:$true] %s44
      %50 = dma.hbm_to_vmem [thread:$0]  %s43, 16384, %s45, [#allocation6], 512, 512, 32
    $region9: #{tpu_custom_call.1} parent=1 // pred_fallthru
      _
    // Predicated region
    $region10: #{tpu_custom_call.1} parent=1 // pred_check
      _
    $region11: #{tpu_custom_call.1} parent=1 // pred_check_branch
      %52 = sbr.rel (0) target = $region13
    $region12: #{tpu_custom_call.1} parent=1 // pred_region
      %54 = vsyncadd [#allocation6], 0
      %s56 = sshll.u32 %s2, 4
      %s57 = int_to_ptr.hbm [resolvable:$true] %s56
      %s58 = sshll.u32 [#allocation7], 4
      %s59 = int_to_ptr.vmem [resolvable:$true] %s58
      %61 = dma.hbm_to_vmem [thread:$0]  %s57, 128, %s59, [#allocation6]
    $region13: #{tpu_custom_call.1} parent=1 // pred_fallthru
      _
    // Predicated region
    $region14: #{tpu_custom_call.1} parent=1 // pred_check
      _
    $region15: #{tpu_custom_call.1} parent=1 // pred_check_branch
      %63 = sbr.rel (0) target = $region17
    $region16: #{tpu_custom_call.1} parent=1 // pred_region
      %65 = vsyncadd [#allocation9], 0
      %s66 = sshll.u32 %s3, 4
      %s67 = int_to_ptr.hbm [resolvable:$true] %s66
      %s68 = sshll.u32 [#allocation8], 4
      %s69 = int_to_ptr.vmem [resolvable:$true] %s68
      %74 = dma.hbm_to_vmem [thread:$0]  %s67, 65536, %s69, [#allocation9], 512, 512, 32
    $region17: #{tpu_custom_call.1} parent=1 // pred_fallthru
      _
    // Predicated region
    $region18: #{tpu_custom_call.1} parent=1 // pred_check
      _
    $region19: #{tpu_custom_call.1} parent=1 // pred_check_branch
      %76 = sbr.rel (0) target = $region21
    $region20: #{tpu_custom_call.1} parent=1 // pred_region
      %78 = vsyncadd [#allocation9], 0
      %s80 = sshll.u32 %s4, 4
      %s81 = int_to_ptr.hbm [resolvable:$true] %s80
      %s82 = sshll.u32 [#allocation10], 4
      %s83 = int_to_ptr.vmem [resolvable:$true] %s82
      %85 = dma.hbm_to_vmem [thread:$0]  %s81, 128, %s83, [#allocation9]
    $region21: #{tpu_custom_call.1} parent=1 // pred_fallthru
      _
    // Predicated region
    $region22: #{tpu_custom_call.1} parent=1 // pred_check
      _
    $region23: #{tpu_custom_call.1} parent=1 // pred_check_branch
      %87 = sbr.rel (0) target = $region25
    $region24: #{tpu_custom_call.1} parent=1 // pred_region
      _
    $region25: #{tpu_custom_call.1} parent=1 // pred_fallthru
      _
    // Predicated region
    $region26: #{tpu_custom_call.1} parent=1 // pred_check
      _
    $region27: #{tpu_custom_call.1} parent=1 // pred_check_branch
      %89 = sbr.rel (0) target = $region29
    $region28: #{tpu_custom_call.1} parent=1 // pred_region
      %91 = vsyncadd [#allocation12], 0
      %s93 = sshll.u32 %s6, 4
      %s94 = int_to_ptr.hbm [resolvable:$true] %s93
      %s95 = sshll.u32 [#allocation11], 4
      %s96 = int_to_ptr.vmem [resolvable:$true] %s95
      %98 = dma.hbm_to_vmem [thread:$0]  %s94, 16, %s96, [#allocation12]
    $region29: #{tpu_custom_call.1} parent=1 // pred_fallthru
      _
    // Predicated region
    $region30: #{tpu_custom_call.1} parent=1 // pred_check
      _
    $region31: #{tpu_custom_call.1} parent=1 // pred_check_branch
      %100 = sbr.rel (0) target = $region33
    $region32: #{tpu_custom_call.1} parent=1 // pred_region
      %102 = vsyncadd [#allocation12], 0
      %s103 = sshll.u32 %s7, 4
      %s104 = int_to_ptr.hbm [resolvable:$true] %s103
      %s105 = sshll.u32 [#allocation13], 4
      %s106 = int_to_ptr.vmem [resolvable:$true] %s105
      %111 = dma.hbm_to_vmem [thread:$0]  %s104, 16384, %s106, [#allocation12], 512, 512, 32
    $region33: #{tpu_custom_call.1} parent=1 // pred_fallthru
      _
    // Predicated region
    $region34: #{tpu_custom_call.1} parent=1 // pred_check
      _
    $region35: #{tpu_custom_call.1} parent=1 // pred_check_branch
      %113 = sbr.rel (0) target = $region37
    $region36: #{tpu_custom_call.1} parent=1 // pred_region
      %115 = vsyncadd [#allocation15], 0
      %s117 = sshll.u32 %s8, 4
      %s118 = int_to_ptr.hbm [resolvable:$true] %s117
      %s119 = sshll.u32 [#allocation14], 4
      %s120 = int_to_ptr.vmem [resolvable:$true] %s119
      %122 = dma.hbm_to_vmem [thread:$0]  %s118, 128, %s120, [#allocation15]
    $region37: #{tpu_custom_call.1} parent=1 // pred_fallthru
      _
    // Predicated region
    $region38: #{tpu_custom_call.1} parent=1 // pred_check
      _
    $region39: #{tpu_custom_call.1} parent=1 // pred_check_branch
      %124 = sbr.rel (0) target = $region41
    $region40: #{tpu_custom_call.1} parent=1 // pred_region
      %126 = vsyncadd [#allocation15], 0
      %s127 = sshll.u32 %s9, 4
      %s128 = int_to_ptr.hbm [resolvable:$true] %s127
      %s129 = sshll.u32 [#allocation16], 4
      %s130 = int_to_ptr.vmem [resolvable:$true] %s129
      %135 = dma.hbm_to_vmem [thread:$0]  %s128, 65536, %s130, [#allocation15], 512, 512, 32
    $region41: #{tpu_custom_call.1} parent=1 // pred_fallthru
      _
    // Predicated region
    $region42: #{tpu_custom_call.1} parent=1 // pred_check
      _
    $region43: #{tpu_custom_call.1} parent=1 // pred_check_branch
      %137 = sbr.rel (0) target = $region45
    $region44: #{tpu_custom_call.1} parent=1 // pred_region
      %139 = vsyncadd [#allocation18], 0
      %s141 = sshll.u32 %s10, 4
      %s142 = int_to_ptr.hbm [resolvable:$true] %s141
      %s143 = sshll.u32 [#allocation17], 4
      %s144 = int_to_ptr.vmem [resolvable:$true] %s143
      %146 = dma.hbm_to_vmem [thread:$0]  %s142, 128, %s144, [#allocation18]
    $region45: #{tpu_custom_call.1} parent=1 // pred_fallthru
      _
    // Predicated region
    $region46: #{tpu_custom_call.1} parent=1 // pred_check
      _
    $region47: #{tpu_custom_call.1} parent=1 // pred_check_branch
      %148 = sbr.rel (0) target = $region49
    $region48: #{tpu_custom_call.1} parent=1 // pred_region
      _
    $region49: #{tpu_custom_call.1} parent=1 // pred_fallthru
      _
    // Predicated region
    $region50: #{tpu_custom_call.1} parent=1 // pred_check
      _
    $region51: #{tpu_custom_call.1} parent=1 // pred_check_branch
      %150 = sbr.rel (0) target = $region53
    $region52: #{tpu_custom_call.1} parent=1 // pred_region
      %152 = vsyncadd [#allocation18], 0
      %s154 = sshll.u32 %s12, 4
      %s155 = int_to_ptr.hbm [resolvable:$true] %s154
      %s156 = sshll.u32 [#allocation19], 4
      %s157 = int_to_ptr.vmem [resolvable:$true] %s156
      %159 = dma.hbm_to_vmem [thread:$0]  %s155, 16, %s157, [#allocation18]
    $region53: #{tpu_custom_call.1} parent=1 // pred_fallthru
      _
    // Predicated region
    $region54: #{tpu_custom_call.1} parent=1 // pred_check
      _
    $region55: #{tpu_custom_call.1} parent=1 // pred_check_branch
      %161 = sbr.rel (0) target = $region57
    $region56: #{tpu_custom_call.1} parent=1 // pred_region
      %163 = dma.done [#allocation3], 256
    $region57: #{tpu_custom_call.1} parent=1 // pred_fallthru
      _
    // Predicated region
    $region58: #{tpu_custom_call.1} parent=1 // pred_check
      _
    $region59: #{tpu_custom_call.1} parent=1 // pred_check_branch
      %165 = sbr.rel (0) target = $region61
    $region60: #{tpu_custom_call.1} parent=1 // pred_region
      %167 = dma.done [#allocation6], 16384
    $region61: #{tpu_custom_call.1} parent=1 // pred_fallthru
      _
    // Predicated region
    $region62: #{tpu_custom_call.1} parent=1 // pred_check
      _
    $region63: #{tpu_custom_call.1} parent=1 // pred_check_branch
      %169 = sbr.rel (0) target = $region65
    $region64: #{tpu_custom_call.1} parent=1 // pred_region
      %171 = dma.done [#allocation6], 128
    $region65: #{tpu_custom_call.1} parent=1 // pred_fallthru
      _
    // Predicated region
    $region66: #{tpu_custom_call.1} parent=1 // pred_check
      _
    $region67: #{tpu_custom_call.1} parent=1 // pred_check_branch
      %173 = sbr.rel (0) target = $region69
    $region68: #{tpu_custom_call.1} parent=1 // pred_region
      %175 = dma.done [#allocation9], 65536
    $region69: #{tpu_custom_call.1} parent=1 // pred_fallthru
      _
    // Predicated region
    $region70: #{tpu_custom_call.1} parent=1 // pred_check
      _
    $region71: #{tpu_custom_call.1} parent=1 // pred_check_branch
      %177 = sbr.rel (0) target = $region73
    $region72: #{tpu_custom_call.1} parent=1 // pred_region
      %179 = dma.done [#allocation9], 128
    $region73: #{tpu_custom_call.1} parent=1 // pred_fallthru
      _
    // Predicated region
    $region74: #{tpu_custom_call.1} parent=1 // pred_check
      _
    $region75: #{tpu_custom_call.1} parent=1 // pred_check_branch
      %181 = sbr.rel (0) target = $region77
    $region76: #{tpu_custom_call.1} parent=1 // pred_region
      %183 = dma.done [#allocation12], 16
    $region77: #{tpu_custom_call.1} parent=1 // pred_fallthru
      _
    // Predicated region
    $region78: #{tpu_custom_call.1} parent=1 // pred_check
      _
    $region79: #{tpu_custom_call.1} parent=1 // pred_check_branch
      %185 = sbr.rel (0) target = $region81
    $region80: #{tpu_custom_call.1} parent=1 // pred_region
      %187 = dma.done [#allocation12], 16384
    $region81: #{tpu_custom_call.1} parent=1 // pred_fallthru
      _
    // Predicated region
    $region82: #{tpu_custom_call.1} parent=1 // pred_check
      _
    $region83: #{tpu_custom_call.1} parent=1 // pred_check_branch
      %189 = sbr.rel (0) target = $region85
    $region84: #{tpu_custom_call.1} parent=1 // pred_region
      %191 = dma.done [#allocation15], 128
    $region85: #{tpu_custom_call.1} parent=1 // pred_fallthru
      _
    // Predicated region
    $region86: #{tpu_custom_call.1} parent=1 // pred_check
      _
    $region87: #{tpu_custom_call.1} parent=1 // pred_check_branch
      %193 = sbr.rel (0) target = $region89
    $region88: #{tpu_custom_call.1} parent=1 // pred_region
      %195 = dma.done [#allocation15], 65536
    $region89: #{tpu_custom_call.1} parent=1 // pred_fallthru
      _
    // Predicated region
    $region90: #{tpu_custom_call.1} parent=1 // pred_check
      _
    $region91: #{tpu_custom_call.1} parent=1 // pred_check_branch
      %197 = sbr.rel (0) target = $region93
    $region92: #{tpu_custom_call.1} parent=1 // pred_region
      %199 = dma.done [#allocation18], 128
    $region93: #{tpu_custom_call.1} parent=1 // pred_fallthru
      _
    // Predicated region
    $region94: #{tpu_custom_call.1} parent=1 // pred_check
      _
    $region95: #{tpu_custom_call.1} parent=1 // pred_check_branch
      %201 = sbr.rel (0) target = $region97
    $region96: #{tpu_custom_call.1} parent=1 // pred_region
      %203 = dma.done [#allocation18], 16
    $region97: #{tpu_custom_call.1} parent=1 // pred_fallthru
      _
    %v204 = vld [vmem:[#allocation2] sm:$0xff]
    %v205 = vld [vmem:[#allocation2 + $0x8] sm:$0xff]
    %v206 = vpack.c.bf16 %v204, %v204
    %v207 = vpack.c.bf16 %v205, %v205
    %v208 = vld [vmem:[#allocation5] sm:$0xff]
    %v209 = vld [vmem:[#allocation5 + $0x8] sm:$0xff]
    %v210 = vld [vmem:[#allocation5 + $0x10] sm:$0xff]
    %v211 = vld [vmem:[#allocation5 + $0x18] sm:$0xff]
    %v212 = vld [vmem:[#allocation5 + $0x20] sm:$0xff]
    %v213 = vld [vmem:[#allocation5 + $0x28] sm:$0xff]
    %v214 = vld [vmem:[#allocation5 + $0x30] sm:$0xff]
    %v215 = vld [vmem:[#allocation5 + $0x38] sm:$0xff]
    %v216 = vld [vmem:[#allocation5 + $0x40] sm:$0xff]
    %v217 = vld [vmem:[#allocation5 + $0x48] sm:$0xff]
    %v218 = vld [vmem:[#allocation5 + $0x50] sm:$0xff]
    %v219 = vld [vmem:[#allocation5 + $0x58] sm:$0xff]
    %v220 = vld [vmem:[#allocation5 + $0x60] sm:$0xff]
    %v221 = vld [vmem:[#allocation5 + $0x68] sm:$0xff]
    %v222 = vld [vmem:[#allocation5 + $0x70] sm:$0xff]
    %v223 = vld [vmem:[#allocation5 + $0x78] sm:$0xff]
    %v224 = vld [vmem:[#allocation5 + $0x80] sm:$0xff]
    %v225 = vld [vmem:[#allocation5 + $0x88] sm:$0xff]
    %v226 = vld [vmem:[#allocation5 + $0x90] sm:$0xff]
    %v227 = vld [vmem:[#allocation5 + $0x98] sm:$0xff]
    %v228 = vld [vmem:[#allocation5 + $0xa0] sm:$0xff]
    %v229 = vld [vmem:[#allocation5 + $0xa8] sm:$0xff]
    %v230 = vld [vmem:[#allocation5 + $0xb0] sm:$0xff]
    %v231 = vld [vmem:[#allocation5 + $0xb8] sm:$0xff]
    %v232 = vld [vmem:[#allocation5 + $0xc0] sm:$0xff]
    %v233 = vld [vmem:[#allocation5 + $0xc8] sm:$0xff]
    %v234 = vld [vmem:[#allocation5 + $0xd0] sm:$0xff]
    %v235 = vld [vmem:[#allocation5 + $0xd8] sm:$0xff]
    %v236 = vld [vmem:[#allocation5 + $0xe0] sm:$0xff]
    %v237 = vld [vmem:[#allocation5 + $0xe8] sm:$0xff]
    %v238 = vld [vmem:[#allocation5 + $0xf0] sm:$0xff]
    %v239 = vld [vmem:[#allocation5 + $0xf8] sm:$0xff]
    %v240 = vld [vmem:[#allocation5 + $0x100] sm:$0xff]
    %v241 = vld [vmem:[#allocation5 + $0x108] sm:$0xff]
    %v242 = vld [vmem:[#allocation5 + $0x110] sm:$0xff]
    %v243 = vld [vmem:[#allocation5 + $0x118] sm:$0xff]
    %v244 = vld [vmem:[#allocation5 + $0x120] sm:$0xff]
    %v245 = vld [vmem:[#allocation5 + $0x128] sm:$0xff]
    %v246 = vld [vmem:[#allocation5 + $0x130] sm:$0xff]
    %v247 = vld [vmem:[#allocation5 + $0x138] sm:$0xff]
    %v248 = vld [vmem:[#allocation5 + $0x140] sm:$0xff]
    %v249 = vld [vmem:[#allocation5 + $0x148] sm:$0xff]
    %v250 = vld [vmem:[#allocation5 + $0x150] sm:$0xff]
    %v251 = vld [vmem:[#allocation5 + $0x158] sm:$0xff]
    %v252 = vld [vmem:[#allocation5 + $0x160] sm:$0xff]
    %v253 = vld [vmem:[#allocation5 + $0x168] sm:$0xff]
    %v254 = vld [vmem:[#allocation5 + $0x170] sm:$0xff]
    %v255 = vld [vmem:[#allocation5 + $0x178] sm:$0xff]
    %v256 = vld [vmem:[#allocation5 + $0x180] sm:$0xff]
    %v257 = vld [vmem:[#allocation5 + $0x188] sm:$0xff]
    %v258 = vld [vmem:[#allocation5 + $0x190] sm:$0xff]
    %v259 = vld [vmem:[#allocation5 + $0x198] sm:$0xff]
    %v260 = vld [vmem:[#allocation5 + $0x1a0] sm:$0xff]
    %v261 = vld [vmem:[#allocation5 + $0x1a8] sm:$0xff]
    %v262 = vld [vmem:[#allocation5 + $0x1b0] sm:$0xff]
    %v263 = vld [vmem:[#allocation5 + $0x1b8] sm:$0xff]
    %v264 = vld [vmem:[#allocation5 + $0x1c0] sm:$0xff]
    %v265 = vld [vmem:[#allocation5 + $0x1c8] sm:$0xff]
    %v266 = vld [vmem:[#allocation5 + $0x1d0] sm:$0xff]
    %v267 = vld [vmem:[#allocation5 + $0x1d8] sm:$0xff]
    %v268 = vld [vmem:[#allocation5 + $0x1e0] sm:$0xff]
    %v269 = vld [vmem:[#allocation5 + $0x1e8] sm:$0xff]
    %v270 = vld [vmem:[#allocation5 + $0x1f0] sm:$0xff]
    %v271 = vld [vmem:[#allocation5 + $0x1f8] sm:$0xff]
    %v272 = vld [vmem:[#allocation5 + $0x200] sm:$0xff]
    %v273 = vld [vmem:[#allocation5 + $0x208] sm:$0xff]
    %v274 = vld [vmem:[#allocation5 + $0x210] sm:$0xff]
    %v275 = vld [vmem:[#allocation5 + $0x218] sm:$0xff]
    %v276 = vld [vmem:[#allocation5 + $0x220] sm:$0xff]
    %v277 = vld [vmem:[#allocation5 + $0x228] sm:$0xff]
    %v278 = vld [vmem:[#allocation5 + $0x230] sm:$0xff]
    %v279 = vld [vmem:[#allocation5 + $0x238] sm:$0xff]
    %v280 = vld [vmem:[#allocation5 + $0x240] sm:$0xff]
    %v281 = vld [vmem:[#allocation5 + $0x248] sm:$0xff]
    %v282 = vld [vmem:[#allocation5 + $0x250] sm:$0xff]
    %v283 = vld [vmem:[#allocation5 + $0x258] sm:$0xff]
    %v284 = vld [vmem:[#allocation5 + $0x260] sm:$0xff]
    %v285 = vld [vmem:[#allocation5 + $0x268] sm:$0xff]
    %v286 = vld [vmem:[#allocation5 + $0x270] sm:$0xff]
    %v287 = vld [vmem:[#allocation5 + $0x278] sm:$0xff]
    %v288 = vld [vmem:[#allocation5 + $0x280] sm:$0xff]
    %v289 = vld [vmem:[#allocation5 + $0x288] sm:$0xff]
    %v290 = vld [vmem:[#allocation5 + $0x290] sm:$0xff]
    %v291 = vld [vmem:[#allocation5 + $0x298] sm:$0xff]
    %v292 = vld [vmem:[#allocation5 + $0x2a0] sm:$0xff]
    %v293 = vld [vmem:[#allocation5 + $0x2a8] sm:$0xff]
    %v294 = vld [vmem:[#allocation5 + $0x2b0] sm:$0xff]
    %v295 = vld [vmem:[#allocation5 + $0x2b8] sm:$0xff]
    %v296 = vld [vmem:[#allocation5 + $0x2c0] sm:$0xff]
    %v297 = vld [vmem:[#allocation5 + $0x2c8] sm:$0xff]
    %v298 = vld [vmem:[#allocation5 + $0x2d0] sm:$0xff]
    %v299 = vld [vmem:[#allocation5 + $0x2d8] sm:$0xff]
    %v300 = vld [vmem:[#allocation5 + $0x2e0] sm:$0xff]
    %v301 = vld [vmem:[#allocation5 + $0x2e8] sm:$0xff]
    %v302 = vld [vmem:[#allocation5 + $0x2f0] sm:$0xff]
    %v303 = vld [vmem:[#allocation5 + $0x2f8] sm:$0xff]
    %v304 = vld [vmem:[#allocation5 + $0x300] sm:$0xff]
    %v305 = vld [vmem:[#allocation5 + $0x308] sm:$0xff]
    %v306 = vld [vmem:[#allocation5 + $0x310] sm:$0xff]
    %v307 = vld [vmem:[#allocation5 + $0x318] sm:$0xff]
    %v308 = vld [vmem:[#allocation5 + $0x320] sm:$0xff]
    %v309 = vld [vmem:[#allocation5 + $0x328] sm:$0xff]
    %v310 = vld [vmem:[#allocation5 + $0x330] sm:$0xff]
    %v311 = vld [vmem:[#allocation5 + $0x338] sm:$0xff]
    %v312 = vld [vmem:[#allocation5 + $0x340] sm:$0xff]
    %v313 = vld [vmem:[#allocation5 + $0x348] sm:$0xff]
    %v314 = vld [vmem:[#allocation5 + $0x350] sm:$0xff]
    %v315 = vld [vmem:[#allocation5 + $0x358] sm:$0xff]
    %v316 = vld [vmem:[#allocation5 + $0x360] sm:$0xff]
    %v317 = vld [vmem:[#allocation5 + $0x368] sm:$0xff]
    %v318 = vld [vmem:[#allocation5 + $0x370] sm:$0xff]
    %v319 = vld [vmem:[#allocation5 + $0x378] sm:$0xff]
    %v320 = vld [vmem:[#allocation5 + $0x380] sm:$0xff]
    %v321 = vld [vmem:[#allocation5 + $0x388] sm:$0xff]
    %v322 = vld [vmem:[#allocation5 + $0x390] sm:$0xff]
    %v323 = vld [vmem:[#allocation5 + $0x398] sm:$0xff]
    %v324 = vld [vmem:[#allocation5 + $0x3a0] sm:$0xff]
    %v325 = vld [vmem:[#allocation5 + $0x3a8] sm:$0xff]
    %v326 = vld [vmem:[#allocation5 + $0x3b0] sm:$0xff]
    %v327 = vld [vmem:[#allocation5 + $0x3b8] sm:$0xff]
    %v328 = vld [vmem:[#allocation5 + $0x3c0] sm:$0xff]
    %v329 = vld [vmem:[#allocation5 + $0x3c8] sm:$0xff]
    %v330 = vld [vmem:[#allocation5 + $0x3d0] sm:$0xff]
    %v331 = vld [vmem:[#allocation5 + $0x3d8] sm:$0xff]
    %v332 = vld [vmem:[#allocation5 + $0x3e0] sm:$0xff]
    %v333 = vld [vmem:[#allocation5 + $0x3e8] sm:$0xff]
    %v334 = vld [vmem:[#allocation5 + $0x3f0] sm:$0xff]
    %v335 = vld [vmem:[#allocation5 + $0x3f8] sm:$0xff]
    %v336 = vld [vmem:[#allocation7] sm:$0xff]
    %v338 = vperm.slane %v336, 0
    %v339 = vperm.slane %v336, 1
    %v340 = vperm.slane %v336, 2
    %v341 = vperm.slane %v336, 3
    %v342 = vperm.slane %v336, 4
    %v343 = vperm.slane %v336, 5
    %v344 = vperm.slane %v336, 6
    %v345 = vperm.slane %v336, 7
    %v482 = vunpack.c.l.b16 %v208
    %v483 = vunpack.c.h.b16 %v208
    %v484 = vunpack.c.l.b16 %v209
    %v485 = vunpack.c.h.b16 %v209
    %v486 = vunpack.c.l.b16 %v210
    %v487 = vunpack.c.h.b16 %v210
    %v488 = vunpack.c.l.b16 %v211
    %v489 = vunpack.c.h.b16 %v211
    %v490 = vunpack.c.l.b16 %v212
    %v491 = vunpack.c.h.b16 %v212
    %v492 = vunpack.c.l.b16 %v213
    %v493 = vunpack.c.h.b16 %v213
    %v494 = vunpack.c.l.b16 %v214
    %v495 = vunpack.c.h.b16 %v214
    %v496 = vunpack.c.l.b16 %v215
    %v497 = vunpack.c.h.b16 %v215
    %v498 = vunpack.c.l.b16 %v216
    %v499 = vunpack.c.h.b16 %v216
    %v500 = vunpack.c.l.b16 %v217
    %v501 = vunpack.c.h.b16 %v217
    %v502 = vunpack.c.l.b16 %v218
    %v503 = vunpack.c.h.b16 %v218
    %v504 = vunpack.c.l.b16 %v219
    %v505 = vunpack.c.h.b16 %v219
    %v506 = vunpack.c.l.b16 %v220
    %v507 = vunpack.c.h.b16 %v220
    %v508 = vunpack.c.l.b16 %v221
    %v509 = vunpack.c.h.b16 %v221
    %v510 = vunpack.c.l.b16 %v222
    %v511 = vunpack.c.h.b16 %v222
    %v512 = vunpack.c.l.b16 %v223
    %v513 = vunpack.c.h.b16 %v223
    %v514 = vunpack.c.l.b16 %v224
    %v515 = vunpack.c.h.b16 %v224
    %v516 = vunpack.c.l.b16 %v225
    %v517 = vunpack.c.h.b16 %v225
    %v518 = vunpack.c.l.b16 %v226
    %v519 = vunpack.c.h.b16 %v226
    %v520 = vunpack.c.l.b16 %v227
    %v521 = vunpack.c.h.b16 %v227
    %v522 = vunpack.c.l.b16 %v228
    %v523 = vunpack.c.h.b16 %v228
    %v524 = vunpack.c.l.b16 %v229
    %v525 = vunpack.c.h.b16 %v229
    %v526 = vunpack.c.l.b16 %v230
    %v527 = vunpack.c.h.b16 %v230
    %v528 = vunpack.c.l.b16 %v231
    %v529 = vunpack.c.h.b16 %v231
    %v530 = vunpack.c.l.b16 %v232
    %v531 = vunpack.c.h.b16 %v232
    %v532 = vunpack.c.l.b16 %v233
    %v533 = vunpack.c.h.b16 %v233
    %v534 = vunpack.c.l.b16 %v234
    %v535 = vunpack.c.h.b16 %v234
    %v536 = vunpack.c.l.b16 %v235
    %v537 = vunpack.c.h.b16 %v235
    %v538 = vunpack.c.l.b16 %v236
    %v539 = vunpack.c.h.b16 %v236
    %v540 = vunpack.c.l.b16 %v237
    %v541 = vunpack.c.h.b16 %v237
    %v542 = vunpack.c.l.b16 %v238
    %v543 = vunpack.c.h.b16 %v238
    %v544 = vunpack.c.l.b16 %v239
    %v545 = vunpack.c.h.b16 %v239
    %v546 = vunpack.c.l.b16 %v240
    %v547 = vunpack.c.h.b16 %v240
    %v548 = vunpack.c.l.b16 %v241
    %v549 = vunpack.c.h.b16 %v241
    %v550 = vunpack.c.l.b16 %v242
    %v551 = vunpack.c.h.b16 %v242
    %v552 = vunpack.c.l.b16 %v243
    %v553 = vunpack.c.h.b16 %v243
    %v554 = vunpack.c.l.b16 %v244
    %v555 = vunpack.c.h.b16 %v244
    %v556 = vunpack.c.l.b16 %v245
    %v557 = vunpack.c.h.b16 %v245
    %v558 = vunpack.c.l.b16 %v246
    %v559 = vunpack.c.h.b16 %v246
    %v560 = vunpack.c.l.b16 %v247
    %v561 = vunpack.c.h.b16 %v247
    %v562 = vunpack.c.l.b16 %v248
    %v563 = vunpack.c.h.b16 %v248
    %v564 = vunpack.c.l.b16 %v249
    %v565 = vunpack.c.h.b16 %v249
    %v566 = vunpack.c.l.b16 %v250
    %v567 = vunpack.c.h.b16 %v250
    %v568 = vunpack.c.l.b16 %v251
    %v569 = vunpack.c.h.b16 %v251
    %v570 = vunpack.c.l.b16 %v252
    %v571 = vunpack.c.h.b16 %v252
    %v572 = vunpack.c.l.b16 %v253
    %v573 = vunpack.c.h.b16 %v253
    %v574 = vunpack.c.l.b16 %v254
    %v575 = vunpack.c.h.b16 %v254
    %v576 = vunpack.c.l.b16 %v255
    %v577 = vunpack.c.h.b16 %v255
    %v578 = vunpack.c.l.b16 %v256
    %v579 = vunpack.c.h.b16 %v256
    %v580 = vunpack.c.l.b16 %v257
    %v581 = vunpack.c.h.b16 %v257
    %v582 = vunpack.c.l.b16 %v258
    %v583 = vunpack.c.h.b16 %v258
    %v584 = vunpack.c.l.b16 %v259
    %v585 = vunpack.c.h.b16 %v259
    %v586 = vunpack.c.l.b16 %v260
    %v587 = vunpack.c.h.b16 %v260
    %v588 = vunpack.c.l.b16 %v261
    %v589 = vunpack.c.h.b16 %v261
    %v590 = vunpack.c.l.b16 %v262
    %v591 = vunpack.c.h.b16 %v262
    %v592 = vunpack.c.l.b16 %v263
    %v593 = vunpack.c.h.b16 %v263
    %v594 = vunpack.c.l.b16 %v264
    %v595 = vunpack.c.h.b16 %v264
    %v596 = vunpack.c.l.b16 %v265
    %v597 = vunpack.c.h.b16 %v265
    %v598 = vunpack.c.l.b16 %v266
    %v599 = vunpack.c.h.b16 %v266
    %v600 = vunpack.c.l.b16 %v267
    %v601 = vunpack.c.h.b16 %v267
    %v602 = vunpack.c.l.b16 %v268
    %v603 = vunpack.c.h.b16 %v268
    %v604 = vunpack.c.l.b16 %v269
    %v605 = vunpack.c.h.b16 %v269
    %v606 = vunpack.c.l.b16 %v270
    %v607 = vunpack.c.h.b16 %v270
    %v608 = vunpack.c.l.b16 %v271
    %v609 = vunpack.c.h.b16 %v271
    %v610 = vunpack.c.l.b16 %v272
    %v611 = vunpack.c.h.b16 %v272
    %v612 = vunpack.c.l.b16 %v273
    %v613 = vunpack.c.h.b16 %v273
    %v614 = vunpack.c.l.b16 %v274
    %v615 = vunpack.c.h.b16 %v274
    %v616 = vunpack.c.l.b16 %v275
    %v617 = vunpack.c.h.b16 %v275
    %v618 = vunpack.c.l.b16 %v276
    %v619 = vunpack.c.h.b16 %v276
    %v620 = vunpack.c.l.b16 %v277
    %v621 = vunpack.c.h.b16 %v277
    %v622 = vunpack.c.l.b16 %v278
    %v623 = vunpack.c.h.b16 %v278
    %v624 = vunpack.c.l.b16 %v279
    %v625 = vunpack.c.h.b16 %v279
    %v626 = vunpack.c.l.b16 %v280
    %v627 = vunpack.c.h.b16 %v280
    %v628 = vunpack.c.l.b16 %v281
    %v629 = vunpack.c.h.b16 %v281
    %v630 = vunpack.c.l.b16 %v282
    %v631 = vunpack.c.h.b16 %v282
    %v632 = vunpack.c.l.b16 %v283
    %v633 = vunpack.c.h.b16 %v283
    %v634 = vunpack.c.l.b16 %v284
    %v635 = vunpack.c.h.b16 %v284
    %v636 = vunpack.c.l.b16 %v285
    %v637 = vunpack.c.h.b16 %v285
    %v638 = vunpack.c.l.b16 %v286
    %v639 = vunpack.c.h.b16 %v286
    %v640 = vunpack.c.l.b16 %v287
    %v641 = vunpack.c.h.b16 %v287
    %v642 = vunpack.c.l.b16 %v288
    %v643 = vunpack.c.h.b16 %v288
    %v644 = vunpack.c.l.b16 %v289
    %v645 = vunpack.c.h.b16 %v289
    %v646 = vunpack.c.l.b16 %v290
    %v647 = vunpack.c.h.b16 %v290
    %v648 = vunpack.c.l.b16 %v291
    %v649 = vunpack.c.h.b16 %v291
    %v650 = vunpack.c.l.b16 %v292
    %v651 = vunpack.c.h.b16 %v292
    %v652 = vunpack.c.l.b16 %v293
    %v653 = vunpack.c.h.b16 %v293
    %v654 = vunpack.c.l.b16 %v294
    %v655 = vunpack.c.h.b16 %v294
    %v656 = vunpack.c.l.b16 %v295
    %v657 = vunpack.c.h.b16 %v295
    %v658 = vunpack.c.l.b16 %v296
    %v659 = vunpack.c.h.b16 %v296
    %v660 = vunpack.c.l.b16 %v297
    %v661 = vunpack.c.h.b16 %v297
    %v662 = vunpack.c.l.b16 %v298
    %v663 = vunpack.c.h.b16 %v298
    %v664 = vunpack.c.l.b16 %v299
    %v665 = vunpack.c.h.b16 %v299
    %v666 = vunpack.c.l.b16 %v300
    %v667 = vunpack.c.h.b16 %v300
    %v668 = vunpack.c.l.b16 %v301
    %v669 = vunpack.c.h.b16 %v301
    %v670 = vunpack.c.l.b16 %v302
    %v671 = vunpack.c.h.b16 %v302
    %v672 = vunpack.c.l.b16 %v303
    %v673 = vunpack.c.h.b16 %v303
    %v674 = vunpack.c.l.b16 %v304
    %v675 = vunpack.c.h.b16 %v304
    %v676 = vunpack.c.l.b16 %v305
    %v677 = vunpack.c.h.b16 %v305
    %v678 = vunpack.c.l.b16 %v306
    %v679 = vunpack.c.h.b16 %v306
    %v680 = vunpack.c.l.b16 %v307
    %v681 = vunpack.c.h.b16 %v307
    %v682 = vunpack.c.l.b16 %v308
    %v683 = vunpack.c.h.b16 %v308
    %v684 = vunpack.c.l.b16 %v309
    %v685 = vunpack.c.h.b16 %v309
    %v686 = vunpack.c.l.b16 %v310
    %v687 = vunpack.c.h.b16 %v310
    %v688 = vunpack.c.l.b16 %v311
    %v689 = vunpack.c.h.b16 %v311
    %v690 = vunpack.c.l.b16 %v312
    %v691 = vunpack.c.h.b16 %v312
    %v692 = vunpack.c.l.b16 %v313
    %v693 = vunpack.c.h.b16 %v313
    %v694 = vunpack.c.l.b16 %v314
    %v695 = vunpack.c.h.b16 %v314
    %v696 = vunpack.c.l.b16 %v315
    %v697 = vunpack.c.h.b16 %v315
    %v698 = vunpack.c.l.b16 %v316
    %v699 = vunpack.c.h.b16 %v316
    %v700 = vunpack.c.l.b16 %v317
    %v701 = vunpack.c.h.b16 %v317
    %v702 = vunpack.c.l.b16 %v318
    %v703 = vunpack.c.h.b16 %v318
    %v704 = vunpack.c.l.b16 %v319
    %v705 = vunpack.c.h.b16 %v319
    %v706 = vunpack.c.l.b16 %v320
    %v707 = vunpack.c.h.b16 %v320
    %v708 = vunpack.c.l.b16 %v321
    %v709 = vunpack.c.h.b16 %v321
    %v710 = vunpack.c.l.b16 %v322
    %v711 = vunpack.c.h.b16 %v322
    %v712 = vunpack.c.l.b16 %v323
    %v713 = vunpack.c.h.b16 %v323
    %v714 = vunpack.c.l.b16 %v324
    %v715 = vunpack.c.h.b16 %v324
    %v716 = vunpack.c.l.b16 %v325
    %v717 = vunpack.c.h.b16 %v325
    %v718 = vunpack.c.l.b16 %v326
    %v719 = vunpack.c.h.b16 %v326
    %v720 = vunpack.c.l.b16 %v327
    %v721 = vunpack.c.h.b16 %v327
    %v722 = vunpack.c.l.b16 %v328
    %v723 = vunpack.c.h.b16 %v328
    %v724 = vunpack.c.l.b16 %v329
    %v725 = vunpack.c.h.b16 %v329
    %v726 = vunpack.c.l.b16 %v330
    %v727 = vunpack.c.h.b16 %v330
    %v728 = vunpack.c.l.b16 %v331
    %v729 = vunpack.c.h.b16 %v331
    %v730 = vunpack.c.l.b16 %v332
    %v731 = vunpack.c.h.b16 %v332
    %v732 = vunpack.c.l.b16 %v333
    %v733 = vunpack.c.h.b16 %v333
    %v734 = vunpack.c.l.b16 %v334
    %v735 = vunpack.c.h.b16 %v334
    %v736 = vunpack.c.l.b16 %v335
    %v737 = vunpack.c.h.b16 %v335
    %v738 = vpack.c.b16 %v490, %v482
    %v739 = vpack.c.b16 %v491, %v483
    %v740 = vpack.c.b16 %v492, %v484
    %v741 = vpack.c.b16 %v493, %v485
    %v742 = vpack.c.b16 %v494, %v486
    %v743 = vpack.c.b16 %v495, %v487
    %v744 = vpack.c.b16 %v496, %v488
    %v745 = vpack.c.b16 %v497, %v489
    %v746 = vpack.c.b16 %v506, %v498
    %v747 = vpack.c.b16 %v507, %v499
    %v748 = vpack.c.b16 %v508, %v500
    %v749 = vpack.c.b16 %v509, %v501
    %v750 = vpack.c.b16 %v510, %v502
    %v751 = vpack.c.b16 %v511, %v503
    %v752 = vpack.c.b16 %v512, %v504
    %v753 = vpack.c.b16 %v513, %v505
    %v754 = vpack.c.b16 %v522, %v514
    %v755 = vpack.c.b16 %v523, %v515
    %v756 = vpack.c.b16 %v524, %v516
    %v757 = vpack.c.b16 %v525, %v517
    %v758 = vpack.c.b16 %v526, %v518
    %v759 = vpack.c.b16 %v527, %v519
    %v760 = vpack.c.b16 %v528, %v520
    %v761 = vpack.c.b16 %v529, %v521
    %v762 = vpack.c.b16 %v538, %v530
    %v763 = vpack.c.b16 %v539, %v531
    %v764 = vpack.c.b16 %v540, %v532
    %v765 = vpack.c.b16 %v541, %v533
    %v766 = vpack.c.b16 %v542, %v534
    %v767 = vpack.c.b16 %v543, %v535
    %v768 = vpack.c.b16 %v544, %v536
    %v769 = vpack.c.b16 %v545, %v537
    %v770 = vpack.c.b16 %v554, %v546
    %v771 = vpack.c.b16 %v555, %v547
    %v772 = vpack.c.b16 %v556, %v548
    %v773 = vpack.c.b16 %v557, %v549
    %v774 = vpack.c.b16 %v558, %v550
    %v775 = vpack.c.b16 %v559, %v551
    %v776 = vpack.c.b16 %v560, %v552
    %v777 = vpack.c.b16 %v561, %v553
    %v778 = vpack.c.b16 %v570, %v562
    %v779 = vpack.c.b16 %v571, %v563
    %v780 = vpack.c.b16 %v572, %v564
    %v781 = vpack.c.b16 %v573, %v565
    %v782 = vpack.c.b16 %v574, %v566
    %v783 = vpack.c.b16 %v575, %v567
    %v784 = vpack.c.b16 %v576, %v568
    %v785 = vpack.c.b16 %v577, %v569
    %v786 = vpack.c.b16 %v586, %v578
    %v787 = vpack.c.b16 %v587, %v579
    %v788 = vpack.c.b16 %v588, %v580
    %v789 = vpack.c.b16 %v589, %v581
    %v790 = vpack.c.b16 %v590, %v582
    %v791 = vpack.c.b16 %v591, %v583
    %v792 = vpack.c.b16 %v592, %v584
    %v793 = vpack.c.b16 %v593, %v585
    %v794 = vpack.c.b16 %v602, %v594
    %v795 = vpack.c.b16 %v603, %v595
    %v796 = vpack.c.b16 %v604, %v596
    %v797 = vpack.c.b16 %v605, %v597
    %v798 = vpack.c.b16 %v606, %v598
    %v799 = vpack.c.b16 %v607, %v599
    %v800 = vpack.c.b16 %v608, %v600
    %v801 = vpack.c.b16 %v609, %v601
    %v802 = vpack.c.b16 %v618, %v610
    %v803 = vpack.c.b16 %v619, %v611
    %v804 = vpack.c.b16 %v620, %v612
    %v805 = vpack.c.b16 %v621, %v613
    %v806 = vpack.c.b16 %v622, %v614
    %v807 = vpack.c.b16 %v623, %v615
    %v808 = vpack.c.b16 %v624, %v616
    %v809 = vpack.c.b16 %v625, %v617
    %v810 = vpack.c.b16 %v634, %v626
    %v811 = vpack.c.b16 %v635, %v627
    %v812 = vpack.c.b16 %v636, %v628
    %v813 = vpack.c.b16 %v637, %v629
    %v814 = vpack.c.b16 %v638, %v630
    %v815 = vpack.c.b16 %v639, %v631
    %v816 = vpack.c.b16 %v640, %v632
    %v817 = vpack.c.b16 %v641, %v633
    %v818 = vpack.c.b16 %v650, %v642
    %v819 = vpack.c.b16 %v651, %v643
    %v820 = vpack.c.b16 %v652, %v644
    %v821 = vpack.c.b16 %v653, %v645
    %v822 = vpack.c.b16 %v654, %v646
    %v823 = vpack.c.b16 %v655, %v647
    %v824 = vpack.c.b16 %v656, %v648
    %v825 = vpack.c.b16 %v657, %v649
    %v826 = vpack.c.b16 %v666, %v658
    %v827 = vpack.c.b16 %v667, %v659
    %v828 = vpack.c.b16 %v668, %v660
    %v829 = vpack.c.b16 %v669, %v661
    %v830 = vpack.c.b16 %v670, %v662
    %v831 = vpack.c.b16 %v671, %v663
    %v832 = vpack.c.b16 %v672, %v664
    %v833 = vpack.c.b16 %v673, %v665
    %v834 = vpack.c.b16 %v682, %v674
    %v835 = vpack.c.b16 %v683, %v675
    %v836 = vpack.c.b16 %v684, %v676
    %v837 = vpack.c.b16 %v685, %v677
    %v838 = vpack.c.b16 %v686, %v678
    %v839 = vpack.c.b16 %v687, %v679
    %v840 = vpack.c.b16 %v688, %v680
    %v841 = vpack.c.b16 %v689, %v681
    %v842 = vpack.c.b16 %v698, %v690
    %v843 = vpack.c.b16 %v699, %v691
    %v844 = vpack.c.b16 %v700, %v692
    %v845 = vpack.c.b16 %v701, %v693
    %v846 = vpack.c.b16 %v702, %v694
    %v847 = vpack.c.b16 %v703, %v695
    %v848 = vpack.c.b16 %v704, %v696
    %v849 = vpack.c.b16 %v705, %v697
    %v850 = vpack.c.b16 %v714, %v706
    %v851 = vpack.c.b16 %v715, %v707
    %v852 = vpack.c.b16 %v716, %v708
    %v853 = vpack.c.b16 %v717, %v709
    %v854 = vpack.c.b16 %v718, %v710
    %v855 = vpack.c.b16 %v719, %v711
    %v856 = vpack.c.b16 %v720, %v712
    %v857 = vpack.c.b16 %v721, %v713
    %v858 = vpack.c.b16 %v730, %v722
    %v859 = vpack.c.b16 %v731, %v723
    %v860 = vpack.c.b16 %v732, %v724
    %v861 = vpack.c.b16 %v733, %v725
    %v862 = vpack.c.b16 %v734, %v726
    %v863 = vpack.c.b16 %v735, %v727
    %v864 = vpack.c.b16 %v736, %v728
    %v865 = vpack.c.b16 %v737, %v729
    %994 = vmatpush.bf16.msra.mxu0 %v794
    %995 = vmatpush.bf16.msra.mxu0 %v786
    %996 = vmatpush.bf16.msra.mxu0 %v778
    %997 = vmatpush.bf16.msra.mxu0 %v770
    %998 = vmatpush.bf16.msra.mxu0 %v762
    %999 = vmatpush.bf16.msra.mxu0 %v754
    %1000 = vmatpush.bf16.msra.mxu0 %v746
    %1001 = vmatpush.bf16.msra.mxu0 %v738
    %1002 = vmatmul.bf16.gmra.mxu0 %v206
    %v1003 = vpop.f32.mrf.mxu0
    %v1004 = vadd.f32 %v338, %v1003
    %v1005 = vpop.f32.mrf.mxu0
    %1006 = vdwg.mxu0
    %1007 = vmatpush.bf16.msra.mxu0 %v858
    %1008 = vmatpush.bf16.msra.mxu0 %v850
    %1009 = vmatpush.bf16.msra.mxu0 %v842
    %1010 = vmatpush.bf16.msra.mxu0 %v834
    %1011 = vmatpush.bf16.msra.mxu0 %v826
    %1012 = vmatpush.bf16.msra.mxu0 %v818
    %1013 = vmatpush.bf16.msra.mxu0 %v810
    %1014 = vmatpush.bf16.msra.mxu0 %v802
    %1015 = vmatmul.bf16.gmra.mxu0 %v207
    %v1016 = vpop.f32.mrf.mxu0
    %v1017 = vadd.f32 %v1004, %v1016
    %v1018 = vpop.f32.mrf.mxu0
    %1019 = vdwg.mxu0
    %1020 = vmatpush.bf16.msra.mxu0 %v795
    %1021 = vmatpush.bf16.msra.mxu0 %v787
    %1022 = vmatpush.bf16.msra.mxu0 %v779
    %1023 = vmatpush.bf16.msra.mxu0 %v771
    %1024 = vmatpush.bf16.msra.mxu0 %v763
    %1025 = vmatpush.bf16.msra.mxu0 %v755
    %1026 = vmatpush.bf16.msra.mxu0 %v747
    %1027 = vmatpush.bf16.msra.mxu0 %v739
    %1028 = vmatmul.bf16.gmra.mxu0 %v206
    %v1029 = vpop.f32.mrf.mxu0
    %v1030 = vadd.f32 %v339, %v1029
    %v1031 = vpop.f32.mrf.mxu0
    %1032 = vdwg.mxu0
    %1033 = vmatpush.bf16.msra.mxu0 %v859
    %1034 = vmatpush.bf16.msra.mxu0 %v851
    %1035 = vmatpush.bf16.msra.mxu0 %v843
    %1036 = vmatpush.bf16.msra.mxu0 %v835
    %1037 = vmatpush.bf16.msra.mxu0 %v827
    %1038 = vmatpush.bf16.msra.mxu0 %v819
    %1039 = vmatpush.bf16.msra.mxu0 %v811
    %1040 = vmatpush.bf16.msra.mxu0 %v803
    %1041 = vmatmul.bf16.gmra.mxu0 %v207
    %v1042 = vpop.f32.mrf.mxu0
    %v1043 = vadd.f32 %v1030, %v1042
    %v1044 = vpop.f32.mrf.mxu0
    %1045 = vdwg.mxu0
    %1046 = vmatpush.bf16.msra.mxu0 %v796
    %1047 = vmatpush.bf16.msra.mxu0 %v788
    %1048 = vmatpush.bf16.msra.mxu0 %v780
    %1049 = vmatpush.bf16.msra.mxu0 %v772
    %1050 = vmatpush.bf16.msra.mxu0 %v764
    %1051 = vmatpush.bf16.msra.mxu0 %v756
    %1052 = vmatpush.bf16.msra.mxu0 %v748
    %1053 = vmatpush.bf16.msra.mxu0 %v740
    %1054 = vmatmul.bf16.gmra.mxu0 %v206
    %v1055 = vpop.f32.mrf.mxu0
    %v1056 = vadd.f32 %v340, %v1055
    %v1057 = vpop.f32.mrf.mxu0
    %1058 = vdwg.mxu0
    %1059 = vmatpush.bf16.msra.mxu0 %v860
    %1060 = vmatpush.bf16.msra.mxu0 %v852
    %1061 = vmatpush.bf16.msra.mxu0 %v844
    %1062 = vmatpush.bf16.msra.mxu0 %v836
    %1063 = vmatpush.bf16.msra.mxu0 %v828
    %1064 = vmatpush.bf16.msra.mxu0 %v820
    %1065 = vmatpush.bf16.msra.mxu0 %v812
    %1066 = vmatpush.bf16.msra.mxu0 %v804
    %1067 = vmatmul.bf16.gmra.mxu0 %v207
    %v1068 = vpop.f32.mrf.mxu0
    %v1069 = vadd.f32 %v1056, %v1068
    %v1070 = vpop.f32.mrf.mxu0
    %1071 = vdwg.mxu0
    %1072 = vmatpush.bf16.msra.mxu0 %v797
    %1073 = vmatpush.bf16.msra.mxu0 %v789
    %1074 = vmatpush.bf16.msra.mxu0 %v781
    %1075 = vmatpush.bf16.msra.mxu0 %v773
    %1076 = vmatpush.bf16.msra.mxu0 %v765
    %1077 = vmatpush.bf16.msra.mxu0 %v757
    %1078 = vmatpush.bf16.msra.mxu0 %v749
    %1079 = vmatpush.bf16.msra.mxu0 %v741
    %1080 = vmatmul.bf16.gmra.mxu0 %v206
    %v1081 = vpop.f32.mrf.mxu0
    %v1082 = vadd.f32 %v341, %v1081
    %v1083 = vpop.f32.mrf.mxu0
    %1084 = vdwg.mxu0
    %1085 = vmatpush.bf16.msra.mxu0 %v861
    %1086 = vmatpush.bf16.msra.mxu0 %v853
    %1087 = vmatpush.bf16.msra.mxu0 %v845
    %1088 = vmatpush.bf16.msra.mxu0 %v837
    %1089 = vmatpush.bf16.msra.mxu0 %v829
    %1090 = vmatpush.bf16.msra.mxu0 %v821
    %1091 = vmatpush.bf16.msra.mxu0 %v813
    %1092 = vmatpush.bf16.msra.mxu0 %v805
    %1093 = vmatmul.bf16.gmra.mxu0 %v207
    %v1094 = vpop.f32.mrf.mxu0
    %v1095 = vadd.f32 %v1082, %v1094
    %v1096 = vpop.f32.mrf.mxu0
    %1097 = vdwg.mxu0
    %1098 = vmatpush.bf16.msra.mxu0 %v798
    %1099 = vmatpush.bf16.msra.mxu0 %v790
    %1100 = vmatpush.bf16.msra.mxu0 %v782
    %1101 = vmatpush.bf16.msra.mxu0 %v774
    %1102 = vmatpush.bf16.msra.mxu0 %v766
    %1103 = vmatpush.bf16.msra.mxu0 %v758
    %1104 = vmatpush.bf16.msra.mxu0 %v750
    %1105 = vmatpush.bf16.msra.mxu0 %v742
    %1106 = vmatmul.bf16.gmra.mxu0 %v206
    %v1107 = vpop.f32.mrf.mxu0
    %v1108 = vadd.f32 %v342, %v1107
    %v1109 = vpop.f32.mrf.mxu0
    %1110 = vdwg.mxu0
    %1111 = vmatpush.bf16.msra.mxu0 %v862
    %1112 = vmatpush.bf16.msra.mxu0 %v854
    %1113 = vmatpush.bf16.msra.mxu0 %v846
    %1114 = vmatpush.bf16.msra.mxu0 %v838
    %1115 = vmatpush.bf16.msra.mxu0 %v830
    %1116 = vmatpush.bf16.msra.mxu0 %v822
    %1117 = vmatpush.bf16.msra.mxu0 %v814
    %1118 = vmatpush.bf16.msra.mxu0 %v806
    %1119 = vmatmul.bf16.gmra.mxu0 %v207
    %v1120 = vpop.f32.mrf.mxu0
    %v1121 = vadd.f32 %v1108, %v1120
    %v1122 = vpop.f32.mrf.mxu0
    %1123 = vdwg.mxu0
    %1124 = vmatpush.bf16.msra.mxu0 %v799
    %1125 = vmatpush.bf16.msra.mxu0 %v791
    %1126 = vmatpush.bf16.msra.mxu0 %v783
    %1127 = vmatpush.bf16.msra.mxu0 %v775
    %1128 = vmatpush.bf16.msra.mxu0 %v767
    %1129 = vmatpush.bf16.msra.mxu0 %v759
    %1130 = vmatpush.bf16.msra.mxu0 %v751
    %1131 = vmatpush.bf16.msra.mxu0 %v743
    %1132 = vmatmul.bf16.gmra.mxu0 %v206
    %v1133 = vpop.f32.mrf.mxu0
    %v1134 = vadd.f32 %v343, %v1133
    %v1135 = vpop.f32.mrf.mxu0
    %1136 = vdwg.mxu0
    %1137 = vmatpush.bf16.msra.mxu0 %v863
    %1138 = vmatpush.bf16.msra.mxu0 %v855
    %1139 = vmatpush.bf16.msra.mxu0 %v847
    %1140 = vmatpush.bf16.msra.mxu0 %v839
    %1141 = vmatpush.bf16.msra.mxu0 %v831
    %1142 = vmatpush.bf16.msra.mxu0 %v823
    %1143 = vmatpush.bf16.msra.mxu0 %v815
    %1144 = vmatpush.bf16.msra.mxu0 %v807
    %1145 = vmatmul.bf16.gmra.mxu0 %v207
    %v1146 = vpop.f32.mrf.mxu0
    %v1147 = vadd.f32 %v1134, %v1146
    %v1148 = vpop.f32.mrf.mxu0
    %1149 = vdwg.mxu0
    %1150 = vmatpush.bf16.msra.mxu0 %v800
    %1151 = vmatpush.bf16.msra.mxu0 %v792
    %1152 = vmatpush.bf16.msra.mxu0 %v784
    %1153 = vmatpush.bf16.msra.mxu0 %v776
    %1154 = vmatpush.bf16.msra.mxu0 %v768
    %1155 = vmatpush.bf16.msra.mxu0 %v760
    %1156 = vmatpush.bf16.msra.mxu0 %v752
    %1157 = vmatpush.bf16.msra.mxu0 %v744
    %1158 = vmatmul.bf16.gmra.mxu0 %v206
    %v1159 = vpop.f32.mrf.mxu0
    %v1160 = vadd.f32 %v344, %v1159
    %v1161 = vpop.f32.mrf.mxu0
    %1162 = vdwg.mxu0
    %1163 = vmatpush.bf16.msra.mxu0 %v864
    %1164 = vmatpush.bf16.msra.mxu0 %v856
    %1165 = vmatpush.bf16.msra.mxu0 %v848
    %1166 = vmatpush.bf16.msra.mxu0 %v840
    %1167 = vmatpush.bf16.msra.mxu0 %v832
    %1168 = vmatpush.bf16.msra.mxu0 %v824
    %1169 = vmatpush.bf16.msra.mxu0 %v816
    %1170 = vmatpush.bf16.msra.mxu0 %v808
    %1171 = vmatmul.bf16.gmra.mxu0 %v207
    %v1172 = vpop.f32.mrf.mxu0
    %v1173 = vadd.f32 %v1160, %v1172
    %v1174 = vpop.f32.mrf.mxu0
    %1175 = vdwg.mxu0
    %1176 = vmatpush.bf16.msra.mxu0 %v801
    %1177 = vmatpush.bf16.msra.mxu0 %v793
    %1178 = vmatpush.bf16.msra.mxu0 %v785
    %1179 = vmatpush.bf16.msra.mxu0 %v777
    %1180 = vmatpush.bf16.msra.mxu0 %v769
    %1181 = vmatpush.bf16.msra.mxu0 %v761
    %1182 = vmatpush.bf16.msra.mxu0 %v753
    %1183 = vmatpush.bf16.msra.mxu0 %v745
    %1184 = vmatmul.bf16.gmra.mxu0 %v206
    %v1185 = vpop.f32.mrf.mxu0
    %v1186 = vadd.f32 %v345, %v1185
    %v1187 = vpop.f32.mrf.mxu0
    %1188 = vdwg.mxu0
    %1189 = vmatpush.bf16.msra.mxu0 %v865
    %1190 = vmatpush.bf16.msra.mxu0 %v857
    %1191 = vmatpush.bf16.msra.mxu0 %v849
    %1192 = vmatpush.bf16.msra.mxu0 %v841
    %1193 = vmatpush.bf16.msra.mxu0 %v833
    %1194 = vmatpush.bf16.msra.mxu0 %v825
    %1195 = vmatpush.bf16.msra.mxu0 %v817
    %1196 = vmatpush.bf16.msra.mxu0 %v809
    %1197 = vmatmul.bf16.gmra.mxu0 %v207
    %v1198 = vpop.f32.mrf.mxu0
    %v1199 = vadd.f32 %v1186, %v1198
    %v1200 = vpop.f32.mrf.mxu0
    %1201 = vdwg.mxu0
    %v1202 = vmax.f32 %v1017, 0.0
    %v1203 = vmax.f32 %v1043, 0.0
    %v1204 = vmax.f32 %v1069, 0.0
    %v1205 = vmax.f32 %v1095, 0.0
    %v1206 = vmax.f32 %v1121, 0.0
    %v1207 = vmax.f32 %v1147, 0.0
    %v1208 = vmax.f32 %v1173, 0.0
    %v1209 = vmax.f32 %v1199, 0.0
    %v1210 = vpack.c.bf16 %v1202, %v1202
    %v1211 = vpack.c.bf16 %v1203, %v1203
    %v1212 = vpack.c.bf16 %v1204, %v1204
    %v1213 = vpack.c.bf16 %v1205, %v1205
    %v1214 = vpack.c.bf16 %v1206, %v1206
    %v1215 = vpack.c.bf16 %v1207, %v1207
    %v1216 = vpack.c.bf16 %v1208, %v1208
    %v1217 = vpack.c.bf16 %v1209, %v1209
    %v1218 = vld [vmem:[#allocation8] sm:$0xff]
    %v1219 = vld [vmem:[#allocation8 + $0x8] sm:$0xff]
    %v1220 = vld [vmem:[#allocation8 + $0x10] sm:$0xff]
    %v1221 = vld [vmem:[#allocation8 + $0x18] sm:$0xff]
    %v1222 = vld [vmem:[#allocation8 + $0x20] sm:$0xff]
    %v1223 = vld [vmem:[#allocation8 + $0x28] sm:$0xff]
    %v1224 = vld [vmem:[#allocation8 + $0x30] sm:$0xff]
    %v1225 = vld [vmem:[#allocation8 + $0x38] sm:$0xff]
    %v1226 = vld [vmem:[#allocation8 + $0x40] sm:$0xff]
    %v1227 = vld [vmem:[#allocation8 + $0x48] sm:$0xff]
    %v1228 = vld [vmem:[#allocation8 + $0x50] sm:$0xff]
    %v1229 = vld [vmem:[#allocation8 + $0x58] sm:$0xff]
    %v1230 = vld [vmem:[#allocation8 + $0x60] sm:$0xff]
    %v1231 = vld [vmem:[#allocation8 + $0x68] sm:$0xff]
    %v1232 = vld [vmem:[#allocation8 + $0x70] sm:$0xff]
    %v1233 = vld [vmem:[#allocation8 + $0x78] sm:$0xff]
    %v1234 = vld [vmem:[#allocation8 + $0x80] sm:$0xff]
    %v1235 = vld [vmem:[#allocation8 + $0x88] sm:$0xff]
    %v1236 = vld [vmem:[#allocation8 + $0x90] sm:$0xff]
    %v1237 = vld [vmem:[#allocation8 + $0x98] sm:$0xff]
    %v1238 = vld [vmem:[#allocation8 + $0xa0] sm:$0xff]
    %v1239 = vld [vmem:[#allocation8 + $0xa8] sm:$0xff]
    %v1240 = vld [vmem:[#allocation8 + $0xb0] sm:$0xff]
    %v1241 = vld [vmem:[#allocation8 + $0xb8] sm:$0xff]
    %v1242 = vld [vmem:[#allocation8 + $0xc0] sm:$0xff]
    %v1243 = vld [vmem:[#allocation8 + $0xc8] sm:$0xff]
    %v1244 = vld [vmem:[#allocation8 + $0xd0] sm:$0xff]
    %v1245 = vld [vmem:[#allocation8 + $0xd8] sm:$0xff]
    %v1246 = vld [vmem:[#allocation8 + $0xe0] sm:$0xff]
    %v1247 = vld [vmem:[#allocation8 + $0xe8] sm:$0xff]
    %v1248 = vld [vmem:[#allocation8 + $0xf0] sm:$0xff]
    %v1249 = vld [vmem:[#allocation8 + $0xf8] sm:$0xff]
    %v1250 = vld [vmem:[#allocation8 + $0x100] sm:$0xff]
    %v1251 = vld [vmem:[#allocation8 + $0x108] sm:$0xff]
    %v1252 = vld [vmem:[#allocation8 + $0x110] sm:$0xff]
    %v1253 = vld [vmem:[#allocation8 + $0x118] sm:$0xff]
    %v1254 = vld [vmem:[#allocation8 + $0x120] sm:$0xff]
    %v1255 = vld [vmem:[#allocation8 + $0x128] sm:$0xff]
    %v1256 = vld [vmem:[#allocation8 + $0x130] sm:$0xff]
    %v1257 = vld [vmem:[#allocation8 + $0x138] sm:$0xff]
    %v1258 = vld [vmem:[#allocation8 + $0x140] sm:$0xff]
    %v1259 = vld [vmem:[#allocation8 + $0x148] sm:$0xff]
    %v1260 = vld [vmem:[#allocation8 + $0x150] sm:$0xff]
    %v1261 = vld [vmem:[#allocation8 + $0x158] sm:$0xff]
    %v1262 = vld [vmem:[#allocation8 + $0x160] sm:$0xff]
    %v1263 = vld [vmem:[#allocation8 + $0x168] sm:$0xff]
    %v1264 = vld [vmem:[#allocation8 + $0x170] sm:$0xff]
    %v1265 = vld [vmem:[#allocation8 + $0x178] sm:$0xff]
    %v1266 = vld [vmem:[#allocation8 + $0x180] sm:$0xff]
    %v1267 = vld [vmem:[#allocation8 + $0x188] sm:$0xff]
    %v1268 = vld [vmem:[#allocation8 + $0x190] sm:$0xff]
    %v1269 = vld [vmem:[#allocation8 + $0x198] sm:$0xff]
    %v1270 = vld [vmem:[#allocation8 + $0x1a0] sm:$0xff]
    %v1271 = vld [vmem:[#allocation8 + $0x1a8] sm:$0xff]
    %v1272 = vld [vmem:[#allocation8 + $0x1b0] sm:$0xff]
    %v1273 = vld [vmem:[#allocation8 + $0x1b8] sm:$0xff]
    %v1274 = vld [vmem:[#allocation8 + $0x1c0] sm:$0xff]
    %v1275 = vld [vmem:[#allocation8 + $0x1c8] sm:$0xff]
    %v1276 = vld [vmem:[#allocation8 + $0x1d0] sm:$0xff]
    %v1277 = vld [vmem:[#allocation8 + $0x1d8] sm:$0xff]
    %v1278 = vld [vmem:[#allocation8 + $0x1e0] sm:$0xff]
    %v1279 = vld [vmem:[#allocation8 + $0x1e8] sm:$0xff]
    %v1280 = vld [vmem:[#allocation8 + $0x1f0] sm:$0xff]
    %v1281 = vld [vmem:[#allocation8 + $0x1f8] sm:$0xff]
    %v1282 = vld [vmem:[#allocation8 + $0x200] sm:$0xff]
    %v1283 = vld [vmem:[#allocation8 + $0x208] sm:$0xff]
    %v1284 = vld [vmem:[#allocation8 + $0x210] sm:$0xff]
    %v1285 = vld [vmem:[#allocation8 + $0x218] sm:$0xff]
    %v1286 = vld [vmem:[#allocation8 + $0x220] sm:$0xff]
    %v1287 = vld [vmem:[#allocation8 + $0x228] sm:$0xff]
    %v1288 = vld [vmem:[#allocation8 + $0x230] sm:$0xff]
    %v1289 = vld [vmem:[#allocation8 + $0x238] sm:$0xff]
    %v1290 = vld [vmem:[#allocation8 + $0x240] sm:$0xff]
    %v1291 = vld [vmem:[#allocation8 + $0x248] sm:$0xff]
    %v1292 = vld [vmem:[#allocation8 + $0x250] sm:$0xff]
    %v1293 = vld [vmem:[#allocation8 + $0x258] sm:$0xff]
    %v1294 = vld [vmem:[#allocation8 + $0x260] sm:$0xff]
    %v1295 = vld [vmem:[#allocation8 + $0x268] sm:$0xff]
    %v1296 = vld [vmem:[#allocation8 + $0x270] sm:$0xff]
    %v1297 = vld [vmem:[#allocation8 + $0x278] sm:$0xff]
    %v1298 = vld [vmem:[#allocation8 + $0x280] sm:$0xff]
    %v1299 = vld [vmem:[#allocation8 + $0x288] sm:$0xff]
    %v1300 = vld [vmem:[#allocation8 + $0x290] sm:$0xff]
    %v1301 = vld [vmem:[#allocation8 + $0x298] sm:$0xff]
    %v1302 = vld [vmem:[#allocation8 + $0x2a0] sm:$0xff]
    %v1303 = vld [vmem:[#allocation8 + $0x2a8] sm:$0xff]
    %v1304 = vld [vmem:[#allocation8 + $0x2b0] sm:$0xff]
    %v1305 = vld [vmem:[#allocation8 + $0x2b8] sm:$0xff]
    %v1306 = vld [vmem:[#allocation8 + $0x2c0] sm:$0xff]
    %v1307 = vld [vmem:[#allocation8 + $0x2c8] sm:$0xff]
    %v1308 = vld [vmem:[#allocation8 + $0x2d0] sm:$0xff]
    %v1309 = vld [vmem:[#allocation8 + $0x2d8] sm:$0xff]
    %v1310 = vld [vmem:[#allocation8 + $0x2e0] sm:$0xff]
    %v1311 = vld [vmem:[#allocation8 + $0x2e8] sm:$0xff]
    %v1312 = vld [vmem:[#allocation8 + $0x2f0] sm:$0xff]
    %v1313 = vld [vmem:[#allocation8 + $0x2f8] sm:$0xff]
    %v1314 = vld [vmem:[#allocation8 + $0x300] sm:$0xff]
    %v1315 = vld [vmem:[#allocation8 + $0x308] sm:$0xff]
    %v1316 = vld [vmem:[#allocation8 + $0x310] sm:$0xff]
    %v1317 = vld [vmem:[#allocation8 + $0x318] sm:$0xff]
    %v1318 = vld [vmem:[#allocation8 + $0x320] sm:$0xff]
    %v1319 = vld [vmem:[#allocation8 + $0x328] sm:$0xff]
    %v1320 = vld [vmem:[#allocation8 + $0x330] sm:$0xff]
    %v1321 = vld [vmem:[#allocation8 + $0x338] sm:$0xff]
    %v1322 = vld [vmem:[#allocation8 + $0x340] sm:$0xff]
    %v1323 = vld [vmem:[#allocation8 + $0x348] sm:$0xff]
    %v1324 = vld [vmem:[#allocation8 + $0x350] sm:$0xff]
    %v1325 = vld [vmem:[#allocation8 + $0x358] sm:$0xff]
    %v1326 = vld [vmem:[#allocation8 + $0x360] sm:$0xff]
    %v1327 = vld [vmem:[#allocation8 + $0x368] sm:$0xff]
    %v1328 = vld [vmem:[#allocation8 + $0x370] sm:$0xff]
    %v1329 = vld [vmem:[#allocation8 + $0x378] sm:$0xff]
    %v1330 = vld [vmem:[#allocation8 + $0x380] sm:$0xff]
    %v1331 = vld [vmem:[#allocation8 + $0x388] sm:$0xff]
    %v1332 = vld [vmem:[#allocation8 + $0x390] sm:$0xff]
    %v1333 = vld [vmem:[#allocation8 + $0x398] sm:$0xff]
    %v1334 = vld [vmem:[#allocation8 + $0x3a0] sm:$0xff]
    %v1335 = vld [vmem:[#allocation8 + $0x3a8] sm:$0xff]
    %v1336 = vld [vmem:[#allocation8 + $0x3b0] sm:$0xff]
    %v1337 = vld [vmem:[#allocation8 + $0x3b8] sm:$0xff]
    %v1338 = vld [vmem:[#allocation8 + $0x3c0] sm:$0xff]
    %v1339 = vld [vmem:[#allocation8 + $0x3c8] sm:$0xff]
    %v1340 = vld [vmem:[#allocation8 + $0x3d0] sm:$0xff]
    %v1341 = vld [vmem:[#allocation8 + $0x3d8] sm:$0xff]
    %v1342 = vld [vmem:[#allocation8 + $0x3e0] sm:$0xff]
    %v1343 = vld [vmem:[#allocation8 + $0x3e8] sm:$0xff]
    %v1344 = vld [vmem:[#allocation8 + $0x3f0] sm:$0xff]
    %v1345 = vld [vmem:[#allocation8 + $0x3f8] sm:$0xff]
    %v1346 = vld [vmem:[#allocation8 + $0x400] sm:$0xff]
    %v1347 = vld [vmem:[#allocation8 + $0x408] sm:$0xff]
    %v1348 = vld [vmem:[#allocation8 + $0x410] sm:$0xff]
    %v1349 = vld [vmem:[#allocation8 + $0x418] sm:$0xff]
    %v1350 = vld [vmem:[#allocation8 + $0x420] sm:$0xff]
    %v1351 = vld [vmem:[#allocation8 + $0x428] sm:$0xff]
    %v1352 = vld [vmem:[#allocation8 + $0x430] sm:$0xff]
    %v1353 = vld [vmem:[#allocation8 + $0x438] sm:$0xff]
    %v1354 = vld [vmem:[#allocation8 + $0x440] sm:$0xff]
    %v1355 = vld [vmem:[#allocation8 + $0x448] sm:$0xff]
    %v1356 = vld [vmem:[#allocation8 + $0x450] sm:$0xff]
    %v1357 = vld [vmem:[#allocation8 + $0x458] sm:$0xff]
    %v1358 = vld [vmem:[#allocation8 + $0x460] sm:$0xff]
    %v1359 = vld [vmem:[#allocation8 + $0x468] sm:$0xff]
    %v1360 = vld [vmem:[#allocation8 + $0x470] sm:$0xff]
    %v1361 = vld [vmem:[#allocation8 + $0x478] sm:$0xff]
    %v1362 = vld [vmem:[#allocation8 + $0x480] sm:$0xff]
    %v1363 = vld [vmem:[#allocation8 + $0x488] sm:$0xff]
    %v1364 = vld [vmem:[#allocation8 + $0x490] sm:$0xff]
    %v1365 = vld [vmem:[#allocation8 + $0x498] sm:$0xff]
    %v1366 = vld [vmem:[#allocation8 + $0x4a0] sm:$0xff]
    %v1367 = vld [vmem:[#allocation8 + $0x4a8] sm:$0xff]
    %v1368 = vld [vmem:[#allocation8 + $0x4b0] sm:$0xff]
    %v1369 = vld [vmem:[#allocation8 + $0x4b8] sm:$0xff]
    %v1370 = vld [vmem:[#allocation8 + $0x4c0] sm:$0xff]
    %v1371 = vld [vmem:[#allocation8 + $0x4c8] sm:$0xff]
    %v1372 = vld [vmem:[#allocation8 + $0x4d0] sm:$0xff]
    %v1373 = vld [vmem:[#allocation8 + $0x4d8] sm:$0xff]
    %v1374 = vld [vmem:[#allocation8 + $0x4e0] sm:$0xff]
    %v1375 = vld [vmem:[#allocation8 + $0x4e8] sm:$0xff]
    %v1376 = vld [vmem:[#allocation8 + $0x4f0] sm:$0xff]
    %v1377 = vld [vmem:[#allocation8 + $0x4f8] sm:$0xff]
    %v1378 = vld [vmem:[#allocation8 + $0x500] sm:$0xff]
    %v1379 = vld [vmem:[#allocation8 + $0x508] sm:$0xff]
    %v1380 = vld [vmem:[#allocation8 + $0x510] sm:$0xff]
    %v1381 = vld [vmem:[#allocation8 + $0x518] sm:$0xff]
    %v1382 = vld [vmem:[#allocation8 + $0x520] sm:$0xff]
    %v1383 = vld [vmem:[#allocation8 + $0x528] sm:$0xff]
    %v1384 = vld [vmem:[#allocation8 + $0x530] sm:$0xff]
    %v1385 = vld [vmem:[#allocation8 + $0x538] sm:$0xff]
    %v1386 = vld [vmem:[#allocation8 + $0x540] sm:$0xff]
    %v1387 = vld [vmem:[#allocation8 + $0x548] sm:$0xff]
    %v1388 = vld [vmem:[#allocation8 + $0x550] sm:$0xff]
    %v1389 = vld [vmem:[#allocation8 + $0x558] sm:$0xff]
    %v1390 = vld [vmem:[#allocation8 + $0x560] sm:$0xff]
    %v1391 = vld [vmem:[#allocation8 + $0x568] sm:$0xff]
    %v1392 = vld [vmem:[#allocation8 + $0x570] sm:$0xff]
    %v1393 = vld [vmem:[#allocation8 + $0x578] sm:$0xff]
    %v1394 = vld [vmem:[#allocation8 + $0x580] sm:$0xff]
    %v1395 = vld [vmem:[#allocation8 + $0x588] sm:$0xff]
    %v1396 = vld [vmem:[#allocation8 + $0x590] sm:$0xff]
    %v1397 = vld [vmem:[#allocation8 + $0x598] sm:$0xff]
    %v1398 = vld [vmem:[#allocation8 + $0x5a0] sm:$0xff]
    %v1399 = vld [vmem:[#allocation8 + $0x5a8] sm:$0xff]
    %v1400 = vld [vmem:[#allocation8 + $0x5b0] sm:$0xff]
    %v1401 = vld [vmem:[#allocation8 + $0x5b8] sm:$0xff]
    %v1402 = vld [vmem:[#allocation8 + $0x5c0] sm:$0xff]
    %v1403 = vld [vmem:[#allocation8 + $0x5c8] sm:$0xff]
    %v1404 = vld [vmem:[#allocation8 + $0x5d0] sm:$0xff]
    %v1405 = vld [vmem:[#allocation8 + $0x5d8] sm:$0xff]
    %v1406 = vld [vmem:[#allocation8 + $0x5e0] sm:$0xff]
    %v1407 = vld [vmem:[#allocation8 + $0x5e8] sm:$0xff]
    %v1408 = vld [vmem:[#allocation8 + $0x5f0] sm:$0xff]
    %v1409 = vld [vmem:[#allocation8 + $0x5f8] sm:$0xff]
    %v1410 = vld [vmem:[#allocation8 + $0x600] sm:$0xff]
    %v1411 = vld [vmem:[#allocation8 + $0x608] sm:$0xff]
    %v1412 = vld [vmem:[#allocation8 + $0x610] sm:$0xff]
    %v1413 = vld [vmem:[#allocation8 + $0x618] sm:$0xff]
    %v1414 = vld [vmem:[#allocation8 + $0x620] sm:$0xff]
    %v1415 = vld [vmem:[#allocation8 + $0x628] sm:$0xff]
    %v1416 = vld [vmem:[#allocation8 + $0x630] sm:$0xff]
    %v1417 = vld [vmem:[#allocation8 + $0x638] sm:$0xff]
    %v1418 = vld [vmem:[#allocation8 + $0x640] sm:$0xff]
    %v1419 = vld [vmem:[#allocation8 + $0x648] sm:$0xff]
    %v1420 = vld [vmem:[#allocation8 + $0x650] sm:$0xff]
    %v1421 = vld [vmem:[#allocation8 + $0x658] sm:$0xff]
    %v1422 = vld [vmem:[#allocation8 + $0x660] sm:$0xff]
    %v1423 = vld [vmem:[#allocation8 + $0x668] sm:$0xff]
    %v1424 = vld [vmem:[#allocation8 + $0x670] sm:$0xff]
    %v1425 = vld [vmem:[#allocation8 + $0x678] sm:$0xff]
    %v1426 = vld [vmem:[#allocation8 + $0x680] sm:$0xff]
    %v1427 = vld [vmem:[#allocation8 + $0x688] sm:$0xff]
    %v1428 = vld [vmem:[#allocation8 + $0x690] sm:$0xff]
    %v1429 = vld [vmem:[#allocation8 + $0x698] sm:$0xff]
    %v1430 = vld [vmem:[#allocation8 + $0x6a0] sm:$0xff]
    %v1431 = vld [vmem:[#allocation8 + $0x6a8] sm:$0xff]
    %v1432 = vld [vmem:[#allocation8 + $0x6b0] sm:$0xff]
    %v1433 = vld [vmem:[#allocation8 + $0x6b8] sm:$0xff]
    %v1434 = vld [vmem:[#allocation8 + $0x6c0] sm:$0xff]
    %v1435 = vld [vmem:[#allocation8 + $0x6c8] sm:$0xff]
    %v1436 = vld [vmem:[#allocation8 + $0x6d0] sm:$0xff]
    %v1437 = vld [vmem:[#allocation8 + $0x6d8] sm:$0xff]
    %v1438 = vld [vmem:[#allocation8 + $0x6e0] sm:$0xff]
    %v1439 = vld [vmem:[#allocation8 + $0x6e8] sm:$0xff]
    %v1440 = vld [vmem:[#allocation8 + $0x6f0] sm:$0xff]
    %v1441 = vld [vmem:[#allocation8 + $0x6f8] sm:$0xff]
    %v1442 = vld [vmem:[#allocation8 + $0x700] sm:$0xff]
    %v1443 = vld [vmem:[#allocation8 + $0x708] sm:$0xff]
    %v1444 = vld [vmem:[#allocation8 + $0x710] sm:$0xff]
    %v1445 = vld [vmem:[#allocation8 + $0x718] sm:$0xff]
    %v1446 = vld [vmem:[#allocation8 + $0x720] sm:$0xff]
    %v1447 = vld [vmem:[#allocation8 + $0x728] sm:$0xff]
    %v1448 = vld [vmem:[#allocation8 + $0x730] sm:$0xff]
    %v1449 = vld [vmem:[#allocation8 + $0x738] sm:$0xff]
    %v1450 = vld [vmem:[#allocation8 + $0x740] sm:$0xff]
    %v1451 = vld [vmem:[#allocation8 + $0x748] sm:$0xff]
    %v1452 = vld [vmem:[#allocation8 + $0x750] sm:$0xff]
    %v1453 = vld [vmem:[#allocation8 + $0x758] sm:$0xff]
    %v1454 = vld [vmem:[#allocation8 + $0x760] sm:$0xff]
    %v1455 = vld [vmem:[#allocation8 + $0x768] sm:$0xff]
    %v1456 = vld [vmem:[#allocation8 + $0x770] sm:$0xff]
    %v1457 = vld [vmem:[#allocation8 + $0x778] sm:$0xff]
    %v1458 = vld [vmem:[#allocation8 + $0x780] sm:$0xff]
    %v1459 = vld [vmem:[#allocation8 + $0x788] sm:$0xff]
    %v1460 = vld [vmem:[#allocation8 + $0x790] sm:$0xff]
    %v1461 = vld [vmem:[#allocation8 + $0x798] sm:$0xff]
    %v1462 = vld [vmem:[#allocation8 + $0x7a0] sm:$0xff]
    %v1463 = vld [vmem:[#allocation8 + $0x7a8] sm:$0xff]
    %v1464 = vld [vmem:[#allocation8 + $0x7b0] sm:$0xff]
    %v1465 = vld [vmem:[#allocation8 + $0x7b8] sm:$0xff]
    %v1466 = vld [vmem:[#allocation8 + $0x7c0] sm:$0xff]
    %v1467 = vld [vmem:[#allocation8 + $0x7c8] sm:$0xff]
    %v1468 = vld [vmem:[#allocation8 + $0x7d0] sm:$0xff]
    %v1469 = vld [vmem:[#allocation8 + $0x7d8] sm:$0xff]
    %v1470 = vld [vmem:[#allocation8 + $0x7e0] sm:$0xff]
    %v1471 = vld [vmem:[#allocation8 + $0x7e8] sm:$0xff]
    %v1472 = vld [vmem:[#allocation8 + $0x7f0] sm:$0xff]
    %v1473 = vld [vmem:[#allocation8 + $0x7f8] sm:$0xff]
    %v1474 = vld [vmem:[#allocation8 + $0x800] sm:$0xff]
    %v1475 = vld [vmem:[#allocation8 + $0x808] sm:$0xff]
    %v1476 = vld [vmem:[#allocation8 + $0x810] sm:$0xff]
    %v1477 = vld [vmem:[#allocation8 + $0x818] sm:$0xff]
    %v1478 = vld [vmem:[#allocation8 + $0x820] sm:$0xff]
    %v1479 = vld [vmem:[#allocation8 + $0x828] sm:$0xff]
    %v1480 = vld [vmem:[#allocation8 + $0x830] sm:$0xff]
    %v1481 = vld [vmem:[#allocation8 + $0x838] sm:$0xff]
    %v1482 = vld [vmem:[#allocation8 + $0x840] sm:$0xff]
    %v1483 = vld [vmem:[#allocation8 + $0x848] sm:$0xff]
    %v1484 = vld [vmem:[#allocation8 + $0x850] sm:$0xff]
    %v1485 = vld [vmem:[#allocation8 + $0x858] sm:$0xff]
    %v1486 = vld [vmem:[#allocation8 + $0x860] sm:$0xff]
    %v1487 = vld [vmem:[#allocation8 + $0x868] sm:$0xff]
    %v1488 = vld [vmem:[#allocation8 + $0x870] sm:$0xff]
    %v1489 = vld [vmem:[#allocation8 + $0x878] sm:$0xff]
    %v1490 = vld [vmem:[#allocation8 + $0x880] sm:$0xff]
    %v1491 = vld [vmem:[#allocation8 + $0x888] sm:$0xff]
    %v1492 = vld [vmem:[#allocation8 + $0x890] sm:$0xff]
    %v1493 = vld [vmem:[#allocation8 + $0x898] sm:$0xff]
    %v1494 = vld [vmem:[#allocation8 + $0x8a0] sm:$0xff]
    %v1495 = vld [vmem:[#allocation8 + $0x8a8] sm:$0xff]
    %v1496 = vld [vmem:[#allocation8 + $0x8b0] sm:$0xff]
    %v1497 = vld [vmem:[#allocation8 + $0x8b8] sm:$0xff]
    %v1498 = vld [vmem:[#allocation8 + $0x8c0] sm:$0xff]
    %v1499 = vld [vmem:[#allocation8 + $0x8c8] sm:$0xff]
    %v1500 = vld [vmem:[#allocation8 + $0x8d0] sm:$0xff]
    %v1501 = vld [vmem:[#allocation8 + $0x8d8] sm:$0xff]
    %v1502 = vld [vmem:[#allocation8 + $0x8e0] sm:$0xff]
    %v1503 = vld [vmem:[#allocation8 + $0x8e8] sm:$0xff]
    %v1504 = vld [vmem:[#allocation8 + $0x8f0] sm:$0xff]
    %v1505 = vld [vmem:[#allocation8 + $0x8f8] sm:$0xff]
    %v1506 = vld [vmem:[#allocation8 + $0x900] sm:$0xff]
    %v1507 = vld [vmem:[#allocation8 + $0x908] sm:$0xff]
    %v1508 = vld [vmem:[#allocation8 + $0x910] sm:$0xff]
    %v1509 = vld [vmem:[#allocation8 + $0x918] sm:$0xff]
    %v1510 = vld [vmem:[#allocation8 + $0x920] sm:$0xff]
    %v1511 = vld [vmem:[#allocation8 + $0x928] sm:$0xff]
    %v1512 = vld [vmem:[#allocation8 + $0x930] sm:$0xff]
    %v1513 = vld [vmem:[#allocation8 + $0x938] sm:$0xff]
    %v1514 = vld [vmem:[#allocation8 + $0x940] sm:$0xff]
    %v1515 = vld [vmem:[#allocation8 + $0x948] sm:$0xff]
    %v1516 = vld [vmem:[#allocation8 + $0x950] sm:$0xff]
    %v1517 = vld [vmem:[#allocation8 + $0x958] sm:$0xff]
    %v1518 = vld [vmem:[#allocation8 + $0x960] sm:$0xff]
    %v1519 = vld [vmem:[#allocation8 + $0x968] sm:$0xff]
    %v1520 = vld [vmem:[#allocation8 + $0x970] sm:$0xff]
    %v1521 = vld [vmem:[#allocation8 + $0x978] sm:$0xff]
    %v1522 = vld [vmem:[#allocation8 + $0x980] sm:$0xff]
    %v1523 = vld [vmem:[#allocation8 + $0x988] sm:$0xff]
    %v1524 = vld [vmem:[#allocation8 + $0x990] sm:$0xff]
    %v1525 = vld [vmem:[#allocation8 + $0x998] sm:$0xff]
    %v1526 = vld [vmem:[#allocation8 + $0x9a0] sm:$0xff]
    %v1527 = vld [vmem:[#allocation8 + $0x9a8] sm:$0xff]
    %v1528 = vld [vmem:[#allocation8 + $0x9b0] sm:$0xff]
    %v1529 = vld [vmem:[#allocation8 + $0x9b8] sm:$0xff]
    %v1530 = vld [vmem:[#allocation8 + $0x9c0] sm:$0xff]
    %v1531 = vld [vmem:[#allocation8 + $0x9c8] sm:$0xff]
    %v1532 = vld [vmem:[#allocation8 + $0x9d0] sm:$0xff]
    %v1533 = vld [vmem:[#allocation8 + $0x9d8] sm:$0xff]
    %v1534 = vld [vmem:[#allocation8 + $0x9e0] sm:$0xff]
    %v1535 = vld [vmem:[#allocation8 + $0x9e8] sm:$0xff]
    %v1536 = vld [vmem:[#allocation8 + $0x9f0] sm:$0xff]
    %v1537 = vld [vmem:[#allocation8 + $0x9f8] sm:$0xff]
    %v1538 = vld [vmem:[#allocation8 + $0xa00] sm:$0xff]
    %v1539 = vld [vmem:[#allocation8 + $0xa08] sm:$0xff]
    %v1540 = vld [vmem:[#allocation8 + $0xa10] sm:$0xff]
    %v1541 = vld [vmem:[#allocation8 + $0xa18] sm:$0xff]
    %v1542 = vld [vmem:[#allocation8 + $0xa20] sm:$0xff]
    %v1543 = vld [vmem:[#allocation8 + $0xa28] sm:$0xff]
    %v1544 = vld [vmem:[#allocation8 + $0xa30] sm:$0xff]
    %v1545 = vld [vmem:[#allocation8 + $0xa38] sm:$0xff]
    %v1546 = vld [vmem:[#allocation8 + $0xa40] sm:$0xff]
    %v1547 = vld [vmem:[#allocation8 + $0xa48] sm:$0xff]
    %v1548 = vld [vmem:[#allocation8 + $0xa50] sm:$0xff]
    %v1549 = vld [vmem:[#allocation8 + $0xa58] sm:$0xff]
    %v1550 = vld [vmem:[#allocation8 + $0xa60] sm:$0xff]
    %v1551 = vld [vmem:[#allocation8 + $0xa68] sm:$0xff]
    %v1552 = vld [vmem:[#allocation8 + $0xa70] sm:$0xff]
    %v1553 = vld [vmem:[#allocation8 + $0xa78] sm:$0xff]
    %v1554 = vld [vmem:[#allocation8 + $0xa80] sm:$0xff]
    %v1555 = vld [vmem:[#allocation8 + $0xa88] sm:$0xff]
    %v1556 = vld [vmem:[#allocation8 + $0xa90] sm:$0xff]
    %v1557 = vld [vmem:[#allocation8 + $0xa98] sm:$0xff]
    %v1558 = vld [vmem:[#allocation8 + $0xaa0] sm:$0xff]
    %v1559 = vld [vmem:[#allocation8 + $0xaa8] sm:$0xff]
    %v1560 = vld [vmem:[#allocation8 + $0xab0] sm:$0xff]
    %v1561 = vld [vmem:[#allocation8 + $0xab8] sm:$0xff]
    %v1562 = vld [vmem:[#allocation8 + $0xac0] sm:$0xff]
    %v1563 = vld [vmem:[#allocation8 + $0xac8] sm:$0xff]
    %v1564 = vld [vmem:[#allocation8 + $0xad0] sm:$0xff]
    %v1565 = vld [vmem:[#allocation8 + $0xad8] sm:$0xff]
    %v1566 = vld [vmem:[#allocation8 + $0xae0] sm:$0xff]
    %v1567 = vld [vmem:[#allocation8 + $0xae8] sm:$0xff]
    %v1568 = vld [vmem:[#allocation8 + $0xaf0] sm:$0xff]
    %v1569 = vld [vmem:[#allocation8 + $0xaf8] sm:$0xff]
    %v1570 = vld [vmem:[#allocation8 + $0xb00] sm:$0xff]
    %v1571 = vld [vmem:[#allocation8 + $0xb08] sm:$0xff]
    %v1572 = vld [vmem:[#allocation8 + $0xb10] sm:$0xff]
    %v1573 = vld [vmem:[#allocation8 + $0xb18] sm:$0xff]
    %v1574 = vld [vmem:[#allocation8 + $0xb20] sm:$0xff]
    %v1575 = vld [vmem:[#allocation8 + $0xb28] sm:$0xff]
    %v1576 = vld [vmem:[#allocation8 + $0xb30] sm:$0xff]
    %v1577 = vld [vmem:[#allocation8 + $0xb38] sm:$0xff]
    %v1578 = vld [vmem:[#allocation8 + $0xb40] sm:$0xff]
    %v1579 = vld [vmem:[#allocation8 + $0xb48] sm:$0xff]
    %v1580 = vld [vmem:[#allocation8 + $0xb50] sm:$0xff]
    %v1581 = vld [vmem:[#allocation8 + $0xb58] sm:$0xff]
    %v1582 = vld [vmem:[#allocation8 + $0xb60] sm:$0xff]
    %v1583 = vld [vmem:[#allocation8 + $0xb68] sm:$0xff]
    %v1584 = vld [vmem:[#allocation8 + $0xb70] sm:$0xff]
    %v1585 = vld [vmem:[#allocation8 + $0xb78] sm:$0xff]
    %v1586 = vld [vmem:[#allocation8 + $0xb80] sm:$0xff]
    %v1587 = vld [vmem:[#allocation8 + $0xb88] sm:$0xff]
    %v1588 = vld [vmem:[#allocation8 + $0xb90] sm:$0xff]
    %v1589 = vld [vmem:[#allocation8 + $0xb98] sm:$0xff]
    %v1590 = vld [vmem:[#allocation8 + $0xba0] sm:$0xff]
    %v1591 = vld [vmem:[#allocation8 + $0xba8] sm:$0xff]
    %v1592 = vld [vmem:[#allocation8 + $0xbb0] sm:$0xff]
    %v1593 = vld [vmem:[#allocation8 + $0xbb8] sm:$0xff]
    %v1594 = vld [vmem:[#allocation8 + $0xbc0] sm:$0xff]
    %v1595 = vld [vmem:[#allocation8 + $0xbc8] sm:$0xff]
    %v1596 = vld [vmem:[#allocation8 + $0xbd0] sm:$0xff]
    %v1597 = vld [vmem:[#allocation8 + $0xbd8] sm:$0xff]
    %v1598 = vld [vmem:[#allocation8 + $0xbe0] sm:$0xff]
    %v1599 = vld [vmem:[#allocation8 + $0xbe8] sm:$0xff]
    %v1600 = vld [vmem:[#allocation8 + $0xbf0] sm:$0xff]
    %v1601 = vld [vmem:[#allocation8 + $0xbf8] sm:$0xff]
    %v1602 = vld [vmem:[#allocation8 + $0xc00] sm:$0xff]
    %v1603 = vld [vmem:[#allocation8 + $0xc08] sm:$0xff]
    %v1604 = vld [vmem:[#allocation8 + $0xc10] sm:$0xff]
    %v1605 = vld [vmem:[#allocation8 + $0xc18] sm:$0xff]
    %v1606 = vld [vmem:[#allocation8 + $0xc20] sm:$0xff]
    %v1607 = vld [vmem:[#allocation8 + $0xc28] sm:$0xff]
    %v1608 = vld [vmem:[#allocation8 + $0xc30] sm:$0xff]
    %v1609 = vld [vmem:[#allocation8 + $0xc38] sm:$0xff]
    %v1610 = vld [vmem:[#allocation8 + $0xc40] sm:$0xff]
    %v1611 = vld [vmem:[#allocation8 + $0xc48] sm:$0xff]
    %v1612 = vld [vmem:[#allocation8 + $0xc50] sm:$0xff]
    %v1613 = vld [vmem:[#allocation8 + $0xc58] sm:$0xff]
    %v1614 = vld [vmem:[#allocation8 + $0xc60] sm:$0xff]
    %v1615 = vld [vmem:[#allocation8 + $0xc68] sm:$0xff]
    %v1616 = vld [vmem:[#allocation8 + $0xc70] sm:$0xff]
    %v1617 = vld [vmem:[#allocation8 + $0xc78] sm:$0xff]
    %v1618 = vld [vmem:[#allocation8 + $0xc80] sm:$0xff]
    %v1619 = vld [vmem:[#allocation8 + $0xc88] sm:$0xff]
    %v1620 = vld [vmem:[#allocation8 + $0xc90] sm:$0xff]
    %v1621 = vld [vmem:[#allocation8 + $0xc98] sm:$0xff]
    %v1622 = vld [vmem:[#allocation8 + $0xca0] sm:$0xff]
    %v1623 = vld [vmem:[#allocation8 + $0xca8] sm:$0xff]
    %v1624 = vld [vmem:[#allocation8 + $0xcb0] sm:$0xff]
    %v1625 = vld [vmem:[#allocation8 + $0xcb8] sm:$0xff]
    %v1626 = vld [vmem:[#allocation8 + $0xcc0] sm:$0xff]
    %v1627 = vld [vmem:[#allocation8 + $0xcc8] sm:$0xff]
    %v1628 = vld [vmem:[#allocation8 + $0xcd0] sm:$0xff]
    %v1629 = vld [vmem:[#allocation8 + $0xcd8] sm:$0xff]
    %v1630 = vld [vmem:[#allocation8 + $0xce0] sm:$0xff]
    %v1631 = vld [vmem:[#allocation8 + $0xce8] sm:$0xff]
    %v1632 = vld [vmem:[#allocation8 + $0xcf0] sm:$0xff]
    %v1633 = vld [vmem:[#allocation8 + $0xcf8] sm:$0xff]
    %v1634 = vld [vmem:[#allocation8 + $0xd00] sm:$0xff]
    %v1635 = vld [vmem:[#allocation8 + $0xd08] sm:$0xff]
    %v1636 = vld [vmem:[#allocation8 + $0xd10] sm:$0xff]
    %v1637 = vld [vmem:[#allocation8 + $0xd18] sm:$0xff]
    %v1638 = vld [vmem:[#allocation8 + $0xd20] sm:$0xff]
    %v1639 = vld [vmem:[#allocation8 + $0xd28] sm:$0xff]
    %v1640 = vld [vmem:[#allocation8 + $0xd30] sm:$0xff]
    %v1641 = vld [vmem:[#allocation8 + $0xd38] sm:$0xff]
    %v1642 = vld [vmem:[#allocation8 + $0xd40] sm:$0xff]
    %v1643 = vld [vmem:[#allocation8 + $0xd48] sm:$0xff]
    %v1644 = vld [vmem:[#allocation8 + $0xd50] sm:$0xff]
    %v1645 = vld [vmem:[#allocation8 + $0xd58] sm:$0xff]
    %v1646 = vld [vmem:[#allocation8 + $0xd60] sm:$0xff]
    %v1647 = vld [vmem:[#allocation8 + $0xd68] sm:$0xff]
    %v1648 = vld [vmem:[#allocation8 + $0xd70] sm:$0xff]
    %v1649 = vld [vmem:[#allocation8 + $0xd78] sm:$0xff]
    %v1650 = vld [vmem:[#allocation8 + $0xd80] sm:$0xff]
    %v1651 = vld [vmem:[#allocation8 + $0xd88] sm:$0xff]
    %v1652 = vld [vmem:[#allocation8 + $0xd90] sm:$0xff]
    %v1653 = vld [vmem:[#allocation8 + $0xd98] sm:$0xff]
    %v1654 = vld [vmem:[#allocation8 + $0xda0] sm:$0xff]
    %v1655 = vld [vmem:[#allocation8 + $0xda8] sm:$0xff]
    %v1656 = vld [vmem:[#allocation8 + $0xdb0] sm:$0xff]
    %v1657 = vld [vmem:[#allocation8 + $0xdb8] sm:$0xff]
    %v1658 = vld [vmem:[#allocation8 + $0xdc0] sm:$0xff]
    %v1659 = vld [vmem:[#allocation8 + $0xdc8] sm:$0xff]
    %v1660 = vld [vmem:[#allocation8 + $0xdd0] sm:$0xff]
    %v1661 = vld [vmem:[#allocation8 + $0xdd8] sm:$0xff]
    %v1662 = vld [vmem:[#allocation8 + $0xde0] sm:$0xff]
    %v1663 = vld [vmem:[#allocation8 + $0xde8] sm:$0xff]
    %v1664 = vld [vmem:[#allocation8 + $0xdf0] sm:$0xff]
    %v1665 = vld [vmem:[#allocation8 + $0xdf8] sm:$0xff]
    %v1666 = vld [vmem:[#allocation8 + $0xe00] sm:$0xff]
    %v1667 = vld [vmem:[#allocation8 + $0xe08] sm:$0xff]
    %v1668 = vld [vmem:[#allocation8 + $0xe10] sm:$0xff]
    %v1669 = vld [vmem:[#allocation8 + $0xe18] sm:$0xff]
    %v1670 = vld [vmem:[#allocation8 + $0xe20] sm:$0xff]
    %v1671 = vld [vmem:[#allocation8 + $0xe28] sm:$0xff]
    %v1672 = vld [vmem:[#allocation8 + $0xe30] sm:$0xff]
    %v1673 = vld [vmem:[#allocation8 + $0xe38] sm:$0xff]
    %v1674 = vld [vmem:[#allocation8 + $0xe40] sm:$0xff]
    %v1675 = vld [vmem:[#allocation8 + $0xe48] sm:$0xff]
    %v1676 = vld [vmem:[#allocation8 + $0xe50] sm:$0xff]
    %v1677 = vld [vmem:[#allocation8 + $0xe58] sm:$0xff]
    %v1678 = vld [vmem:[#allocation8 + $0xe60] sm:$0xff]
    %v1679 = vld [vmem:[#allocation8 + $0xe68] sm:$0xff]
    %v1680 = vld [vmem:[#allocation8 + $0xe70] sm:$0xff]
    %v1681 = vld [vmem:[#allocation8 + $0xe78] sm:$0xff]
    %v1682 = vld [vmem:[#allocation8 + $0xe80] sm:$0xff]
    %v1683 = vld [vmem:[#allocation8 + $0xe88] sm:$0xff]
    %v1684 = vld [vmem:[#allocation8 + $0xe90] sm:$0xff]
    %v1685 = vld [vmem:[#allocation8 + $0xe98] sm:$0xff]
    %v1686 = vld [vmem:[#allocation8 + $0xea0] sm:$0xff]
    %v1687 = vld [vmem:[#allocation8 + $0xea8] sm:$0xff]
    %v1688 = vld [vmem:[#allocation8 + $0xeb0] sm:$0xff]
    %v1689 = vld [vmem:[#allocation8 + $0xeb8] sm:$0xff]
    %v1690 = vld [vmem:[#allocation8 + $0xec0] sm:$0xff]
    %v1691 = vld [vmem:[#allocation8 + $0xec8] sm:$0xff]
    %v1692 = vld [vmem:[#allocation8 + $0xed0] sm:$0xff]
    %v1693 = vld [vmem:[#allocation8 + $0xed8] sm:$0xff]
    %v1694 = vld [vmem:[#allocation8 + $0xee0] sm:$0xff]
    %v1695 = vld [vmem:[#allocation8 + $0xee8] sm:$0xff]
    %v1696 = vld [vmem:[#allocation8 + $0xef0] sm:$0xff]
    %v1697 = vld [vmem:[#allocation8 + $0xef8] sm:$0xff]
    %v1698 = vld [vmem:[#allocation8 + $0xf00] sm:$0xff]
    %v1699 = vld [vmem:[#allocation8 + $0xf08] sm:$0xff]
    %v1700 = vld [vmem:[#allocation8 + $0xf10] sm:$0xff]
    %v1701 = vld [vmem:[#allocation8 + $0xf18] sm:$0xff]
    %v1702 = vld [vmem:[#allocation8 + $0xf20] sm:$0xff]
    %v1703 = vld [vmem:[#allocation8 + $0xf28] sm:$0xff]
    %v1704 = vld [vmem:[#allocation8 + $0xf30] sm:$0xff]
    %v1705 = vld [vmem:[#allocation8 + $0xf38] sm:$0xff]
    %v1706 = vld [vmem:[#allocation8 + $0xf40] sm:$0xff]
    %v1707 = vld [vmem:[#allocation8 + $0xf48] sm:$0xff]
    %v1708 = vld [vmem:[#allocation8 + $0xf50] sm:$0xff]
    %v1709 = vld [vmem:[#allocation8 + $0xf58] sm:$0xff]
    %v1710 = vld [vmem:[#allocation8 + $0xf60] sm:$0xff]
    %v1711 = vld [vmem:[#allocation8 + $0xf68] sm:$0xff]
    %v1712 = vld [vmem:[#allocation8 + $0xf70] sm:$0xff]
    %v1713 = vld [vmem:[#allocation8 + $0xf78] sm:$0xff]
    %v1714 = vld [vmem:[#allocation8 + $0xf80] sm:$0xff]
    %v1715 = vld [vmem:[#allocation8 + $0xf88] sm:$0xff]
    %v1716 = vld [vmem:[#allocation8 + $0xf90] sm:$0xff]
    %v1717 = vld [vmem:[#allocation8 + $0xf98] sm:$0xff]
    %v1718 = vld [vmem:[#allocation8 + $0xfa0] sm:$0xff]
    %v1719 = vld [vmem:[#allocation8 + $0xfa8] sm:$0xff]
    %v1720 = vld [vmem:[#allocation8 + $0xfb0] sm:$0xff]
    %v1721 = vld [vmem:[#allocation8 + $0xfb8] sm:$0xff]
    %v1722 = vld [vmem:[#allocation8 + $0xfc0] sm:$0xff]
    %v1723 = vld [vmem:[#allocation8 + $0xfc8] sm:$0xff]
    %v1724 = vld [vmem:[#allocation8 + $0xfd0] sm:$0xff]
    %v1725 = vld [vmem:[#allocation8 + $0xfd8] sm:$0xff]
    %v1726 = vld [vmem:[#allocation8 + $0xfe0] sm:$0xff]
    %v1727 = vld [vmem:[#allocation8 + $0xfe8] sm:$0xff]
    %v1728 = vld [vmem:[#allocation8 + $0xff0] sm:$0xff]
    %v1729 = vld [vmem:[#allocation8 + $0xff8] sm:$0xff]
    %v1730 = vld [vmem:[#allocation10] sm:$0xff]
    %v1732 = vperm.slane %v1730, 0
    %v1733 = vperm.slane %v1730, 1
    %v1734 = vperm.slane %v1730, 2
    %v1735 = vperm.slane %v1730, 3
    %v1736 = vperm.slane %v1730, 4
    %v1737 = vperm.slane %v1730, 5
    %v1738 = vperm.slane %v1730, 6
    %v1739 = vperm.slane %v1730, 7
    %v2260 = vunpack.c.l.b16 %v1218
    %v2261 = vunpack.c.h.b16 %v1218
    %v2262 = vunpack.c.l.b16 %v1219
    %v2263 = vunpack.c.h.b16 %v1219
    %v2264 = vunpack.c.l.b16 %v1220
    %v2265 = vunpack.c.h.b16 %v1220
    %v2266 = vunpack.c.l.b16 %v1221
    %v2267 = vunpack.c.h.b16 %v1221
    %v2268 = vunpack.c.l.b16 %v1222
    %v2269 = vunpack.c.h.b16 %v1222
    %v2270 = vunpack.c.l.b16 %v1223
    %v2271 = vunpack.c.h.b16 %v1223
    %v2272 = vunpack.c.l.b16 %v1224
    %v2273 = vunpack.c.h.b16 %v1224
    %v2274 = vunpack.c.l.b16 %v1225
    %v2275 = vunpack.c.h.b16 %v1225
    %v2276 = vunpack.c.l.b16 %v1226
    %v2277 = vunpack.c.h.b16 %v1226
    %v2278 = vunpack.c.l.b16 %v1227
    %v2279 = vunpack.c.h.b16 %v1227
    %v2280 = vunpack.c.l.b16 %v1228
    %v2281 = vunpack.c.h.b16 %v1228
    %v2282 = vunpack.c.l.b16 %v1229
    %v2283 = vunpack.c.h.b16 %v1229
    %v2284 = vunpack.c.l.b16 %v1230
    %v2285 = vunpack.c.h.b16 %v1230
    %v2286 = vunpack.c.l.b16 %v1231
    %v2287 = vunpack.c.h.b16 %v1231
    %v2288 = vunpack.c.l.b16 %v1232
    %v2289 = vunpack.c.h.b16 %v1232
    %v2290 = vunpack.c.l.b16 %v1233
    %v2291 = vunpack.c.h.b16 %v1233
    %v2292 = vunpack.c.l.b16 %v1234
    %v2293 = vunpack.c.h.b16 %v1234
    %v2294 = vunpack.c.l.b16 %v1235
    %v2295 = vunpack.c.h.b16 %v1235
    %v2296 = vunpack.c.l.b16 %v1236
    %v2297 = vunpack.c.h.b16 %v1236
    %v2298 = vunpack.c.l.b16 %v1237
    %v2299 = vunpack.c.h.b16 %v1237
    %v2300 = vunpack.c.l.b16 %v1238
    %v2301 = vunpack.c.h.b16 %v1238
    %v2302 = vunpack.c.l.b16 %v1239
    %v2303 = vunpack.c.h.b16 %v1239
    %v2304 = vunpack.c.l.b16 %v1240
    %v2305 = vunpack.c.h.b16 %v1240
    %v2306 = vunpack.c.l.b16 %v1241
    %v2307 = vunpack.c.h.b16 %v1241
    %v2308 = vunpack.c.l.b16 %v1242
    %v2309 = vunpack.c.h.b16 %v1242
    %v2310 = vunpack.c.l.b16 %v1243
    %v2311 = vunpack.c.h.b16 %v1243
    %v2312 = vunpack.c.l.b16 %v1244
    %v2313 = vunpack.c.h.b16 %v1244
    %v2314 = vunpack.c.l.b16 %v1245
    %v2315 = vunpack.c.h.b16 %v1245
    %v2316 = vunpack.c.l.b16 %v1246
    %v2317 = vunpack.c.h.b16 %v1246
    %v2318 = vunpack.c.l.b16 %v1247
    %v2319 = vunpack.c.h.b16 %v1247
    %v2320 = vunpack.c.l.b16 %v1248
    %v2321 = vunpack.c.h.b16 %v1248
    %v2322 = vunpack.c.l.b16 %v1249
    %v2323 = vunpack.c.h.b16 %v1249
    %v2324 = vunpack.c.l.b16 %v1250
    %v2325 = vunpack.c.h.b16 %v1250
    %v2326 = vunpack.c.l.b16 %v1251
    %v2327 = vunpack.c.h.b16 %v1251
    %v2328 = vunpack.c.l.b16 %v1252
    %v2329 = vunpack.c.h.b16 %v1252
    %v2330 = vunpack.c.l.b16 %v1253
    %v2331 = vunpack.c.h.b16 %v1253
    %v2332 = vunpack.c.l.b16 %v1254
    %v2333 = vunpack.c.h.b16 %v1254
    %v2334 = vunpack.c.l.b16 %v1255
    %v2335 = vunpack.c.h.b16 %v1255
    %v2336 = vunpack.c.l.b16 %v1256
    %v2337 = vunpack.c.h.b16 %v1256
    %v2338 = vunpack.c.l.b16 %v1257
    %v2339 = vunpack.c.h.b16 %v1257
    %v2340 = vunpack.c.l.b16 %v1258
    %v2341 = vunpack.c.h.b16 %v1258
    %v2342 = vunpack.c.l.b16 %v1259
    %v2343 = vunpack.c.h.b16 %v1259
    %v2344 = vunpack.c.l.b16 %v1260
    %v2345 = vunpack.c.h.b16 %v1260
    %v2346 = vunpack.c.l.b16 %v1261
    %v2347 = vunpack.c.h.b16 %v1261
    %v2348 = vunpack.c.l.b16 %v1262
    %v2349 = vunpack.c.h.b16 %v1262
    %v2350 = vunpack.c.l.b16 %v1263
    %v2351 = vunpack.c.h.b16 %v1263
    %v2352 = vunpack.c.l.b16 %v1264
    %v2353 = vunpack.c.h.b16 %v1264
    %v2354 = vunpack.c.l.b16 %v1265
    %v2355 = vunpack.c.h.b16 %v1265
    %v2356 = vunpack.c.l.b16 %v1266
    %v2357 = vunpack.c.h.b16 %v1266
    %v2358 = vunpack.c.l.b16 %v1267
    %v2359 = vunpack.c.h.b16 %v1267
    %v2360 = vunpack.c.l.b16 %v1268
    %v2361 = vunpack.c.h.b16 %v1268
    %v2362 = vunpack.c.l.b16 %v1269
    %v2363 = vunpack.c.h.b16 %v1269
    %v2364 = vunpack.c.l.b16 %v1270
    %v2365 = vunpack.c.h.b16 %v1270
    %v2366 = vunpack.c.l.b16 %v1271
    %v2367 = vunpack.c.h.b16 %v1271
    %v2368 = vunpack.c.l.b16 %v1272
    %v2369 = vunpack.c.h.b16 %v1272
    %v2370 = vunpack.c.l.b16 %v1273
    %v2371 = vunpack.c.h.b16 %v1273
    %v2372 = vunpack.c.l.b16 %v1274
    %v2373 = vunpack.c.h.b16 %v1274
    %v2374 = vunpack.c.l.b16 %v1275
    %v2375 = vunpack.c.h.b16 %v1275
    %v2376 = vunpack.c.l.b16 %v1276
    %v2377 = vunpack.c.h.b16 %v1276
    %v2378 = vunpack.c.l.b16 %v1277
    %v2379 = vunpack.c.h.b16 %v1277
    %v2380 = vunpack.c.l.b16 %v1278
    %v2381 = vunpack.c.h.b16 %v1278
    %v2382 = vunpack.c.l.b16 %v1279
    %v2383 = vunpack.c.h.b16 %v1279
    %v2384 = vunpack.c.l.b16 %v1280
    %v2385 = vunpack.c.h.b16 %v1280
    %v2386 = vunpack.c.l.b16 %v1281
    %v2387 = vunpack.c.h.b16 %v1281
    %v2388 = vunpack.c.l.b16 %v1282
    %v2389 = vunpack.c.h.b16 %v1282
    %v2390 = vunpack.c.l.b16 %v1283
    %v2391 = vunpack.c.h.b16 %v1283
    %v2392 = vunpack.c.l.b16 %v1284
    %v2393 = vunpack.c.h.b16 %v1284
    %v2394 = vunpack.c.l.b16 %v1285
    %v2395 = vunpack.c.h.b16 %v1285
    %v2396 = vunpack.c.l.b16 %v1286
    %v2397 = vunpack.c.h.b16 %v1286
    %v2398 = vunpack.c.l.b16 %v1287
    %v2399 = vunpack.c.h.b16 %v1287
    %v2400 = vunpack.c.l.b16 %v1288
    %v2401 = vunpack.c.h.b16 %v1288
    %v2402 = vunpack.c.l.b16 %v1289
    %v2403 = vunpack.c.h.b16 %v1289
    %v2404 = vunpack.c.l.b16 %v1290
    %v2405 = vunpack.c.h.b16 %v1290
    %v2406 = vunpack.c.l.b16 %v1291
    %v2407 = vunpack.c.h.b16 %v1291
    %v2408 = vunpack.c.l.b16 %v1292
    %v2409 = vunpack.c.h.b16 %v1292
    %v2410 = vunpack.c.l.b16 %v1293
    %v2411 = vunpack.c.h.b16 %v1293
    %v2412 = vunpack.c.l.b16 %v1294
    %v2413 = vunpack.c.h.b16 %v1294
    %v2414 = vunpack.c.l.b16 %v1295
    %v2415 = vunpack.c.h.b16 %v1295
    %v2416 = vunpack.c.l.b16 %v1296
    %v2417 = vunpack.c.h.b16 %v1296
    %v2418 = vunpack.c.l.b16 %v1297
    %v2419 = vunpack.c.h.b16 %v1297
    %v2420 = vunpack.c.l.b16 %v1298
    %v2421 = vunpack.c.h.b16 %v1298
    %v2422 = vunpack.c.l.b16 %v1299
    %v2423 = vunpack.c.h.b16 %v1299
    %v2424 = vunpack.c.l.b16 %v1300
    %v2425 = vunpack.c.h.b16 %v1300
    %v2426 = vunpack.c.l.b16 %v1301
    %v2427 = vunpack.c.h.b16 %v1301
    %v2428 = vunpack.c.l.b16 %v1302
    %v2429 = vunpack.c.h.b16 %v1302
    %v2430 = vunpack.c.l.b16 %v1303
    %v2431 = vunpack.c.h.b16 %v1303
    %v2432 = vunpack.c.l.b16 %v1304
    %v2433 = vunpack.c.h.b16 %v1304
    %v2434 = vunpack.c.l.b16 %v1305
    %v2435 = vunpack.c.h.b16 %v1305
    %v2436 = vunpack.c.l.b16 %v1306
    %v2437 = vunpack.c.h.b16 %v1306
    %v2438 = vunpack.c.l.b16 %v1307
    %v2439 = vunpack.c.h.b16 %v1307
    %v2440 = vunpack.c.l.b16 %v1308
    %v2441 = vunpack.c.h.b16 %v1308
    %v2442 = vunpack.c.l.b16 %v1309
    %v2443 = vunpack.c.h.b16 %v1309
    %v2444 = vunpack.c.l.b16 %v1310
    %v2445 = vunpack.c.h.b16 %v1310
    %v2446 = vunpack.c.l.b16 %v1311
    %v2447 = vunpack.c.h.b16 %v1311
    %v2448 = vunpack.c.l.b16 %v1312
    %v2449 = vunpack.c.h.b16 %v1312
    %v2450 = vunpack.c.l.b16 %v1313
    %v2451 = vunpack.c.h.b16 %v1313
    %v2452 = vunpack.c.l.b16 %v1314
    %v2453 = vunpack.c.h.b16 %v1314
    %v2454 = vunpack.c.l.b16 %v1315
    %v2455 = vunpack.c.h.b16 %v1315
    %v2456 = vunpack.c.l.b16 %v1316
    %v2457 = vunpack.c.h.b16 %v1316
    %v2458 = vunpack.c.l.b16 %v1317
    %v2459 = vunpack.c.h.b16 %v1317
    %v2460 = vunpack.c.l.b16 %v1318
    %v2461 = vunpack.c.h.b16 %v1318
    %v2462 = vunpack.c.l.b16 %v1319
    %v2463 = vunpack.c.h.b16 %v1319
    %v2464 = vunpack.c.l.b16 %v1320
    %v2465 = vunpack.c.h.b16 %v1320
    %v2466 = vunpack.c.l.b16 %v1321
    %v2467 = vunpack.c.h.b16 %v1321
    %v2468 = vunpack.c.l.b16 %v1322
    %v2469 = vunpack.c.h.b16 %v1322
    %v2470 = vunpack.c.l.b16 %v1323
    %v2471 = vunpack.c.h.b16 %v1323
    %v2472 = vunpack.c.l.b16 %v1324
    %v2473 = vunpack.c.h.b16 %v1324
    %v2474 = vunpack.c.l.b16 %v1325
    %v2475 = vunpack.c.h.b16 %v1325
    %v2476 = vunpack.c.l.b16 %v1326
    %v2477 = vunpack.c.h.b16 %v1326
    %v2478 = vunpack.c.l.b16 %v1327
    %v2479 = vunpack.c.h.b16 %v1327
    %v2480 = vunpack.c.l.b16 %v1328
    %v2481 = vunpack.c.h.b16 %v1328
    %v2482 = vunpack.c.l.b16 %v1329
    %v2483 = vunpack.c.h.b16 %v1329
    %v2484 = vunpack.c.l.b16 %v1330
    %v2485 = vunpack.c.h.b16 %v1330
    %v2486 = vunpack.c.l.b16 %v1331
    %v2487 = vunpack.c.h.b16 %v1331
    %v2488 = vunpack.c.l.b16 %v1332
    %v2489 = vunpack.c.h.b16 %v1332
    %v2490 = vunpack.c.l.b16 %v1333
    %v2491 = vunpack.c.h.b16 %v1333
    %v2492 = vunpack.c.l.b16 %v1334
    %v2493 = vunpack.c.h.b16 %v1334
    %v2494 = vunpack.c.l.b16 %v1335
    %v2495 = vunpack.c.h.b16 %v1335
    %v2496 = vunpack.c.l.b16 %v1336
    %v2497 = vunpack.c.h.b16 %v1336
    %v2498 = vunpack.c.l.b16 %v1337
    %v2499 = vunpack.c.h.b16 %v1337
    %v2500 = vunpack.c.l.b16 %v1338
    %v2501 = vunpack.c.h.b16 %v1338
    %v2502 = vunpack.c.l.b16 %v1339
    %v2503 = vunpack.c.h.b16 %v1339
    %v2504 = vunpack.c.l.b16 %v1340
    %v2505 = vunpack.c.h.b16 %v1340
    %v2506 = vunpack.c.l.b16 %v1341
    %v2507 = vunpack.c.h.b16 %v1341
    %v2508 = vunpack.c.l.b16 %v1342
    %v2509 = vunpack.c.h.b16 %v1342
    %v2510 = vunpack.c.l.b16 %v1343
    %v2511 = vunpack.c.h.b16 %v1343
    %v2512 = vunpack.c.l.b16 %v1344
    %v2513 = vunpack.c.h.b16 %v1344
    %v2514 = vunpack.c.l.b16 %v1345
    %v2515 = vunpack.c.h.b16 %v1345
    %v2516 = vunpack.c.l.b16 %v1346
    %v2517 = vunpack.c.h.b16 %v1346
    %v2518 = vunpack.c.l.b16 %v1347
    %v2519 = vunpack.c.h.b16 %v1347
    %v2520 = vunpack.c.l.b16 %v1348
    %v2521 = vunpack.c.h.b16 %v1348
    %v2522 = vunpack.c.l.b16 %v1349
    %v2523 = vunpack.c.h.b16 %v1349
    %v2524 = vunpack.c.l.b16 %v1350
    %v2525 = vunpack.c.h.b16 %v1350
    %v2526 = vunpack.c.l.b16 %v1351
    %v2527 = vunpack.c.h.b16 %v1351
    %v2528 = vunpack.c.l.b16 %v1352
    %v2529 = vunpack.c.h.b16 %v1352
    %v2530 = vunpack.c.l.b16 %v1353
    %v2531 = vunpack.c.h.b16 %v1353
    %v2532 = vunpack.c.l.b16 %v1354
    %v2533 = vunpack.c.h.b16 %v1354
    %v2534 = vunpack.c.l.b16 %v1355
    %v2535 = vunpack.c.h.b16 %v1355
    %v2536 = vunpack.c.l.b16 %v1356
    %v2537 = vunpack.c.h.b16 %v1356
    %v2538 = vunpack.c.l.b16 %v1357
    %v2539 = vunpack.c.h.b16 %v1357
    %v2540 = vunpack.c.l.b16 %v1358
    %v2541 = vunpack.c.h.b16 %v1358
    %v2542 = vunpack.c.l.b16 %v1359
    %v2543 = vunpack.c.h.b16 %v1359
    %v2544 = vunpack.c.l.b16 %v1360
    %v2545 = vunpack.c.h.b16 %v1360
    %v2546 = vunpack.c.l.b16 %v1361
    %v2547 = vunpack.c.h.b16 %v1361
    %v2548 = vunpack.c.l.b16 %v1362
    %v2549 = vunpack.c.h.b16 %v1362
    %v2550 = vunpack.c.l.b16 %v1363
    %v2551 = vunpack.c.h.b16 %v1363
    %v2552 = vunpack.c.l.b16 %v1364
    %v2553 = vunpack.c.h.b16 %v1364
    %v2554 = vunpack.c.l.b16 %v1365
    %v2555 = vunpack.c.h.b16 %v1365
    %v2556 = vunpack.c.l.b16 %v1366
    %v2557 = vunpack.c.h.b16 %v1366
    %v2558 = vunpack.c.l.b16 %v1367
    %v2559 = vunpack.c.h.b16 %v1367
    %v2560 = vunpack.c.l.b16 %v1368
    %v2561 = vunpack.c.h.b16 %v1368
    %v2562 = vunpack.c.l.b16 %v1369
    %v2563 = vunpack.c.h.b16 %v1369
    %v2564 = vunpack.c.l.b16 %v1370
    %v2565 = vunpack.c.h.b16 %v1370
    %v2566 = vunpack.c.l.b16 %v1371
    %v2567 = vunpack.c.h.b16 %v1371
    %v2568 = vunpack.c.l.b16 %v1372
    %v2569 = vunpack.c.h.b16 %v1372
    %v2570 = vunpack.c.l.b16 %v1373
    %v2571 = vunpack.c.h.b16 %v1373
    %v2572 = vunpack.c.l.b16 %v1374
    %v2573 = vunpack.c.h.b16 %v1374
    %v2574 = vunpack.c.l.b16 %v1375
    %v2575 = vunpack.c.h.b16 %v1375
    %v2576 = vunpack.c.l.b16 %v1376
    %v2577 = vunpack.c.h.b16 %v1376
    %v2578 = vunpack.c.l.b16 %v1377
    %v2579 = vunpack.c.h.b16 %v1377
    %v2580 = vunpack.c.l.b16 %v1378
    %v2581 = vunpack.c.h.b16 %v1378
    %v2582 = vunpack.c.l.b16 %v1379
    %v2583 = vunpack.c.h.b16 %v1379
    %v2584 = vunpack.c.l.b16 %v1380
    %v2585 = vunpack.c.h.b16 %v1380
    %v2586 = vunpack.c.l.b16 %v1381
    %v2587 = vunpack.c.h.b16 %v1381
    %v2588 = vunpack.c.l.b16 %v1382
    %v2589 = vunpack.c.h.b16 %v1382
    %v2590 = vunpack.c.l.b16 %v1383
    %v2591 = vunpack.c.h.b16 %v1383
    %v2592 = vunpack.c.l.b16 %v1384
    %v2593 = vunpack.c.h.b16 %v1384
    %v2594 = vunpack.c.l.b16 %v1385
    %v2595 = vunpack.c.h.b16 %v1385
    %v2596 = vunpack.c.l.b16 %v1386
    %v2597 = vunpack.c.h.b16 %v1386
    %v2598 = vunpack.c.l.b16 %v1387
    %v2599 = vunpack.c.h.b16 %v1387
    %v2600 = vunpack.c.l.b16 %v1388
    %v2601 = vunpack.c.h.b16 %v1388
    %v2602 = vunpack.c.l.b16 %v1389
    %v2603 = vunpack.c.h.b16 %v1389
    %v2604 = vunpack.c.l.b16 %v1390
    %v2605 = vunpack.c.h.b16 %v1390
    %v2606 = vunpack.c.l.b16 %v1391
    %v2607 = vunpack.c.h.b16 %v1391
    %v2608 = vunpack.c.l.b16 %v1392
    %v2609 = vunpack.c.h.b16 %v1392
    %v2610 = vunpack.c.l.b16 %v1393
    %v2611 = vunpack.c.h.b16 %v1393
    %v2612 = vunpack.c.l.b16 %v1394
    %v2613 = vunpack.c.h.b16 %v1394
    %v2614 = vunpack.c.l.b16 %v1395
    %v2615 = vunpack.c.h.b16 %v1395
    %v2616 = vunpack.c.l.b16 %v1396
    %v2617 = vunpack.c.h.b16 %v1396
    %v2618 = vunpack.c.l.b16 %v1397
    %v2619 = vunpack.c.h.b16 %v1397
    %v2620 = vunpack.c.l.b16 %v1398
    %v2621 = vunpack.c.h.b16 %v1398
    %v2622 = vunpack.c.l.b16 %v1399
    %v2623 = vunpack.c.h.b16 %v1399
    %v2624 = vunpack.c.l.b16 %v1400
    %v2625 = vunpack.c.h.b16 %v1400
    %v2626 = vunpack.c.l.b16 %v1401
    %v2627 = vunpack.c.h.b16 %v1401
    %v2628 = vunpack.c.l.b16 %v1402
    %v2629 = vunpack.c.h.b16 %v1402
    %v2630 = vunpack.c.l.b16 %v1403
    %v2631 = vunpack.c.h.b16 %v1403
    %v2632 = vunpack.c.l.b16 %v1404
    %v2633 = vunpack.c.h.b16 %v1404
    %v2634 = vunpack.c.l.b16 %v1405
    %v2635 = vunpack.c.h.b16 %v1405
    %v2636 = vunpack.c.l.b16 %v1406
    %v2637 = vunpack.c.h.b16 %v1406
    %v2638 = vunpack.c.l.b16 %v1407
    %v2639 = vunpack.c.h.b16 %v1407
    %v2640 = vunpack.c.l.b16 %v1408
    %v2641 = vunpack.c.h.b16 %v1408
    %v2642 = vunpack.c.l.b16 %v1409
    %v2643 = vunpack.c.h.b16 %v1409
    %v2644 = vunpack.c.l.b16 %v1410
    %v2645 = vunpack.c.h.b16 %v1410
    %v2646 = vunpack.c.l.b16 %v1411
    %v2647 = vunpack.c.h.b16 %v1411
    %v2648 = vunpack.c.l.b16 %v1412
    %v2649 = vunpack.c.h.b16 %v1412
    %v2650 = vunpack.c.l.b16 %v1413
    %v2651 = vunpack.c.h.b16 %v1413
    %v2652 = vunpack.c.l.b16 %v1414
    %v2653 = vunpack.c.h.b16 %v1414
    %v2654 = vunpack.c.l.b16 %v1415
    %v2655 = vunpack.c.h.b16 %v1415
    %v2656 = vunpack.c.l.b16 %v1416
    %v2657 = vunpack.c.h.b16 %v1416
    %v2658 = vunpack.c.l.b16 %v1417
    %v2659 = vunpack.c.h.b16 %v1417
    %v2660 = vunpack.c.l.b16 %v1418
    %v2661 = vunpack.c.h.b16 %v1418
    %v2662 = vunpack.c.l.b16 %v1419
    %v2663 = vunpack.c.h.b16 %v1419
    %v2664 = vunpack.c.l.b16 %v1420
    %v2665 = vunpack.c.h.b16 %v1420
    %v2666 = vunpack.c.l.b16 %v1421
    %v2667 = vunpack.c.h.b16 %v1421
    %v2668 = vunpack.c.l.b16 %v1422
    %v2669 = vunpack.c.h.b16 %v1422
    %v2670 = vunpack.c.l.b16 %v1423
    %v2671 = vunpack.c.h.b16 %v1423
    %v2672 = vunpack.c.l.b16 %v1424
    %v2673 = vunpack.c.h.b16 %v1424
    %v2674 = vunpack.c.l.b16 %v1425
    %v2675 = vunpack.c.h.b16 %v1425
    %v2676 = vunpack.c.l.b16 %v1426
    %v2677 = vunpack.c.h.b16 %v1426
    %v2678 = vunpack.c.l.b16 %v1427
    %v2679 = vunpack.c.h.b16 %v1427
    %v2680 = vunpack.c.l.b16 %v1428
    %v2681 = vunpack.c.h.b16 %v1428
    %v2682 = vunpack.c.l.b16 %v1429
    %v2683 = vunpack.c.h.b16 %v1429
    %v2684 = vunpack.c.l.b16 %v1430
    %v2685 = vunpack.c.h.b16 %v1430
    %v2686 = vunpack.c.l.b16 %v1431
    %v2687 = vunpack.c.h.b16 %v1431
    %v2688 = vunpack.c.l.b16 %v1432
    %v2689 = vunpack.c.h.b16 %v1432
    %v2690 = vunpack.c.l.b16 %v1433
    %v2691 = vunpack.c.h.b16 %v1433
    %v2692 = vunpack.c.l.b16 %v1434
    %v2693 = vunpack.c.h.b16 %v1434
    %v2694 = vunpack.c.l.b16 %v1435
    %v2695 = vunpack.c.h.b16 %v1435
    %v2696 = vunpack.c.l.b16 %v1436
    %v2697 = vunpack.c.h.b16 %v1436
    %v2698 = vunpack.c.l.b16 %v1437
    %v2699 = vunpack.c.h.b16 %v1437
    %v2700 = vunpack.c.l.b16 %v1438
    %v2701 = vunpack.c.h.b16 %v1438
    %v2702 = vunpack.c.l.b16 %v1439
    %v2703 = vunpack.c.h.b16 %v1439
    %v2704 = vunpack.c.l.b16 %v1440
    %v2705 = vunpack.c.h.b16 %v1440
    %v2706 = vunpack.c.l.b16 %v1441
    %v2707 = vunpack.c.h.b16 %v1441
    %v2708 = vunpack.c.l.b16 %v1442
    %v2709 = vunpack.c.h.b16 %v1442
    %v2710 = vunpack.c.l.b16 %v1443
    %v2711 = vunpack.c.h.b16 %v1443
    %v2712 = vunpack.c.l.b16 %v1444
    %v2713 = vunpack.c.h.b16 %v1444
    %v2714 = vunpack.c.l.b16 %v1445
    %v2715 = vunpack.c.h.b16 %v1445
    %v2716 = vunpack.c.l.b16 %v1446
    %v2717 = vunpack.c.h.b16 %v1446
    %v2718 = vunpack.c.l.b16 %v1447
    %v2719 = vunpack.c.h.b16 %v1447
    %v2720 = vunpack.c.l.b16 %v1448
    %v2721 = vunpack.c.h.b16 %v1448
    %v2722 = vunpack.c.l.b16 %v1449
    %v2723 = vunpack.c.h.b16 %v1449
    %v2724 = vunpack.c.l.b16 %v1450
    %v2725 = vunpack.c.h.b16 %v1450
    %v2726 = vunpack.c.l.b16 %v1451
    %v2727 = vunpack.c.h.b16 %v1451
    %v2728 = vunpack.c.l.b16 %v1452
    %v2729 = vunpack.c.h.b16 %v1452
    %v2730 = vunpack.c.l.b16 %v1453
    %v2731 = vunpack.c.h.b16 %v1453
    %v2732 = vunpack.c.l.b16 %v1454
    %v2733 = vunpack.c.h.b16 %v1454
    %v2734 = vunpack.c.l.b16 %v1455
    %v2735 = vunpack.c.h.b16 %v1455
    %v2736 = vunpack.c.l.b16 %v1456
    %v2737 = vunpack.c.h.b16 %v1456
    %v2738 = vunpack.c.l.b16 %v1457
    %v2739 = vunpack.c.h.b16 %v1457
    %v2740 = vunpack.c.l.b16 %v1458
    %v2741 = vunpack.c.h.b16 %v1458
    %v2742 = vunpack.c.l.b16 %v1459
    %v2743 = vunpack.c.h.b16 %v1459
    %v2744 = vunpack.c.l.b16 %v1460
    %v2745 = vunpack.c.h.b16 %v1460
    %v2746 = vunpack.c.l.b16 %v1461
    %v2747 = vunpack.c.h.b16 %v1461
    %v2748 = vunpack.c.l.b16 %v1462
    %v2749 = vunpack.c.h.b16 %v1462
    %v2750 = vunpack.c.l.b16 %v1463
    %v2751 = vunpack.c.h.b16 %v1463
    %v2752 = vunpack.c.l.b16 %v1464
    %v2753 = vunpack.c.h.b16 %v1464
    %v2754 = vunpack.c.l.b16 %v1465
    %v2755 = vunpack.c.h.b16 %v1465
    %v2756 = vunpack.c.l.b16 %v1466
    %v2757 = vunpack.c.h.b16 %v1466
    %v2758 = vunpack.c.l.b16 %v1467
    %v2759 = vunpack.c.h.b16 %v1467
    %v2760 = vunpack.c.l.b16 %v1468
    %v2761 = vunpack.c.h.b16 %v1468
    %v2762 = vunpack.c.l.b16 %v1469
    %v2763 = vunpack.c.h.b16 %v1469
    %v2764 = vunpack.c.l.b16 %v1470
    %v2765 = vunpack.c.h.b16 %v1470
    %v2766 = vunpack.c.l.b16 %v1471
    %v2767 = vunpack.c.h.b16 %v1471
    %v2768 = vunpack.c.l.b16 %v1472
    %v2769 = vunpack.c.h.b16 %v1472
    %v2770 = vunpack.c.l.b16 %v1473
    %v2771 = vunpack.c.h.b16 %v1473
    %v2772 = vunpack.c.l.b16 %v1474
    %v2773 = vunpack.c.h.b16 %v1474
    %v2774 = vunpack.c.l.b16 %v1475
    %v2775 = vunpack.c.h.b16 %v1475
    %v2776 = vunpack.c.l.b16 %v1476
    %v2777 = vunpack.c.h.b16 %v1476
    %v2778 = vunpack.c.l.b16 %v1477
    %v2779 = vunpack.c.h.b16 %v1477
    %v2780 = vunpack.c.l.b16 %v1478
    %v2781 = vunpack.c.h.b16 %v1478
    %v2782 = vunpack.c.l.b16 %v1479
    %v2783 = vunpack.c.h.b16 %v1479
    %v2784 = vunpack.c.l.b16 %v1480
    %v2785 = vunpack.c.h.b16 %v1480
    %v2786 = vunpack.c.l.b16 %v1481
    %v2787 = vunpack.c.h.b16 %v1481
    %v2788 = vunpack.c.l.b16 %v1482
    %v2789 = vunpack.c.h.b16 %v1482
    %v2790 = vunpack.c.l.b16 %v1483
    %v2791 = vunpack.c.h.b16 %v1483
    %v2792 = vunpack.c.l.b16 %v1484
    %v2793 = vunpack.c.h.b16 %v1484
    %v2794 = vunpack.c.l.b16 %v1485
    %v2795 = vunpack.c.h.b16 %v1485
    %v2796 = vunpack.c.l.b16 %v1486
    %v2797 = vunpack.c.h.b16 %v1486
    %v2798 = vunpack.c.l.b16 %v1487
    %v2799 = vunpack.c.h.b16 %v1487
    %v2800 = vunpack.c.l.b16 %v1488
    %v2801 = vunpack.c.h.b16 %v1488
    %v2802 = vunpack.c.l.b16 %v1489
    %v2803 = vunpack.c.h.b16 %v1489
    %v2804 = vunpack.c.l.b16 %v1490
    %v2805 = vunpack.c.h.b16 %v1490
    %v2806 = vunpack.c.l.b16 %v1491
    %v2807 = vunpack.c.h.b16 %v1491
    %v2808 = vunpack.c.l.b16 %v1492
    %v2809 = vunpack.c.h.b16 %v1492
    %v2810 = vunpack.c.l.b16 %v1493
    %v2811 = vunpack.c.h.b16 %v1493
    %v2812 = vunpack.c.l.b16 %v1494
    %v2813 = vunpack.c.h.b16 %v1494
    %v2814 = vunpack.c.l.b16 %v1495
    %v2815 = vunpack.c.h.b16 %v1495
    %v2816 = vunpack.c.l.b16 %v1496
    %v2817 = vunpack.c.h.b16 %v1496
    %v2818 = vunpack.c.l.b16 %v1497
    %v2819 = vunpack.c.h.b16 %v1497
    %v2820 = vunpack.c.l.b16 %v1498
    %v2821 = vunpack.c.h.b16 %v1498
    %v2822 = vunpack.c.l.b16 %v1499
    %v2823 = vunpack.c.h.b16 %v1499
    %v2824 = vunpack.c.l.b16 %v1500
    %v2825 = vunpack.c.h.b16 %v1500
    %v2826 = vunpack.c.l.b16 %v1501
    %v2827 = vunpack.c.h.b16 %v1501
    %v2828 = vunpack.c.l.b16 %v1502
    %v2829 = vunpack.c.h.b16 %v1502
    %v2830 = vunpack.c.l.b16 %v1503
    %v2831 = vunpack.c.h.b16 %v1503
    %v2832 = vunpack.c.l.b16 %v1504
    %v2833 = vunpack.c.h.b16 %v1504
    %v2834 = vunpack.c.l.b16 %v1505
    %v2835 = vunpack.c.h.b16 %v1505
    %v2836 = vunpack.c.l.b16 %v1506
    %v2837 = vunpack.c.h.b16 %v1506
    %v2838 = vunpack.c.l.b16 %v1507
    %v2839 = vunpack.c.h.b16 %v1507
    %v2840 = vunpack.c.l.b16 %v1508
    %v2841 = vunpack.c.h.b16 %v1508
    %v2842 = vunpack.c.l.b16 %v1509
    %v2843 = vunpack.c.h.b16 %v1509
    %v2844 = vunpack.c.l.b16 %v1510
    %v2845 = vunpack.c.h.b16 %v1510
    %v2846 = vunpack.c.l.b16 %v1511
    %v2847 = vunpack.c.h.b16 %v1511
    %v2848 = vunpack.c.l.b16 %v1512
    %v2849 = vunpack.c.h.b16 %v1512
    %v2850 = vunpack.c.l.b16 %v1513
    %v2851 = vunpack.c.h.b16 %v1513
    %v2852 = vunpack.c.l.b16 %v1514
    %v2853 = vunpack.c.h.b16 %v1514
    %v2854 = vunpack.c.l.b16 %v1515
    %v2855 = vunpack.c.h.b16 %v1515
    %v2856 = vunpack.c.l.b16 %v1516
    %v2857 = vunpack.c.h.b16 %v1516
    %v2858 = vunpack.c.l.b16 %v1517
    %v2859 = vunpack.c.h.b16 %v1517
    %v2860 = vunpack.c.l.b16 %v1518
    %v2861 = vunpack.c.h.b16 %v1518
    %v2862 = vunpack.c.l.b16 %v1519
    %v2863 = vunpack.c.h.b16 %v1519
    %v2864 = vunpack.c.l.b16 %v1520
    %v2865 = vunpack.c.h.b16 %v1520
    %v2866 = vunpack.c.l.b16 %v1521
    %v2867 = vunpack.c.h.b16 %v1521
    %v2868 = vunpack.c.l.b16 %v1522
    %v2869 = vunpack.c.h.b16 %v1522
    %v2870 = vunpack.c.l.b16 %v1523
    %v2871 = vunpack.c.h.b16 %v1523
    %v2872 = vunpack.c.l.b16 %v1524
    %v2873 = vunpack.c.h.b16 %v1524
    %v2874 = vunpack.c.l.b16 %v1525
    %v2875 = vunpack.c.h.b16 %v1525
    %v2876 = vunpack.c.l.b16 %v1526
    %v2877 = vunpack.c.h.b16 %v1526
    %v2878 = vunpack.c.l.b16 %v1527
    %v2879 = vunpack.c.h.b16 %v1527
    %v2880 = vunpack.c.l.b16 %v1528
    %v2881 = vunpack.c.h.b16 %v1528
    %v2882 = vunpack.c.l.b16 %v1529
    %v2883 = vunpack.c.h.b16 %v1529
    %v2884 = vunpack.c.l.b16 %v1530
    %v2885 = vunpack.c.h.b16 %v1530
    %v2886 = vunpack.c.l.b16 %v1531
    %v2887 = vunpack.c.h.b16 %v1531
    %v2888 = vunpack.c.l.b16 %v1532
    %v2889 = vunpack.c.h.b16 %v1532
    %v2890 = vunpack.c.l.b16 %v1533
    %v2891 = vunpack.c.h.b16 %v1533
    %v2892 = vunpack.c.l.b16 %v1534
    %v2893 = vunpack.c.h.b16 %v1534
    %v2894 = vunpack.c.l.b16 %v1535
    %v2895 = vunpack.c.h.b16 %v1535
    %v2896 = vunpack.c.l.b16 %v1536
    %v2897 = vunpack.c.h.b16 %v1536
    %v2898 = vunpack.c.l.b16 %v1537
    %v2899 = vunpack.c.h.b16 %v1537
    %v2900 = vunpack.c.l.b16 %v1538
    %v2901 = vunpack.c.h.b16 %v1538
    %v2902 = vunpack.c.l.b16 %v1539
    %v2903 = vunpack.c.h.b16 %v1539
    %v2904 = vunpack.c.l.b16 %v1540
    %v2905 = vunpack.c.h.b16 %v1540
    %v2906 = vunpack.c.l.b16 %v1541
    %v2907 = vunpack.c.h.b16 %v1541
    %v2908 = vunpack.c.l.b16 %v1542
    %v2909 = vunpack.c.h.b16 %v1542
    %v2910 = vunpack.c.l.b16 %v1543
    %v2911 = vunpack.c.h.b16 %v1543
    %v2912 = vunpack.c.l.b16 %v1544
    %v2913 = vunpack.c.h.b16 %v1544
    %v2914 = vunpack.c.l.b16 %v1545
    %v2915 = vunpack.c.h.b16 %v1545
    %v2916 = vunpack.c.l.b16 %v1546
    %v2917 = vunpack.c.h.b16 %v1546
    %v2918 = vunpack.c.l.b16 %v1547
    %v2919 = vunpack.c.h.b16 %v1547
    %v2920 = vunpack.c.l.b16 %v1548
    %v2921 = vunpack.c.h.b16 %v1548
    %v2922 = vunpack.c.l.b16 %v1549
    %v2923 = vunpack.c.h.b16 %v1549
    %v2924 = vunpack.c.l.b16 %v1550
    %v2925 = vunpack.c.h.b16 %v1550
    %v2926 = vunpack.c.l.b16 %v1551
    %v2927 = vunpack.c.h.b16 %v1551
    %v2928 = vunpack.c.l.b16 %v1552
    %v2929 = vunpack.c.h.b16 %v1552
    %v2930 = vunpack.c.l.b16 %v1553
    %v2931 = vunpack.c.h.b16 %v1553
    %v2932 = vunpack.c.l.b16 %v1554
    %v2933 = vunpack.c.h.b16 %v1554
    %v2934 = vunpack.c.l.b16 %v1555
    %v2935 = vunpack.c.h.b16 %v1555
    %v2936 = vunpack.c.l.b16 %v1556
    %v2937 = vunpack.c.h.b16 %v1556
    %v2938 = vunpack.c.l.b16 %v1557
    %v2939 = vunpack.c.h.b16 %v1557
    %v2940 = vunpack.c.l.b16 %v1558
    %v2941 = vunpack.c.h.b16 %v1558
    %v2942 = vunpack.c.l.b16 %v1559
    %v2943 = vunpack.c.h.b16 %v1559
    %v2944 = vunpack.c.l.b16 %v1560
    %v2945 = vunpack.c.h.b16 %v1560
    %v2946 = vunpack.c.l.b16 %v1561
    %v2947 = vunpack.c.h.b16 %v1561
    %v2948 = vunpack.c.l.b16 %v1562
    %v2949 = vunpack.c.h.b16 %v1562
    %v2950 = vunpack.c.l.b16 %v1563
    %v2951 = vunpack.c.h.b16 %v1563
    %v2952 = vunpack.c.l.b16 %v1564
    %v2953 = vunpack.c.h.b16 %v1564
    %v2954 = vunpack.c.l.b16 %v1565
    %v2955 = vunpack.c.h.b16 %v1565
    %v2956 = vunpack.c.l.b16 %v1566
    %v2957 = vunpack.c.h.b16 %v1566
    %v2958 = vunpack.c.l.b16 %v1567
    %v2959 = vunpack.c.h.b16 %v1567
    %v2960 = vunpack.c.l.b16 %v1568
    %v2961 = vunpack.c.h.b16 %v1568
    %v2962 = vunpack.c.l.b16 %v1569
    %v2963 = vunpack.c.h.b16 %v1569
    %v2964 = vunpack.c.l.b16 %v1570
    %v2965 = vunpack.c.h.b16 %v1570
    %v2966 = vunpack.c.l.b16 %v1571
    %v2967 = vunpack.c.h.b16 %v1571
    %v2968 = vunpack.c.l.b16 %v1572
    %v2969 = vunpack.c.h.b16 %v1572
    %v2970 = vunpack.c.l.b16 %v1573
    %v2971 = vunpack.c.h.b16 %v1573
    %v2972 = vunpack.c.l.b16 %v1574
    %v2973 = vunpack.c.h.b16 %v1574
    %v2974 = vunpack.c.l.b16 %v1575
    %v2975 = vunpack.c.h.b16 %v1575
    %v2976 = vunpack.c.l.b16 %v1576
    %v2977 = vunpack.c.h.b16 %v1576
    %v2978 = vunpack.c.l.b16 %v1577
    %v2979 = vunpack.c.h.b16 %v1577
    %v2980 = vunpack.c.l.b16 %v1578
    %v2981 = vunpack.c.h.b16 %v1578
    %v2982 = vunpack.c.l.b16 %v1579
    %v2983 = vunpack.c.h.b16 %v1579
    %v2984 = vunpack.c.l.b16 %v1580
    %v2985 = vunpack.c.h.b16 %v1580
    %v2986 = vunpack.c.l.b16 %v1581
    %v2987 = vunpack.c.h.b16 %v1581
    %v2988 = vunpack.c.l.b16 %v1582
    %v2989 = vunpack.c.h.b16 %v1582
    %v2990 = vunpack.c.l.b16 %v1583
    %v2991 = vunpack.c.h.b16 %v1583
    %v2992 = vunpack.c.l.b16 %v1584
    %v2993 = vunpack.c.h.b16 %v1584
    %v2994 = vunpack.c.l.b16 %v1585
    %v2995 = vunpack.c.h.b16 %v1585
    %v2996 = vunpack.c.l.b16 %v1586
    %v2997 = vunpack.c.h.b16 %v1586
    %v2998 = vunpack.c.l.b16 %v1587
    %v2999 = vunpack.c.h.b16 %v1587
    %v3000 = vunpack.c.l.b16 %v1588
    %v3001 = vunpack.c.h.b16 %v1588
    %v3002 = vunpack.c.l.b16 %v1589
    %v3003 = vunpack.c.h.b16 %v1589
    %v3004 = vunpack.c.l.b16 %v1590
    %v3005 = vunpack.c.h.b16 %v1590
    %v3006 = vunpack.c.l.b16 %v1591
    %v3007 = vunpack.c.h.b16 %v1591
    %v3008 = vunpack.c.l.b16 %v1592
    %v3009 = vunpack.c.h.b16 %v1592
    %v3010 = vunpack.c.l.b16 %v1593
    %v3011 = vunpack.c.h.b16 %v1593
    %v3012 = vunpack.c.l.b16 %v1594
    %v3013 = vunpack.c.h.b16 %v1594
    %v3014 = vunpack.c.l.b16 %v1595
    %v3015 = vunpack.c.h.b16 %v1595
    %v3016 = vunpack.c.l.b16 %v1596
    %v3017 = vunpack.c.h.b16 %v1596
    %v3018 = vunpack.c.l.b16 %v1597
    %v3019 = vunpack.c.h.b16 %v1597
    %v3020 = vunpack.c.l.b16 %v1598
    %v3021 = vunpack.c.h.b16 %v1598
    %v3022 = vunpack.c.l.b16 %v1599
    %v3023 = vunpack.c.h.b16 %v1599
    %v3024 = vunpack.c.l.b16 %v1600
    %v3025 = vunpack.c.h.b16 %v1600
    %v3026 = vunpack.c.l.b16 %v1601
    %v3027 = vunpack.c.h.b16 %v1601
    %v3028 = vunpack.c.l.b16 %v1602
    %v3029 = vunpack.c.h.b16 %v1602
    %v3030 = vunpack.c.l.b16 %v1603
    %v3031 = vunpack.c.h.b16 %v1603
    %v3032 = vunpack.c.l.b16 %v1604
    %v3033 = vunpack.c.h.b16 %v1604
    %v3034 = vunpack.c.l.b16 %v1605
    %v3035 = vunpack.c.h.b16 %v1605
    %v3036 = vunpack.c.l.b16 %v1606
    %v3037 = vunpack.c.h.b16 %v1606
    %v3038 = vunpack.c.l.b16 %v1607
    %v3039 = vunpack.c.h.b16 %v1607
    %v3040 = vunpack.c.l.b16 %v1608
    %v3041 = vunpack.c.h.b16 %v1608
    %v3042 = vunpack.c.l.b16 %v1609
    %v3043 = vunpack.c.h.b16 %v1609
    %v3044 = vunpack.c.l.b16 %v1610
    %v3045 = vunpack.c.h.b16 %v1610
    %v3046 = vunpack.c.l.b16 %v1611
    %v3047 = vunpack.c.h.b16 %v1611
    %v3048 = vunpack.c.l.b16 %v1612
    %v3049 = vunpack.c.h.b16 %v1612
    %v3050 = vunpack.c.l.b16 %v1613
    %v3051 = vunpack.c.h.b16 %v1613
    %v3052 = vunpack.c.l.b16 %v1614
    %v3053 = vunpack.c.h.b16 %v1614
    %v3054 = vunpack.c.l.b16 %v1615
    %v3055 = vunpack.c.h.b16 %v1615
    %v3056 = vunpack.c.l.b16 %v1616
    %v3057 = vunpack.c.h.b16 %v1616
    %v3058 = vunpack.c.l.b16 %v1617
    %v3059 = vunpack.c.h.b16 %v1617
    %v3060 = vunpack.c.l.b16 %v1618
    %v3061 = vunpack.c.h.b16 %v1618
    %v3062 = vunpack.c.l.b16 %v1619
    %v3063 = vunpack.c.h.b16 %v1619
    %v3064 = vunpack.c.l.b16 %v1620
    %v3065 = vunpack.c.h.b16 %v1620
    %v3066 = vunpack.c.l.b16 %v1621
    %v3067 = vunpack.c.h.b16 %v1621
    %v3068 = vunpack.c.l.b16 %v1622
    %v3069 = vunpack.c.h.b16 %v1622
    %v3070 = vunpack.c.l.b16 %v1623
    %v3071 = vunpack.c.h.b16 %v1623
    %v3072 = vunpack.c.l.b16 %v1624
    %v3073 = vunpack.c.h.b16 %v1624
    %v3074 = vunpack.c.l.b16 %v1625
    %v3075 = vunpack.c.h.b16 %v1625
    %v3076 = vunpack.c.l.b16 %v1626
    %v3077 = vunpack.c.h.b16 %v1626
    %v3078 = vunpack.c.l.b16 %v1627
    %v3079 = vunpack.c.h.b16 %v1627
    %v3080 = vunpack.c.l.b16 %v1628
    %v3081 = vunpack.c.h.b16 %v1628
    %v3082 = vunpack.c.l.b16 %v1629
    %v3083 = vunpack.c.h.b16 %v1629
    %v3084 = vunpack.c.l.b16 %v1630
    %v3085 = vunpack.c.h.b16 %v1630
    %v3086 = vunpack.c.l.b16 %v1631
    %v3087 = vunpack.c.h.b16 %v1631
    %v3088 = vunpack.c.l.b16 %v1632
    %v3089 = vunpack.c.h.b16 %v1632
    %v3090 = vunpack.c.l.b16 %v1633
    %v3091 = vunpack.c.h.b16 %v1633
    %v3092 = vunpack.c.l.b16 %v1634
    %v3093 = vunpack.c.h.b16 %v1634
    %v3094 = vunpack.c.l.b16 %v1635
    %v3095 = vunpack.c.h.b16 %v1635
    %v3096 = vunpack.c.l.b16 %v1636
    %v3097 = vunpack.c.h.b16 %v1636
    %v3098 = vunpack.c.l.b16 %v1637
    %v3099 = vunpack.c.h.b16 %v1637
    %v3100 = vunpack.c.l.b16 %v1638
    %v3101 = vunpack.c.h.b16 %v1638
    %v3102 = vunpack.c.l.b16 %v1639
    %v3103 = vunpack.c.h.b16 %v1639
    %v3104 = vunpack.c.l.b16 %v1640
    %v3105 = vunpack.c.h.b16 %v1640
    %v3106 = vunpack.c.l.b16 %v1641
    %v3107 = vunpack.c.h.b16 %v1641
    %v3108 = vunpack.c.l.b16 %v1642
    %v3109 = vunpack.c.h.b16 %v1642
    %v3110 = vunpack.c.l.b16 %v1643
    %v3111 = vunpack.c.h.b16 %v1643
    %v3112 = vunpack.c.l.b16 %v1644
    %v3113 = vunpack.c.h.b16 %v1644
    %v3114 = vunpack.c.l.b16 %v1645
    %v3115 = vunpack.c.h.b16 %v1645
    %v3116 = vunpack.c.l.b16 %v1646
    %v3117 = vunpack.c.h.b16 %v1646
    %v3118 = vunpack.c.l.b16 %v1647
    %v3119 = vunpack.c.h.b16 %v1647
    %v3120 = vunpack.c.l.b16 %v1648
    %v3121 = vunpack.c.h.b16 %v1648
    %v3122 = vunpack.c.l.b16 %v1649
    %v3123 = vunpack.c.h.b16 %v1649
    %v3124 = vunpack.c.l.b16 %v1650
    %v3125 = vunpack.c.h.b16 %v1650
    %v3126 = vunpack.c.l.b16 %v1651
    %v3127 = vunpack.c.h.b16 %v1651
    %v3128 = vunpack.c.l.b16 %v1652
    %v3129 = vunpack.c.h.b16 %v1652
    %v3130 = vunpack.c.l.b16 %v1653
    %v3131 = vunpack.c.h.b16 %v1653
    %v3132 = vunpack.c.l.b16 %v1654
    %v3133 = vunpack.c.h.b16 %v1654
    %v3134 = vunpack.c.l.b16 %v1655
    %v3135 = vunpack.c.h.b16 %v1655
    %v3136 = vunpack.c.l.b16 %v1656
    %v3137 = vunpack.c.h.b16 %v1656
    %v3138 = vunpack.c.l.b16 %v1657
    %v3139 = vunpack.c.h.b16 %v1657
    %v3140 = vunpack.c.l.b16 %v1658
    %v3141 = vunpack.c.h.b16 %v1658
    %v3142 = vunpack.c.l.b16 %v1659
    %v3143 = vunpack.c.h.b16 %v1659
    %v3144 = vunpack.c.l.b16 %v1660
    %v3145 = vunpack.c.h.b16 %v1660
    %v3146 = vunpack.c.l.b16 %v1661
    %v3147 = vunpack.c.h.b16 %v1661
    %v3148 = vunpack.c.l.b16 %v1662
    %v3149 = vunpack.c.h.b16 %v1662
    %v3150 = vunpack.c.l.b16 %v1663
    %v3151 = vunpack.c.h.b16 %v1663
    %v3152 = vunpack.c.l.b16 %v1664
    %v3153 = vunpack.c.h.b16 %v1664
    %v3154 = vunpack.c.l.b16 %v1665
    %v3155 = vunpack.c.h.b16 %v1665
    %v3156 = vunpack.c.l.b16 %v1666
    %v3157 = vunpack.c.h.b16 %v1666
    %v3158 = vunpack.c.l.b16 %v1667
    %v3159 = vunpack.c.h.b16 %v1667
    %v3160 = vunpack.c.l.b16 %v1668
    %v3161 = vunpack.c.h.b16 %v1668
    %v3162 = vunpack.c.l.b16 %v1669
    %v3163 = vunpack.c.h.b16 %v1669
    %v3164 = vunpack.c.l.b16 %v1670
    %v3165 = vunpack.c.h.b16 %v1670
    %v3166 = vunpack.c.l.b16 %v1671
    %v3167 = vunpack.c.h.b16 %v1671
    %v3168 = vunpack.c.l.b16 %v1672
    %v3169 = vunpack.c.h.b16 %v1672
    %v3170 = vunpack.c.l.b16 %v1673
    %v3171 = vunpack.c.h.b16 %v1673
    %v3172 = vunpack.c.l.b16 %v1674
    %v3173 = vunpack.c.h.b16 %v1674
    %v3174 = vunpack.c.l.b16 %v1675
    %v3175 = vunpack.c.h.b16 %v1675
    %v3176 = vunpack.c.l.b16 %v1676
    %v3177 = vunpack.c.h.b16 %v1676
    %v3178 = vunpack.c.l.b16 %v1677
    %v3179 = vunpack.c.h.b16 %v1677
    %v3180 = vunpack.c.l.b16 %v1678
    %v3181 = vunpack.c.h.b16 %v1678
    %v3182 = vunpack.c.l.b16 %v1679
    %v3183 = vunpack.c.h.b16 %v1679
    %v3184 = vunpack.c.l.b16 %v1680
    %v3185 = vunpack.c.h.b16 %v1680
    %v3186 = vunpack.c.l.b16 %v1681
    %v3187 = vunpack.c.h.b16 %v1681
    %v3188 = vunpack.c.l.b16 %v1682
    %v3189 = vunpack.c.h.b16 %v1682
    %v3190 = vunpack.c.l.b16 %v1683
    %v3191 = vunpack.c.h.b16 %v1683
    %v3192 = vunpack.c.l.b16 %v1684
    %v3193 = vunpack.c.h.b16 %v1684
    %v3194 = vunpack.c.l.b16 %v1685
    %v3195 = vunpack.c.h.b16 %v1685
    %v3196 = vunpack.c.l.b16 %v1686
    %v3197 = vunpack.c.h.b16 %v1686
    %v3198 = vunpack.c.l.b16 %v1687
    %v3199 = vunpack.c.h.b16 %v1687
    %v3200 = vunpack.c.l.b16 %v1688
    %v3201 = vunpack.c.h.b16 %v1688
    %v3202 = vunpack.c.l.b16 %v1689
    %v3203 = vunpack.c.h.b16 %v1689
    %v3204 = vunpack.c.l.b16 %v1690
    %v3205 = vunpack.c.h.b16 %v1690
    %v3206 = vunpack.c.l.b16 %v1691
    %v3207 = vunpack.c.h.b16 %v1691
    %v3208 = vunpack.c.l.b16 %v1692
    %v3209 = vunpack.c.h.b16 %v1692
    %v3210 = vunpack.c.l.b16 %v1693
    %v3211 = vunpack.c.h.b16 %v1693
    %v3212 = vunpack.c.l.b16 %v1694
    %v3213 = vunpack.c.h.b16 %v1694
    %v3214 = vunpack.c.l.b16 %v1695
    %v3215 = vunpack.c.h.b16 %v1695
    %v3216 = vunpack.c.l.b16 %v1696
    %v3217 = vunpack.c.h.b16 %v1696
    %v3218 = vunpack.c.l.b16 %v1697
    %v3219 = vunpack.c.h.b16 %v1697
    %v3220 = vunpack.c.l.b16 %v1698
    %v3221 = vunpack.c.h.b16 %v1698
    %v3222 = vunpack.c.l.b16 %v1699
    %v3223 = vunpack.c.h.b16 %v1699
    %v3224 = vunpack.c.l.b16 %v1700
    %v3225 = vunpack.c.h.b16 %v1700
    %v3226 = vunpack.c.l.b16 %v1701
    %v3227 = vunpack.c.h.b16 %v1701
    %v3228 = vunpack.c.l.b16 %v1702
    %v3229 = vunpack.c.h.b16 %v1702
    %v3230 = vunpack.c.l.b16 %v1703
    %v3231 = vunpack.c.h.b16 %v1703
    %v3232 = vunpack.c.l.b16 %v1704
    %v3233 = vunpack.c.h.b16 %v1704
    %v3234 = vunpack.c.l.b16 %v1705
    %v3235 = vunpack.c.h.b16 %v1705
    %v3236 = vunpack.c.l.b16 %v1706
    %v3237 = vunpack.c.h.b16 %v1706
    %v3238 = vunpack.c.l.b16 %v1707
    %v3239 = vunpack.c.h.b16 %v1707
    %v3240 = vunpack.c.l.b16 %v1708
    %v3241 = vunpack.c.h.b16 %v1708
    %v3242 = vunpack.c.l.b16 %v1709
    %v3243 = vunpack.c.h.b16 %v1709
    %v3244 = vunpack.c.l.b16 %v1710
    %v3245 = vunpack.c.h.b16 %v1710
    %v3246 = vunpack.c.l.b16 %v1711
    %v3247 = vunpack.c.h.b16 %v1711
    %v3248 = vunpack.c.l.b16 %v1712
    %v3249 = vunpack.c.h.b16 %v1712
    %v3250 = vunpack.c.l.b16 %v1713
    %v3251 = vunpack.c.h.b16 %v1713
    %v3252 = vunpack.c.l.b16 %v1714
    %v3253 = vunpack.c.h.b16 %v1714
    %v3254 = vunpack.c.l.b16 %v1715
    %v3255 = vunpack.c.h.b16 %v1715
    %v3256 = vunpack.c.l.b16 %v1716
    %v3257 = vunpack.c.h.b16 %v1716
    %v3258 = vunpack.c.l.b16 %v1717
    %v3259 = vunpack.c.h.b16 %v1717
    %v3260 = vunpack.c.l.b16 %v1718
    %v3261 = vunpack.c.h.b16 %v1718
    %v3262 = vunpack.c.l.b16 %v1719
    %v3263 = vunpack.c.h.b16 %v1719
    %v3264 = vunpack.c.l.b16 %v1720
    %v3265 = vunpack.c.h.b16 %v1720
    %v3266 = vunpack.c.l.b16 %v1721
    %v3267 = vunpack.c.h.b16 %v1721
    %v3268 = vunpack.c.l.b16 %v1722
    %v3269 = vunpack.c.h.b16 %v1722
    %v3270 = vunpack.c.l.b16 %v1723
    %v3271 = vunpack.c.h.b16 %v1723
    %v3272 = vunpack.c.l.b16 %v1724
    %v3273 = vunpack.c.h.b16 %v1724
    %v3274 = vunpack.c.l.b16 %v1725
    %v3275 = vunpack.c.h.b16 %v1725
    %v3276 = vunpack.c.l.b16 %v1726
    %v3277 = vunpack.c.h.b16 %v1726
    %v3278 = vunpack.c.l.b16 %v1727
    %v3279 = vunpack.c.h.b16 %v1727
    %v3280 = vunpack.c.l.b16 %v1728
    %v3281 = vunpack.c.h.b16 %v1728
    %v3282 = vunpack.c.l.b16 %v1729
    %v3283 = vunpack.c.h.b16 %v1729
    %v3284 = vpack.c.b16 %v2268, %v2260
    %v3285 = vpack.c.b16 %v2269, %v2261
    %v3286 = vpack.c.b16 %v2270, %v2262
    %v3287 = vpack.c.b16 %v2271, %v2263
    %v3288 = vpack.c.b16 %v2272, %v2264
    %v3289 = vpack.c.b16 %v2273, %v2265
    %v3290 = vpack.c.b16 %v2274, %v2266
    %v3291 = vpack.c.b16 %v2275, %v2267
    %v3292 = vpack.c.b16 %v2284, %v2276
    %v3293 = vpack.c.b16 %v2285, %v2277
    %v3294 = vpack.c.b16 %v2286, %v2278
    %v3295 = vpack.c.b16 %v2287, %v2279
    %v3296 = vpack.c.b16 %v2288, %v2280
    %v3297 = vpack.c.b16 %v2289, %v2281
    %v3298 = vpack.c.b16 %v2290, %v2282
    %v3299 = vpack.c.b16 %v2291, %v2283
    %v3300 = vpack.c.b16 %v2300, %v2292
    %v3301 = vpack.c.b16 %v2301, %v2293
    %v3302 = vpack.c.b16 %v2302, %v2294
    %v3303 = vpack.c.b16 %v2303, %v2295
    %v3304 = vpack.c.b16 %v2304, %v2296
    %v3305 = vpack.c.b16 %v2305, %v2297
    %v3306 = vpack.c.b16 %v2306, %v2298
    %v3307 = vpack.c.b16 %v2307, %v2299
    %v3308 = vpack.c.b16 %v2316, %v2308
    %v3309 = vpack.c.b16 %v2317, %v2309
    %v3310 = vpack.c.b16 %v2318, %v2310
    %v3311 = vpack.c.b16 %v2319, %v2311
    %v3312 = vpack.c.b16 %v2320, %v2312
    %v3313 = vpack.c.b16 %v2321, %v2313
    %v3314 = vpack.c.b16 %v2322, %v2314
    %v3315 = vpack.c.b16 %v2323, %v2315
    %v3316 = vpack.c.b16 %v2332, %v2324
    %v3317 = vpack.c.b16 %v2333, %v2325
    %v3318 = vpack.c.b16 %v2334, %v2326
    %v3319 = vpack.c.b16 %v2335, %v2327
    %v3320 = vpack.c.b16 %v2336, %v2328
    %v3321 = vpack.c.b16 %v2337, %v2329
    %v3322 = vpack.c.b16 %v2338, %v2330
    %v3323 = vpack.c.b16 %v2339, %v2331
    %v3324 = vpack.c.b16 %v2348, %v2340
    %v3325 = vpack.c.b16 %v2349, %v2341
    %v3326 = vpack.c.b16 %v2350, %v2342
    %v3327 = vpack.c.b16 %v2351, %v2343
    %v3328 = vpack.c.b16 %v2352, %v2344
    %v3329 = vpack.c.b16 %v2353, %v2345
    %v3330 = vpack.c.b16 %v2354, %v2346
    %v3331 = vpack.c.b16 %v2355, %v2347
    %v3332 = vpack.c.b16 %v2364, %v2356
    %v3333 = vpack.c.b16 %v2365, %v2357
    %v3334 = vpack.c.b16 %v2366, %v2358
    %v3335 = vpack.c.b16 %v2367, %v2359
    %v3336 = vpack.c.b16 %v2368, %v2360
    %v3337 = vpack.c.b16 %v2369, %v2361
    %v3338 = vpack.c.b16 %v2370, %v2362
    %v3339 = vpack.c.b16 %v2371, %v2363
    %v3340 = vpack.c.b16 %v2380, %v2372
    %v3341 = vpack.c.b16 %v2381, %v2373
    %v3342 = vpack.c.b16 %v2382, %v2374
    %v3343 = vpack.c.b16 %v2383, %v2375
    %v3344 = vpack.c.b16 %v2384, %v2376
    %v3345 = vpack.c.b16 %v2385, %v2377
    %v3346 = vpack.c.b16 %v2386, %v2378
    %v3347 = vpack.c.b16 %v2387, %v2379
    %v3348 = vpack.c.b16 %v2396, %v2388
    %v3349 = vpack.c.b16 %v2397, %v2389
    %v3350 = vpack.c.b16 %v2398, %v2390
    %v3351 = vpack.c.b16 %v2399, %v2391
    %v3352 = vpack.c.b16 %v2400, %v2392
    %v3353 = vpack.c.b16 %v2401, %v2393
    %v3354 = vpack.c.b16 %v2402, %v2394
    %v3355 = vpack.c.b16 %v2403, %v2395
    %v3356 = vpack.c.b16 %v2412, %v2404
    %v3357 = vpack.c.b16 %v2413, %v2405
    %v3358 = vpack.c.b16 %v2414, %v2406
    %v3359 = vpack.c.b16 %v2415, %v2407
    %v3360 = vpack.c.b16 %v2416, %v2408
    %v3361 = vpack.c.b16 %v2417, %v2409
    %v3362 = vpack.c.b16 %v2418, %v2410
    %v3363 = vpack.c.b16 %v2419, %v2411
    %v3364 = vpack.c.b16 %v2428, %v2420
    %v3365 = vpack.c.b16 %v2429, %v2421
    %v3366 = vpack.c.b16 %v2430, %v2422
    %v3367 = vpack.c.b16 %v2431, %v2423
    %v3368 = vpack.c.b16 %v2432, %v2424
    %v3369 = vpack.c.b16 %v2433, %v2425
    %v3370 = vpack.c.b16 %v2434, %v2426
    %v3371 = vpack.c.b16 %v2435, %v2427
    %v3372 = vpack.c.b16 %v2444, %v2436
    %v3373 = vpack.c.b16 %v2445, %v2437
    %v3374 = vpack.c.b16 %v2446, %v2438
    %v3375 = vpack.c.b16 %v2447, %v2439
    %v3376 = vpack.c.b16 %v2448, %v2440
    %v3377 = vpack.c.b16 %v2449, %v2441
    %v3378 = vpack.c.b16 %v2450, %v2442
    %v3379 = vpack.c.b16 %v2451, %v2443
    %v3380 = vpack.c.b16 %v2460, %v2452
    %v3381 = vpack.c.b16 %v2461, %v2453
    %v3382 = vpack.c.b16 %v2462, %v2454
    %v3383 = vpack.c.b16 %v2463, %v2455
    %v3384 = vpack.c.b16 %v2464, %v2456
    %v3385 = vpack.c.b16 %v2465, %v2457
    %v3386 = vpack.c.b16 %v2466, %v2458
    %v3387 = vpack.c.b16 %v2467, %v2459
    %v3388 = vpack.c.b16 %v2476, %v2468
    %v3389 = vpack.c.b16 %v2477, %v2469
    %v3390 = vpack.c.b16 %v2478, %v2470
    %v3391 = vpack.c.b16 %v2479, %v2471
    %v3392 = vpack.c.b16 %v2480, %v2472
    %v3393 = vpack.c.b16 %v2481, %v2473
    %v3394 = vpack.c.b16 %v2482, %v2474
    %v3395 = vpack.c.b16 %v2483, %v2475
    %v3396 = vpack.c.b16 %v2492, %v2484
    %v3397 = vpack.c.b16 %v2493, %v2485
    %v3398 = vpack.c.b16 %v2494, %v2486
    %v3399 = vpack.c.b16 %v2495, %v2487
    %v3400 = vpack.c.b16 %v2496, %v2488
    %v3401 = vpack.c.b16 %v2497, %v2489
    %v3402 = vpack.c.b16 %v2498, %v2490
    %v3403 = vpack.c.b16 %v2499, %v2491
    %v3404 = vpack.c.b16 %v2508, %v2500
    %v3405 = vpack.c.b16 %v2509, %v2501
    %v3406 = vpack.c.b16 %v2510, %v2502
    %v3407 = vpack.c.b16 %v2511, %v2503
    %v3408 = vpack.c.b16 %v2512, %v2504
    %v3409 = vpack.c.b16 %v2513, %v2505
    %v3410 = vpack.c.b16 %v2514, %v2506
    %v3411 = vpack.c.b16 %v2515, %v2507
    %v3412 = vpack.c.b16 %v2524, %v2516
    %v3413 = vpack.c.b16 %v2525, %v2517
    %v3414 = vpack.c.b16 %v2526, %v2518
    %v3415 = vpack.c.b16 %v2527, %v2519
    %v3416 = vpack.c.b16 %v2528, %v2520
    %v3417 = vpack.c.b16 %v2529, %v2521
    %v3418 = vpack.c.b16 %v2530, %v2522
    %v3419 = vpack.c.b16 %v2531, %v2523
    %v3420 = vpack.c.b16 %v2540, %v2532
    %v3421 = vpack.c.b16 %v2541, %v2533
    %v3422 = vpack.c.b16 %v2542, %v2534
    %v3423 = vpack.c.b16 %v2543, %v2535
    %v3424 = vpack.c.b16 %v2544, %v2536
    %v3425 = vpack.c.b16 %v2545, %v2537
    %v3426 = vpack.c.b16 %v2546, %v2538
    %v3427 = vpack.c.b16 %v2547, %v2539
    %v3428 = vpack.c.b16 %v2556, %v2548
    %v3429 = vpack.c.b16 %v2557, %v2549
    %v3430 = vpack.c.b16 %v2558, %v2550
    %v3431 = vpack.c.b16 %v2559, %v2551
    %v3432 = vpack.c.b16 %v2560, %v2552
    %v3433 = vpack.c.b16 %v2561, %v2553
    %v3434 = vpack.c.b16 %v2562, %v2554
    %v3435 = vpack.c.b16 %v2563, %v2555
    %v3436 = vpack.c.b16 %v2572, %v2564
    %v3437 = vpack.c.b16 %v2573, %v2565
    %v3438 = vpack.c.b16 %v2574, %v2566
    %v3439 = vpack.c.b16 %v2575, %v2567
    %v3440 = vpack.c.b16 %v2576, %v2568
    %v3441 = vpack.c.b16 %v2577, %v2569
    %v3442 = vpack.c.b16 %v2578, %v2570
    %v3443 = vpack.c.b16 %v2579, %v2571
    %v3444 = vpack.c.b16 %v2588, %v2580
    %v3445 = vpack.c.b16 %v2589, %v2581
    %v3446 = vpack.c.b16 %v2590, %v2582
    %v3447 = vpack.c.b16 %v2591, %v2583
    %v3448 = vpack.c.b16 %v2592, %v2584
    %v3449 = vpack.c.b16 %v2593, %v2585
    %v3450 = vpack.c.b16 %v2594, %v2586
    %v3451 = vpack.c.b16 %v2595, %v2587
    %v3452 = vpack.c.b16 %v2604, %v2596
    %v3453 = vpack.c.b16 %v2605, %v2597
    %v3454 = vpack.c.b16 %v2606, %v2598
    %v3455 = vpack.c.b16 %v2607, %v2599
    %v3456 = vpack.c.b16 %v2608, %v2600
    %v3457 = vpack.c.b16 %v2609, %v2601
    %v3458 = vpack.c.b16 %v2610, %v2602
    %v3459 = vpack.c.b16 %v2611, %v2603
    %v3460 = vpack.c.b16 %v2620, %v2612
    %v3461 = vpack.c.b16 %v2621, %v2613
    %v3462 = vpack.c.b16 %v2622, %v2614
    %v3463 = vpack.c.b16 %v2623, %v2615
    %v3464 = vpack.c.b16 %v2624, %v2616
    %v3465 = vpack.c.b16 %v2625, %v2617
    %v3466 = vpack.c.b16 %v2626, %v2618
    %v3467 = vpack.c.b16 %v2627, %v2619
    %v3468 = vpack.c.b16 %v2636, %v2628
    %v3469 = vpack.c.b16 %v2637, %v2629
    %v3470 = vpack.c.b16 %v2638, %v2630
    %v3471 = vpack.c.b16 %v2639, %v2631
    %v3472 = vpack.c.b16 %v2640, %v2632
    %v3473 = vpack.c.b16 %v2641, %v2633
    %v3474 = vpack.c.b16 %v2642, %v2634
    %v3475 = vpack.c.b16 %v2643, %v2635
    %v3476 = vpack.c.b16 %v2652, %v2644
    %v3477 = vpack.c.b16 %v2653, %v2645
    %v3478 = vpack.c.b16 %v2654, %v2646
    %v3479 = vpack.c.b16 %v2655, %v2647
    %v3480 = vpack.c.b16 %v2656, %v2648
    %v3481 = vpack.c.b16 %v2657, %v2649
    %v3482 = vpack.c.b16 %v2658, %v2650
    %v3483 = vpack.c.b16 %v2659, %v2651
    %v3484 = vpack.c.b16 %v2668, %v2660
    %v3485 = vpack.c.b16 %v2669, %v2661
    %v3486 = vpack.c.b16 %v2670, %v2662
    %v3487 = vpack.c.b16 %v2671, %v2663
    %v3488 = vpack.c.b16 %v2672, %v2664
    %v3489 = vpack.c.b16 %v2673, %v2665
    %v3490 = vpack.c.b16 %v2674, %v2666
    %v3491 = vpack.c.b16 %v2675, %v2667
    %v3492 = vpack.c.b16 %v2684, %v2676
    %v3493 = vpack.c.b16 %v2685, %v2677
    %v3494 = vpack.c.b16 %v2686, %v2678
    %v3495 = vpack.c.b16 %v2687, %v2679
    %v3496 = vpack.c.b16 %v2688, %v2680
    %v3497 = vpack.c.b16 %v2689, %v2681
    %v3498 = vpack.c.b16 %v2690, %v2682
    %v3499 = vpack.c.b16 %v2691, %v2683
    %v3500 = vpack.c.b16 %v2700, %v2692
    %v3501 = vpack.c.b16 %v2701, %v2693
    %v3502 = vpack.c.b16 %v2702, %v2694
    %v3503 = vpack.c.b16 %v2703, %v2695
    %v3504 = vpack.c.b16 %v2704, %v2696
    %v3505 = vpack.c.b16 %v2705, %v2697
    %v3506 = vpack.c.b16 %v2706, %v2698
    %v3507 = vpack.c.b16 %v2707, %v2699
    %v3508 = vpack.c.b16 %v2716, %v2708
    %v3509 = vpack.c.b16 %v2717, %v2709
    %v3510 = vpack.c.b16 %v2718, %v2710
    %v3511 = vpack.c.b16 %v2719, %v2711
    %v3512 = vpack.c.b16 %v2720, %v2712
    %v3513 = vpack.c.b16 %v2721, %v2713
    %v3514 = vpack.c.b16 %v2722, %v2714
    %v3515 = vpack.c.b16 %v2723, %v2715
    %v3516 = vpack.c.b16 %v2732, %v2724
    %v3517 = vpack.c.b16 %v2733, %v2725
    %v3518 = vpack.c.b16 %v2734, %v2726
    %v3519 = vpack.c.b16 %v2735, %v2727
    %v3520 = vpack.c.b16 %v2736, %v2728
    %v3521 = vpack.c.b16 %v2737, %v2729
    %v3522 = vpack.c.b16 %v2738, %v2730
    %v3523 = vpack.c.b16 %v2739, %v2731
    %v3524 = vpack.c.b16 %v2748, %v2740
    %v3525 = vpack.c.b16 %v2749, %v2741
    %v3526 = vpack.c.b16 %v2750, %v2742
    %v3527 = vpack.c.b16 %v2751, %v2743
    %v3528 = vpack.c.b16 %v2752, %v2744
    %v3529 = vpack.c.b16 %v2753, %v2745
    %v3530 = vpack.c.b16 %v2754, %v2746
    %v3531 = vpack.c.b16 %v2755, %v2747
    %v3532 = vpack.c.b16 %v2764, %v2756
    %v3533 = vpack.c.b16 %v2765, %v2757
    %v3534 = vpack.c.b16 %v2766, %v2758
    %v3535 = vpack.c.b16 %v2767, %v2759
    %v3536 = vpack.c.b16 %v2768, %v2760
    %v3537 = vpack.c.b16 %v2769, %v2761
    %v3538 = vpack.c.b16 %v2770, %v2762
    %v3539 = vpack.c.b16 %v2771, %v2763
    %v3540 = vpack.c.b16 %v2780, %v2772
    %v3541 = vpack.c.b16 %v2781, %v2773
    %v3542 = vpack.c.b16 %v2782, %v2774
    %v3543 = vpack.c.b16 %v2783, %v2775
    %v3544 = vpack.c.b16 %v2784, %v2776
    %v3545 = vpack.c.b16 %v2785, %v2777
    %v3546 = vpack.c.b16 %v2786, %v2778
    %v3547 = vpack.c.b16 %v2787, %v2779
    %v3548 = vpack.c.b16 %v2796, %v2788
    %v3549 = vpack.c.b16 %v2797, %v2789
    %v3550 = vpack.c.b16 %v2798, %v2790
    %v3551 = vpack.c.b16 %v2799, %v2791
    %v3552 = vpack.c.b16 %v2800, %v2792
    %v3553 = vpack.c.b16 %v2801, %v2793
    %v3554 = vpack.c.b16 %v2802, %v2794
    %v3555 = vpack.c.b16 %v2803, %v2795
    %v3556 = vpack.c.b16 %v2812, %v2804
    %v3557 = vpack.c.b16 %v2813, %v2805
    %v3558 = vpack.c.b16 %v2814, %v2806
    %v3559 = vpack.c.b16 %v2815, %v2807
    %v3560 = vpack.c.b16 %v2816, %v2808
    %v3561 = vpack.c.b16 %v2817, %v2809
    %v3562 = vpack.c.b16 %v2818, %v2810
    %v3563 = vpack.c.b16 %v2819, %v2811
    %v3564 = vpack.c.b16 %v2828, %v2820
    %v3565 = vpack.c.b16 %v2829, %v2821
    %v3566 = vpack.c.b16 %v2830, %v2822
    %v3567 = vpack.c.b16 %v2831, %v2823
    %v3568 = vpack.c.b16 %v2832, %v2824
    %v3569 = vpack.c.b16 %v2833, %v2825
    %v3570 = vpack.c.b16 %v2834, %v2826
    %v3571 = vpack.c.b16 %v2835, %v2827
    %v3572 = vpack.c.b16 %v2844, %v2836
    %v3573 = vpack.c.b16 %v2845, %v2837
    %v3574 = vpack.c.b16 %v2846, %v2838
    %v3575 = vpack.c.b16 %v2847, %v2839
    %v3576 = vpack.c.b16 %v2848, %v2840
    %v3577 = vpack.c.b16 %v2849, %v2841
    %v3578 = vpack.c.b16 %v2850, %v2842
    %v3579 = vpack.c.b16 %v2851, %v2843
    %v3580 = vpack.c.b16 %v2860, %v2852
    %v3581 = vpack.c.b16 %v2861, %v2853
    %v3582 = vpack.c.b16 %v2862, %v2854
    %v3583 = vpack.c.b16 %v2863, %v2855
    %v3584 = vpack.c.b16 %v2864, %v2856
    %v3585 = vpack.c.b16 %v2865, %v2857
    %v3586 = vpack.c.b16 %v2866, %v2858
    %v3587 = vpack.c.b16 %v2867, %v2859
    %v3588 = vpack.c.b16 %v2876, %v2868
    %v3589 = vpack.c.b16 %v2877, %v2869
    %v3590 = vpack.c.b16 %v2878, %v2870
    %v3591 = vpack.c.b16 %v2879, %v2871
    %v3592 = vpack.c.b16 %v2880, %v2872
    %v3593 = vpack.c.b16 %v2881, %v2873
    %v3594 = vpack.c.b16 %v2882, %v2874
    %v3595 = vpack.c.b16 %v2883, %v2875
    %v3596 = vpack.c.b16 %v2892, %v2884
    %v3597 = vpack.c.b16 %v2893, %v2885
    %v3598 = vpack.c.b16 %v2894, %v2886
    %v3599 = vpack.c.b16 %v2895, %v2887
    %v3600 = vpack.c.b16 %v2896, %v2888
    %v3601 = vpack.c.b16 %v2897, %v2889
    %v3602 = vpack.c.b16 %v2898, %v2890
    %v3603 = vpack.c.b16 %v2899, %v2891
    %v3604 = vpack.c.b16 %v2908, %v2900
    %v3605 = vpack.c.b16 %v2909, %v2901
    %v3606 = vpack.c.b16 %v2910, %v2902
    %v3607 = vpack.c.b16 %v2911, %v2903
    %v3608 = vpack.c.b16 %v2912, %v2904
    %v3609 = vpack.c.b16 %v2913, %v2905
    %v3610 = vpack.c.b16 %v2914, %v2906
    %v3611 = vpack.c.b16 %v2915, %v2907
    %v3612 = vpack.c.b16 %v2924, %v2916
    %v3613 = vpack.c.b16 %v2925, %v2917
    %v3614 = vpack.c.b16 %v2926, %v2918
    %v3615 = vpack.c.b16 %v2927, %v2919
    %v3616 = vpack.c.b16 %v2928, %v2920
    %v3617 = vpack.c.b16 %v2929, %v2921
    %v3618 = vpack.c.b16 %v2930, %v2922
    %v3619 = vpack.c.b16 %v2931, %v2923
    %v3620 = vpack.c.b16 %v2940, %v2932
    %v3621 = vpack.c.b16 %v2941, %v2933
    %v3622 = vpack.c.b16 %v2942, %v2934
    %v3623 = vpack.c.b16 %v2943, %v2935
    %v3624 = vpack.c.b16 %v2944, %v2936
    %v3625 = vpack.c.b16 %v2945, %v2937
    %v3626 = vpack.c.b16 %v2946, %v2938
    %v3627 = vpack.c.b16 %v2947, %v2939
    %v3628 = vpack.c.b16 %v2956, %v2948
    %v3629 = vpack.c.b16 %v2957, %v2949
    %v3630 = vpack.c.b16 %v2958, %v2950
    %v3631 = vpack.c.b16 %v2959, %v2951
    %v3632 = vpack.c.b16 %v2960, %v2952
    %v3633 = vpack.c.b16 %v2961, %v2953
    %v3634 = vpack.c.b16 %v2962, %v2954
    %v3635 = vpack.c.b16 %v2963, %v2955
    %v3636 = vpack.c.b16 %v2972, %v2964
    %v3637 = vpack.c.b16 %v2973, %v2965
    %v3638 = vpack.c.b16 %v2974, %v2966
    %v3639 = vpack.c.b16 %v2975, %v2967
    %v3640 = vpack.c.b16 %v2976, %v2968
    %v3641 = vpack.c.b16 %v2977, %v2969
    %v3642 = vpack.c.b16 %v2978, %v2970
    %v3643 = vpack.c.b16 %v2979, %v2971
    %v3644 = vpack.c.b16 %v2988, %v2980
    %v3645 = vpack.c.b16 %v2989, %v2981
    %v3646 = vpack.c.b16 %v2990, %v2982
    %v3647 = vpack.c.b16 %v2991, %v2983
    %v3648 = vpack.c.b16 %v2992, %v2984
    %v3649 = vpack.c.b16 %v2993, %v2985
    %v3650 = vpack.c.b16 %v2994, %v2986
    %v3651 = vpack.c.b16 %v2995, %v2987
    %v3652 = vpack.c.b16 %v3004, %v2996
    %v3653 = vpack.c.b16 %v3005, %v2997
    %v3654 = vpack.c.b16 %v3006, %v2998
    %v3655 = vpack.c.b16 %v3007, %v2999
    %v3656 = vpack.c.b16 %v3008, %v3000
    %v3657 = vpack.c.b16 %v3009, %v3001
    %v3658 = vpack.c.b16 %v3010, %v3002
    %v3659 = vpack.c.b16 %v3011, %v3003
    %v3660 = vpack.c.b16 %v3020, %v3012
    %v3661 = vpack.c.b16 %v3021, %v3013
    %v3662 = vpack.c.b16 %v3022, %v3014
    %v3663 = vpack.c.b16 %v3023, %v3015
    %v3664 = vpack.c.b16 %v3024, %v3016
    %v3665 = vpack.c.b16 %v3025, %v3017
    %v3666 = vpack.c.b16 %v3026, %v3018
    %v3667 = vpack.c.b16 %v3027, %v3019
    %v3668 = vpack.c.b16 %v3036, %v3028
    %v3669 = vpack.c.b16 %v3037, %v3029
    %v3670 = vpack.c.b16 %v3038, %v3030
    %v3671 = vpack.c.b16 %v3039, %v3031
    %v3672 = vpack.c.b16 %v3040, %v3032
    %v3673 = vpack.c.b16 %v3041, %v3033
    %v3674 = vpack.c.b16 %v3042, %v3034
    %v3675 = vpack.c.b16 %v3043, %v3035
    %v3676 = vpack.c.b16 %v3052, %v3044
    %v3677 = vpack.c.b16 %v3053, %v3045
    %v3678 = vpack.c.b16 %v3054, %v3046
    %v3679 = vpack.c.b16 %v3055, %v3047
    %v3680 = vpack.c.b16 %v3056, %v3048
    %v3681 = vpack.c.b16 %v3057, %v3049
    %v3682 = vpack.c.b16 %v3058, %v3050
    %v3683 = vpack.c.b16 %v3059, %v3051
    %v3684 = vpack.c.b16 %v3068, %v3060
    %v3685 = vpack.c.b16 %v3069, %v3061
    %v3686 = vpack.c.b16 %v3070, %v3062
    %v3687 = vpack.c.b16 %v3071, %v3063
    %v3688 = vpack.c.b16 %v3072, %v3064
    %v3689 = vpack.c.b16 %v3073, %v3065
    %v3690 = vpack.c.b16 %v3074, %v3066
    %v3691 = vpack.c.b16 %v3075, %v3067
    %v3692 = vpack.c.b16 %v3084, %v3076
    %v3693 = vpack.c.b16 %v3085, %v3077
    %v3694 = vpack.c.b16 %v3086, %v3078
    %v3695 = vpack.c.b16 %v3087, %v3079
    %v3696 = vpack.c.b16 %v3088, %v3080
    %v3697 = vpack.c.b16 %v3089, %v3081
    %v3698 = vpack.c.b16 %v3090, %v3082
    %v3699 = vpack.c.b16 %v3091, %v3083
    %v3700 = vpack.c.b16 %v3100, %v3092
    %v3701 = vpack.c.b16 %v3101, %v3093
    %v3702 = vpack.c.b16 %v3102, %v3094
    %v3703 = vpack.c.b16 %v3103, %v3095
    %v3704 = vpack.c.b16 %v3104, %v3096
    %v3705 = vpack.c.b16 %v3105, %v3097
    %v3706 = vpack.c.b16 %v3106, %v3098
    %v3707 = vpack.c.b16 %v3107, %v3099
    %v3708 = vpack.c.b16 %v3116, %v3108
    %v3709 = vpack.c.b16 %v3117, %v3109
    %v3710 = vpack.c.b16 %v3118, %v3110
    %v3711 = vpack.c.b16 %v3119, %v3111
    %v3712 = vpack.c.b16 %v3120, %v3112
    %v3713 = vpack.c.b16 %v3121, %v3113
    %v3714 = vpack.c.b16 %v3122, %v3114
    %v3715 = vpack.c.b16 %v3123, %v3115
    %v3716 = vpack.c.b16 %v3132, %v3124
    %v3717 = vpack.c.b16 %v3133, %v3125
    %v3718 = vpack.c.b16 %v3134, %v3126
    %v3719 = vpack.c.b16 %v3135, %v3127
    %v3720 = vpack.c.b16 %v3136, %v3128
    %v3721 = vpack.c.b16 %v3137, %v3129
    %v3722 = vpack.c.b16 %v3138, %v3130
    %v3723 = vpack.c.b16 %v3139, %v3131
    %v3724 = vpack.c.b16 %v3148, %v3140
    %v3725 = vpack.c.b16 %v3149, %v3141
    %v3726 = vpack.c.b16 %v3150, %v3142
    %v3727 = vpack.c.b16 %v3151, %v3143
    %v3728 = vpack.c.b16 %v3152, %v3144
    %v3729 = vpack.c.b16 %v3153, %v3145
    %v3730 = vpack.c.b16 %v3154, %v3146
    %v3731 = vpack.c.b16 %v3155, %v3147
    %v3732 = vpack.c.b16 %v3164, %v3156
    %v3733 = vpack.c.b16 %v3165, %v3157
    %v3734 = vpack.c.b16 %v3166, %v3158
    %v3735 = vpack.c.b16 %v3167, %v3159
    %v3736 = vpack.c.b16 %v3168, %v3160
    %v3737 = vpack.c.b16 %v3169, %v3161
    %v3738 = vpack.c.b16 %v3170, %v3162
    %v3739 = vpack.c.b16 %v3171, %v3163
    %v3740 = vpack.c.b16 %v3180, %v3172
    %v3741 = vpack.c.b16 %v3181, %v3173
    %v3742 = vpack.c.b16 %v3182, %v3174
    %v3743 = vpack.c.b16 %v3183, %v3175
    %v3744 = vpack.c.b16 %v3184, %v3176
    %v3745 = vpack.c.b16 %v3185, %v3177
    %v3746 = vpack.c.b16 %v3186, %v3178
    %v3747 = vpack.c.b16 %v3187, %v3179
    %v3748 = vpack.c.b16 %v3196, %v3188
    %v3749 = vpack.c.b16 %v3197, %v3189
    %v3750 = vpack.c.b16 %v3198, %v3190
    %v3751 = vpack.c.b16 %v3199, %v3191
    %v3752 = vpack.c.b16 %v3200, %v3192
    %v3753 = vpack.c.b16 %v3201, %v3193
    %v3754 = vpack.c.b16 %v3202, %v3194
    %v3755 = vpack.c.b16 %v3203, %v3195
    %v3756 = vpack.c.b16 %v3212, %v3204
    %v3757 = vpack.c.b16 %v3213, %v3205
    %v3758 = vpack.c.b16 %v3214, %v3206
    %v3759 = vpack.c.b16 %v3215, %v3207
    %v3760 = vpack.c.b16 %v3216, %v3208
    %v3761 = vpack.c.b16 %v3217, %v3209
    %v3762 = vpack.c.b16 %v3218, %v3210
    %v3763 = vpack.c.b16 %v3219, %v3211
    %v3764 = vpack.c.b16 %v3228, %v3220
    %v3765 = vpack.c.b16 %v3229, %v3221
    %v3766 = vpack.c.b16 %v3230, %v3222
    %v3767 = vpack.c.b16 %v3231, %v3223
    %v3768 = vpack.c.b16 %v3232, %v3224
    %v3769 = vpack.c.b16 %v3233, %v3225
    %v3770 = vpack.c.b16 %v3234, %v3226
    %v3771 = vpack.c.b16 %v3235, %v3227
    %v3772 = vpack.c.b16 %v3244, %v3236
    %v3773 = vpack.c.b16 %v3245, %v3237
    %v3774 = vpack.c.b16 %v3246, %v3238
    %v3775 = vpack.c.b16 %v3247, %v3239
    %v3776 = vpack.c.b16 %v3248, %v3240
    %v3777 = vpack.c.b16 %v3249, %v3241
    %v3778 = vpack.c.b16 %v3250, %v3242
    %v3779 = vpack.c.b16 %v3251, %v3243
    %v3780 = vpack.c.b16 %v3260, %v3252
    %v3781 = vpack.c.b16 %v3261, %v3253
    %v3782 = vpack.c.b16 %v3262, %v3254
    %v3783 = vpack.c.b16 %v3263, %v3255
    %v3784 = vpack.c.b16 %v3264, %v3256
    %v3785 = vpack.c.b16 %v3265, %v3257
    %v3786 = vpack.c.b16 %v3266, %v3258
    %v3787 = vpack.c.b16 %v3267, %v3259
    %v3788 = vpack.c.b16 %v3276, %v3268
    %v3789 = vpack.c.b16 %v3277, %v3269
    %v3790 = vpack.c.b16 %v3278, %v3270
    %v3791 = vpack.c.b16 %v3279, %v3271
    %v3792 = vpack.c.b16 %v3280, %v3272
    %v3793 = vpack.c.b16 %v3281, %v3273
    %v3794 = vpack.c.b16 %v3282, %v3274
    %v3795 = vpack.c.b16 %v3283, %v3275
    %4308 = vmatpush.bf16.msra.mxu0 %v3340
    %4309 = vmatpush.bf16.msra.mxu0 %v3332
    %4310 = vmatpush.bf16.msra.mxu0 %v3324
    %4311 = vmatpush.bf16.msra.mxu0 %v3316
    %4312 = vmatpush.bf16.msra.mxu0 %v3308
    %4313 = vmatpush.bf16.msra.mxu0 %v3300
    %4314 = vmatpush.bf16.msra.mxu0 %v3292
    %4315 = vmatpush.bf16.msra.mxu0 %v3284
    %4316 = vmatmul.bf16.gmra.mxu0 %v1210
    %v4317 = vpop.f32.mrf.mxu0
    %v4318 = vadd.f32 %v1732, %v4317
    %v4319 = vpop.f32.mrf.mxu0
    %4320 = vdwg.mxu0
    %4321 = vmatpush.bf16.msra.mxu0 %v3404
    %4322 = vmatpush.bf16.msra.mxu0 %v3396
    %4323 = vmatpush.bf16.msra.mxu0 %v3388
    %4324 = vmatpush.bf16.msra.mxu0 %v3380
    %4325 = vmatpush.bf16.msra.mxu0 %v3372
    %4326 = vmatpush.bf16.msra.mxu0 %v3364
    %4327 = vmatpush.bf16.msra.mxu0 %v3356
    %4328 = vmatpush.bf16.msra.mxu0 %v3348
    %4329 = vmatmul.bf16.gmra.mxu0 %v1211
    %v4330 = vpop.f32.mrf.mxu0
    %v4331 = vadd.f32 %v4318, %v4330
    %v4332 = vpop.f32.mrf.mxu0
    %4333 = vdwg.mxu0
    %4334 = vmatpush.bf16.msra.mxu0 %v3468
    %4335 = vmatpush.bf16.msra.mxu0 %v3460
    %4336 = vmatpush.bf16.msra.mxu0 %v3452
    %4337 = vmatpush.bf16.msra.mxu0 %v3444
    %4338 = vmatpush.bf16.msra.mxu0 %v3436
    %4339 = vmatpush.bf16.msra.mxu0 %v3428
    %4340 = vmatpush.bf16.msra.mxu0 %v3420
    %4341 = vmatpush.bf16.msra.mxu0 %v3412
    %4342 = vmatmul.bf16.gmra.mxu0 %v1212
    %v4343 = vpop.f32.mrf.mxu0
    %v4344 = vadd.f32 %v4331, %v4343
    %v4345 = vpop.f32.mrf.mxu0
    %4346 = vdwg.mxu0
    %4347 = vmatpush.bf16.msra.mxu0 %v3532
    %4348 = vmatpush.bf16.msra.mxu0 %v3524
    %4349 = vmatpush.bf16.msra.mxu0 %v3516
    %4350 = vmatpush.bf16.msra.mxu0 %v3508
    %4351 = vmatpush.bf16.msra.mxu0 %v3500
    %4352 = vmatpush.bf16.msra.mxu0 %v3492
    %4353 = vmatpush.bf16.msra.mxu0 %v3484
    %4354 = vmatpush.bf16.msra.mxu0 %v3476
    %4355 = vmatmul.bf16.gmra.mxu0 %v1213
    %v4356 = vpop.f32.mrf.mxu0
    %v4357 = vadd.f32 %v4344, %v4356
    %v4358 = vpop.f32.mrf.mxu0
    %4359 = vdwg.mxu0
    %4360 = vmatpush.bf16.msra.mxu0 %v3596
    %4361 = vmatpush.bf16.msra.mxu0 %v3588
    %4362 = vmatpush.bf16.msra.mxu0 %v3580
    %4363 = vmatpush.bf16.msra.mxu0 %v3572
    %4364 = vmatpush.bf16.msra.mxu0 %v3564
    %4365 = vmatpush.bf16.msra.mxu0 %v3556
    %4366 = vmatpush.bf16.msra.mxu0 %v3548
    %4367 = vmatpush.bf16.msra.mxu0 %v3540
    %4368 = vmatmul.bf16.gmra.mxu0 %v1214
    %v4369 = vpop.f32.mrf.mxu0
    %v4370 = vadd.f32 %v4357, %v4369
    %v4371 = vpop.f32.mrf.mxu0
    %4372 = vdwg.mxu0
    %4373 = vmatpush.bf16.msra.mxu0 %v3660
    %4374 = vmatpush.bf16.msra.mxu0 %v3652
    %4375 = vmatpush.bf16.msra.mxu0 %v3644
    %4376 = vmatpush.bf16.msra.mxu0 %v3636
    %4377 = vmatpush.bf16.msra.mxu0 %v3628
    %4378 = vmatpush.bf16.msra.mxu0 %v3620
    %4379 = vmatpush.bf16.msra.mxu0 %v3612
    %4380 = vmatpush.bf16.msra.mxu0 %v3604
    %4381 = vmatmul.bf16.gmra.mxu0 %v1215
    %v4382 = vpop.f32.mrf.mxu0
    %v4383 = vadd.f32 %v4370, %v4382
    %v4384 = vpop.f32.mrf.mxu0
    %4385 = vdwg.mxu0
    %4386 = vmatpush.bf16.msra.mxu0 %v3724
    %4387 = vmatpush.bf16.msra.mxu0 %v3716
    %4388 = vmatpush.bf16.msra.mxu0 %v3708
    %4389 = vmatpush.bf16.msra.mxu0 %v3700
    %4390 = vmatpush.bf16.msra.mxu0 %v3692
    %4391 = vmatpush.bf16.msra.mxu0 %v3684
    %4392 = vmatpush.bf16.msra.mxu0 %v3676
    %4393 = vmatpush.bf16.msra.mxu0 %v3668
    %4394 = vmatmul.bf16.gmra.mxu0 %v1216
    %v4395 = vpop.f32.mrf.mxu0
    %v4396 = vadd.f32 %v4383, %v4395
    %v4397 = vpop.f32.mrf.mxu0
    %4398 = vdwg.mxu0
    %4399 = vmatpush.bf16.msra.mxu0 %v3788
    %4400 = vmatpush.bf16.msra.mxu0 %v3780
    %4401 = vmatpush.bf16.msra.mxu0 %v3772
    %4402 = vmatpush.bf16.msra.mxu0 %v3764
    %4403 = vmatpush.bf16.msra.mxu0 %v3756
    %4404 = vmatpush.bf16.msra.mxu0 %v3748
    %4405 = vmatpush.bf16.msra.mxu0 %v3740
    %4406 = vmatpush.bf16.msra.mxu0 %v3732
    %4407 = vmatmul.bf16.gmra.mxu0 %v1217
    %v4408 = vpop.f32.mrf.mxu0
    %v4409 = vadd.f32 %v4396, %v4408
    %v4410 = vpop.f32.mrf.mxu0
    %4411 = vdwg.mxu0
    %4412 = vmatpush.bf16.msra.mxu0 %v3341
    %4413 = vmatpush.bf16.msra.mxu0 %v3333
    %4414 = vmatpush.bf16.msra.mxu0 %v3325
    %4415 = vmatpush.bf16.msra.mxu0 %v3317
    %4416 = vmatpush.bf16.msra.mxu0 %v3309
    %4417 = vmatpush.bf16.msra.mxu0 %v3301
    %4418 = vmatpush.bf16.msra.mxu0 %v3293
    %4419 = vmatpush.bf16.msra.mxu0 %v3285
    %4420 = vmatmul.bf16.gmra.mxu0 %v1210
    %v4421 = vpop.f32.mrf.mxu0
    %v4422 = vadd.f32 %v1733, %v4421
    %v4423 = vpop.f32.mrf.mxu0
    %4424 = vdwg.mxu0
    %4425 = vmatpush.bf16.msra.mxu0 %v3405
    %4426 = vmatpush.bf16.msra.mxu0 %v3397
    %4427 = vmatpush.bf16.msra.mxu0 %v3389
    %4428 = vmatpush.bf16.msra.mxu0 %v3381
    %4429 = vmatpush.bf16.msra.mxu0 %v3373
    %4430 = vmatpush.bf16.msra.mxu0 %v3365
    %4431 = vmatpush.bf16.msra.mxu0 %v3357
    %4432 = vmatpush.bf16.msra.mxu0 %v3349
    %4433 = vmatmul.bf16.gmra.mxu0 %v1211
    %v4434 = vpop.f32.mrf.mxu0
    %v4435 = vadd.f32 %v4422, %v4434
    %v4436 = vpop.f32.mrf.mxu0
    %4437 = vdwg.mxu0
    %4438 = vmatpush.bf16.msra.mxu0 %v3469
    %4439 = vmatpush.bf16.msra.mxu0 %v3461
    %4440 = vmatpush.bf16.msra.mxu0 %v3453
    %4441 = vmatpush.bf16.msra.mxu0 %v3445
    %4442 = vmatpush.bf16.msra.mxu0 %v3437
    %4443 = vmatpush.bf16.msra.mxu0 %v3429
    %4444 = vmatpush.bf16.msra.mxu0 %v3421
    %4445 = vmatpush.bf16.msra.mxu0 %v3413
    %4446 = vmatmul.bf16.gmra.mxu0 %v1212
    %v4447 = vpop.f32.mrf.mxu0
    %v4448 = vadd.f32 %v4435, %v4447
    %v4449 = vpop.f32.mrf.mxu0
    %4450 = vdwg.mxu0
    %4451 = vmatpush.bf16.msra.mxu0 %v3533
    %4452 = vmatpush.bf16.msra.mxu0 %v3525
    %4453 = vmatpush.bf16.msra.mxu0 %v3517
    %4454 = vmatpush.bf16.msra.mxu0 %v3509
    %4455 = vmatpush.bf16.msra.mxu0 %v3501
    %4456 = vmatpush.bf16.msra.mxu0 %v3493
    %4457 = vmatpush.bf16.msra.mxu0 %v3485
    %4458 = vmatpush.bf16.msra.mxu0 %v3477
    %4459 = vmatmul.bf16.gmra.mxu0 %v1213
    %v4460 = vpop.f32.mrf.mxu0
    %v4461 = vadd.f32 %v4448, %v4460
    %v4462 = vpop.f32.mrf.mxu0
    %4463 = vdwg.mxu0
    %4464 = vmatpush.bf16.msra.mxu0 %v3597
    %4465 = vmatpush.bf16.msra.mxu0 %v3589
    %4466 = vmatpush.bf16.msra.mxu0 %v3581
    %4467 = vmatpush.bf16.msra.mxu0 %v3573
    %4468 = vmatpush.bf16.msra.mxu0 %v3565
    %4469 = vmatpush.bf16.msra.mxu0 %v3557
    %4470 = vmatpush.bf16.msra.mxu0 %v3549
    %4471 = vmatpush.bf16.msra.mxu0 %v3541
    %4472 = vmatmul.bf16.gmra.mxu0 %v1214
    %v4473 = vpop.f32.mrf.mxu0
    %v4474 = vadd.f32 %v4461, %v4473
    %v4475 = vpop.f32.mrf.mxu0
    %4476 = vdwg.mxu0
    %4477 = vmatpush.bf16.msra.mxu0 %v3661
    %4478 = vmatpush.bf16.msra.mxu0 %v3653
    %4479 = vmatpush.bf16.msra.mxu0 %v3645
    %4480 = vmatpush.bf16.msra.mxu0 %v3637
    %4481 = vmatpush.bf16.msra.mxu0 %v3629
    %4482 = vmatpush.bf16.msra.mxu0 %v3621
    %4483 = vmatpush.bf16.msra.mxu0 %v3613
    %4484 = vmatpush.bf16.msra.mxu0 %v3605
    %4485 = vmatmul.bf16.gmra.mxu0 %v1215
    %v4486 = vpop.f32.mrf.mxu0
    %v4487 = vadd.f32 %v4474, %v4486
    %v4488 = vpop.f32.mrf.mxu0
    %4489 = vdwg.mxu0
    %4490 = vmatpush.bf16.msra.mxu0 %v3725
    %4491 = vmatpush.bf16.msra.mxu0 %v3717
    %4492 = vmatpush.bf16.msra.mxu0 %v3709
    %4493 = vmatpush.bf16.msra.mxu0 %v3701
    %4494 = vmatpush.bf16.msra.mxu0 %v3693
    %4495 = vmatpush.bf16.msra.mxu0 %v3685
    %4496 = vmatpush.bf16.msra.mxu0 %v3677
    %4497 = vmatpush.bf16.msra.mxu0 %v3669
    %4498 = vmatmul.bf16.gmra.mxu0 %v1216
    %v4499 = vpop.f32.mrf.mxu0
    %v4500 = vadd.f32 %v4487, %v4499
    %v4501 = vpop.f32.mrf.mxu0
    %4502 = vdwg.mxu0
    %4503 = vmatpush.bf16.msra.mxu0 %v3789
    %4504 = vmatpush.bf16.msra.mxu0 %v3781
    %4505 = vmatpush.bf16.msra.mxu0 %v3773
    %4506 = vmatpush.bf16.msra.mxu0 %v3765
    %4507 = vmatpush.bf16.msra.mxu0 %v3757
    %4508 = vmatpush.bf16.msra.mxu0 %v3749
    %4509 = vmatpush.bf16.msra.mxu0 %v3741
    %4510 = vmatpush.bf16.msra.mxu0 %v3733
    %4511 = vmatmul.bf16.gmra.mxu0 %v1217
    %v4512 = vpop.f32.mrf.mxu0
    %v4513 = vadd.f32 %v4500, %v4512
    %v4514 = vpop.f32.mrf.mxu0
    %4515 = vdwg.mxu0
    %4516 = vmatpush.bf16.msra.mxu0 %v3342
    %4517 = vmatpush.bf16.msra.mxu0 %v3334
    %4518 = vmatpush.bf16.msra.mxu0 %v3326
    %4519 = vmatpush.bf16.msra.mxu0 %v3318
    %4520 = vmatpush.bf16.msra.mxu0 %v3310
    %4521 = vmatpush.bf16.msra.mxu0 %v3302
    %4522 = vmatpush.bf16.msra.mxu0 %v3294
    %4523 = vmatpush.bf16.msra.mxu0 %v3286
    %4524 = vmatmul.bf16.gmra.mxu0 %v1210
    %v4525 = vpop.f32.mrf.mxu0
    %v4526 = vadd.f32 %v1734, %v4525
    %v4527 = vpop.f32.mrf.mxu0
    %4528 = vdwg.mxu0
    %4529 = vmatpush.bf16.msra.mxu0 %v3406
    %4530 = vmatpush.bf16.msra.mxu0 %v3398
    %4531 = vmatpush.bf16.msra.mxu0 %v3390
    %4532 = vmatpush.bf16.msra.mxu0 %v3382
    %4533 = vmatpush.bf16.msra.mxu0 %v3374
    %4534 = vmatpush.bf16.msra.mxu0 %v3366
    %4535 = vmatpush.bf16.msra.mxu0 %v3358
    %4536 = vmatpush.bf16.msra.mxu0 %v3350
    %4537 = vmatmul.bf16.gmra.mxu0 %v1211
    %v4538 = vpop.f32.mrf.mxu0
    %v4539 = vadd.f32 %v4526, %v4538
    %v4540 = vpop.f32.mrf.mxu0
    %4541 = vdwg.mxu0
    %4542 = vmatpush.bf16.msra.mxu0 %v3470
    %4543 = vmatpush.bf16.msra.mxu0 %v3462
    %4544 = vmatpush.bf16.msra.mxu0 %v3454
    %4545 = vmatpush.bf16.msra.mxu0 %v3446
    %4546 = vmatpush.bf16.msra.mxu0 %v3438
    %4547 = vmatpush.bf16.msra.mxu0 %v3430
    %4548 = vmatpush.bf16.msra.mxu0 %v3422
    %4549 = vmatpush.bf16.msra.mxu0 %v3414
    %4550 = vmatmul.bf16.gmra.mxu0 %v1212
    %v4551 = vpop.f32.mrf.mxu0
    %v4552 = vadd.f32 %v4539, %v4551
    %v4553 = vpop.f32.mrf.mxu0
    %4554 = vdwg.mxu0
    %4555 = vmatpush.bf16.msra.mxu0 %v3534
    %4556 = vmatpush.bf16.msra.mxu0 %v3526
    %4557 = vmatpush.bf16.msra.mxu0 %v3518
    %4558 = vmatpush.bf16.msra.mxu0 %v3510
    %4559 = vmatpush.bf16.msra.mxu0 %v3502
    %4560 = vmatpush.bf16.msra.mxu0 %v3494
    %4561 = vmatpush.bf16.msra.mxu0 %v3486
    %4562 = vmatpush.bf16.msra.mxu0 %v3478
    %4563 = vmatmul.bf16.gmra.mxu0 %v1213
    %v4564 = vpop.f32.mrf.mxu0
    %v4565 = vadd.f32 %v4552, %v4564
    %v4566 = vpop.f32.mrf.mxu0
    %4567 = vdwg.mxu0
    %4568 = vmatpush.bf16.msra.mxu0 %v3598
    %4569 = vmatpush.bf16.msra.mxu0 %v3590
    %4570 = vmatpush.bf16.msra.mxu0 %v3582
    %4571 = vmatpush.bf16.msra.mxu0 %v3574
    %4572 = vmatpush.bf16.msra.mxu0 %v3566
    %4573 = vmatpush.bf16.msra.mxu0 %v3558
    %4574 = vmatpush.bf16.msra.mxu0 %v3550
    %4575 = vmatpush.bf16.msra.mxu0 %v3542
    %4576 = vmatmul.bf16.gmra.mxu0 %v1214
    %v4577 = vpop.f32.mrf.mxu0
    %v4578 = vadd.f32 %v4565, %v4577
    %v4579 = vpop.f32.mrf.mxu0
    %4580 = vdwg.mxu0
    %4581 = vmatpush.bf16.msra.mxu0 %v3662
    %4582 = vmatpush.bf16.msra.mxu0 %v3654
    %4583 = vmatpush.bf16.msra.mxu0 %v3646
    %4584 = vmatpush.bf16.msra.mxu0 %v3638
    %4585 = vmatpush.bf16.msra.mxu0 %v3630
    %4586 = vmatpush.bf16.msra.mxu0 %v3622
    %4587 = vmatpush.bf16.msra.mxu0 %v3614
    %4588 = vmatpush.bf16.msra.mxu0 %v3606
    %4589 = vmatmul.bf16.gmra.mxu0 %v1215
    %v4590 = vpop.f32.mrf.mxu0
    %v4591 = vadd.f32 %v4578, %v4590
    %v4592 = vpop.f32.mrf.mxu0
    %4593 = vdwg.mxu0
    %4594 = vmatpush.bf16.msra.mxu0 %v3726
    %4595 = vmatpush.bf16.msra.mxu0 %v3718
    %4596 = vmatpush.bf16.msra.mxu0 %v3710
    %4597 = vmatpush.bf16.msra.mxu0 %v3702
    %4598 = vmatpush.bf16.msra.mxu0 %v3694
    %4599 = vmatpush.bf16.msra.mxu0 %v3686
    %4600 = vmatpush.bf16.msra.mxu0 %v3678
    %4601 = vmatpush.bf16.msra.mxu0 %v3670
    %4602 = vmatmul.bf16.gmra.mxu0 %v1216
    %v4603 = vpop.f32.mrf.mxu0
    %v4604 = vadd.f32 %v4591, %v4603
    %v4605 = vpop.f32.mrf.mxu0
    %4606 = vdwg.mxu0
    %4607 = vmatpush.bf16.msra.mxu0 %v3790
    %4608 = vmatpush.bf16.msra.mxu0 %v3782
    %4609 = vmatpush.bf16.msra.mxu0 %v3774
    %4610 = vmatpush.bf16.msra.mxu0 %v3766
    %4611 = vmatpush.bf16.msra.mxu0 %v3758
    %4612 = vmatpush.bf16.msra.mxu0 %v3750
    %4613 = vmatpush.bf16.msra.mxu0 %v3742
    %4614 = vmatpush.bf16.msra.mxu0 %v3734
    %4615 = vmatmul.bf16.gmra.mxu0 %v1217
    %v4616 = vpop.f32.mrf.mxu0
    %v4617 = vadd.f32 %v4604, %v4616
    %v4618 = vpop.f32.mrf.mxu0
    %4619 = vdwg.mxu0
    %4620 = vmatpush.bf16.msra.mxu0 %v3343
    %4621 = vmatpush.bf16.msra.mxu0 %v3335
    %4622 = vmatpush.bf16.msra.mxu0 %v3327
    %4623 = vmatpush.bf16.msra.mxu0 %v3319
    %4624 = vmatpush.bf16.msra.mxu0 %v3311
    %4625 = vmatpush.bf16.msra.mxu0 %v3303
    %4626 = vmatpush.bf16.msra.mxu0 %v3295
    %4627 = vmatpush.bf16.msra.mxu0 %v3287
    %4628 = vmatmul.bf16.gmra.mxu0 %v1210
    %v4629 = vpop.f32.mrf.mxu0
    %v4630 = vadd.f32 %v1735, %v4629
    %v4631 = vpop.f32.mrf.mxu0
    %4632 = vdwg.mxu0
    %4633 = vmatpush.bf16.msra.mxu0 %v3407
    %4634 = vmatpush.bf16.msra.mxu0 %v3399
    %4635 = vmatpush.bf16.msra.mxu0 %v3391
    %4636 = vmatpush.bf16.msra.mxu0 %v3383
    %4637 = vmatpush.bf16.msra.mxu0 %v3375
    %4638 = vmatpush.bf16.msra.mxu0 %v3367
    %4639 = vmatpush.bf16.msra.mxu0 %v3359
    %4640 = vmatpush.bf16.msra.mxu0 %v3351
    %4641 = vmatmul.bf16.gmra.mxu0 %v1211
    %v4642 = vpop.f32.mrf.mxu0
    %v4643 = vadd.f32 %v4630, %v4642
    %v4644 = vpop.f32.mrf.mxu0
    %4645 = vdwg.mxu0
    %4646 = vmatpush.bf16.msra.mxu0 %v3471
    %4647 = vmatpush.bf16.msra.mxu0 %v3463
    %4648 = vmatpush.bf16.msra.mxu0 %v3455
    %4649 = vmatpush.bf16.msra.mxu0 %v3447
    %4650 = vmatpush.bf16.msra.mxu0 %v3439
    %4651 = vmatpush.bf16.msra.mxu0 %v3431
    %4652 = vmatpush.bf16.msra.mxu0 %v3423
    %4653 = vmatpush.bf16.msra.mxu0 %v3415
    %4654 = vmatmul.bf16.gmra.mxu0 %v1212
    %v4655 = vpop.f32.mrf.mxu0
    %v4656 = vadd.f32 %v4643, %v4655
    %v4657 = vpop.f32.mrf.mxu0
    %4658 = vdwg.mxu0
    %4659 = vmatpush.bf16.msra.mxu0 %v3535
    %4660 = vmatpush.bf16.msra.mxu0 %v3527
    %4661 = vmatpush.bf16.msra.mxu0 %v3519
    %4662 = vmatpush.bf16.msra.mxu0 %v3511
    %4663 = vmatpush.bf16.msra.mxu0 %v3503
    %4664 = vmatpush.bf16.msra.mxu0 %v3495
    %4665 = vmatpush.bf16.msra.mxu0 %v3487
    %4666 = vmatpush.bf16.msra.mxu0 %v3479
    %4667 = vmatmul.bf16.gmra.mxu0 %v1213
    %v4668 = vpop.f32.mrf.mxu0
    %v4669 = vadd.f32 %v4656, %v4668
    %v4670 = vpop.f32.mrf.mxu0
    %4671 = vdwg.mxu0
    %4672 = vmatpush.bf16.msra.mxu0 %v3599
    %4673 = vmatpush.bf16.msra.mxu0 %v3591
    %4674 = vmatpush.bf16.msra.mxu0 %v3583
    %4675 = vmatpush.bf16.msra.mxu0 %v3575
    %4676 = vmatpush.bf16.msra.mxu0 %v3567
    %4677 = vmatpush.bf16.msra.mxu0 %v3559
    %4678 = vmatpush.bf16.msra.mxu0 %v3551
    %4679 = vmatpush.bf16.msra.mxu0 %v3543
    %4680 = vmatmul.bf16.gmra.mxu0 %v1214
    %v4681 = vpop.f32.mrf.mxu0
    %v4682 = vadd.f32 %v4669, %v4681
    %v4683 = vpop.f32.mrf.mxu0
    %4684 = vdwg.mxu0
    %4685 = vmatpush.bf16.msra.mxu0 %v3663
    %4686 = vmatpush.bf16.msra.mxu0 %v3655
    %4687 = vmatpush.bf16.msra.mxu0 %v3647
    %4688 = vmatpush.bf16.msra.mxu0 %v3639
    %4689 = vmatpush.bf16.msra.mxu0 %v3631
    %4690 = vmatpush.bf16.msra.mxu0 %v3623
    %4691 = vmatpush.bf16.msra.mxu0 %v3615
    %4692 = vmatpush.bf16.msra.mxu0 %v3607
    %4693 = vmatmul.bf16.gmra.mxu0 %v1215
    %v4694 = vpop.f32.mrf.mxu0
    %v4695 = vadd.f32 %v4682, %v4694
    %v4696 = vpop.f32.mrf.mxu0
    %4697 = vdwg.mxu0
    %4698 = vmatpush.bf16.msra.mxu0 %v3727
    %4699 = vmatpush.bf16.msra.mxu0 %v3719
    %4700 = vmatpush.bf16.msra.mxu0 %v3711
    %4701 = vmatpush.bf16.msra.mxu0 %v3703
    %4702 = vmatpush.bf16.msra.mxu0 %v3695
    %4703 = vmatpush.bf16.msra.mxu0 %v3687
    %4704 = vmatpush.bf16.msra.mxu0 %v3679
    %4705 = vmatpush.bf16.msra.mxu0 %v3671
    %4706 = vmatmul.bf16.gmra.mxu0 %v1216
    %v4707 = vpop.f32.mrf.mxu0
    %v4708 = vadd.f32 %v4695, %v4707
    %v4709 = vpop.f32.mrf.mxu0
    %4710 = vdwg.mxu0
    %4711 = vmatpush.bf16.msra.mxu0 %v3791
    %4712 = vmatpush.bf16.msra.mxu0 %v3783
    %4713 = vmatpush.bf16.msra.mxu0 %v3775
    %4714 = vmatpush.bf16.msra.mxu0 %v3767
    %4715 = vmatpush.bf16.msra.mxu0 %v3759
    %4716 = vmatpush.bf16.msra.mxu0 %v3751
    %4717 = vmatpush.bf16.msra.mxu0 %v3743
    %4718 = vmatpush.bf16.msra.mxu0 %v3735
    %4719 = vmatmul.bf16.gmra.mxu0 %v1217
    %v4720 = vpop.f32.mrf.mxu0
    %v4721 = vadd.f32 %v4708, %v4720
    %v4722 = vpop.f32.mrf.mxu0
    %4723 = vdwg.mxu0
    %4724 = vmatpush.bf16.msra.mxu0 %v3344
    %4725 = vmatpush.bf16.msra.mxu0 %v3336
    %4726 = vmatpush.bf16.msra.mxu0 %v3328
    %4727 = vmatpush.bf16.msra.mxu0 %v3320
    %4728 = vmatpush.bf16.msra.mxu0 %v3312
    %4729 = vmatpush.bf16.msra.mxu0 %v3304
    %4730 = vmatpush.bf16.msra.mxu0 %v3296
    %4731 = vmatpush.bf16.msra.mxu0 %v3288
    %4732 = vmatmul.bf16.gmra.mxu0 %v1210
    %v4733 = vpop.f32.mrf.mxu0
    %v4734 = vadd.f32 %v1736, %v4733
    %v4735 = vpop.f32.mrf.mxu0
    %4736 = vdwg.mxu0
    %4737 = vmatpush.bf16.msra.mxu0 %v3408
    %4738 = vmatpush.bf16.msra.mxu0 %v3400
    %4739 = vmatpush.bf16.msra.mxu0 %v3392
    %4740 = vmatpush.bf16.msra.mxu0 %v3384
    %4741 = vmatpush.bf16.msra.mxu0 %v3376
    %4742 = vmatpush.bf16.msra.mxu0 %v3368
    %4743 = vmatpush.bf16.msra.mxu0 %v3360
    %4744 = vmatpush.bf16.msra.mxu0 %v3352
    %4745 = vmatmul.bf16.gmra.mxu0 %v1211
    %v4746 = vpop.f32.mrf.mxu0
    %v4747 = vadd.f32 %v4734, %v4746
    %v4748 = vpop.f32.mrf.mxu0
    %4749 = vdwg.mxu0
    %4750 = vmatpush.bf16.msra.mxu0 %v3472
    %4751 = vmatpush.bf16.msra.mxu0 %v3464
    %4752 = vmatpush.bf16.msra.mxu0 %v3456
    %4753 = vmatpush.bf16.msra.mxu0 %v3448
    %4754 = vmatpush.bf16.msra.mxu0 %v3440
    %4755 = vmatpush.bf16.msra.mxu0 %v3432
    %4756 = vmatpush.bf16.msra.mxu0 %v3424
    %4757 = vmatpush.bf16.msra.mxu0 %v3416
    %4758 = vmatmul.bf16.gmra.mxu0 %v1212
    %v4759 = vpop.f32.mrf.mxu0
    %v4760 = vadd.f32 %v4747, %v4759
    %v4761 = vpop.f32.mrf.mxu0
    %4762 = vdwg.mxu0
    %4763 = vmatpush.bf16.msra.mxu0 %v3536
    %4764 = vmatpush.bf16.msra.mxu0 %v3528
    %4765 = vmatpush.bf16.msra.mxu0 %v3520
    %4766 = vmatpush.bf16.msra.mxu0 %v3512
    %4767 = vmatpush.bf16.msra.mxu0 %v3504
    %4768 = vmatpush.bf16.msra.mxu0 %v3496
    %4769 = vmatpush.bf16.msra.mxu0 %v3488
    %4770 = vmatpush.bf16.msra.mxu0 %v3480
    %4771 = vmatmul.bf16.gmra.mxu0 %v1213
    %v4772 = vpop.f32.mrf.mxu0
    %v4773 = vadd.f32 %v4760, %v4772
    %v4774 = vpop.f32.mrf.mxu0
    %4775 = vdwg.mxu0
    %4776 = vmatpush.bf16.msra.mxu0 %v3600
    %4777 = vmatpush.bf16.msra.mxu0 %v3592
    %4778 = vmatpush.bf16.msra.mxu0 %v3584
    %4779 = vmatpush.bf16.msra.mxu0 %v3576
    %4780 = vmatpush.bf16.msra.mxu0 %v3568
    %4781 = vmatpush.bf16.msra.mxu0 %v3560
    %4782 = vmatpush.bf16.msra.mxu0 %v3552
    %4783 = vmatpush.bf16.msra.mxu0 %v3544
    %4784 = vmatmul.bf16.gmra.mxu0 %v1214
    %v4785 = vpop.f32.mrf.mxu0
    %v4786 = vadd.f32 %v4773, %v4785
    %v4787 = vpop.f32.mrf.mxu0
    %4788 = vdwg.mxu0
    %4789 = vmatpush.bf16.msra.mxu0 %v3664
    %4790 = vmatpush.bf16.msra.mxu0 %v3656
    %4791 = vmatpush.bf16.msra.mxu0 %v3648
    %4792 = vmatpush.bf16.msra.mxu0 %v3640
    %4793 = vmatpush.bf16.msra.mxu0 %v3632
    %4794 = vmatpush.bf16.msra.mxu0 %v3624
    %4795 = vmatpush.bf16.msra.mxu0 %v3616
    %4796 = vmatpush.bf16.msra.mxu0 %v3608
    %4797 = vmatmul.bf16.gmra.mxu0 %v1215
    %v4798 = vpop.f32.mrf.mxu0
    %v4799 = vadd.f32 %v4786, %v4798
    %v4800 = vpop.f32.mrf.mxu0
    %4801 = vdwg.mxu0
    %4802 = vmatpush.bf16.msra.mxu0 %v3728
    %4803 = vmatpush.bf16.msra.mxu0 %v3720
    %4804 = vmatpush.bf16.msra.mxu0 %v3712
    %4805 = vmatpush.bf16.msra.mxu0 %v3704
    %4806 = vmatpush.bf16.msra.mxu0 %v3696
    %4807 = vmatpush.bf16.msra.mxu0 %v3688
    %4808 = vmatpush.bf16.msra.mxu0 %v3680
    %4809 = vmatpush.bf16.msra.mxu0 %v3672
    %4810 = vmatmul.bf16.gmra.mxu0 %v1216
    %v4811 = vpop.f32.mrf.mxu0
    %v4812 = vadd.f32 %v4799, %v4811
    %v4813 = vpop.f32.mrf.mxu0
    %4814 = vdwg.mxu0
    %4815 = vmatpush.bf16.msra.mxu0 %v3792
    %4816 = vmatpush.bf16.msra.mxu0 %v3784
    %4817 = vmatpush.bf16.msra.mxu0 %v3776
    %4818 = vmatpush.bf16.msra.mxu0 %v3768
    %4819 = vmatpush.bf16.msra.mxu0 %v3760
    %4820 = vmatpush.bf16.msra.mxu0 %v3752
    %4821 = vmatpush.bf16.msra.mxu0 %v3744
    %4822 = vmatpush.bf16.msra.mxu0 %v3736
    %4823 = vmatmul.bf16.gmra.mxu0 %v1217
    %v4824 = vpop.f32.mrf.mxu0
    %v4825 = vadd.f32 %v4812, %v4824
    %v4826 = vpop.f32.mrf.mxu0
    %4827 = vdwg.mxu0
    %4828 = vmatpush.bf16.msra.mxu0 %v3345
    %4829 = vmatpush.bf16.msra.mxu0 %v3337
    %4830 = vmatpush.bf16.msra.mxu0 %v3329
    %4831 = vmatpush.bf16.msra.mxu0 %v3321
    %4832 = vmatpush.bf16.msra.mxu0 %v3313
    %4833 = vmatpush.bf16.msra.mxu0 %v3305
    %4834 = vmatpush.bf16.msra.mxu0 %v3297
    %4835 = vmatpush.bf16.msra.mxu0 %v3289
    %4836 = vmatmul.bf16.gmra.mxu0 %v1210
    %v4837 = vpop.f32.mrf.mxu0
    %v4838 = vadd.f32 %v1737, %v4837
    %v4839 = vpop.f32.mrf.mxu0
    %4840 = vdwg.mxu0
    %4841 = vmatpush.bf16.msra.mxu0 %v3409
    %4842 = vmatpush.bf16.msra.mxu0 %v3401
    %4843 = vmatpush.bf16.msra.mxu0 %v3393
    %4844 = vmatpush.bf16.msra.mxu0 %v3385
    %4845 = vmatpush.bf16.msra.mxu0 %v3377
    %4846 = vmatpush.bf16.msra.mxu0 %v3369
    %4847 = vmatpush.bf16.msra.mxu0 %v3361
    %4848 = vmatpush.bf16.msra.mxu0 %v3353
    %4849 = vmatmul.bf16.gmra.mxu0 %v1211
    %v4850 = vpop.f32.mrf.mxu0
    %v4851 = vadd.f32 %v4838, %v4850
    %v4852 = vpop.f32.mrf.mxu0
    %4853 = vdwg.mxu0
    %4854 = vmatpush.bf16.msra.mxu0 %v3473
    %4855 = vmatpush.bf16.msra.mxu0 %v3465
    %4856 = vmatpush.bf16.msra.mxu0 %v3457
    %4857 = vmatpush.bf16.msra.mxu0 %v3449
    %4858 = vmatpush.bf16.msra.mxu0 %v3441
    %4859 = vmatpush.bf16.msra.mxu0 %v3433
    %4860 = vmatpush.bf16.msra.mxu0 %v3425
    %4861 = vmatpush.bf16.msra.mxu0 %v3417
    %4862 = vmatmul.bf16.gmra.mxu0 %v1212
    %v4863 = vpop.f32.mrf.mxu0
    %v4864 = vadd.f32 %v4851, %v4863
    %v4865 = vpop.f32.mrf.mxu0
    %4866 = vdwg.mxu0
    %4867 = vmatpush.bf16.msra.mxu0 %v3537
    %4868 = vmatpush.bf16.msra.mxu0 %v3529
    %4869 = vmatpush.bf16.msra.mxu0 %v3521
    %4870 = vmatpush.bf16.msra.mxu0 %v3513
    %4871 = vmatpush.bf16.msra.mxu0 %v3505
    %4872 = vmatpush.bf16.msra.mxu0 %v3497
    %4873 = vmatpush.bf16.msra.mxu0 %v3489
    %4874 = vmatpush.bf16.msra.mxu0 %v3481
    %4875 = vmatmul.bf16.gmra.mxu0 %v1213
    %v4876 = vpop.f32.mrf.mxu0
    %v4877 = vadd.f32 %v4864, %v4876
    %v4878 = vpop.f32.mrf.mxu0
    %4879 = vdwg.mxu0
    %4880 = vmatpush.bf16.msra.mxu0 %v3601
    %4881 = vmatpush.bf16.msra.mxu0 %v3593
    %4882 = vmatpush.bf16.msra.mxu0 %v3585
    %4883 = vmatpush.bf16.msra.mxu0 %v3577
    %4884 = vmatpush.bf16.msra.mxu0 %v3569
    %4885 = vmatpush.bf16.msra.mxu0 %v3561
    %4886 = vmatpush.bf16.msra.mxu0 %v3553
    %4887 = vmatpush.bf16.msra.mxu0 %v3545
    %4888 = vmatmul.bf16.gmra.mxu0 %v1214
    %v4889 = vpop.f32.mrf.mxu0
    %v4890 = vadd.f32 %v4877, %v4889
    %v4891 = vpop.f32.mrf.mxu0
    %4892 = vdwg.mxu0
    %4893 = vmatpush.bf16.msra.mxu0 %v3665
    %4894 = vmatpush.bf16.msra.mxu0 %v3657
    %4895 = vmatpush.bf16.msra.mxu0 %v3649
    %4896 = vmatpush.bf16.msra.mxu0 %v3641
    %4897 = vmatpush.bf16.msra.mxu0 %v3633
    %4898 = vmatpush.bf16.msra.mxu0 %v3625
    %4899 = vmatpush.bf16.msra.mxu0 %v3617
    %4900 = vmatpush.bf16.msra.mxu0 %v3609
    %4901 = vmatmul.bf16.gmra.mxu0 %v1215
    %v4902 = vpop.f32.mrf.mxu0
    %v4903 = vadd.f32 %v4890, %v4902
    %v4904 = vpop.f32.mrf.mxu0
    %4905 = vdwg.mxu0
    %4906 = vmatpush.bf16.msra.mxu0 %v3729
    %4907 = vmatpush.bf16.msra.mxu0 %v3721
    %4908 = vmatpush.bf16.msra.mxu0 %v3713
    %4909 = vmatpush.bf16.msra.mxu0 %v3705
    %4910 = vmatpush.bf16.msra.mxu0 %v3697
    %4911 = vmatpush.bf16.msra.mxu0 %v3689
    %4912 = vmatpush.bf16.msra.mxu0 %v3681
    %4913 = vmatpush.bf16.msra.mxu0 %v3673
    %4914 = vmatmul.bf16.gmra.mxu0 %v1216
    %v4915 = vpop.f32.mrf.mxu0
    %v4916 = vadd.f32 %v4903, %v4915
    %v4917 = vpop.f32.mrf.mxu0
    %4918 = vdwg.mxu0
    %4919 = vmatpush.bf16.msra.mxu0 %v3793
    %4920 = vmatpush.bf16.msra.mxu0 %v3785
    %4921 = vmatpush.bf16.msra.mxu0 %v3777
    %4922 = vmatpush.bf16.msra.mxu0 %v3769
    %4923 = vmatpush.bf16.msra.mxu0 %v3761
    %4924 = vmatpush.bf16.msra.mxu0 %v3753
    %4925 = vmatpush.bf16.msra.mxu0 %v3745
    %4926 = vmatpush.bf16.msra.mxu0 %v3737
    %4927 = vmatmul.bf16.gmra.mxu0 %v1217
    %v4928 = vpop.f32.mrf.mxu0
    %v4929 = vadd.f32 %v4916, %v4928
    %v4930 = vpop.f32.mrf.mxu0
    %4931 = vdwg.mxu0
    %4932 = vmatpush.bf16.msra.mxu0 %v3346
    %4933 = vmatpush.bf16.msra.mxu0 %v3338
    %4934 = vmatpush.bf16.msra.mxu0 %v3330
    %4935 = vmatpush.bf16.msra.mxu0 %v3322
    %4936 = vmatpush.bf16.msra.mxu0 %v3314
    %4937 = vmatpush.bf16.msra.mxu0 %v3306
    %4938 = vmatpush.bf16.msra.mxu0 %v3298
    %4939 = vmatpush.bf16.msra.mxu0 %v3290
    %4940 = vmatmul.bf16.gmra.mxu0 %v1210
    %v4941 = vpop.f32.mrf.mxu0
    %v4942 = vadd.f32 %v1738, %v4941
    %v4943 = vpop.f32.mrf.mxu0
    %4944 = vdwg.mxu0
    %4945 = vmatpush.bf16.msra.mxu0 %v3410
    %4946 = vmatpush.bf16.msra.mxu0 %v3402
    %4947 = vmatpush.bf16.msra.mxu0 %v3394
    %4948 = vmatpush.bf16.msra.mxu0 %v3386
    %4949 = vmatpush.bf16.msra.mxu0 %v3378
    %4950 = vmatpush.bf16.msra.mxu0 %v3370
    %4951 = vmatpush.bf16.msra.mxu0 %v3362
    %4952 = vmatpush.bf16.msra.mxu0 %v3354
    %4953 = vmatmul.bf16.gmra.mxu0 %v1211
    %v4954 = vpop.f32.mrf.mxu0
    %v4955 = vadd.f32 %v4942, %v4954
    %v4956 = vpop.f32.mrf.mxu0
    %4957 = vdwg.mxu0
    %4958 = vmatpush.bf16.msra.mxu0 %v3474
    %4959 = vmatpush.bf16.msra.mxu0 %v3466
    %4960 = vmatpush.bf16.msra.mxu0 %v3458
    %4961 = vmatpush.bf16.msra.mxu0 %v3450
    %4962 = vmatpush.bf16.msra.mxu0 %v3442
    %4963 = vmatpush.bf16.msra.mxu0 %v3434
    %4964 = vmatpush.bf16.msra.mxu0 %v3426
    %4965 = vmatpush.bf16.msra.mxu0 %v3418
    %4966 = vmatmul.bf16.gmra.mxu0 %v1212
    %v4967 = vpop.f32.mrf.mxu0
    %v4968 = vadd.f32 %v4955, %v4967
    %v4969 = vpop.f32.mrf.mxu0
    %4970 = vdwg.mxu0
    %4971 = vmatpush.bf16.msra.mxu0 %v3538
    %4972 = vmatpush.bf16.msra.mxu0 %v3530
    %4973 = vmatpush.bf16.msra.mxu0 %v3522
    %4974 = vmatpush.bf16.msra.mxu0 %v3514
    %4975 = vmatpush.bf16.msra.mxu0 %v3506
    %4976 = vmatpush.bf16.msra.mxu0 %v3498
    %4977 = vmatpush.bf16.msra.mxu0 %v3490
    %4978 = vmatpush.bf16.msra.mxu0 %v3482
    %4979 = vmatmul.bf16.gmra.mxu0 %v1213
    %v4980 = vpop.f32.mrf.mxu0
    %v4981 = vadd.f32 %v4968, %v4980
    %v4982 = vpop.f32.mrf.mxu0
    %4983 = vdwg.mxu0
    %4984 = vmatpush.bf16.msra.mxu0 %v3602
    %4985 = vmatpush.bf16.msra.mxu0 %v3594
    %4986 = vmatpush.bf16.msra.mxu0 %v3586
    %4987 = vmatpush.bf16.msra.mxu0 %v3578
    %4988 = vmatpush.bf16.msra.mxu0 %v3570
    %4989 = vmatpush.bf16.msra.mxu0 %v3562
    %4990 = vmatpush.bf16.msra.mxu0 %v3554
    %4991 = vmatpush.bf16.msra.mxu0 %v3546
    %4992 = vmatmul.bf16.gmra.mxu0 %v1214
    %v4993 = vpop.f32.mrf.mxu0
    %v4994 = vadd.f32 %v4981, %v4993
    %v4995 = vpop.f32.mrf.mxu0
    %4996 = vdwg.mxu0
    %4997 = vmatpush.bf16.msra.mxu0 %v3666
    %4998 = vmatpush.bf16.msra.mxu0 %v3658
    %4999 = vmatpush.bf16.msra.mxu0 %v3650
    %5000 = vmatpush.bf16.msra.mxu0 %v3642
    %5001 = vmatpush.bf16.msra.mxu0 %v3634
    %5002 = vmatpush.bf16.msra.mxu0 %v3626
    %5003 = vmatpush.bf16.msra.mxu0 %v3618
    %5004 = vmatpush.bf16.msra.mxu0 %v3610
    %5005 = vmatmul.bf16.gmra.mxu0 %v1215
    %v5006 = vpop.f32.mrf.mxu0
    %v5007 = vadd.f32 %v4994, %v5006
    %v5008 = vpop.f32.mrf.mxu0
    %5009 = vdwg.mxu0
    %5010 = vmatpush.bf16.msra.mxu0 %v3730
    %5011 = vmatpush.bf16.msra.mxu0 %v3722
    %5012 = vmatpush.bf16.msra.mxu0 %v3714
    %5013 = vmatpush.bf16.msra.mxu0 %v3706
    %5014 = vmatpush.bf16.msra.mxu0 %v3698
    %5015 = vmatpush.bf16.msra.mxu0 %v3690
    %5016 = vmatpush.bf16.msra.mxu0 %v3682
    %5017 = vmatpush.bf16.msra.mxu0 %v3674
    %5018 = vmatmul.bf16.gmra.mxu0 %v1216
    %v5019 = vpop.f32.mrf.mxu0
    %v5020 = vadd.f32 %v5007, %v5019
    %v5021 = vpop.f32.mrf.mxu0
    %5022 = vdwg.mxu0
    %5023 = vmatpush.bf16.msra.mxu0 %v3794
    %5024 = vmatpush.bf16.msra.mxu0 %v3786
    %5025 = vmatpush.bf16.msra.mxu0 %v3778
    %5026 = vmatpush.bf16.msra.mxu0 %v3770
    %5027 = vmatpush.bf16.msra.mxu0 %v3762
    %5028 = vmatpush.bf16.msra.mxu0 %v3754
    %5029 = vmatpush.bf16.msra.mxu0 %v3746
    %5030 = vmatpush.bf16.msra.mxu0 %v3738
    %5031 = vmatmul.bf16.gmra.mxu0 %v1217
    %v5032 = vpop.f32.mrf.mxu0
    %v5033 = vadd.f32 %v5020, %v5032
    %v5034 = vpop.f32.mrf.mxu0
    %5035 = vdwg.mxu0
    %5036 = vmatpush.bf16.msra.mxu0 %v3347
    %5037 = vmatpush.bf16.msra.mxu0 %v3339
    %5038 = vmatpush.bf16.msra.mxu0 %v3331
    %5039 = vmatpush.bf16.msra.mxu0 %v3323
    %5040 = vmatpush.bf16.msra.mxu0 %v3315
    %5041 = vmatpush.bf16.msra.mxu0 %v3307
    %5042 = vmatpush.bf16.msra.mxu0 %v3299
    %5043 = vmatpush.bf16.msra.mxu0 %v3291
    %5044 = vmatmul.bf16.gmra.mxu0 %v1210
    %v5045 = vpop.f32.mrf.mxu0
    %v5046 = vadd.f32 %v1739, %v5045
    %v5047 = vpop.f32.mrf.mxu0
    %5048 = vdwg.mxu0
    %5049 = vmatpush.bf16.msra.mxu0 %v3411
    %5050 = vmatpush.bf16.msra.mxu0 %v3403
    %5051 = vmatpush.bf16.msra.mxu0 %v3395
    %5052 = vmatpush.bf16.msra.mxu0 %v3387
    %5053 = vmatpush.bf16.msra.mxu0 %v3379
    %5054 = vmatpush.bf16.msra.mxu0 %v3371
    %5055 = vmatpush.bf16.msra.mxu0 %v3363
    %5056 = vmatpush.bf16.msra.mxu0 %v3355
    %5057 = vmatmul.bf16.gmra.mxu0 %v1211
    %v5058 = vpop.f32.mrf.mxu0
    %v5059 = vadd.f32 %v5046, %v5058
    %v5060 = vpop.f32.mrf.mxu0
    %5061 = vdwg.mxu0
    %5062 = vmatpush.bf16.msra.mxu0 %v3475
    %5063 = vmatpush.bf16.msra.mxu0 %v3467
    %5064 = vmatpush.bf16.msra.mxu0 %v3459
    %5065 = vmatpush.bf16.msra.mxu0 %v3451
    %5066 = vmatpush.bf16.msra.mxu0 %v3443
    %5067 = vmatpush.bf16.msra.mxu0 %v3435
    %5068 = vmatpush.bf16.msra.mxu0 %v3427
    %5069 = vmatpush.bf16.msra.mxu0 %v3419
    %5070 = vmatmul.bf16.gmra.mxu0 %v1212
    %v5071 = vpop.f32.mrf.mxu0
    %v5072 = vadd.f32 %v5059, %v5071
    %v5073 = vpop.f32.mrf.mxu0
    %5074 = vdwg.mxu0
    %5075 = vmatpush.bf16.msra.mxu0 %v3539
    %5076 = vmatpush.bf16.msra.mxu0 %v3531
    %5077 = vmatpush.bf16.msra.mxu0 %v3523
    %5078 = vmatpush.bf16.msra.mxu0 %v3515
    %5079 = vmatpush.bf16.msra.mxu0 %v3507
    %5080 = vmatpush.bf16.msra.mxu0 %v3499
    %5081 = vmatpush.bf16.msra.mxu0 %v3491
    %5082 = vmatpush.bf16.msra.mxu0 %v3483
    %5083 = vmatmul.bf16.gmra.mxu0 %v1213
    %v5084 = vpop.f32.mrf.mxu0
    %v5085 = vadd.f32 %v5072, %v5084
    %v5086 = vpop.f32.mrf.mxu0
    %5087 = vdwg.mxu0
    %5088 = vmatpush.bf16.msra.mxu0 %v3603
    %5089 = vmatpush.bf16.msra.mxu0 %v3595
    %5090 = vmatpush.bf16.msra.mxu0 %v3587
    %5091 = vmatpush.bf16.msra.mxu0 %v3579
    %5092 = vmatpush.bf16.msra.mxu0 %v3571
    %5093 = vmatpush.bf16.msra.mxu0 %v3563
    %5094 = vmatpush.bf16.msra.mxu0 %v3555
    %5095 = vmatpush.bf16.msra.mxu0 %v3547
    %5096 = vmatmul.bf16.gmra.mxu0 %v1214
    %v5097 = vpop.f32.mrf.mxu0
    %v5098 = vadd.f32 %v5085, %v5097
    %v5099 = vpop.f32.mrf.mxu0
    %5100 = vdwg.mxu0
    %5101 = vmatpush.bf16.msra.mxu0 %v3667
    %5102 = vmatpush.bf16.msra.mxu0 %v3659
    %5103 = vmatpush.bf16.msra.mxu0 %v3651
    %5104 = vmatpush.bf16.msra.mxu0 %v3643
    %5105 = vmatpush.bf16.msra.mxu0 %v3635
    %5106 = vmatpush.bf16.msra.mxu0 %v3627
    %5107 = vmatpush.bf16.msra.mxu0 %v3619
    %5108 = vmatpush.bf16.msra.mxu0 %v3611
    %5109 = vmatmul.bf16.gmra.mxu0 %v1215
    %v5110 = vpop.f32.mrf.mxu0
    %v5111 = vadd.f32 %v5098, %v5110
    %v5112 = vpop.f32.mrf.mxu0
    %5113 = vdwg.mxu0
    %5114 = vmatpush.bf16.msra.mxu0 %v3731
    %5115 = vmatpush.bf16.msra.mxu0 %v3723
    %5116 = vmatpush.bf16.msra.mxu0 %v3715
    %5117 = vmatpush.bf16.msra.mxu0 %v3707
    %5118 = vmatpush.bf16.msra.mxu0 %v3699
    %5119 = vmatpush.bf16.msra.mxu0 %v3691
    %5120 = vmatpush.bf16.msra.mxu0 %v3683
    %5121 = vmatpush.bf16.msra.mxu0 %v3675
    %5122 = vmatmul.bf16.gmra.mxu0 %v1216
    %v5123 = vpop.f32.mrf.mxu0
    %v5124 = vadd.f32 %v5111, %v5123
    %v5125 = vpop.f32.mrf.mxu0
    %5126 = vdwg.mxu0
    %5127 = vmatpush.bf16.msra.mxu0 %v3795
    %5128 = vmatpush.bf16.msra.mxu0 %v3787
    %5129 = vmatpush.bf16.msra.mxu0 %v3779
    %5130 = vmatpush.bf16.msra.mxu0 %v3771
    %5131 = vmatpush.bf16.msra.mxu0 %v3763
    %5132 = vmatpush.bf16.msra.mxu0 %v3755
    %5133 = vmatpush.bf16.msra.mxu0 %v3747
    %5134 = vmatpush.bf16.msra.mxu0 %v3739
    %5135 = vmatmul.bf16.gmra.mxu0 %v1217
    %v5136 = vpop.f32.mrf.mxu0
    %v5137 = vadd.f32 %v5124, %v5136
    %v5138 = vpop.f32.mrf.mxu0
    %5139 = vdwg.mxu0
    %v5140 = vmax.f32 %v4409, 0.0
    %v5141 = vmax.f32 %v4513, 0.0
    %v5142 = vmax.f32 %v4617, 0.0
    %v5143 = vmax.f32 %v4721, 0.0
    %v5144 = vmax.f32 %v4825, 0.0
    %v5145 = vmax.f32 %v4929, 0.0
    %v5146 = vmax.f32 %v5033, 0.0
    %v5147 = vmax.f32 %v5137, 0.0
    %v5148 = vpack.c.bf16 %v5140, %v5140
    %v5149 = vpack.c.bf16 %v5141, %v5141
    %v5150 = vpack.c.bf16 %v5142, %v5142
    %v5151 = vpack.c.bf16 %v5143, %v5143
    %v5152 = vpack.c.bf16 %v5144, %v5144
    %v5153 = vpack.c.bf16 %v5145, %v5145
    %v5154 = vpack.c.bf16 %v5146, %v5146
    %v5155 = vpack.c.bf16 %v5147, %v5147
    %v5156 = vld [vmem:[%s5] sm:$0xf]
    %v5157 = vld [vmem:[%s5 + $0x4] sm:$0xf]
    %v5158 = vld [vmem:[%s5 + $0x8] sm:$0xf]
    %v5159 = vld [vmem:[%s5 + $0xc] sm:$0xf]
    %v5160 = vld [vmem:[%s5 + $0x10] sm:$0xf]
    %v5161 = vld [vmem:[%s5 + $0x14] sm:$0xf]
    %v5162 = vld [vmem:[%s5 + $0x18] sm:$0xf]
    %v5163 = vld [vmem:[%s5 + $0x1c] sm:$0xf]
    %v5164 = vld [vmem:[%s5 + $0x20] sm:$0xf]
    %v5165 = vld [vmem:[%s5 + $0x24] sm:$0xf]
    %v5166 = vld [vmem:[%s5 + $0x28] sm:$0xf]
    %v5167 = vld [vmem:[%s5 + $0x2c] sm:$0xf]
    %v5168 = vld [vmem:[%s5 + $0x30] sm:$0xf]
    %v5169 = vld [vmem:[%s5 + $0x34] sm:$0xf]
    %v5170 = vld [vmem:[%s5 + $0x38] sm:$0xf]
    %v5171 = vld [vmem:[%s5 + $0x3c] sm:$0xf]
    %v5172 = vld [vmem:[%s5 + $0x40] sm:$0xf]
    %v5173 = vld [vmem:[%s5 + $0x44] sm:$0xf]
    %v5174 = vld [vmem:[%s5 + $0x48] sm:$0xf]
    %v5175 = vld [vmem:[%s5 + $0x4c] sm:$0xf]
    %v5176 = vld [vmem:[%s5 + $0x50] sm:$0xf]
    %v5177 = vld [vmem:[%s5 + $0x54] sm:$0xf]
    %v5178 = vld [vmem:[%s5 + $0x58] sm:$0xf]
    %v5179 = vld [vmem:[%s5 + $0x5c] sm:$0xf]
    %v5180 = vld [vmem:[%s5 + $0x60] sm:$0xf]
    %v5181 = vld [vmem:[%s5 + $0x64] sm:$0xf]
    %v5182 = vld [vmem:[%s5 + $0x68] sm:$0xf]
    %v5183 = vld [vmem:[%s5 + $0x6c] sm:$0xf]
    %v5184 = vld [vmem:[%s5 + $0x70] sm:$0xf]
    %v5185 = vld [vmem:[%s5 + $0x74] sm:$0xf]
    %v5186 = vld [vmem:[%s5 + $0x78] sm:$0xf]
    %v5187 = vld [vmem:[%s5 + $0x7c] sm:$0xf]
    %v5188 = vld [vmem:[%s5 + $0x80] sm:$0xf]
    %v5189 = vld [vmem:[%s5 + $0x84] sm:$0xf]
    %v5190 = vld [vmem:[%s5 + $0x88] sm:$0xf]
    %v5191 = vld [vmem:[%s5 + $0x8c] sm:$0xf]
    %v5192 = vld [vmem:[%s5 + $0x90] sm:$0xf]
    %v5193 = vld [vmem:[%s5 + $0x94] sm:$0xf]
    %v5194 = vld [vmem:[%s5 + $0x98] sm:$0xf]
    %v5195 = vld [vmem:[%s5 + $0x9c] sm:$0xf]
    %v5196 = vld [vmem:[%s5 + $0xa0] sm:$0xf]
    %v5197 = vld [vmem:[%s5 + $0xa4] sm:$0xf]
    %v5198 = vld [vmem:[%s5 + $0xa8] sm:$0xf]
    %v5199 = vld [vmem:[%s5 + $0xac] sm:$0xf]
    %v5200 = vld [vmem:[%s5 + $0xb0] sm:$0xf]
    %v5201 = vld [vmem:[%s5 + $0xb4] sm:$0xf]
    %v5202 = vld [vmem:[%s5 + $0xb8] sm:$0xf]
    %v5203 = vld [vmem:[%s5 + $0xbc] sm:$0xf]
    %v5204 = vld [vmem:[%s5 + $0xc0] sm:$0xf]
    %v5205 = vld [vmem:[%s5 + $0xc4] sm:$0xf]
    %v5206 = vld [vmem:[%s5 + $0xc8] sm:$0xf]
    %v5207 = vld [vmem:[%s5 + $0xcc] sm:$0xf]
    %v5208 = vld [vmem:[%s5 + $0xd0] sm:$0xf]
    %v5209 = vld [vmem:[%s5 + $0xd4] sm:$0xf]
    %v5210 = vld [vmem:[%s5 + $0xd8] sm:$0xf]
    %v5211 = vld [vmem:[%s5 + $0xdc] sm:$0xf]
    %v5212 = vld [vmem:[%s5 + $0xe0] sm:$0xf]
    %v5213 = vld [vmem:[%s5 + $0xe4] sm:$0xf]
    %v5214 = vld [vmem:[%s5 + $0xe8] sm:$0xf]
    %v5215 = vld [vmem:[%s5 + $0xec] sm:$0xf]
    %v5216 = vld [vmem:[%s5 + $0xf0] sm:$0xf]
    %v5217 = vld [vmem:[%s5 + $0xf4] sm:$0xf]
    %v5218 = vld [vmem:[%s5 + $0xf8] sm:$0xf]
    %v5219 = vld [vmem:[%s5 + $0xfc] sm:$0xf]
    %v5220 = vld [vmem:[%s5 + $0x100] sm:$0xf]
    %v5221 = vld [vmem:[%s5 + $0x104] sm:$0xf]
    %v5222 = vld [vmem:[%s5 + $0x108] sm:$0xf]
    %v5223 = vld [vmem:[%s5 + $0x10c] sm:$0xf]
    %v5224 = vld [vmem:[%s5 + $0x110] sm:$0xf]
    %v5225 = vld [vmem:[%s5 + $0x114] sm:$0xf]
    %v5226 = vld [vmem:[%s5 + $0x118] sm:$0xf]
    %v5227 = vld [vmem:[%s5 + $0x11c] sm:$0xf]
    %v5228 = vld [vmem:[%s5 + $0x120] sm:$0xf]
    %v5229 = vld [vmem:[%s5 + $0x124] sm:$0xf]
    %v5230 = vld [vmem:[%s5 + $0x128] sm:$0xf]
    %v5231 = vld [vmem:[%s5 + $0x12c] sm:$0xf]
    %v5232 = vld [vmem:[%s5 + $0x130] sm:$0xf]
    %v5233 = vld [vmem:[%s5 + $0x134] sm:$0xf]
    %v5234 = vld [vmem:[%s5 + $0x138] sm:$0xf]
    %v5235 = vld [vmem:[%s5 + $0x13c] sm:$0xf]
    %v5236 = vld [vmem:[%s5 + $0x140] sm:$0xf]
    %v5237 = vld [vmem:[%s5 + $0x144] sm:$0xf]
    %v5238 = vld [vmem:[%s5 + $0x148] sm:$0xf]
    %v5239 = vld [vmem:[%s5 + $0x14c] sm:$0xf]
    %v5240 = vld [vmem:[%s5 + $0x150] sm:$0xf]
    %v5241 = vld [vmem:[%s5 + $0x154] sm:$0xf]
    %v5242 = vld [vmem:[%s5 + $0x158] sm:$0xf]
    %v5243 = vld [vmem:[%s5 + $0x15c] sm:$0xf]
    %v5244 = vld [vmem:[%s5 + $0x160] sm:$0xf]
    %v5245 = vld [vmem:[%s5 + $0x164] sm:$0xf]
    %v5246 = vld [vmem:[%s5 + $0x168] sm:$0xf]
    %v5247 = vld [vmem:[%s5 + $0x16c] sm:$0xf]
    %v5248 = vld [vmem:[%s5 + $0x170] sm:$0xf]
    %v5249 = vld [vmem:[%s5 + $0x174] sm:$0xf]
    %v5250 = vld [vmem:[%s5 + $0x178] sm:$0xf]
    %v5251 = vld [vmem:[%s5 + $0x17c] sm:$0xf]
    %v5252 = vld [vmem:[%s5 + $0x180] sm:$0xf]
    %v5253 = vld [vmem:[%s5 + $0x184] sm:$0xf]
    %v5254 = vld [vmem:[%s5 + $0x188] sm:$0xf]
    %v5255 = vld [vmem:[%s5 + $0x18c] sm:$0xf]
    %v5256 = vld [vmem:[%s5 + $0x190] sm:$0xf]
    %v5257 = vld [vmem:[%s5 + $0x194] sm:$0xf]
    %v5258 = vld [vmem:[%s5 + $0x198] sm:$0xf]
    %v5259 = vld [vmem:[%s5 + $0x19c] sm:$0xf]
    %v5260 = vld [vmem:[%s5 + $0x1a0] sm:$0xf]
    %v5261 = vld [vmem:[%s5 + $0x1a4] sm:$0xf]
    %v5262 = vld [vmem:[%s5 + $0x1a8] sm:$0xf]
    %v5263 = vld [vmem:[%s5 + $0x1ac] sm:$0xf]
    %v5264 = vld [vmem:[%s5 + $0x1b0] sm:$0xf]
    %v5265 = vld [vmem:[%s5 + $0x1b4] sm:$0xf]
    %v5266 = vld [vmem:[%s5 + $0x1b8] sm:$0xf]
    %v5267 = vld [vmem:[%s5 + $0x1bc] sm:$0xf]
    %v5268 = vld [vmem:[%s5 + $0x1c0] sm:$0xf]
    %v5269 = vld [vmem:[%s5 + $0x1c4] sm:$0xf]
    %v5270 = vld [vmem:[%s5 + $0x1c8] sm:$0xf]
    %v5271 = vld [vmem:[%s5 + $0x1cc] sm:$0xf]
    %v5272 = vld [vmem:[%s5 + $0x1d0] sm:$0xf]
    %v5273 = vld [vmem:[%s5 + $0x1d4] sm:$0xf]
    %v5274 = vld [vmem:[%s5 + $0x1d8] sm:$0xf]
    %v5275 = vld [vmem:[%s5 + $0x1dc] sm:$0xf]
    %v5276 = vld [vmem:[%s5 + $0x1e0] sm:$0xf]
    %v5277 = vld [vmem:[%s5 + $0x1e4] sm:$0xf]
    %v5278 = vld [vmem:[%s5 + $0x1e8] sm:$0xf]
    %v5279 = vld [vmem:[%s5 + $0x1ec] sm:$0xf]
    %v5280 = vld [vmem:[%s5 + $0x1f0] sm:$0xf]
    %v5281 = vld [vmem:[%s5 + $0x1f4] sm:$0xf]
    %v5282 = vld [vmem:[%s5 + $0x1f8] sm:$0xf]
    %v5283 = vld [vmem:[%s5 + $0x1fc] sm:$0xf]
    %v5284 = vld [vmem:[#allocation11] sm:$0x1]
    %v5286 = vperm.slane %v5284, 0
    %v5416 = vunpack.c.l.b16 %v5156
    %v5417 = vunpack.c.l.b16 %v5157
    %v5418 = vunpack.c.l.b16 %v5158
    %v5419 = vunpack.c.l.b16 %v5159
    %v5420 = vunpack.c.l.b16 %v5160
    %v5421 = vunpack.c.l.b16 %v5161
    %v5422 = vunpack.c.l.b16 %v5162
    %v5423 = vunpack.c.l.b16 %v5163
    %v5424 = vunpack.c.l.b16 %v5164
    %v5425 = vunpack.c.l.b16 %v5165
    %v5426 = vunpack.c.l.b16 %v5166
    %v5427 = vunpack.c.l.b16 %v5167
    %v5428 = vunpack.c.l.b16 %v5168
    %v5429 = vunpack.c.l.b16 %v5169
    %v5430 = vunpack.c.l.b16 %v5170
    %v5431 = vunpack.c.l.b16 %v5171
    %v5432 = vunpack.c.l.b16 %v5172
    %v5433 = vunpack.c.l.b16 %v5173
    %v5434 = vunpack.c.l.b16 %v5174
    %v5435 = vunpack.c.l.b16 %v5175
    %v5436 = vunpack.c.l.b16 %v5176
    %v5437 = vunpack.c.l.b16 %v5177
    %v5438 = vunpack.c.l.b16 %v5178
    %v5439 = vunpack.c.l.b16 %v5179
    %v5440 = vunpack.c.l.b16 %v5180
    %v5441 = vunpack.c.l.b16 %v5181
    %v5442 = vunpack.c.l.b16 %v5182
    %v5443 = vunpack.c.l.b16 %v5183
    %v5444 = vunpack.c.l.b16 %v5184
    %v5445 = vunpack.c.l.b16 %v5185
    %v5446 = vunpack.c.l.b16 %v5186
    %v5447 = vunpack.c.l.b16 %v5187
    %v5448 = vunpack.c.l.b16 %v5188
    %v5449 = vunpack.c.l.b16 %v5189
    %v5450 = vunpack.c.l.b16 %v5190
    %v5451 = vunpack.c.l.b16 %v5191
    %v5452 = vunpack.c.l.b16 %v5192
    %v5453 = vunpack.c.l.b16 %v5193
    %v5454 = vunpack.c.l.b16 %v5194
    %v5455 = vunpack.c.l.b16 %v5195
    %v5456 = vunpack.c.l.b16 %v5196
    %v5457 = vunpack.c.l.b16 %v5197
    %v5458 = vunpack.c.l.b16 %v5198
    %v5459 = vunpack.c.l.b16 %v5199
    %v5460 = vunpack.c.l.b16 %v5200
    %v5461 = vunpack.c.l.b16 %v5201
    %v5462 = vunpack.c.l.b16 %v5202
    %v5463 = vunpack.c.l.b16 %v5203
    %v5464 = vunpack.c.l.b16 %v5204
    %v5465 = vunpack.c.l.b16 %v5205
    %v5466 = vunpack.c.l.b16 %v5206
    %v5467 = vunpack.c.l.b16 %v5207
    %v5468 = vunpack.c.l.b16 %v5208
    %v5469 = vunpack.c.l.b16 %v5209
    %v5470 = vunpack.c.l.b16 %v5210
    %v5471 = vunpack.c.l.b16 %v5211
    %v5472 = vunpack.c.l.b16 %v5212
    %v5473 = vunpack.c.l.b16 %v5213
    %v5474 = vunpack.c.l.b16 %v5214
    %v5475 = vunpack.c.l.b16 %v5215
    %v5476 = vunpack.c.l.b16 %v5216
    %v5477 = vunpack.c.l.b16 %v5217
    %v5478 = vunpack.c.l.b16 %v5218
    %v5479 = vunpack.c.l.b16 %v5219
    %v5480 = vunpack.c.l.b16 %v5220
    %v5481 = vunpack.c.l.b16 %v5221
    %v5482 = vunpack.c.l.b16 %v5222
    %v5483 = vunpack.c.l.b16 %v5223
    %v5484 = vunpack.c.l.b16 %v5224
    %v5485 = vunpack.c.l.b16 %v5225
    %v5486 = vunpack.c.l.b16 %v5226
    %v5487 = vunpack.c.l.b16 %v5227
    %v5488 = vunpack.c.l.b16 %v5228
    %v5489 = vunpack.c.l.b16 %v5229
    %v5490 = vunpack.c.l.b16 %v5230
    %v5491 = vunpack.c.l.b16 %v5231
    %v5492 = vunpack.c.l.b16 %v5232
    %v5493 = vunpack.c.l.b16 %v5233
    %v5494 = vunpack.c.l.b16 %v5234
    %v5495 = vunpack.c.l.b16 %v5235
    %v5496 = vunpack.c.l.b16 %v5236
    %v5497 = vunpack.c.l.b16 %v5237
    %v5498 = vunpack.c.l.b16 %v5238
    %v5499 = vunpack.c.l.b16 %v5239
    %v5500 = vunpack.c.l.b16 %v5240
    %v5501 = vunpack.c.l.b16 %v5241
    %v5502 = vunpack.c.l.b16 %v5242
    %v5503 = vunpack.c.l.b16 %v5243
    %v5504 = vunpack.c.l.b16 %v5244
    %v5505 = vunpack.c.l.b16 %v5245
    %v5506 = vunpack.c.l.b16 %v5246
    %v5507 = vunpack.c.l.b16 %v5247
    %v5508 = vunpack.c.l.b16 %v5248
    %v5509 = vunpack.c.l.b16 %v5249
    %v5510 = vunpack.c.l.b16 %v5250
    %v5511 = vunpack.c.l.b16 %v5251
    %v5512 = vunpack.c.l.b16 %v5252
    %v5513 = vunpack.c.l.b16 %v5253
    %v5514 = vunpack.c.l.b16 %v5254
    %v5515 = vunpack.c.l.b16 %v5255
    %v5516 = vunpack.c.l.b16 %v5256
    %v5517 = vunpack.c.l.b16 %v5257
    %v5518 = vunpack.c.l.b16 %v5258
    %v5519 = vunpack.c.l.b16 %v5259
    %v5520 = vunpack.c.l.b16 %v5260
    %v5521 = vunpack.c.l.b16 %v5261
    %v5522 = vunpack.c.l.b16 %v5262
    %v5523 = vunpack.c.l.b16 %v5263
    %v5524 = vunpack.c.l.b16 %v5264
    %v5525 = vunpack.c.l.b16 %v5265
    %v5526 = vunpack.c.l.b16 %v5266
    %v5527 = vunpack.c.l.b16 %v5267
    %v5528 = vunpack.c.l.b16 %v5268
    %v5529 = vunpack.c.l.b16 %v5269
    %v5530 = vunpack.c.l.b16 %v5270
    %v5531 = vunpack.c.l.b16 %v5271
    %v5532 = vunpack.c.l.b16 %v5272
    %v5533 = vunpack.c.l.b16 %v5273
    %v5534 = vunpack.c.l.b16 %v5274
    %v5535 = vunpack.c.l.b16 %v5275
    %v5536 = vunpack.c.l.b16 %v5276
    %v5537 = vunpack.c.l.b16 %v5277
    %v5538 = vunpack.c.l.b16 %v5278
    %v5539 = vunpack.c.l.b16 %v5279
    %v5540 = vunpack.c.l.b16 %v5280
    %v5541 = vunpack.c.l.b16 %v5281
    %v5542 = vunpack.c.l.b16 %v5282
    %v5543 = vunpack.c.l.b16 %v5283
    %v5544 = vpack.c.b16 %v5417, %v5416
    %v5545 = vpack.c.b16 %v5419, %v5418
    %v5546 = vpack.c.b16 %v5421, %v5420
    %v5547 = vpack.c.b16 %v5423, %v5422
    %v5548 = vpack.c.b16 %v5425, %v5424
    %v5549 = vpack.c.b16 %v5427, %v5426
    %v5550 = vpack.c.b16 %v5429, %v5428
    %v5551 = vpack.c.b16 %v5431, %v5430
    %v5552 = vpack.c.b16 %v5433, %v5432
    %v5553 = vpack.c.b16 %v5435, %v5434
    %v5554 = vpack.c.b16 %v5437, %v5436
    %v5555 = vpack.c.b16 %v5439, %v5438
    %v5556 = vpack.c.b16 %v5441, %v5440
    %v5557 = vpack.c.b16 %v5443, %v5442
    %v5558 = vpack.c.b16 %v5445, %v5444
    %v5559 = vpack.c.b16 %v5447, %v5446
    %v5560 = vpack.c.b16 %v5449, %v5448
    %v5561 = vpack.c.b16 %v5451, %v5450
    %v5562 = vpack.c.b16 %v5453, %v5452
    %v5563 = vpack.c.b16 %v5455, %v5454
    %v5564 = vpack.c.b16 %v5457, %v5456
    %v5565 = vpack.c.b16 %v5459, %v5458
    %v5566 = vpack.c.b16 %v5461, %v5460
    %v5567 = vpack.c.b16 %v5463, %v5462
    %v5568 = vpack.c.b16 %v5465, %v5464
    %v5569 = vpack.c.b16 %v5467, %v5466
    %v5570 = vpack.c.b16 %v5469, %v5468
    %v5571 = vpack.c.b16 %v5471, %v5470
    %v5572 = vpack.c.b16 %v5473, %v5472
    %v5573 = vpack.c.b16 %v5475, %v5474
    %v5574 = vpack.c.b16 %v5477, %v5476
    %v5575 = vpack.c.b16 %v5479, %v5478
    %v5576 = vpack.c.b16 %v5481, %v5480
    %v5577 = vpack.c.b16 %v5483, %v5482
    %v5578 = vpack.c.b16 %v5485, %v5484
    %v5579 = vpack.c.b16 %v5487, %v5486
    %v5580 = vpack.c.b16 %v5489, %v5488
    %v5581 = vpack.c.b16 %v5491, %v5490
    %v5582 = vpack.c.b16 %v5493, %v5492
    %v5583 = vpack.c.b16 %v5495, %v5494
    %v5584 = vpack.c.b16 %v5497, %v5496
    %v5585 = vpack.c.b16 %v5499, %v5498
    %v5586 = vpack.c.b16 %v5501, %v5500
    %v5587 = vpack.c.b16 %v5503, %v5502
    %v5588 = vpack.c.b16 %v5505, %v5504
    %v5589 = vpack.c.b16 %v5507, %v5506
    %v5590 = vpack.c.b16 %v5509, %v5508
    %v5591 = vpack.c.b16 %v5511, %v5510
    %v5592 = vpack.c.b16 %v5513, %v5512
    %v5593 = vpack.c.b16 %v5515, %v5514
    %v5594 = vpack.c.b16 %v5517, %v5516
    %v5595 = vpack.c.b16 %v5519, %v5518
    %v5596 = vpack.c.b16 %v5521, %v5520
    %v5597 = vpack.c.b16 %v5523, %v5522
    %v5598 = vpack.c.b16 %v5525, %v5524
    %v5599 = vpack.c.b16 %v5527, %v5526
    %v5600 = vpack.c.b16 %v5529, %v5528
    %v5601 = vpack.c.b16 %v5531, %v5530
    %v5602 = vpack.c.b16 %v5533, %v5532
    %v5603 = vpack.c.b16 %v5535, %v5534
    %v5604 = vpack.c.b16 %v5537, %v5536
    %v5605 = vpack.c.b16 %v5539, %v5538
    %v5606 = vpack.c.b16 %v5541, %v5540
    %v5607 = vpack.c.b16 %v5543, %v5542
    %5672 = vmatpush.bf16.msra.mxu0 %v5551
    %5673 = vmatpush.bf16.msra.mxu0 %v5550
    %5674 = vmatpush.bf16.msra.mxu0 %v5549
    %5675 = vmatpush.bf16.msra.mxu0 %v5548
    %5676 = vmatpush.bf16.msra.mxu0 %v5547
    %5677 = vmatpush.bf16.msra.mxu0 %v5546
    %5678 = vmatpush.bf16.msra.mxu0 %v5545
    %5679 = vmatpush.bf16.msra.mxu0 %v5544
    %5680 = vmatmul.bf16.gmra.mxu0 %v5148
    %v5681 = vpop.f32.mrf.mxu0
    %v5682 = vadd.f32 %v5286, %v5681
    %v5683 = vpop.f32.mrf.mxu0
    %5684 = vdwg.mxu0
    %5685 = vmatpush.bf16.msra.mxu0 %v5559
    %5686 = vmatpush.bf16.msra.mxu0 %v5558
    %5687 = vmatpush.bf16.msra.mxu0 %v5557
    %5688 = vmatpush.bf16.msra.mxu0 %v5556
    %5689 = vmatpush.bf16.msra.mxu0 %v5555
    %5690 = vmatpush.bf16.msra.mxu0 %v5554
    %5691 = vmatpush.bf16.msra.mxu0 %v5553
    %5692 = vmatpush.bf16.msra.mxu0 %v5552
    %5693 = vmatmul.bf16.gmra.mxu0 %v5149
    %v5694 = vpop.f32.mrf.mxu0
    %v5695 = vadd.f32 %v5682, %v5694
    %v5696 = vpop.f32.mrf.mxu0
    %5697 = vdwg.mxu0
    %5698 = vmatpush.bf16.msra.mxu0 %v5567
    %5699 = vmatpush.bf16.msra.mxu0 %v5566
    %5700 = vmatpush.bf16.msra.mxu0 %v5565
    %5701 = vmatpush.bf16.msra.mxu0 %v5564
    %5702 = vmatpush.bf16.msra.mxu0 %v5563
    %5703 = vmatpush.bf16.msra.mxu0 %v5562
    %5704 = vmatpush.bf16.msra.mxu0 %v5561
    %5705 = vmatpush.bf16.msra.mxu0 %v5560
    %5706 = vmatmul.bf16.gmra.mxu0 %v5150
    %v5707 = vpop.f32.mrf.mxu0
    %v5708 = vadd.f32 %v5695, %v5707
    %v5709 = vpop.f32.mrf.mxu0
    %5710 = vdwg.mxu0
    %5711 = vmatpush.bf16.msra.mxu0 %v5575
    %5712 = vmatpush.bf16.msra.mxu0 %v5574
    %5713 = vmatpush.bf16.msra.mxu0 %v5573
    %5714 = vmatpush.bf16.msra.mxu0 %v5572
    %5715 = vmatpush.bf16.msra.mxu0 %v5571
    %5716 = vmatpush.bf16.msra.mxu0 %v5570
    %5717 = vmatpush.bf16.msra.mxu0 %v5569
    %5718 = vmatpush.bf16.msra.mxu0 %v5568
    %5719 = vmatmul.bf16.gmra.mxu0 %v5151
    %v5720 = vpop.f32.mrf.mxu0
    %v5721 = vadd.f32 %v5708, %v5720
    %v5722 = vpop.f32.mrf.mxu0
    %5723 = vdwg.mxu0
    %5724 = vmatpush.bf16.msra.mxu0 %v5583
    %5725 = vmatpush.bf16.msra.mxu0 %v5582
    %5726 = vmatpush.bf16.msra.mxu0 %v5581
    %5727 = vmatpush.bf16.msra.mxu0 %v5580
    %5728 = vmatpush.bf16.msra.mxu0 %v5579
    %5729 = vmatpush.bf16.msra.mxu0 %v5578
    %5730 = vmatpush.bf16.msra.mxu0 %v5577
    %5731 = vmatpush.bf16.msra.mxu0 %v5576
    %5732 = vmatmul.bf16.gmra.mxu0 %v5152
    %v5733 = vpop.f32.mrf.mxu0
    %v5734 = vadd.f32 %v5721, %v5733
    %v5735 = vpop.f32.mrf.mxu0
    %5736 = vdwg.mxu0
    %5737 = vmatpush.bf16.msra.mxu0 %v5591
    %5738 = vmatpush.bf16.msra.mxu0 %v5590
    %5739 = vmatpush.bf16.msra.mxu0 %v5589
    %5740 = vmatpush.bf16.msra.mxu0 %v5588
    %5741 = vmatpush.bf16.msra.mxu0 %v5587
    %5742 = vmatpush.bf16.msra.mxu0 %v5586
    %5743 = vmatpush.bf16.msra.mxu0 %v5585
    %5744 = vmatpush.bf16.msra.mxu0 %v5584
    %5745 = vmatmul.bf16.gmra.mxu0 %v5153
    %v5746 = vpop.f32.mrf.mxu0
    %v5747 = vadd.f32 %v5734, %v5746
    %v5748 = vpop.f32.mrf.mxu0
    %5749 = vdwg.mxu0
    %5750 = vmatpush.bf16.msra.mxu0 %v5599
    %5751 = vmatpush.bf16.msra.mxu0 %v5598
    %5752 = vmatpush.bf16.msra.mxu0 %v5597
    %5753 = vmatpush.bf16.msra.mxu0 %v5596
    %5754 = vmatpush.bf16.msra.mxu0 %v5595
    %5755 = vmatpush.bf16.msra.mxu0 %v5594
    %5756 = vmatpush.bf16.msra.mxu0 %v5593
    %5757 = vmatpush.bf16.msra.mxu0 %v5592
    %5758 = vmatmul.bf16.gmra.mxu0 %v5154
    %v5759 = vpop.f32.mrf.mxu0
    %v5760 = vadd.f32 %v5747, %v5759
    %v5761 = vpop.f32.mrf.mxu0
    %5762 = vdwg.mxu0
    %5763 = vmatpush.bf16.msra.mxu0 %v5607
    %5764 = vmatpush.bf16.msra.mxu0 %v5606
    %5765 = vmatpush.bf16.msra.mxu0 %v5605
    %5766 = vmatpush.bf16.msra.mxu0 %v5604
    %5767 = vmatpush.bf16.msra.mxu0 %v5603
    %5768 = vmatpush.bf16.msra.mxu0 %v5602
    %5769 = vmatpush.bf16.msra.mxu0 %v5601
    %5770 = vmatpush.bf16.msra.mxu0 %v5600
    %5771 = vmatmul.bf16.gmra.mxu0 %v5155
    %v5772 = vpop.f32.mrf.mxu0
    %v5773 = vadd.f32 %v5760, %v5772
    %v5774 = vpop.f32.mrf.mxu0
    %5775 = vdwg.mxu0
    %vm5776 = vcmask 15360
    %5777 = vst.msk [vmem:[%s13] sm:$0xff] %vm5776, %v5773
    %v5778 = vld [vmem:[#allocation13] sm:$0xff]
    %v5779 = vld [vmem:[#allocation13 + $0x8] sm:$0xff]
    %v5780 = vld [vmem:[#allocation13 + $0x10] sm:$0xff]
    %v5781 = vld [vmem:[#allocation13 + $0x18] sm:$0xff]
    %v5782 = vld [vmem:[#allocation13 + $0x20] sm:$0xff]
    %v5783 = vld [vmem:[#allocation13 + $0x28] sm:$0xff]
    %v5784 = vld [vmem:[#allocation13 + $0x30] sm:$0xff]
    %v5785 = vld [vmem:[#allocation13 + $0x38] sm:$0xff]
    %v5786 = vld [vmem:[#allocation13 + $0x40] sm:$0xff]
    %v5787 = vld [vmem:[#allocation13 + $0x48] sm:$0xff]
    %v5788 = vld [vmem:[#allocation13 + $0x50] sm:$0xff]
    %v5789 = vld [vmem:[#allocation13 + $0x58] sm:$0xff]
    %v5790 = vld [vmem:[#allocation13 + $0x60] sm:$0xff]
    %v5791 = vld [vmem:[#allocation13 + $0x68] sm:$0xff]
    %v5792 = vld [vmem:[#allocation13 + $0x70] sm:$0xff]
    %v5793 = vld [vmem:[#allocation13 + $0x78] sm:$0xff]
    %v5794 = vld [vmem:[#allocation13 + $0x80] sm:$0xff]
    %v5795 = vld [vmem:[#allocation13 + $0x88] sm:$0xff]
    %v5796 = vld [vmem:[#allocation13 + $0x90] sm:$0xff]
    %v5797 = vld [vmem:[#allocation13 + $0x98] sm:$0xff]
    %v5798 = vld [vmem:[#allocation13 + $0xa0] sm:$0xff]
    %v5799 = vld [vmem:[#allocation13 + $0xa8] sm:$0xff]
    %v5800 = vld [vmem:[#allocation13 + $0xb0] sm:$0xff]
    %v5801 = vld [vmem:[#allocation13 + $0xb8] sm:$0xff]
    %v5802 = vld [vmem:[#allocation13 + $0xc0] sm:$0xff]
    %v5803 = vld [vmem:[#allocation13 + $0xc8] sm:$0xff]
    %v5804 = vld [vmem:[#allocation13 + $0xd0] sm:$0xff]
    %v5805 = vld [vmem:[#allocation13 + $0xd8] sm:$0xff]
    %v5806 = vld [vmem:[#allocation13 + $0xe0] sm:$0xff]
    %v5807 = vld [vmem:[#allocation13 + $0xe8] sm:$0xff]
    %v5808 = vld [vmem:[#allocation13 + $0xf0] sm:$0xff]
    %v5809 = vld [vmem:[#allocation13 + $0xf8] sm:$0xff]
    %v5810 = vld [vmem:[#allocation13 + $0x100] sm:$0xff]
    %v5811 = vld [vmem:[#allocation13 + $0x108] sm:$0xff]
    %v5812 = vld [vmem:[#allocation13 + $0x110] sm:$0xff]
    %v5813 = vld [vmem:[#allocation13 + $0x118] sm:$0xff]
    %v5814 = vld [vmem:[#allocation13 + $0x120] sm:$0xff]
    %v5815 = vld [vmem:[#allocation13 + $0x128] sm:$0xff]
    %v5816 = vld [vmem:[#allocation13 + $0x130] sm:$0xff]
    %v5817 = vld [vmem:[#allocation13 + $0x138] sm:$0xff]
    %v5818 = vld [vmem:[#allocation13 + $0x140] sm:$0xff]
    %v5819 = vld [vmem:[#allocation13 + $0x148] sm:$0xff]
    %v5820 = vld [vmem:[#allocation13 + $0x150] sm:$0xff]
    %v5821 = vld [vmem:[#allocation13 + $0x158] sm:$0xff]
    %v5822 = vld [vmem:[#allocation13 + $0x160] sm:$0xff]
    %v5823 = vld [vmem:[#allocation13 + $0x168] sm:$0xff]
    %v5824 = vld [vmem:[#allocation13 + $0x170] sm:$0xff]
    %v5825 = vld [vmem:[#allocation13 + $0x178] sm:$0xff]
    %v5826 = vld [vmem:[#allocation13 + $0x180] sm:$0xff]
    %v5827 = vld [vmem:[#allocation13 + $0x188] sm:$0xff]
    %v5828 = vld [vmem:[#allocation13 + $0x190] sm:$0xff]
    %v5829 = vld [vmem:[#allocation13 + $0x198] sm:$0xff]
    %v5830 = vld [vmem:[#allocation13 + $0x1a0] sm:$0xff]
    %v5831 = vld [vmem:[#allocation13 + $0x1a8] sm:$0xff]
    %v5832 = vld [vmem:[#allocation13 + $0x1b0] sm:$0xff]
    %v5833 = vld [vmem:[#allocation13 + $0x1b8] sm:$0xff]
    %v5834 = vld [vmem:[#allocation13 + $0x1c0] sm:$0xff]
    %v5835 = vld [vmem:[#allocation13 + $0x1c8] sm:$0xff]
    %v5836 = vld [vmem:[#allocation13 + $0x1d0] sm:$0xff]
    %v5837 = vld [vmem:[#allocation13 + $0x1d8] sm:$0xff]
    %v5838 = vld [vmem:[#allocation13 + $0x1e0] sm:$0xff]
    %v5839 = vld [vmem:[#allocation13 + $0x1e8] sm:$0xff]
    %v5840 = vld [vmem:[#allocation13 + $0x1f0] sm:$0xff]
    %v5841 = vld [vmem:[#allocation13 + $0x1f8] sm:$0xff]
    %v5842 = vld [vmem:[#allocation13 + $0x200] sm:$0xff]
    %v5843 = vld [vmem:[#allocation13 + $0x208] sm:$0xff]
    %v5844 = vld [vmem:[#allocation13 + $0x210] sm:$0xff]
    %v5845 = vld [vmem:[#allocation13 + $0x218] sm:$0xff]
    %v5846 = vld [vmem:[#allocation13 + $0x220] sm:$0xff]
    %v5847 = vld [vmem:[#allocation13 + $0x228] sm:$0xff]
    %v5848 = vld [vmem:[#allocation13 + $0x230] sm:$0xff]
    %v5849 = vld [vmem:[#allocation13 + $0x238] sm:$0xff]
    %v5850 = vld [vmem:[#allocation13 + $0x240] sm:$0xff]
    %v5851 = vld [vmem:[#allocation13 + $0x248] sm:$0xff]
    %v5852 = vld [vmem:[#allocation13 + $0x250] sm:$0xff]
    %v5853 = vld [vmem:[#allocation13 + $0x258] sm:$0xff]
    %v5854 = vld [vmem:[#allocation13 + $0x260] sm:$0xff]
    %v5855 = vld [vmem:[#allocation13 + $0x268] sm:$0xff]
    %v5856 = vld [vmem:[#allocation13 + $0x270] sm:$0xff]
    %v5857 = vld [vmem:[#allocation13 + $0x278] sm:$0xff]
    %v5858 = vld [vmem:[#allocation13 + $0x280] sm:$0xff]
    %v5859 = vld [vmem:[#allocation13 + $0x288] sm:$0xff]
    %v5860 = vld [vmem:[#allocation13 + $0x290] sm:$0xff]
    %v5861 = vld [vmem:[#allocation13 + $0x298] sm:$0xff]
    %v5862 = vld [vmem:[#allocation13 + $0x2a0] sm:$0xff]
    %v5863 = vld [vmem:[#allocation13 + $0x2a8] sm:$0xff]
    %v5864 = vld [vmem:[#allocation13 + $0x2b0] sm:$0xff]
    %v5865 = vld [vmem:[#allocation13 + $0x2b8] sm:$0xff]
    %v5866 = vld [vmem:[#allocation13 + $0x2c0] sm:$0xff]
    %v5867 = vld [vmem:[#allocation13 + $0x2c8] sm:$0xff]
    %v5868 = vld [vmem:[#allocation13 + $0x2d0] sm:$0xff]
    %v5869 = vld [vmem:[#allocation13 + $0x2d8] sm:$0xff]
    %v5870 = vld [vmem:[#allocation13 + $0x2e0] sm:$0xff]
    %v5871 = vld [vmem:[#allocation13 + $0x2e8] sm:$0xff]
    %v5872 = vld [vmem:[#allocation13 + $0x2f0] sm:$0xff]
    %v5873 = vld [vmem:[#allocation13 + $0x2f8] sm:$0xff]
    %v5874 = vld [vmem:[#allocation13 + $0x300] sm:$0xff]
    %v5875 = vld [vmem:[#allocation13 + $0x308] sm:$0xff]
    %v5876 = vld [vmem:[#allocation13 + $0x310] sm:$0xff]
    %v5877 = vld [vmem:[#allocation13 + $0x318] sm:$0xff]
    %v5878 = vld [vmem:[#allocation13 + $0x320] sm:$0xff]
    %v5879 = vld [vmem:[#allocation13 + $0x328] sm:$0xff]
    %v5880 = vld [vmem:[#allocation13 + $0x330] sm:$0xff]
    %v5881 = vld [vmem:[#allocation13 + $0x338] sm:$0xff]
    %v5882 = vld [vmem:[#allocation13 + $0x340] sm:$0xff]
    %v5883 = vld [vmem:[#allocation13 + $0x348] sm:$0xff]
    %v5884 = vld [vmem:[#allocation13 + $0x350] sm:$0xff]
    %v5885 = vld [vmem:[#allocation13 + $0x358] sm:$0xff]
    %v5886 = vld [vmem:[#allocation13 + $0x360] sm:$0xff]
    %v5887 = vld [vmem:[#allocation13 + $0x368] sm:$0xff]
    %v5888 = vld [vmem:[#allocation13 + $0x370] sm:$0xff]
    %v5889 = vld [vmem:[#allocation13 + $0x378] sm:$0xff]
    %v5890 = vld [vmem:[#allocation13 + $0x380] sm:$0xff]
    %v5891 = vld [vmem:[#allocation13 + $0x388] sm:$0xff]
    %v5892 = vld [vmem:[#allocation13 + $0x390] sm:$0xff]
    %v5893 = vld [vmem:[#allocation13 + $0x398] sm:$0xff]
    %v5894 = vld [vmem:[#allocation13 + $0x3a0] sm:$0xff]
    %v5895 = vld [vmem:[#allocation13 + $0x3a8] sm:$0xff]
    %v5896 = vld [vmem:[#allocation13 + $0x3b0] sm:$0xff]
    %v5897 = vld [vmem:[#allocation13 + $0x3b8] sm:$0xff]
    %v5898 = vld [vmem:[#allocation13 + $0x3c0] sm:$0xff]
    %v5899 = vld [vmem:[#allocation13 + $0x3c8] sm:$0xff]
    %v5900 = vld [vmem:[#allocation13 + $0x3d0] sm:$0xff]
    %v5901 = vld [vmem:[#allocation13 + $0x3d8] sm:$0xff]
    %v5902 = vld [vmem:[#allocation13 + $0x3e0] sm:$0xff]
    %v5903 = vld [vmem:[#allocation13 + $0x3e8] sm:$0xff]
    %v5904 = vld [vmem:[#allocation13 + $0x3f0] sm:$0xff]
    %v5905 = vld [vmem:[#allocation13 + $0x3f8] sm:$0xff]
    %v5906 = vld [vmem:[#allocation14] sm:$0xff]
    %v5908 = vperm.slane %v5906, 0
    %v5909 = vperm.slane %v5906, 1
    %v5910 = vperm.slane %v5906, 2
    %v5911 = vperm.slane %v5906, 3
    %v5912 = vperm.slane %v5906, 4
    %v5913 = vperm.slane %v5906, 5
    %v5914 = vperm.slane %v5906, 6
    %v5915 = vperm.slane %v5906, 7
    %v6052 = vunpack.c.l.b16 %v5778
    %v6053 = vunpack.c.h.b16 %v5778
    %v6054 = vunpack.c.l.b16 %v5779
    %v6055 = vunpack.c.h.b16 %v5779
    %v6056 = vunpack.c.l.b16 %v5780
    %v6057 = vunpack.c.h.b16 %v5780
    %v6058 = vunpack.c.l.b16 %v5781
    %v6059 = vunpack.c.h.b16 %v5781
    %v6060 = vunpack.c.l.b16 %v5782
    %v6061 = vunpack.c.h.b16 %v5782
    %v6062 = vunpack.c.l.b16 %v5783
    %v6063 = vunpack.c.h.b16 %v5783
    %v6064 = vunpack.c.l.b16 %v5784
    %v6065 = vunpack.c.h.b16 %v5784
    %v6066 = vunpack.c.l.b16 %v5785
    %v6067 = vunpack.c.h.b16 %v5785
    %v6068 = vunpack.c.l.b16 %v5786
    %v6069 = vunpack.c.h.b16 %v5786
    %v6070 = vunpack.c.l.b16 %v5787
    %v6071 = vunpack.c.h.b16 %v5787
    %v6072 = vunpack.c.l.b16 %v5788
    %v6073 = vunpack.c.h.b16 %v5788
    %v6074 = vunpack.c.l.b16 %v5789
    %v6075 = vunpack.c.h.b16 %v5789
    %v6076 = vunpack.c.l.b16 %v5790
    %v6077 = vunpack.c.h.b16 %v5790
    %v6078 = vunpack.c.l.b16 %v5791
    %v6079 = vunpack.c.h.b16 %v5791
    %v6080 = vunpack.c.l.b16 %v5792
    %v6081 = vunpack.c.h.b16 %v5792
    %v6082 = vunpack.c.l.b16 %v5793
    %v6083 = vunpack.c.h.b16 %v5793
    %v6084 = vunpack.c.l.b16 %v5794
    %v6085 = vunpack.c.h.b16 %v5794
    %v6086 = vunpack.c.l.b16 %v5795
    %v6087 = vunpack.c.h.b16 %v5795
    %v6088 = vunpack.c.l.b16 %v5796
    %v6089 = vunpack.c.h.b16 %v5796
    %v6090 = vunpack.c.l.b16 %v5797
    %v6091 = vunpack.c.h.b16 %v5797
    %v6092 = vunpack.c.l.b16 %v5798
    %v6093 = vunpack.c.h.b16 %v5798
    %v6094 = vunpack.c.l.b16 %v5799
    %v6095 = vunpack.c.h.b16 %v5799
    %v6096 = vunpack.c.l.b16 %v5800
    %v6097 = vunpack.c.h.b16 %v5800
    %v6098 = vunpack.c.l.b16 %v5801
    %v6099 = vunpack.c.h.b16 %v5801
    %v6100 = vunpack.c.l.b16 %v5802
    %v6101 = vunpack.c.h.b16 %v5802
    %v6102 = vunpack.c.l.b16 %v5803
    %v6103 = vunpack.c.h.b16 %v5803
    %v6104 = vunpack.c.l.b16 %v5804
    %v6105 = vunpack.c.h.b16 %v5804
    %v6106 = vunpack.c.l.b16 %v5805
    %v6107 = vunpack.c.h.b16 %v5805
    %v6108 = vunpack.c.l.b16 %v5806
    %v6109 = vunpack.c.h.b16 %v5806
    %v6110 = vunpack.c.l.b16 %v5807
    %v6111 = vunpack.c.h.b16 %v5807
    %v6112 = vunpack.c.l.b16 %v5808
    %v6113 = vunpack.c.h.b16 %v5808
    %v6114 = vunpack.c.l.b16 %v5809
    %v6115 = vunpack.c.h.b16 %v5809
    %v6116 = vunpack.c.l.b16 %v5810
    %v6117 = vunpack.c.h.b16 %v5810
    %v6118 = vunpack.c.l.b16 %v5811
    %v6119 = vunpack.c.h.b16 %v5811
    %v6120 = vunpack.c.l.b16 %v5812
    %v6121 = vunpack.c.h.b16 %v5812
    %v6122 = vunpack.c.l.b16 %v5813
    %v6123 = vunpack.c.h.b16 %v5813
    %v6124 = vunpack.c.l.b16 %v5814
    %v6125 = vunpack.c.h.b16 %v5814
    %v6126 = vunpack.c.l.b16 %v5815
    %v6127 = vunpack.c.h.b16 %v5815
    %v6128 = vunpack.c.l.b16 %v5816
    %v6129 = vunpack.c.h.b16 %v5816
    %v6130 = vunpack.c.l.b16 %v5817
    %v6131 = vunpack.c.h.b16 %v5817
    %v6132 = vunpack.c.l.b16 %v5818
    %v6133 = vunpack.c.h.b16 %v5818
    %v6134 = vunpack.c.l.b16 %v5819
    %v6135 = vunpack.c.h.b16 %v5819
    %v6136 = vunpack.c.l.b16 %v5820
    %v6137 = vunpack.c.h.b16 %v5820
    %v6138 = vunpack.c.l.b16 %v5821
    %v6139 = vunpack.c.h.b16 %v5821
    %v6140 = vunpack.c.l.b16 %v5822
    %v6141 = vunpack.c.h.b16 %v5822
    %v6142 = vunpack.c.l.b16 %v5823
    %v6143 = vunpack.c.h.b16 %v5823
    %v6144 = vunpack.c.l.b16 %v5824
    %v6145 = vunpack.c.h.b16 %v5824
    %v6146 = vunpack.c.l.b16 %v5825
    %v6147 = vunpack.c.h.b16 %v5825
    %v6148 = vunpack.c.l.b16 %v5826
    %v6149 = vunpack.c.h.b16 %v5826
    %v6150 = vunpack.c.l.b16 %v5827
    %v6151 = vunpack.c.h.b16 %v5827
    %v6152 = vunpack.c.l.b16 %v5828
    %v6153 = vunpack.c.h.b16 %v5828
    %v6154 = vunpack.c.l.b16 %v5829
    %v6155 = vunpack.c.h.b16 %v5829
    %v6156 = vunpack.c.l.b16 %v5830
    %v6157 = vunpack.c.h.b16 %v5830
    %v6158 = vunpack.c.l.b16 %v5831
    %v6159 = vunpack.c.h.b16 %v5831
    %v6160 = vunpack.c.l.b16 %v5832
    %v6161 = vunpack.c.h.b16 %v5832
    %v6162 = vunpack.c.l.b16 %v5833
    %v6163 = vunpack.c.h.b16 %v5833
    %v6164 = vunpack.c.l.b16 %v5834
    %v6165 = vunpack.c.h.b16 %v5834
    %v6166 = vunpack.c.l.b16 %v5835
    %v6167 = vunpack.c.h.b16 %v5835
    %v6168 = vunpack.c.l.b16 %v5836
    %v6169 = vunpack.c.h.b16 %v5836
    %v6170 = vunpack.c.l.b16 %v5837
    %v6171 = vunpack.c.h.b16 %v5837
    %v6172 = vunpack.c.l.b16 %v5838
    %v6173 = vunpack.c.h.b16 %v5838
    %v6174 = vunpack.c.l.b16 %v5839
    %v6175 = vunpack.c.h.b16 %v5839
    %v6176 = vunpack.c.l.b16 %v5840
    %v6177 = vunpack.c.h.b16 %v5840
    %v6178 = vunpack.c.l.b16 %v5841
    %v6179 = vunpack.c.h.b16 %v5841
    %v6180 = vunpack.c.l.b16 %v5842
    %v6181 = vunpack.c.h.b16 %v5842
    %v6182 = vunpack.c.l.b16 %v5843
    %v6183 = vunpack.c.h.b16 %v5843
    %v6184 = vunpack.c.l.b16 %v5844
    %v6185 = vunpack.c.h.b16 %v5844
    %v6186 = vunpack.c.l.b16 %v5845
    %v6187 = vunpack.c.h.b16 %v5845
    %v6188 = vunpack.c.l.b16 %v5846
    %v6189 = vunpack.c.h.b16 %v5846
    %v6190 = vunpack.c.l.b16 %v5847
    %v6191 = vunpack.c.h.b16 %v5847
    %v6192 = vunpack.c.l.b16 %v5848
    %v6193 = vunpack.c.h.b16 %v5848
    %v6194 = vunpack.c.l.b16 %v5849
    %v6195 = vunpack.c.h.b16 %v5849
    %v6196 = vunpack.c.l.b16 %v5850
    %v6197 = vunpack.c.h.b16 %v5850
    %v6198 = vunpack.c.l.b16 %v5851
    %v6199 = vunpack.c.h.b16 %v5851
    %v6200 = vunpack.c.l.b16 %v5852
    %v6201 = vunpack.c.h.b16 %v5852
    %v6202 = vunpack.c.l.b16 %v5853
    %v6203 = vunpack.c.h.b16 %v5853
    %v6204 = vunpack.c.l.b16 %v5854
    %v6205 = vunpack.c.h.b16 %v5854
    %v6206 = vunpack.c.l.b16 %v5855
    %v6207 = vunpack.c.h.b16 %v5855
    %v6208 = vunpack.c.l.b16 %v5856
    %v6209 = vunpack.c.h.b16 %v5856
    %v6210 = vunpack.c.l.b16 %v5857
    %v6211 = vunpack.c.h.b16 %v5857
    %v6212 = vunpack.c.l.b16 %v5858
    %v6213 = vunpack.c.h.b16 %v5858
    %v6214 = vunpack.c.l.b16 %v5859
    %v6215 = vunpack.c.h.b16 %v5859
    %v6216 = vunpack.c.l.b16 %v5860
    %v6217 = vunpack.c.h.b16 %v5860
    %v6218 = vunpack.c.l.b16 %v5861
    %v6219 = vunpack.c.h.b16 %v5861
    %v6220 = vunpack.c.l.b16 %v5862
    %v6221 = vunpack.c.h.b16 %v5862
    %v6222 = vunpack.c.l.b16 %v5863
    %v6223 = vunpack.c.h.b16 %v5863
    %v6224 = vunpack.c.l.b16 %v5864
    %v6225 = vunpack.c.h.b16 %v5864
    %v6226 = vunpack.c.l.b16 %v5865
    %v6227 = vunpack.c.h.b16 %v5865
    %v6228 = vunpack.c.l.b16 %v5866
    %v6229 = vunpack.c.h.b16 %v5866
    %v6230 = vunpack.c.l.b16 %v5867
    %v6231 = vunpack.c.h.b16 %v5867
    %v6232 = vunpack.c.l.b16 %v5868
    %v6233 = vunpack.c.h.b16 %v5868
    %v6234 = vunpack.c.l.b16 %v5869
    %v6235 = vunpack.c.h.b16 %v5869
    %v6236 = vunpack.c.l.b16 %v5870
    %v6237 = vunpack.c.h.b16 %v5870
    %v6238 = vunpack.c.l.b16 %v5871
    %v6239 = vunpack.c.h.b16 %v5871
    %v6240 = vunpack.c.l.b16 %v5872
    %v6241 = vunpack.c.h.b16 %v5872
    %v6242 = vunpack.c.l.b16 %v5873
    %v6243 = vunpack.c.h.b16 %v5873
    %v6244 = vunpack.c.l.b16 %v5874
    %v6245 = vunpack.c.h.b16 %v5874
    %v6246 = vunpack.c.l.b16 %v5875
    %v6247 = vunpack.c.h.b16 %v5875
    %v6248 = vunpack.c.l.b16 %v5876
    %v6249 = vunpack.c.h.b16 %v5876
    %v6250 = vunpack.c.l.b16 %v5877
    %v6251 = vunpack.c.h.b16 %v5877
    %v6252 = vunpack.c.l.b16 %v5878
    %v6253 = vunpack.c.h.b16 %v5878
    %v6254 = vunpack.c.l.b16 %v5879
    %v6255 = vunpack.c.h.b16 %v5879
    %v6256 = vunpack.c.l.b16 %v5880
    %v6257 = vunpack.c.h.b16 %v5880
    %v6258 = vunpack.c.l.b16 %v5881
    %v6259 = vunpack.c.h.b16 %v5881
    %v6260 = vunpack.c.l.b16 %v5882
    %v6261 = vunpack.c.h.b16 %v5882
    %v6262 = vunpack.c.l.b16 %v5883
    %v6263 = vunpack.c.h.b16 %v5883
    %v6264 = vunpack.c.l.b16 %v5884
    %v6265 = vunpack.c.h.b16 %v5884
    %v6266 = vunpack.c.l.b16 %v5885
    %v6267 = vunpack.c.h.b16 %v5885
    %v6268 = vunpack.c.l.b16 %v5886
    %v6269 = vunpack.c.h.b16 %v5886
    %v6270 = vunpack.c.l.b16 %v5887
    %v6271 = vunpack.c.h.b16 %v5887
    %v6272 = vunpack.c.l.b16 %v5888
    %v6273 = vunpack.c.h.b16 %v5888
    %v6274 = vunpack.c.l.b16 %v5889
    %v6275 = vunpack.c.h.b16 %v5889
    %v6276 = vunpack.c.l.b16 %v5890
    %v6277 = vunpack.c.h.b16 %v5890
    %v6278 = vunpack.c.l.b16 %v5891
    %v6279 = vunpack.c.h.b16 %v5891
    %v6280 = vunpack.c.l.b16 %v5892
    %v6281 = vunpack.c.h.b16 %v5892
    %v6282 = vunpack.c.l.b16 %v5893
    %v6283 = vunpack.c.h.b16 %v5893
    %v6284 = vunpack.c.l.b16 %v5894
    %v6285 = vunpack.c.h.b16 %v5894
    %v6286 = vunpack.c.l.b16 %v5895
    %v6287 = vunpack.c.h.b16 %v5895
    %v6288 = vunpack.c.l.b16 %v5896
    %v6289 = vunpack.c.h.b16 %v5896
    %v6290 = vunpack.c.l.b16 %v5897
    %v6291 = vunpack.c.h.b16 %v5897
    %v6292 = vunpack.c.l.b16 %v5898
    %v6293 = vunpack.c.h.b16 %v5898
    %v6294 = vunpack.c.l.b16 %v5899
    %v6295 = vunpack.c.h.b16 %v5899
    %v6296 = vunpack.c.l.b16 %v5900
    %v6297 = vunpack.c.h.b16 %v5900
    %v6298 = vunpack.c.l.b16 %v5901
    %v6299 = vunpack.c.h.b16 %v5901
    %v6300 = vunpack.c.l.b16 %v5902
    %v6301 = vunpack.c.h.b16 %v5902
    %v6302 = vunpack.c.l.b16 %v5903
    %v6303 = vunpack.c.h.b16 %v5903
    %v6304 = vunpack.c.l.b16 %v5904
    %v6305 = vunpack.c.h.b16 %v5904
    %v6306 = vunpack.c.l.b16 %v5905
    %v6307 = vunpack.c.h.b16 %v5905
    %v6308 = vpack.c.b16 %v6060, %v6052
    %v6309 = vpack.c.b16 %v6061, %v6053
    %v6310 = vpack.c.b16 %v6062, %v6054
    %v6311 = vpack.c.b16 %v6063, %v6055
    %v6312 = vpack.c.b16 %v6064, %v6056
    %v6313 = vpack.c.b16 %v6065, %v6057
    %v6314 = vpack.c.b16 %v6066, %v6058
    %v6315 = vpack.c.b16 %v6067, %v6059
    %v6316 = vpack.c.b16 %v6076, %v6068
    %v6317 = vpack.c.b16 %v6077, %v6069
    %v6318 = vpack.c.b16 %v6078, %v6070
    %v6319 = vpack.c.b16 %v6079, %v6071
    %v6320 = vpack.c.b16 %v6080, %v6072
    %v6321 = vpack.c.b16 %v6081, %v6073
    %v6322 = vpack.c.b16 %v6082, %v6074
    %v6323 = vpack.c.b16 %v6083, %v6075
    %v6324 = vpack.c.b16 %v6092, %v6084
    %v6325 = vpack.c.b16 %v6093, %v6085
    %v6326 = vpack.c.b16 %v6094, %v6086
    %v6327 = vpack.c.b16 %v6095, %v6087
    %v6328 = vpack.c.b16 %v6096, %v6088
    %v6329 = vpack.c.b16 %v6097, %v6089
    %v6330 = vpack.c.b16 %v6098, %v6090
    %v6331 = vpack.c.b16 %v6099, %v6091
    %v6332 = vpack.c.b16 %v6108, %v6100
    %v6333 = vpack.c.b16 %v6109, %v6101
    %v6334 = vpack.c.b16 %v6110, %v6102
    %v6335 = vpack.c.b16 %v6111, %v6103
    %v6336 = vpack.c.b16 %v6112, %v6104
    %v6337 = vpack.c.b16 %v6113, %v6105
    %v6338 = vpack.c.b16 %v6114, %v6106
    %v6339 = vpack.c.b16 %v6115, %v6107
    %v6340 = vpack.c.b16 %v6124, %v6116
    %v6341 = vpack.c.b16 %v6125, %v6117
    %v6342 = vpack.c.b16 %v6126, %v6118
    %v6343 = vpack.c.b16 %v6127, %v6119
    %v6344 = vpack.c.b16 %v6128, %v6120
    %v6345 = vpack.c.b16 %v6129, %v6121
    %v6346 = vpack.c.b16 %v6130, %v6122
    %v6347 = vpack.c.b16 %v6131, %v6123
    %v6348 = vpack.c.b16 %v6140, %v6132
    %v6349 = vpack.c.b16 %v6141, %v6133
    %v6350 = vpack.c.b16 %v6142, %v6134
    %v6351 = vpack.c.b16 %v6143, %v6135
    %v6352 = vpack.c.b16 %v6144, %v6136
    %v6353 = vpack.c.b16 %v6145, %v6137
    %v6354 = vpack.c.b16 %v6146, %v6138
    %v6355 = vpack.c.b16 %v6147, %v6139
    %v6356 = vpack.c.b16 %v6156, %v6148
    %v6357 = vpack.c.b16 %v6157, %v6149
    %v6358 = vpack.c.b16 %v6158, %v6150
    %v6359 = vpack.c.b16 %v6159, %v6151
    %v6360 = vpack.c.b16 %v6160, %v6152
    %v6361 = vpack.c.b16 %v6161, %v6153
    %v6362 = vpack.c.b16 %v6162, %v6154
    %v6363 = vpack.c.b16 %v6163, %v6155
    %v6364 = vpack.c.b16 %v6172, %v6164
    %v6365 = vpack.c.b16 %v6173, %v6165
    %v6366 = vpack.c.b16 %v6174, %v6166
    %v6367 = vpack.c.b16 %v6175, %v6167
    %v6368 = vpack.c.b16 %v6176, %v6168
    %v6369 = vpack.c.b16 %v6177, %v6169
    %v6370 = vpack.c.b16 %v6178, %v6170
    %v6371 = vpack.c.b16 %v6179, %v6171
    %v6372 = vpack.c.b16 %v6188, %v6180
    %v6373 = vpack.c.b16 %v6189, %v6181
    %v6374 = vpack.c.b16 %v6190, %v6182
    %v6375 = vpack.c.b16 %v6191, %v6183
    %v6376 = vpack.c.b16 %v6192, %v6184
    %v6377 = vpack.c.b16 %v6193, %v6185
    %v6378 = vpack.c.b16 %v6194, %v6186
    %v6379 = vpack.c.b16 %v6195, %v6187
    %v6380 = vpack.c.b16 %v6204, %v6196
    %v6381 = vpack.c.b16 %v6205, %v6197
    %v6382 = vpack.c.b16 %v6206, %v6198
    %v6383 = vpack.c.b16 %v6207, %v6199
    %v6384 = vpack.c.b16 %v6208, %v6200
    %v6385 = vpack.c.b16 %v6209, %v6201
    %v6386 = vpack.c.b16 %v6210, %v6202
    %v6387 = vpack.c.b16 %v6211, %v6203
    %v6388 = vpack.c.b16 %v6220, %v6212
    %v6389 = vpack.c.b16 %v6221, %v6213
    %v6390 = vpack.c.b16 %v6222, %v6214
    %v6391 = vpack.c.b16 %v6223, %v6215
    %v6392 = vpack.c.b16 %v6224, %v6216
    %v6393 = vpack.c.b16 %v6225, %v6217
    %v6394 = vpack.c.b16 %v6226, %v6218
    %v6395 = vpack.c.b16 %v6227, %v6219
    %v6396 = vpack.c.b16 %v6236, %v6228
    %v6397 = vpack.c.b16 %v6237, %v6229
    %v6398 = vpack.c.b16 %v6238, %v6230
    %v6399 = vpack.c.b16 %v6239, %v6231
    %v6400 = vpack.c.b16 %v6240, %v6232
    %v6401 = vpack.c.b16 %v6241, %v6233
    %v6402 = vpack.c.b16 %v6242, %v6234
    %v6403 = vpack.c.b16 %v6243, %v6235
    %v6404 = vpack.c.b16 %v6252, %v6244
    %v6405 = vpack.c.b16 %v6253, %v6245
    %v6406 = vpack.c.b16 %v6254, %v6246
    %v6407 = vpack.c.b16 %v6255, %v6247
    %v6408 = vpack.c.b16 %v6256, %v6248
    %v6409 = vpack.c.b16 %v6257, %v6249
    %v6410 = vpack.c.b16 %v6258, %v6250
    %v6411 = vpack.c.b16 %v6259, %v6251
    %v6412 = vpack.c.b16 %v6268, %v6260
    %v6413 = vpack.c.b16 %v6269, %v6261
    %v6414 = vpack.c.b16 %v6270, %v6262
    %v6415 = vpack.c.b16 %v6271, %v6263
    %v6416 = vpack.c.b16 %v6272, %v6264
    %v6417 = vpack.c.b16 %v6273, %v6265
    %v6418 = vpack.c.b16 %v6274, %v6266
    %v6419 = vpack.c.b16 %v6275, %v6267
    %v6420 = vpack.c.b16 %v6284, %v6276
    %v6421 = vpack.c.b16 %v6285, %v6277
    %v6422 = vpack.c.b16 %v6286, %v6278
    %v6423 = vpack.c.b16 %v6287, %v6279
    %v6424 = vpack.c.b16 %v6288, %v6280
    %v6425 = vpack.c.b16 %v6289, %v6281
    %v6426 = vpack.c.b16 %v6290, %v6282
    %v6427 = vpack.c.b16 %v6291, %v6283
    %v6428 = vpack.c.b16 %v6300, %v6292
    %v6429 = vpack.c.b16 %v6301, %v6293
    %v6430 = vpack.c.b16 %v6302, %v6294
    %v6431 = vpack.c.b16 %v6303, %v6295
    %v6432 = vpack.c.b16 %v6304, %v6296
    %v6433 = vpack.c.b16 %v6305, %v6297
    %v6434 = vpack.c.b16 %v6306, %v6298
    %v6435 = vpack.c.b16 %v6307, %v6299
    %6564 = vmatpush.bf16.msra.mxu0 %v6364
    %6565 = vmatpush.bf16.msra.mxu0 %v6356
    %6566 = vmatpush.bf16.msra.mxu0 %v6348
    %6567 = vmatpush.bf16.msra.mxu0 %v6340
    %6568 = vmatpush.bf16.msra.mxu0 %v6332
    %6569 = vmatpush.bf16.msra.mxu0 %v6324
    %6570 = vmatpush.bf16.msra.mxu0 %v6316
    %6571 = vmatpush.bf16.msra.mxu0 %v6308
    %6572 = vmatmul.bf16.gmra.mxu0 %v206
    %v6573 = vpop.f32.mrf.mxu0
    %v6574 = vadd.f32 %v5908, %v6573
    %v6575 = vpop.f32.mrf.mxu0
    %6576 = vdwg.mxu0
    %6577 = vmatpush.bf16.msra.mxu0 %v6428
    %6578 = vmatpush.bf16.msra.mxu0 %v6420
    %6579 = vmatpush.bf16.msra.mxu0 %v6412
    %6580 = vmatpush.bf16.msra.mxu0 %v6404
    %6581 = vmatpush.bf16.msra.mxu0 %v6396
    %6582 = vmatpush.bf16.msra.mxu0 %v6388
    %6583 = vmatpush.bf16.msra.mxu0 %v6380
    %6584 = vmatpush.bf16.msra.mxu0 %v6372
    %6585 = vmatmul.bf16.gmra.mxu0 %v207
    %v6586 = vpop.f32.mrf.mxu0
    %v6587 = vadd.f32 %v6574, %v6586
    %v6588 = vpop.f32.mrf.mxu0
    %6589 = vdwg.mxu0
    %6590 = vmatpush.bf16.msra.mxu0 %v6365
    %6591 = vmatpush.bf16.msra.mxu0 %v6357
    %6592 = vmatpush.bf16.msra.mxu0 %v6349
    %6593 = vmatpush.bf16.msra.mxu0 %v6341
    %6594 = vmatpush.bf16.msra.mxu0 %v6333
    %6595 = vmatpush.bf16.msra.mxu0 %v6325
    %6596 = vmatpush.bf16.msra.mxu0 %v6317
    %6597 = vmatpush.bf16.msra.mxu0 %v6309
    %6598 = vmatmul.bf16.gmra.mxu0 %v206
    %v6599 = vpop.f32.mrf.mxu0
    %v6600 = vadd.f32 %v5909, %v6599
    %v6601 = vpop.f32.mrf.mxu0
    %6602 = vdwg.mxu0
    %6603 = vmatpush.bf16.msra.mxu0 %v6429
    %6604 = vmatpush.bf16.msra.mxu0 %v6421
    %6605 = vmatpush.bf16.msra.mxu0 %v6413
    %6606 = vmatpush.bf16.msra.mxu0 %v6405
    %6607 = vmatpush.bf16.msra.mxu0 %v6397
    %6608 = vmatpush.bf16.msra.mxu0 %v6389
    %6609 = vmatpush.bf16.msra.mxu0 %v6381
    %6610 = vmatpush.bf16.msra.mxu0 %v6373
    %6611 = vmatmul.bf16.gmra.mxu0 %v207
    %v6612 = vpop.f32.mrf.mxu0
    %v6613 = vadd.f32 %v6600, %v6612
    %v6614 = vpop.f32.mrf.mxu0
    %6615 = vdwg.mxu0
    %6616 = vmatpush.bf16.msra.mxu0 %v6366
    %6617 = vmatpush.bf16.msra.mxu0 %v6358
    %6618 = vmatpush.bf16.msra.mxu0 %v6350
    %6619 = vmatpush.bf16.msra.mxu0 %v6342
    %6620 = vmatpush.bf16.msra.mxu0 %v6334
    %6621 = vmatpush.bf16.msra.mxu0 %v6326
    %6622 = vmatpush.bf16.msra.mxu0 %v6318
    %6623 = vmatpush.bf16.msra.mxu0 %v6310
    %6624 = vmatmul.bf16.gmra.mxu0 %v206
    %v6625 = vpop.f32.mrf.mxu0
    %v6626 = vadd.f32 %v5910, %v6625
    %v6627 = vpop.f32.mrf.mxu0
    %6628 = vdwg.mxu0
    %6629 = vmatpush.bf16.msra.mxu0 %v6430
    %6630 = vmatpush.bf16.msra.mxu0 %v6422
    %6631 = vmatpush.bf16.msra.mxu0 %v6414
    %6632 = vmatpush.bf16.msra.mxu0 %v6406
    %6633 = vmatpush.bf16.msra.mxu0 %v6398
    %6634 = vmatpush.bf16.msra.mxu0 %v6390
    %6635 = vmatpush.bf16.msra.mxu0 %v6382
    %6636 = vmatpush.bf16.msra.mxu0 %v6374
    %6637 = vmatmul.bf16.gmra.mxu0 %v207
    %v6638 = vpop.f32.mrf.mxu0
    %v6639 = vadd.f32 %v6626, %v6638
    %v6640 = vpop.f32.mrf.mxu0
    %6641 = vdwg.mxu0
    %6642 = vmatpush.bf16.msra.mxu0 %v6367
    %6643 = vmatpush.bf16.msra.mxu0 %v6359
    %6644 = vmatpush.bf16.msra.mxu0 %v6351
    %6645 = vmatpush.bf16.msra.mxu0 %v6343
    %6646 = vmatpush.bf16.msra.mxu0 %v6335
    %6647 = vmatpush.bf16.msra.mxu0 %v6327
    %6648 = vmatpush.bf16.msra.mxu0 %v6319
    %6649 = vmatpush.bf16.msra.mxu0 %v6311
    %6650 = vmatmul.bf16.gmra.mxu0 %v206
    %v6651 = vpop.f32.mrf.mxu0
    %v6652 = vadd.f32 %v5911, %v6651
    %v6653 = vpop.f32.mrf.mxu0
    %6654 = vdwg.mxu0
    %6655 = vmatpush.bf16.msra.mxu0 %v6431
    %6656 = vmatpush.bf16.msra.mxu0 %v6423
    %6657 = vmatpush.bf16.msra.mxu0 %v6415
    %6658 = vmatpush.bf16.msra.mxu0 %v6407
    %6659 = vmatpush.bf16.msra.mxu0 %v6399
    %6660 = vmatpush.bf16.msra.mxu0 %v6391
    %6661 = vmatpush.bf16.msra.mxu0 %v6383
    %6662 = vmatpush.bf16.msra.mxu0 %v6375
    %6663 = vmatmul.bf16.gmra.mxu0 %v207
    %v6664 = vpop.f32.mrf.mxu0
    %v6665 = vadd.f32 %v6652, %v6664
    %v6666 = vpop.f32.mrf.mxu0
    %6667 = vdwg.mxu0
    %6668 = vmatpush.bf16.msra.mxu0 %v6368
    %6669 = vmatpush.bf16.msra.mxu0 %v6360
    %6670 = vmatpush.bf16.msra.mxu0 %v6352
    %6671 = vmatpush.bf16.msra.mxu0 %v6344
    %6672 = vmatpush.bf16.msra.mxu0 %v6336
    %6673 = vmatpush.bf16.msra.mxu0 %v6328
    %6674 = vmatpush.bf16.msra.mxu0 %v6320
    %6675 = vmatpush.bf16.msra.mxu0 %v6312
    %6676 = vmatmul.bf16.gmra.mxu0 %v206
    %v6677 = vpop.f32.mrf.mxu0
    %v6678 = vadd.f32 %v5912, %v6677
    %v6679 = vpop.f32.mrf.mxu0
    %6680 = vdwg.mxu0
    %6681 = vmatpush.bf16.msra.mxu0 %v6432
    %6682 = vmatpush.bf16.msra.mxu0 %v6424
    %6683 = vmatpush.bf16.msra.mxu0 %v6416
    %6684 = vmatpush.bf16.msra.mxu0 %v6408
    %6685 = vmatpush.bf16.msra.mxu0 %v6400
    %6686 = vmatpush.bf16.msra.mxu0 %v6392
    %6687 = vmatpush.bf16.msra.mxu0 %v6384
    %6688 = vmatpush.bf16.msra.mxu0 %v6376
    %6689 = vmatmul.bf16.gmra.mxu0 %v207
    %v6690 = vpop.f32.mrf.mxu0
    %v6691 = vadd.f32 %v6678, %v6690
    %v6692 = vpop.f32.mrf.mxu0
    %6693 = vdwg.mxu0
    %6694 = vmatpush.bf16.msra.mxu0 %v6369
    %6695 = vmatpush.bf16.msra.mxu0 %v6361
    %6696 = vmatpush.bf16.msra.mxu0 %v6353
    %6697 = vmatpush.bf16.msra.mxu0 %v6345
    %6698 = vmatpush.bf16.msra.mxu0 %v6337
    %6699 = vmatpush.bf16.msra.mxu0 %v6329
    %6700 = vmatpush.bf16.msra.mxu0 %v6321
    %6701 = vmatpush.bf16.msra.mxu0 %v6313
    %6702 = vmatmul.bf16.gmra.mxu0 %v206
    %v6703 = vpop.f32.mrf.mxu0
    %v6704 = vadd.f32 %v5913, %v6703
    %v6705 = vpop.f32.mrf.mxu0
    %6706 = vdwg.mxu0
    %6707 = vmatpush.bf16.msra.mxu0 %v6433
    %6708 = vmatpush.bf16.msra.mxu0 %v6425
    %6709 = vmatpush.bf16.msra.mxu0 %v6417
    %6710 = vmatpush.bf16.msra.mxu0 %v6409
    %6711 = vmatpush.bf16.msra.mxu0 %v6401
    %6712 = vmatpush.bf16.msra.mxu0 %v6393
    %6713 = vmatpush.bf16.msra.mxu0 %v6385
    %6714 = vmatpush.bf16.msra.mxu0 %v6377
    %6715 = vmatmul.bf16.gmra.mxu0 %v207
    %v6716 = vpop.f32.mrf.mxu0
    %v6717 = vadd.f32 %v6704, %v6716
    %v6718 = vpop.f32.mrf.mxu0
    %6719 = vdwg.mxu0
    %6720 = vmatpush.bf16.msra.mxu0 %v6370
    %6721 = vmatpush.bf16.msra.mxu0 %v6362
    %6722 = vmatpush.bf16.msra.mxu0 %v6354
    %6723 = vmatpush.bf16.msra.mxu0 %v6346
    %6724 = vmatpush.bf16.msra.mxu0 %v6338
    %6725 = vmatpush.bf16.msra.mxu0 %v6330
    %6726 = vmatpush.bf16.msra.mxu0 %v6322
    %6727 = vmatpush.bf16.msra.mxu0 %v6314
    %6728 = vmatmul.bf16.gmra.mxu0 %v206
    %v6729 = vpop.f32.mrf.mxu0
    %v6730 = vadd.f32 %v5914, %v6729
    %v6731 = vpop.f32.mrf.mxu0
    %6732 = vdwg.mxu0
    %6733 = vmatpush.bf16.msra.mxu0 %v6434
    %6734 = vmatpush.bf16.msra.mxu0 %v6426
    %6735 = vmatpush.bf16.msra.mxu0 %v6418
    %6736 = vmatpush.bf16.msra.mxu0 %v6410
    %6737 = vmatpush.bf16.msra.mxu0 %v6402
    %6738 = vmatpush.bf16.msra.mxu0 %v6394
    %6739 = vmatpush.bf16.msra.mxu0 %v6386
    %6740 = vmatpush.bf16.msra.mxu0 %v6378
    %6741 = vmatmul.bf16.gmra.mxu0 %v207
    %v6742 = vpop.f32.mrf.mxu0
    %v6743 = vadd.f32 %v6730, %v6742
    %v6744 = vpop.f32.mrf.mxu0
    %6745 = vdwg.mxu0
    %6746 = vmatpush.bf16.msra.mxu0 %v6371
    %6747 = vmatpush.bf16.msra.mxu0 %v6363
    %6748 = vmatpush.bf16.msra.mxu0 %v6355
    %6749 = vmatpush.bf16.msra.mxu0 %v6347
    %6750 = vmatpush.bf16.msra.mxu0 %v6339
    %6751 = vmatpush.bf16.msra.mxu0 %v6331
    %6752 = vmatpush.bf16.msra.mxu0 %v6323
    %6753 = vmatpush.bf16.msra.mxu0 %v6315
    %6754 = vmatmul.bf16.gmra.mxu0 %v206
    %v6755 = vpop.f32.mrf.mxu0
    %v6756 = vadd.f32 %v5915, %v6755
    %v6757 = vpop.f32.mrf.mxu0
    %6758 = vdwg.mxu0
    %6759 = vmatpush.bf16.msra.mxu0 %v6435
    %6760 = vmatpush.bf16.msra.mxu0 %v6427
    %6761 = vmatpush.bf16.msra.mxu0 %v6419
    %6762 = vmatpush.bf16.msra.mxu0 %v6411
    %6763 = vmatpush.bf16.msra.mxu0 %v6403
    %6764 = vmatpush.bf16.msra.mxu0 %v6395
    %6765 = vmatpush.bf16.msra.mxu0 %v6387
    %6766 = vmatpush.bf16.msra.mxu0 %v6379
    %6767 = vmatmul.bf16.gmra.mxu0 %v207
    %v6768 = vpop.f32.mrf.mxu0
    %v6769 = vadd.f32 %v6756, %v6768
    %v6770 = vpop.f32.mrf.mxu0
    %6771 = vdwg.mxu0
    %v6772 = vmax.f32 %v6587, 0.0
    %v6773 = vmax.f32 %v6613, 0.0
    %v6774 = vmax.f32 %v6639, 0.0
    %v6775 = vmax.f32 %v6665, 0.0
    %v6776 = vmax.f32 %v6691, 0.0
    %v6777 = vmax.f32 %v6717, 0.0
    %v6778 = vmax.f32 %v6743, 0.0
    %v6779 = vmax.f32 %v6769, 0.0
    %v6780 = vpack.c.bf16 %v6772, %v6772
    %v6781 = vpack.c.bf16 %v6773, %v6773
    %v6782 = vpack.c.bf16 %v6774, %v6774
    %v6783 = vpack.c.bf16 %v6775, %v6775
    %v6784 = vpack.c.bf16 %v6776, %v6776
    %v6785 = vpack.c.bf16 %v6777, %v6777
    %v6786 = vpack.c.bf16 %v6778, %v6778
    %v6787 = vpack.c.bf16 %v6779, %v6779
    %v6788 = vld [vmem:[#allocation16] sm:$0xff]
    %v6789 = vld [vmem:[#allocation16 + $0x8] sm:$0xff]
    %v6790 = vld [vmem:[#allocation16 + $0x10] sm:$0xff]
    %v6791 = vld [vmem:[#allocation16 + $0x18] sm:$0xff]
    %v6792 = vld [vmem:[#allocation16 + $0x20] sm:$0xff]
    %v6793 = vld [vmem:[#allocation16 + $0x28] sm:$0xff]
    %v6794 = vld [vmem:[#allocation16 + $0x30] sm:$0xff]
    %v6795 = vld [vmem:[#allocation16 + $0x38] sm:$0xff]
    %v6796 = vld [vmem:[#allocation16 + $0x40] sm:$0xff]
    %v6797 = vld [vmem:[#allocation16 + $0x48] sm:$0xff]
    %v6798 = vld [vmem:[#allocation16 + $0x50] sm:$0xff]
    %v6799 = vld [vmem:[#allocation16 + $0x58] sm:$0xff]
    %v6800 = vld [vmem:[#allocation16 + $0x60] sm:$0xff]
    %v6801 = vld [vmem:[#allocation16 + $0x68] sm:$0xff]
    %v6802 = vld [vmem:[#allocation16 + $0x70] sm:$0xff]
    %v6803 = vld [vmem:[#allocation16 + $0x78] sm:$0xff]
    %v6804 = vld [vmem:[#allocation16 + $0x80] sm:$0xff]
    %v6805 = vld [vmem:[#allocation16 + $0x88] sm:$0xff]
    %v6806 = vld [vmem:[#allocation16 + $0x90] sm:$0xff]
    %v6807 = vld [vmem:[#allocation16 + $0x98] sm:$0xff]
    %v6808 = vld [vmem:[#allocation16 + $0xa0] sm:$0xff]
    %v6809 = vld [vmem:[#allocation16 + $0xa8] sm:$0xff]
    %v6810 = vld [vmem:[#allocation16 + $0xb0] sm:$0xff]
    %v6811 = vld [vmem:[#allocation16 + $0xb8] sm:$0xff]
    %v6812 = vld [vmem:[#allocation16 + $0xc0] sm:$0xff]
    %v6813 = vld [vmem:[#allocation16 + $0xc8] sm:$0xff]
    %v6814 = vld [vmem:[#allocation16 + $0xd0] sm:$0xff]
    %v6815 = vld [vmem:[#allocation16 + $0xd8] sm:$0xff]
    %v6816 = vld [vmem:[#allocation16 + $0xe0] sm:$0xff]
    %v6817 = vld [vmem:[#allocation16 + $0xe8] sm:$0xff]
    %v6818 = vld [vmem:[#allocation16 + $0xf0] sm:$0xff]
    %v6819 = vld [vmem:[#allocation16 + $0xf8] sm:$0xff]
    %v6820 = vld [vmem:[#allocation16 + $0x100] sm:$0xff]
    %v6821 = vld [vmem:[#allocation16 + $0x108] sm:$0xff]
    %v6822 = vld [vmem:[#allocation16 + $0x110] sm:$0xff]
    %v6823 = vld [vmem:[#allocation16 + $0x118] sm:$0xff]
    %v6824 = vld [vmem:[#allocation16 + $0x120] sm:$0xff]
    %v6825 = vld [vmem:[#allocation16 + $0x128] sm:$0xff]
    %v6826 = vld [vmem:[#allocation16 + $0x130] sm:$0xff]
    %v6827 = vld [vmem:[#allocation16 + $0x138] sm:$0xff]
    %v6828 = vld [vmem:[#allocation16 + $0x140] sm:$0xff]
    %v6829 = vld [vmem:[#allocation16 + $0x148] sm:$0xff]
    %v6830 = vld [vmem:[#allocation16 + $0x150] sm:$0xff]
    %v6831 = vld [vmem:[#allocation16 + $0x158] sm:$0xff]
    %v6832 = vld [vmem:[#allocation16 + $0x160] sm:$0xff]
    %v6833 = vld [vmem:[#allocation16 + $0x168] sm:$0xff]
    %v6834 = vld [vmem:[#allocation16 + $0x170] sm:$0xff]
    %v6835 = vld [vmem:[#allocation16 + $0x178] sm:$0xff]
    %v6836 = vld [vmem:[#allocation16 + $0x180] sm:$0xff]
    %v6837 = vld [vmem:[#allocation16 + $0x188] sm:$0xff]
    %v6838 = vld [vmem:[#allocation16 + $0x190] sm:$0xff]
    %v6839 = vld [vmem:[#allocation16 + $0x198] sm:$0xff]
    %v6840 = vld [vmem:[#allocation16 + $0x1a0] sm:$0xff]
    %v6841 = vld [vmem:[#allocation16 + $0x1a8] sm:$0xff]
    %v6842 = vld [vmem:[#allocation16 + $0x1b0] sm:$0xff]
    %v6843 = vld [vmem:[#allocation16 + $0x1b8] sm:$0xff]
    %v6844 = vld [vmem:[#allocation16 + $0x1c0] sm:$0xff]
    %v6845 = vld [vmem:[#allocation16 + $0x1c8] sm:$0xff]
    %v6846 = vld [vmem:[#allocation16 + $0x1d0] sm:$0xff]
    %v6847 = vld [vmem:[#allocation16 + $0x1d8] sm:$0xff]
    %v6848 = vld [vmem:[#allocation16 + $0x1e0] sm:$0xff]
    %v6849 = vld [vmem:[#allocation16 + $0x1e8] sm:$0xff]
    %v6850 = vld [vmem:[#allocation16 + $0x1f0] sm:$0xff]
    %v6851 = vld [vmem:[#allocation16 + $0x1f8] sm:$0xff]
    %v6852 = vld [vmem:[#allocation16 + $0x200] sm:$0xff]
    %v6853 = vld [vmem:[#allocation16 + $0x208] sm:$0xff]
    %v6854 = vld [vmem:[#allocation16 + $0x210] sm:$0xff]
    %v6855 = vld [vmem:[#allocation16 + $0x218] sm:$0xff]
    %v6856 = vld [vmem:[#allocation16 + $0x220] sm:$0xff]
    %v6857 = vld [vmem:[#allocation16 + $0x228] sm:$0xff]
    %v6858 = vld [vmem:[#allocation16 + $0x230] sm:$0xff]
    %v6859 = vld [vmem:[#allocation16 + $0x238] sm:$0xff]
    %v6860 = vld [vmem:[#allocation16 + $0x240] sm:$0xff]
    %v6861 = vld [vmem:[#allocation16 + $0x248] sm:$0xff]
    %v6862 = vld [vmem:[#allocation16 + $0x250] sm:$0xff]
    %v6863 = vld [vmem:[#allocation16 + $0x258] sm:$0xff]
    %v6864 = vld [vmem:[#allocation16 + $0x260] sm:$0xff]
    %v6865 = vld [vmem:[#allocation16 + $0x268] sm:$0xff]
    %v6866 = vld [vmem:[#allocation16 + $0x270] sm:$0xff]
    %v6867 = vld [vmem:[#allocation16 + $0x278] sm:$0xff]
    %v6868 = vld [vmem:[#allocation16 + $0x280] sm:$0xff]
    %v6869 = vld [vmem:[#allocation16 + $0x288] sm:$0xff]
    %v6870 = vld [vmem:[#allocation16 + $0x290] sm:$0xff]
    %v6871 = vld [vmem:[#allocation16 + $0x298] sm:$0xff]
    %v6872 = vld [vmem:[#allocation16 + $0x2a0] sm:$0xff]
    %v6873 = vld [vmem:[#allocation16 + $0x2a8] sm:$0xff]
    %v6874 = vld [vmem:[#allocation16 + $0x2b0] sm:$0xff]
    %v6875 = vld [vmem:[#allocation16 + $0x2b8] sm:$0xff]
    %v6876 = vld [vmem:[#allocation16 + $0x2c0] sm:$0xff]
    %v6877 = vld [vmem:[#allocation16 + $0x2c8] sm:$0xff]
    %v6878 = vld [vmem:[#allocation16 + $0x2d0] sm:$0xff]
    %v6879 = vld [vmem:[#allocation16 + $0x2d8] sm:$0xff]
    %v6880 = vld [vmem:[#allocation16 + $0x2e0] sm:$0xff]
    %v6881 = vld [vmem:[#allocation16 + $0x2e8] sm:$0xff]
    %v6882 = vld [vmem:[#allocation16 + $0x2f0] sm:$0xff]
    %v6883 = vld [vmem:[#allocation16 + $0x2f8] sm:$0xff]
    %v6884 = vld [vmem:[#allocation16 + $0x300] sm:$0xff]
    %v6885 = vld [vmem:[#allocation16 + $0x308] sm:$0xff]
    %v6886 = vld [vmem:[#allocation16 + $0x310] sm:$0xff]
    %v6887 = vld [vmem:[#allocation16 + $0x318] sm:$0xff]
    %v6888 = vld [vmem:[#allocation16 + $0x320] sm:$0xff]
    %v6889 = vld [vmem:[#allocation16 + $0x328] sm:$0xff]
    %v6890 = vld [vmem:[#allocation16 + $0x330] sm:$0xff]
    %v6891 = vld [vmem:[#allocation16 + $0x338] sm:$0xff]
    %v6892 = vld [vmem:[#allocation16 + $0x340] sm:$0xff]
    %v6893 = vld [vmem:[#allocation16 + $0x348] sm:$0xff]
    %v6894 = vld [vmem:[#allocation16 + $0x350] sm:$0xff]
    %v6895 = vld [vmem:[#allocation16 + $0x358] sm:$0xff]
    %v6896 = vld [vmem:[#allocation16 + $0x360] sm:$0xff]
    %v6897 = vld [vmem:[#allocation16 + $0x368] sm:$0xff]
    %v6898 = vld [vmem:[#allocation16 + $0x370] sm:$0xff]
    %v6899 = vld [vmem:[#allocation16 + $0x378] sm:$0xff]
    %v6900 = vld [vmem:[#allocation16 + $0x380] sm:$0xff]
    %v6901 = vld [vmem:[#allocation16 + $0x388] sm:$0xff]
    %v6902 = vld [vmem:[#allocation16 + $0x390] sm:$0xff]
    %v6903 = vld [vmem:[#allocation16 + $0x398] sm:$0xff]
    %v6904 = vld [vmem:[#allocation16 + $0x3a0] sm:$0xff]
    %v6905 = vld [vmem:[#allocation16 + $0x3a8] sm:$0xff]
    %v6906 = vld [vmem:[#allocation16 + $0x3b0] sm:$0xff]
    %v6907 = vld [vmem:[#allocation16 + $0x3b8] sm:$0xff]
    %v6908 = vld [vmem:[#allocation16 + $0x3c0] sm:$0xff]
    %v6909 = vld [vmem:[#allocation16 + $0x3c8] sm:$0xff]
    %v6910 = vld [vmem:[#allocation16 + $0x3d0] sm:$0xff]
    %v6911 = vld [vmem:[#allocation16 + $0x3d8] sm:$0xff]
    %v6912 = vld [vmem:[#allocation16 + $0x3e0] sm:$0xff]
    %v6913 = vld [vmem:[#allocation16 + $0x3e8] sm:$0xff]
    %v6914 = vld [vmem:[#allocation16 + $0x3f0] sm:$0xff]
    %v6915 = vld [vmem:[#allocation16 + $0x3f8] sm:$0xff]
    %v6916 = vld [vmem:[#allocation16 + $0x400] sm:$0xff]
    %v6917 = vld [vmem:[#allocation16 + $0x408] sm:$0xff]
    %v6918 = vld [vmem:[#allocation16 + $0x410] sm:$0xff]
    %v6919 = vld [vmem:[#allocation16 + $0x418] sm:$0xff]
    %v6920 = vld [vmem:[#allocation16 + $0x420] sm:$0xff]
    %v6921 = vld [vmem:[#allocation16 + $0x428] sm:$0xff]
    %v6922 = vld [vmem:[#allocation16 + $0x430] sm:$0xff]
    %v6923 = vld [vmem:[#allocation16 + $0x438] sm:$0xff]
    %v6924 = vld [vmem:[#allocation16 + $0x440] sm:$0xff]
    %v6925 = vld [vmem:[#allocation16 + $0x448] sm:$0xff]
    %v6926 = vld [vmem:[#allocation16 + $0x450] sm:$0xff]
    %v6927 = vld [vmem:[#allocation16 + $0x458] sm:$0xff]
    %v6928 = vld [vmem:[#allocation16 + $0x460] sm:$0xff]
    %v6929 = vld [vmem:[#allocation16 + $0x468] sm:$0xff]
    %v6930 = vld [vmem:[#allocation16 + $0x470] sm:$0xff]
    %v6931 = vld [vmem:[#allocation16 + $0x478] sm:$0xff]
    %v6932 = vld [vmem:[#allocation16 + $0x480] sm:$0xff]
    %v6933 = vld [vmem:[#allocation16 + $0x488] sm:$0xff]
    %v6934 = vld [vmem:[#allocation16 + $0x490] sm:$0xff]
    %v6935 = vld [vmem:[#allocation16 + $0x498] sm:$0xff]
    %v6936 = vld [vmem:[#allocation16 + $0x4a0] sm:$0xff]
    %v6937 = vld [vmem:[#allocation16 + $0x4a8] sm:$0xff]
    %v6938 = vld [vmem:[#allocation16 + $0x4b0] sm:$0xff]
    %v6939 = vld [vmem:[#allocation16 + $0x4b8] sm:$0xff]
    %v6940 = vld [vmem:[#allocation16 + $0x4c0] sm:$0xff]
    %v6941 = vld [vmem:[#allocation16 + $0x4c8] sm:$0xff]
    %v6942 = vld [vmem:[#allocation16 + $0x4d0] sm:$0xff]
    %v6943 = vld [vmem:[#allocation16 + $0x4d8] sm:$0xff]
    %v6944 = vld [vmem:[#allocation16 + $0x4e0] sm:$0xff]
    %v6945 = vld [vmem:[#allocation16 + $0x4e8] sm:$0xff]
    %v6946 = vld [vmem:[#allocation16 + $0x4f0] sm:$0xff]
    %v6947 = vld [vmem:[#allocation16 + $0x4f8] sm:$0xff]
    %v6948 = vld [vmem:[#allocation16 + $0x500] sm:$0xff]
    %v6949 = vld [vmem:[#allocation16 + $0x508] sm:$0xff]
    %v6950 = vld [vmem:[#allocation16 + $0x510] sm:$0xff]
    %v6951 = vld [vmem:[#allocation16 + $0x518] sm:$0xff]
    %v6952 = vld [vmem:[#allocation16 + $0x520] sm:$0xff]
    %v6953 = vld [vmem:[#allocation16 + $0x528] sm:$0xff]
    %v6954 = vld [vmem:[#allocation16 + $0x530] sm:$0xff]
    %v6955 = vld [vmem:[#allocation16 + $0x538] sm:$0xff]
    %v6956 = vld [vmem:[#allocation16 + $0x540] sm:$0xff]
    %v6957 = vld [vmem:[#allocation16 + $0x548] sm:$0xff]
    %v6958 = vld [vmem:[#allocation16 + $0x550] sm:$0xff]
    %v6959 = vld [vmem:[#allocation16 + $0x558] sm:$0xff]
    %v6960 = vld [vmem:[#allocation16 + $0x560] sm:$0xff]
    %v6961 = vld [vmem:[#allocation16 + $0x568] sm:$0xff]
    %v6962 = vld [vmem:[#allocation16 + $0x570] sm:$0xff]
    %v6963 = vld [vmem:[#allocation16 + $0x578] sm:$0xff]
    %v6964 = vld [vmem:[#allocation16 + $0x580] sm:$0xff]
    %v6965 = vld [vmem:[#allocation16 + $0x588] sm:$0xff]
    %v6966 = vld [vmem:[#allocation16 + $0x590] sm:$0xff]
    %v6967 = vld [vmem:[#allocation16 + $0x598] sm:$0xff]
    %v6968 = vld [vmem:[#allocation16 + $0x5a0] sm:$0xff]
    %v6969 = vld [vmem:[#allocation16 + $0x5a8] sm:$0xff]
    %v6970 = vld [vmem:[#allocation16 + $0x5b0] sm:$0xff]
    %v6971 = vld [vmem:[#allocation16 + $0x5b8] sm:$0xff]
    %v6972 = vld [vmem:[#allocation16 + $0x5c0] sm:$0xff]
    %v6973 = vld [vmem:[#allocation16 + $0x5c8] sm:$0xff]
    %v6974 = vld [vmem:[#allocation16 + $0x5d0] sm:$0xff]
    %v6975 = vld [vmem:[#allocation16 + $0x5d8] sm:$0xff]
    %v6976 = vld [vmem:[#allocation16 + $0x5e0] sm:$0xff]
    %v6977 = vld [vmem:[#allocation16 + $0x5e8] sm:$0xff]
    %v6978 = vld [vmem:[#allocation16 + $0x5f0] sm:$0xff]
    %v6979 = vld [vmem:[#allocation16 + $0x5f8] sm:$0xff]
    %v6980 = vld [vmem:[#allocation16 + $0x600] sm:$0xff]
    %v6981 = vld [vmem:[#allocation16 + $0x608] sm:$0xff]
    %v6982 = vld [vmem:[#allocation16 + $0x610] sm:$0xff]
    %v6983 = vld [vmem:[#allocation16 + $0x618] sm:$0xff]
    %v6984 = vld [vmem:[#allocation16 + $0x620] sm:$0xff]
    %v6985 = vld [vmem:[#allocation16 + $0x628] sm:$0xff]
    %v6986 = vld [vmem:[#allocation16 + $0x630] sm:$0xff]
    %v6987 = vld [vmem:[#allocation16 + $0x638] sm:$0xff]
    %v6988 = vld [vmem:[#allocation16 + $0x640] sm:$0xff]
    %v6989 = vld [vmem:[#allocation16 + $0x648] sm:$0xff]
    %v6990 = vld [vmem:[#allocation16 + $0x650] sm:$0xff]
    %v6991 = vld [vmem:[#allocation16 + $0x658] sm:$0xff]
    %v6992 = vld [vmem:[#allocation16 + $0x660] sm:$0xff]
    %v6993 = vld [vmem:[#allocation16 + $0x668] sm:$0xff]
    %v6994 = vld [vmem:[#allocation16 + $0x670] sm:$0xff]
    %v6995 = vld [vmem:[#allocation16 + $0x678] sm:$0xff]
    %v6996 = vld [vmem:[#allocation16 + $0x680] sm:$0xff]
    %v6997 = vld [vmem:[#allocation16 + $0x688] sm:$0xff]
    %v6998 = vld [vmem:[#allocation16 + $0x690] sm:$0xff]
    %v6999 = vld [vmem:[#allocation16 + $0x698] sm:$0xff]
    %v7000 = vld [vmem:[#allocation16 + $0x6a0] sm:$0xff]
    %v7001 = vld [vmem:[#allocation16 + $0x6a8] sm:$0xff]
    %v7002 = vld [vmem:[#allocation16 + $0x6b0] sm:$0xff]
    %v7003 = vld [vmem:[#allocation16 + $0x6b8] sm:$0xff]
    %v7004 = vld [vmem:[#allocation16 + $0x6c0] sm:$0xff]
    %v7005 = vld [vmem:[#allocation16 + $0x6c8] sm:$0xff]
    %v7006 = vld [vmem:[#allocation16 + $0x6d0] sm:$0xff]
    %v7007 = vld [vmem:[#allocation16 + $0x6d8] sm:$0xff]
    %v7008 = vld [vmem:[#allocation16 + $0x6e0] sm:$0xff]
    %v7009 = vld [vmem:[#allocation16 + $0x6e8] sm:$0xff]
    %v7010 = vld [vmem:[#allocation16 + $0x6f0] sm:$0xff]
    %v7011 = vld [vmem:[#allocation16 + $0x6f8] sm:$0xff]
    %v7012 = vld [vmem:[#allocation16 + $0x700] sm:$0xff]
    %v7013 = vld [vmem:[#allocation16 + $0x708] sm:$0xff]
    %v7014 = vld [vmem:[#allocation16 + $0x710] sm:$0xff]
    %v7015 = vld [vmem:[#allocation16 + $0x718] sm:$0xff]
    %v7016 = vld [vmem:[#allocation16 + $0x720] sm:$0xff]
    %v7017 = vld [vmem:[#allocation16 + $0x728] sm:$0xff]
    %v7018 = vld [vmem:[#allocation16 + $0x730] sm:$0xff]
    %v7019 = vld [vmem:[#allocation16 + $0x738] sm:$0xff]
    %v7020 = vld [vmem:[#allocation16 + $0x740] sm:$0xff]
    %v7021 = vld [vmem:[#allocation16 + $0x748] sm:$0xff]
    %v7022 = vld [vmem:[#allocation16 + $0x750] sm:$0xff]
    %v7023 = vld [vmem:[#allocation16 + $0x758] sm:$0xff]
    %v7024 = vld [vmem:[#allocation16 + $0x760] sm:$0xff]
    %v7025 = vld [vmem:[#allocation16 + $0x768] sm:$0xff]
    %v7026 = vld [vmem:[#allocation16 + $0x770] sm:$0xff]
    %v7027 = vld [vmem:[#allocation16 + $0x778] sm:$0xff]
    %v7028 = vld [vmem:[#allocation16 + $0x780] sm:$0xff]
    %v7029 = vld [vmem:[#allocation16 + $0x788] sm:$0xff]
    %v7030 = vld [vmem:[#allocation16 + $0x790] sm:$0xff]
    %v7031 = vld [vmem:[#allocation16 + $0x798] sm:$0xff]
    %v7032 = vld [vmem:[#allocation16 + $0x7a0] sm:$0xff]
    %v7033 = vld [vmem:[#allocation16 + $0x7a8] sm:$0xff]
    %v7034 = vld [vmem:[#allocation16 + $0x7b0] sm:$0xff]
    %v7035 = vld [vmem:[#allocation16 + $0x7b8] sm:$0xff]
    %v7036 = vld [vmem:[#allocation16 + $0x7c0] sm:$0xff]
    %v7037 = vld [vmem:[#allocation16 + $0x7c8] sm:$0xff]
    %v7038 = vld [vmem:[#allocation16 + $0x7d0] sm:$0xff]
    %v7039 = vld [vmem:[#allocation16 + $0x7d8] sm:$0xff]
    %v7040 = vld [vmem:[#allocation16 + $0x7e0] sm:$0xff]
    %v7041 = vld [vmem:[#allocation16 + $0x7e8] sm:$0xff]
    %v7042 = vld [vmem:[#allocation16 + $0x7f0] sm:$0xff]
    %v7043 = vld [vmem:[#allocation16 + $0x7f8] sm:$0xff]
    %v7044 = vld [vmem:[#allocation16 + $0x800] sm:$0xff]
    %v7045 = vld [vmem:[#allocation16 + $0x808] sm:$0xff]
    %v7046 = vld [vmem:[#allocation16 + $0x810] sm:$0xff]
    %v7047 = vld [vmem:[#allocation16 + $0x818] sm:$0xff]
    %v7048 = vld [vmem:[#allocation16 + $0x820] sm:$0xff]
    %v7049 = vld [vmem:[#allocation16 + $0x828] sm:$0xff]
    %v7050 = vld [vmem:[#allocation16 + $0x830] sm:$0xff]
    %v7051 = vld [vmem:[#allocation16 + $0x838] sm:$0xff]
    %v7052 = vld [vmem:[#allocation16 + $0x840] sm:$0xff]
    %v7053 = vld [vmem:[#allocation16 + $0x848] sm:$0xff]
    %v7054 = vld [vmem:[#allocation16 + $0x850] sm:$0xff]
    %v7055 = vld [vmem:[#allocation16 + $0x858] sm:$0xff]
    %v7056 = vld [vmem:[#allocation16 + $0x860] sm:$0xff]
    %v7057 = vld [vmem:[#allocation16 + $0x868] sm:$0xff]
    %v7058 = vld [vmem:[#allocation16 + $0x870] sm:$0xff]
    %v7059 = vld [vmem:[#allocation16 + $0x878] sm:$0xff]
    %v7060 = vld [vmem:[#allocation16 + $0x880] sm:$0xff]
    %v7061 = vld [vmem:[#allocation16 + $0x888] sm:$0xff]
    %v7062 = vld [vmem:[#allocation16 + $0x890] sm:$0xff]
    %v7063 = vld [vmem:[#allocation16 + $0x898] sm:$0xff]
    %v7064 = vld [vmem:[#allocation16 + $0x8a0] sm:$0xff]
    %v7065 = vld [vmem:[#allocation16 + $0x8a8] sm:$0xff]
    %v7066 = vld [vmem:[#allocation16 + $0x8b0] sm:$0xff]
    %v7067 = vld [vmem:[#allocation16 + $0x8b8] sm:$0xff]
    %v7068 = vld [vmem:[#allocation16 + $0x8c0] sm:$0xff]
    %v7069 = vld [vmem:[#allocation16 + $0x8c8] sm:$0xff]
    %v7070 = vld [vmem:[#allocation16 + $0x8d0] sm:$0xff]
    %v7071 = vld [vmem:[#allocation16 + $0x8d8] sm:$0xff]
    %v7072 = vld [vmem:[#allocation16 + $0x8e0] sm:$0xff]
    %v7073 = vld [vmem:[#allocation16 + $0x8e8] sm:$0xff]
    %v7074 = vld [vmem:[#allocation16 + $0x8f0] sm:$0xff]
    %v7075 = vld [vmem:[#allocation16 + $0x8f8] sm:$0xff]
    %v7076 = vld [vmem:[#allocation16 + $0x900] sm:$0xff]
    %v7077 = vld [vmem:[#allocation16 + $0x908] sm:$0xff]
    %v7078 = vld [vmem:[#allocation16 + $0x910] sm:$0xff]
    %v7079 = vld [vmem:[#allocation16 + $0x918] sm:$0xff]
    %v7080 = vld [vmem:[#allocation16 + $0x920] sm:$0xff]
    %v7081 = vld [vmem:[#allocation16 + $0x928] sm:$0xff]
    %v7082 = vld [vmem:[#allocation16 + $0x930] sm:$0xff]
    %v7083 = vld [vmem:[#allocation16 + $0x938] sm:$0xff]
    %v7084 = vld [vmem:[#allocation16 + $0x940] sm:$0xff]
    %v7085 = vld [vmem:[#allocation16 + $0x948] sm:$0xff]
    %v7086 = vld [vmem:[#allocation16 + $0x950] sm:$0xff]
    %v7087 = vld [vmem:[#allocation16 + $0x958] sm:$0xff]
    %v7088 = vld [vmem:[#allocation16 + $0x960] sm:$0xff]
    %v7089 = vld [vmem:[#allocation16 + $0x968] sm:$0xff]
    %v7090 = vld [vmem:[#allocation16 + $0x970] sm:$0xff]
    %v7091 = vld [vmem:[#allocation16 + $0x978] sm:$0xff]
    %v7092 = vld [vmem:[#allocation16 + $0x980] sm:$0xff]
    %v7093 = vld [vmem:[#allocation16 + $0x988] sm:$0xff]
    %v7094 = vld [vmem:[#allocation16 + $0x990] sm:$0xff]
    %v7095 = vld [vmem:[#allocation16 + $0x998] sm:$0xff]
    %v7096 = vld [vmem:[#allocation16 + $0x9a0] sm:$0xff]
    %v7097 = vld [vmem:[#allocation16 + $0x9a8] sm:$0xff]
    %v7098 = vld [vmem:[#allocation16 + $0x9b0] sm:$0xff]
    %v7099 = vld [vmem:[#allocation16 + $0x9b8] sm:$0xff]
    %v7100 = vld [vmem:[#allocation16 + $0x9c0] sm:$0xff]
    %v7101 = vld [vmem:[#allocation16 + $0x9c8] sm:$0xff]
    %v7102 = vld [vmem:[#allocation16 + $0x9d0] sm:$0xff]
    %v7103 = vld [vmem:[#allocation16 + $0x9d8] sm:$0xff]
    %v7104 = vld [vmem:[#allocation16 + $0x9e0] sm:$0xff]
    %v7105 = vld [vmem:[#allocation16 + $0x9e8] sm:$0xff]
    %v7106 = vld [vmem:[#allocation16 + $0x9f0] sm:$0xff]
    %v7107 = vld [vmem:[#allocation16 + $0x9f8] sm:$0xff]
    %v7108 = vld [vmem:[#allocation16 + $0xa00] sm:$0xff]
    %v7109 = vld [vmem:[#allocation16 + $0xa08] sm:$0xff]
    %v7110 = vld [vmem:[#allocation16 + $0xa10] sm:$0xff]
    %v7111 = vld [vmem:[#allocation16 + $0xa18] sm:$0xff]
    %v7112 = vld [vmem:[#allocation16 + $0xa20] sm:$0xff]
    %v7113 = vld [vmem:[#allocation16 + $0xa28] sm:$0xff]
    %v7114 = vld [vmem:[#allocation16 + $0xa30] sm:$0xff]
    %v7115 = vld [vmem:[#allocation16 + $0xa38] sm:$0xff]
    %v7116 = vld [vmem:[#allocation16 + $0xa40] sm:$0xff]
    %v7117 = vld [vmem:[#allocation16 + $0xa48] sm:$0xff]
    %v7118 = vld [vmem:[#allocation16 + $0xa50] sm:$0xff]
    %v7119 = vld [vmem:[#allocation16 + $0xa58] sm:$0xff]
    %v7120 = vld [vmem:[#allocation16 + $0xa60] sm:$0xff]
    %v7121 = vld [vmem:[#allocation16 + $0xa68] sm:$0xff]
    %v7122 = vld [vmem:[#allocation16 + $0xa70] sm:$0xff]
    %v7123 = vld [vmem:[#allocation16 + $0xa78] sm:$0xff]
    %v7124 = vld [vmem:[#allocation16 + $0xa80] sm:$0xff]
    %v7125 = vld [vmem:[#allocation16 + $0xa88] sm:$0xff]
    %v7126 = vld [vmem:[#allocation16 + $0xa90] sm:$0xff]
    %v7127 = vld [vmem:[#allocation16 + $0xa98] sm:$0xff]
    %v7128 = vld [vmem:[#allocation16 + $0xaa0] sm:$0xff]
    %v7129 = vld [vmem:[#allocation16 + $0xaa8] sm:$0xff]
    %v7130 = vld [vmem:[#allocation16 + $0xab0] sm:$0xff]
    %v7131 = vld [vmem:[#allocation16 + $0xab8] sm:$0xff]
    %v7132 = vld [vmem:[#allocation16 + $0xac0] sm:$0xff]
    %v7133 = vld [vmem:[#allocation16 + $0xac8] sm:$0xff]
    %v7134 = vld [vmem:[#allocation16 + $0xad0] sm:$0xff]
    %v7135 = vld [vmem:[#allocation16 + $0xad8] sm:$0xff]
    %v7136 = vld [vmem:[#allocation16 + $0xae0] sm:$0xff]
    %v7137 = vld [vmem:[#allocation16 + $0xae8] sm:$0xff]
    %v7138 = vld [vmem:[#allocation16 + $0xaf0] sm:$0xff]
    %v7139 = vld [vmem:[#allocation16 + $0xaf8] sm:$0xff]
    %v7140 = vld [vmem:[#allocation16 + $0xb00] sm:$0xff]
    %v7141 = vld [vmem:[#allocation16 + $0xb08] sm:$0xff]
    %v7142 = vld [vmem:[#allocation16 + $0xb10] sm:$0xff]
    %v7143 = vld [vmem:[#allocation16 + $0xb18] sm:$0xff]
    %v7144 = vld [vmem:[#allocation16 + $0xb20] sm:$0xff]
    %v7145 = vld [vmem:[#allocation16 + $0xb28] sm:$0xff]
    %v7146 = vld [vmem:[#allocation16 + $0xb30] sm:$0xff]
    %v7147 = vld [vmem:[#allocation16 + $0xb38] sm:$0xff]
    %v7148 = vld [vmem:[#allocation16 + $0xb40] sm:$0xff]
    %v7149 = vld [vmem:[#allocation16 + $0xb48] sm:$0xff]
    %v7150 = vld [vmem:[#allocation16 + $0xb50] sm:$0xff]
    %v7151 = vld [vmem:[#allocation16 + $0xb58] sm:$0xff]
    %v7152 = vld [vmem:[#allocation16 + $0xb60] sm:$0xff]
    %v7153 = vld [vmem:[#allocation16 + $0xb68] sm:$0xff]
    %v7154 = vld [vmem:[#allocation16 + $0xb70] sm:$0xff]
    %v7155 = vld [vmem:[#allocation16 + $0xb78] sm:$0xff]
    %v7156 = vld [vmem:[#allocation16 + $0xb80] sm:$0xff]
    %v7157 = vld [vmem:[#allocation16 + $0xb88] sm:$0xff]
    %v7158 = vld [vmem:[#allocation16 + $0xb90] sm:$0xff]
    %v7159 = vld [vmem:[#allocation16 + $0xb98] sm:$0xff]
    %v7160 = vld [vmem:[#allocation16 + $0xba0] sm:$0xff]
    %v7161 = vld [vmem:[#allocation16 + $0xba8] sm:$0xff]
    %v7162 = vld [vmem:[#allocation16 + $0xbb0] sm:$0xff]
    %v7163 = vld [vmem:[#allocation16 + $0xbb8] sm:$0xff]
    %v7164 = vld [vmem:[#allocation16 + $0xbc0] sm:$0xff]
    %v7165 = vld [vmem:[#allocation16 + $0xbc8] sm:$0xff]
    %v7166 = vld [vmem:[#allocation16 + $0xbd0] sm:$0xff]
    %v7167 = vld [vmem:[#allocation16 + $0xbd8] sm:$0xff]
    %v7168 = vld [vmem:[#allocation16 + $0xbe0] sm:$0xff]
    %v7169 = vld [vmem:[#allocation16 + $0xbe8] sm:$0xff]
    %v7170 = vld [vmem:[#allocation16 + $0xbf0] sm:$0xff]
    %v7171 = vld [vmem:[#allocation16 + $0xbf8] sm:$0xff]
    %v7172 = vld [vmem:[#allocation16 + $0xc00] sm:$0xff]
    %v7173 = vld [vmem:[#allocation16 + $0xc08] sm:$0xff]
    %v7174 = vld [vmem:[#allocation16 + $0xc10] sm:$0xff]
    %v7175 = vld [vmem:[#allocation16 + $0xc18] sm:$0xff]
    %v7176 = vld [vmem:[#allocation16 + $0xc20] sm:$0xff]
    %v7177 = vld [vmem:[#allocation16 + $0xc28] sm:$0xff]
    %v7178 = vld [vmem:[#allocation16 + $0xc30] sm:$0xff]
    %v7179 = vld [vmem:[#allocation16 + $0xc38] sm:$0xff]
    %v7180 = vld [vmem:[#allocation16 + $0xc40] sm:$0xff]
    %v7181 = vld [vmem:[#allocation16 + $0xc48] sm:$0xff]
    %v7182 = vld [vmem:[#allocation16 + $0xc50] sm:$0xff]
    %v7183 = vld [vmem:[#allocation16 + $0xc58] sm:$0xff]
    %v7184 = vld [vmem:[#allocation16 + $0xc60] sm:$0xff]
    %v7185 = vld [vmem:[#allocation16 + $0xc68] sm:$0xff]
    %v7186 = vld [vmem:[#allocation16 + $0xc70] sm:$0xff]
    %v7187 = vld [vmem:[#allocation16 + $0xc78] sm:$0xff]
    %v7188 = vld [vmem:[#allocation16 + $0xc80] sm:$0xff]
    %v7189 = vld [vmem:[#allocation16 + $0xc88] sm:$0xff]
    %v7190 = vld [vmem:[#allocation16 + $0xc90] sm:$0xff]
    %v7191 = vld [vmem:[#allocation16 + $0xc98] sm:$0xff]
    %v7192 = vld [vmem:[#allocation16 + $0xca0] sm:$0xff]
    %v7193 = vld [vmem:[#allocation16 + $0xca8] sm:$0xff]
    %v7194 = vld [vmem:[#allocation16 + $0xcb0] sm:$0xff]
    %v7195 = vld [vmem:[#allocation16 + $0xcb8] sm:$0xff]
    %v7196 = vld [vmem:[#allocation16 + $0xcc0] sm:$0xff]
    %v7197 = vld [vmem:[#allocation16 + $0xcc8] sm:$0xff]
    %v7198 = vld [vmem:[#allocation16 + $0xcd0] sm:$0xff]
    %v7199 = vld [vmem:[#allocation16 + $0xcd8] sm:$0xff]
    %v7200 = vld [vmem:[#allocation16 + $0xce0] sm:$0xff]
    %v7201 = vld [vmem:[#allocation16 + $0xce8] sm:$0xff]
    %v7202 = vld [vmem:[#allocation16 + $0xcf0] sm:$0xff]
    %v7203 = vld [vmem:[#allocation16 + $0xcf8] sm:$0xff]
    %v7204 = vld [vmem:[#allocation16 + $0xd00] sm:$0xff]
    %v7205 = vld [vmem:[#allocation16 + $0xd08] sm:$0xff]
    %v7206 = vld [vmem:[#allocation16 + $0xd10] sm:$0xff]
    %v7207 = vld [vmem:[#allocation16 + $0xd18] sm:$0xff]
    %v7208 = vld [vmem:[#allocation16 + $0xd20] sm:$0xff]
    %v7209 = vld [vmem:[#allocation16 + $0xd28] sm:$0xff]
    %v7210 = vld [vmem:[#allocation16 + $0xd30] sm:$0xff]
    %v7211 = vld [vmem:[#allocation16 + $0xd38] sm:$0xff]
    %v7212 = vld [vmem:[#allocation16 + $0xd40] sm:$0xff]
    %v7213 = vld [vmem:[#allocation16 + $0xd48] sm:$0xff]
    %v7214 = vld [vmem:[#allocation16 + $0xd50] sm:$0xff]
    %v7215 = vld [vmem:[#allocation16 + $0xd58] sm:$0xff]
    %v7216 = vld [vmem:[#allocation16 + $0xd60] sm:$0xff]
    %v7217 = vld [vmem:[#allocation16 + $0xd68] sm:$0xff]
    %v7218 = vld [vmem:[#allocation16 + $0xd70] sm:$0xff]
    %v7219 = vld [vmem:[#allocation16 + $0xd78] sm:$0xff]
    %v7220 = vld [vmem:[#allocation16 + $0xd80] sm:$0xff]
    %v7221 = vld [vmem:[#allocation16 + $0xd88] sm:$0xff]
    %v7222 = vld [vmem:[#allocation16 + $0xd90] sm:$0xff]
    %v7223 = vld [vmem:[#allocation16 + $0xd98] sm:$0xff]
    %v7224 = vld [vmem:[#allocation16 + $0xda0] sm:$0xff]
    %v7225 = vld [vmem:[#allocation16 + $0xda8] sm:$0xff]
    %v7226 = vld [vmem:[#allocation16 + $0xdb0] sm:$0xff]
    %v7227 = vld [vmem:[#allocation16 + $0xdb8] sm:$0xff]
    %v7228 = vld [vmem:[#allocation16 + $0xdc0] sm:$0xff]
    %v7229 = vld [vmem:[#allocation16 + $0xdc8] sm:$0xff]
    %v7230 = vld [vmem:[#allocation16 + $0xdd0] sm:$0xff]
    %v7231 = vld [vmem:[#allocation16 + $0xdd8] sm:$0xff]
    %v7232 = vld [vmem:[#allocation16 + $0xde0] sm:$0xff]
    %v7233 = vld [vmem:[#allocation16 + $0xde8] sm:$0xff]
    %v7234 = vld [vmem:[#allocation16 + $0xdf0] sm:$0xff]
    %v7235 = vld [vmem:[#allocation16 + $0xdf8] sm:$0xff]
    %v7236 = vld [vmem:[#allocation16 + $0xe00] sm:$0xff]
    %v7237 = vld [vmem:[#allocation16 + $0xe08] sm:$0xff]
    %v7238 = vld [vmem:[#allocation16 + $0xe10] sm:$0xff]
    %v7239 = vld [vmem:[#allocation16 + $0xe18] sm:$0xff]
    %v7240 = vld [vmem:[#allocation16 + $0xe20] sm:$0xff]
    %v7241 = vld [vmem:[#allocation16 + $0xe28] sm:$0xff]
    %v7242 = vld [vmem:[#allocation16 + $0xe30] sm:$0xff]
    %v7243 = vld [vmem:[#allocation16 + $0xe38] sm:$0xff]
    %v7244 = vld [vmem:[#allocation16 + $0xe40] sm:$0xff]
    %v7245 = vld [vmem:[#allocation16 + $0xe48] sm:$0xff]
    %v7246 = vld [vmem:[#allocation16 + $0xe50] sm:$0xff]
    %v7247 = vld [vmem:[#allocation16 + $0xe58] sm:$0xff]
    %v7248 = vld [vmem:[#allocation16 + $0xe60] sm:$0xff]
    %v7249 = vld [vmem:[#allocation16 + $0xe68] sm:$0xff]
    %v7250 = vld [vmem:[#allocation16 + $0xe70] sm:$0xff]
    %v7251 = vld [vmem:[#allocation16 + $0xe78] sm:$0xff]
    %v7252 = vld [vmem:[#allocation16 + $0xe80] sm:$0xff]
    %v7253 = vld [vmem:[#allocation16 + $0xe88] sm:$0xff]
    %v7254 = vld [vmem:[#allocation16 + $0xe90] sm:$0xff]
    %v7255 = vld [vmem:[#allocation16 + $0xe98] sm:$0xff]
    %v7256 = vld [vmem:[#allocation16 + $0xea0] sm:$0xff]
    %v7257 = vld [vmem:[#allocation16 + $0xea8] sm:$0xff]
    %v7258 = vld [vmem:[#allocation16 + $0xeb0] sm:$0xff]
    %v7259 = vld [vmem:[#allocation16 + $0xeb8] sm:$0xff]
    %v7260 = vld [vmem:[#allocation16 + $0xec0] sm:$0xff]
    %v7261 = vld [vmem:[#allocation16 + $0xec8] sm:$0xff]
    %v7262 = vld [vmem:[#allocation16 + $0xed0] sm:$0xff]
    %v7263 = vld [vmem:[#allocation16 + $0xed8] sm:$0xff]
    %v7264 = vld [vmem:[#allocation16 + $0xee0] sm:$0xff]
    %v7265 = vld [vmem:[#allocation16 + $0xee8] sm:$0xff]
    %v7266 = vld [vmem:[#allocation16 + $0xef0] sm:$0xff]
    %v7267 = vld [vmem:[#allocation16 + $0xef8] sm:$0xff]
    %v7268 = vld [vmem:[#allocation16 + $0xf00] sm:$0xff]
    %v7269 = vld [vmem:[#allocation16 + $0xf08] sm:$0xff]
    %v7270 = vld [vmem:[#allocation16 + $0xf10] sm:$0xff]
    %v7271 = vld [vmem:[#allocation16 + $0xf18] sm:$0xff]
    %v7272 = vld [vmem:[#allocation16 + $0xf20] sm:$0xff]
    %v7273 = vld [vmem:[#allocation16 + $0xf28] sm:$0xff]
    %v7274 = vld [vmem:[#allocation16 + $0xf30] sm:$0xff]
    %v7275 = vld [vmem:[#allocation16 + $0xf38] sm:$0xff]
    %v7276 = vld [vmem:[#allocation16 + $0xf40] sm:$0xff]
    %v7277 = vld [vmem:[#allocation16 + $0xf48] sm:$0xff]
    %v7278 = vld [vmem:[#allocation16 + $0xf50] sm:$0xff]
    %v7279 = vld [vmem:[#allocation16 + $0xf58] sm:$0xff]
    %v7280 = vld [vmem:[#allocation16 + $0xf60] sm:$0xff]
    %v7281 = vld [vmem:[#allocation16 + $0xf68] sm:$0xff]
    %v7282 = vld [vmem:[#allocation16 + $0xf70] sm:$0xff]
    %v7283 = vld [vmem:[#allocation16 + $0xf78] sm:$0xff]
    %v7284 = vld [vmem:[#allocation16 + $0xf80] sm:$0xff]
    %v7285 = vld [vmem:[#allocation16 + $0xf88] sm:$0xff]
    %v7286 = vld [vmem:[#allocation16 + $0xf90] sm:$0xff]
    %v7287 = vld [vmem:[#allocation16 + $0xf98] sm:$0xff]
    %v7288 = vld [vmem:[#allocation16 + $0xfa0] sm:$0xff]
    %v7289 = vld [vmem:[#allocation16 + $0xfa8] sm:$0xff]
    %v7290 = vld [vmem:[#allocation16 + $0xfb0] sm:$0xff]
    %v7291 = vld [vmem:[#allocation16 + $0xfb8] sm:$0xff]
    %v7292 = vld [vmem:[#allocation16 + $0xfc0] sm:$0xff]
    %v7293 = vld [vmem:[#allocation16 + $0xfc8] sm:$0xff]
    %v7294 = vld [vmem:[#allocation16 + $0xfd0] sm:$0xff]
    %v7295 = vld [vmem:[#allocation16 + $0xfd8] sm:$0xff]
    %v7296 = vld [vmem:[#allocation16 + $0xfe0] sm:$0xff]
    %v7297 = vld [vmem:[#allocation16 + $0xfe8] sm:$0xff]
    %v7298 = vld [vmem:[#allocation16 + $0xff0] sm:$0xff]
    %v7299 = vld [vmem:[#allocation16 + $0xff8] sm:$0xff]
    %v7300 = vld [vmem:[#allocation17] sm:$0xff]
    %v7302 = vperm.slane %v7300, 0
    %v7303 = vperm.slane %v7300, 1
    %v7304 = vperm.slane %v7300, 2
    %v7305 = vperm.slane %v7300, 3
    %v7306 = vperm.slane %v7300, 4
    %v7307 = vperm.slane %v7300, 5
    %v7308 = vperm.slane %v7300, 6
    %v7309 = vperm.slane %v7300, 7
    %v7830 = vunpack.c.l.b16 %v6788
    %v7831 = vunpack.c.h.b16 %v6788
    %v7832 = vunpack.c.l.b16 %v6789
    %v7833 = vunpack.c.h.b16 %v6789
    %v7834 = vunpack.c.l.b16 %v6790
    %v7835 = vunpack.c.h.b16 %v6790
    %v7836 = vunpack.c.l.b16 %v6791
    %v7837 = vunpack.c.h.b16 %v6791
    %v7838 = vunpack.c.l.b16 %v6792
    %v7839 = vunpack.c.h.b16 %v6792
    %v7840 = vunpack.c.l.b16 %v6793
    %v7841 = vunpack.c.h.b16 %v6793
    %v7842 = vunpack.c.l.b16 %v6794
    %v7843 = vunpack.c.h.b16 %v6794
    %v7844 = vunpack.c.l.b16 %v6795
    %v7845 = vunpack.c.h.b16 %v6795
    %v7846 = vunpack.c.l.b16 %v6796
    %v7847 = vunpack.c.h.b16 %v6796
    %v7848 = vunpack.c.l.b16 %v6797
    %v7849 = vunpack.c.h.b16 %v6797
    %v7850 = vunpack.c.l.b16 %v6798
    %v7851 = vunpack.c.h.b16 %v6798
    %v7852 = vunpack.c.l.b16 %v6799
    %v7853 = vunpack.c.h.b16 %v6799
    %v7854 = vunpack.c.l.b16 %v6800
    %v7855 = vunpack.c.h.b16 %v6800
    %v7856 = vunpack.c.l.b16 %v6801
    %v7857 = vunpack.c.h.b16 %v6801
    %v7858 = vunpack.c.l.b16 %v6802
    %v7859 = vunpack.c.h.b16 %v6802
    %v7860 = vunpack.c.l.b16 %v6803
    %v7861 = vunpack.c.h.b16 %v6803
    %v7862 = vunpack.c.l.b16 %v6804
    %v7863 = vunpack.c.h.b16 %v6804
    %v7864 = vunpack.c.l.b16 %v6805
    %v7865 = vunpack.c.h.b16 %v6805
    %v7866 = vunpack.c.l.b16 %v6806
    %v7867 = vunpack.c.h.b16 %v6806
    %v7868 = vunpack.c.l.b16 %v6807
    %v7869 = vunpack.c.h.b16 %v6807
    %v7870 = vunpack.c.l.b16 %v6808
    %v7871 = vunpack.c.h.b16 %v6808
    %v7872 = vunpack.c.l.b16 %v6809
    %v7873 = vunpack.c.h.b16 %v6809
    %v7874 = vunpack.c.l.b16 %v6810
    %v7875 = vunpack.c.h.b16 %v6810
    %v7876 = vunpack.c.l.b16 %v6811
    %v7877 = vunpack.c.h.b16 %v6811
    %v7878 = vunpack.c.l.b16 %v6812
    %v7879 = vunpack.c.h.b16 %v6812
    %v7880 = vunpack.c.l.b16 %v6813
    %v7881 = vunpack.c.h.b16 %v6813
    %v7882 = vunpack.c.l.b16 %v6814
    %v7883 = vunpack.c.h.b16 %v6814
    %v7884 = vunpack.c.l.b16 %v6815
    %v7885 = vunpack.c.h.b16 %v6815
    %v7886 = vunpack.c.l.b16 %v6816
    %v7887 = vunpack.c.h.b16 %v6816
    %v7888 = vunpack.c.l.b16 %v6817
    %v7889 = vunpack.c.h.b16 %v6817
    %v7890 = vunpack.c.l.b16 %v6818
    %v7891 = vunpack.c.h.b16 %v6818
    %v7892 = vunpack.c.l.b16 %v6819
    %v7893 = vunpack.c.h.b16 %v6819
    %v7894 = vunpack.c.l.b16 %v6820
    %v7895 = vunpack.c.h.b16 %v6820
    %v7896 = vunpack.c.l.b16 %v6821
    %v7897 = vunpack.c.h.b16 %v6821
    %v7898 = vunpack.c.l.b16 %v6822
    %v7899 = vunpack.c.h.b16 %v6822
    %v7900 = vunpack.c.l.b16 %v6823
    %v7901 = vunpack.c.h.b16 %v6823
    %v7902 = vunpack.c.l.b16 %v6824
    %v7903 = vunpack.c.h.b16 %v6824
    %v7904 = vunpack.c.l.b16 %v6825
    %v7905 = vunpack.c.h.b16 %v6825
    %v7906 = vunpack.c.l.b16 %v6826
    %v7907 = vunpack.c.h.b16 %v6826
    %v7908 = vunpack.c.l.b16 %v6827
    %v7909 = vunpack.c.h.b16 %v6827
    %v7910 = vunpack.c.l.b16 %v6828
    %v7911 = vunpack.c.h.b16 %v6828
    %v7912 = vunpack.c.l.b16 %v6829
    %v7913 = vunpack.c.h.b16 %v6829
    %v7914 = vunpack.c.l.b16 %v6830
    %v7915 = vunpack.c.h.b16 %v6830
    %v7916 = vunpack.c.l.b16 %v6831
    %v7917 = vunpack.c.h.b16 %v6831
    %v7918 = vunpack.c.l.b16 %v6832
    %v7919 = vunpack.c.h.b16 %v6832
    %v7920 = vunpack.c.l.b16 %v6833
    %v7921 = vunpack.c.h.b16 %v6833
    %v7922 = vunpack.c.l.b16 %v6834
    %v7923 = vunpack.c.h.b16 %v6834
    %v7924 = vunpack.c.l.b16 %v6835
    %v7925 = vunpack.c.h.b16 %v6835
    %v7926 = vunpack.c.l.b16 %v6836
    %v7927 = vunpack.c.h.b16 %v6836
    %v7928 = vunpack.c.l.b16 %v6837
    %v7929 = vunpack.c.h.b16 %v6837
    %v7930 = vunpack.c.l.b16 %v6838
    %v7931 = vunpack.c.h.b16 %v6838
    %v7932 = vunpack.c.l.b16 %v6839
    %v7933 = vunpack.c.h.b16 %v6839
    %v7934 = vunpack.c.l.b16 %v6840
    %v7935 = vunpack.c.h.b16 %v6840
    %v7936 = vunpack.c.l.b16 %v6841
    %v7937 = vunpack.c.h.b16 %v6841
    %v7938 = vunpack.c.l.b16 %v6842
    %v7939 = vunpack.c.h.b16 %v6842
    %v7940 = vunpack.c.l.b16 %v6843
    %v7941 = vunpack.c.h.b16 %v6843
    %v7942 = vunpack.c.l.b16 %v6844
    %v7943 = vunpack.c.h.b16 %v6844
    %v7944 = vunpack.c.l.b16 %v6845
    %v7945 = vunpack.c.h.b16 %v6845
    %v7946 = vunpack.c.l.b16 %v6846
    %v7947 = vunpack.c.h.b16 %v6846
    %v7948 = vunpack.c.l.b16 %v6847
    %v7949 = vunpack.c.h.b16 %v6847
    %v7950 = vunpack.c.l.b16 %v6848
    %v7951 = vunpack.c.h.b16 %v6848
    %v7952 = vunpack.c.l.b16 %v6849
    %v7953 = vunpack.c.h.b16 %v6849
    %v7954 = vunpack.c.l.b16 %v6850
    %v7955 = vunpack.c.h.b16 %v6850
    %v7956 = vunpack.c.l.b16 %v6851
    %v7957 = vunpack.c.h.b16 %v6851
    %v7958 = vunpack.c.l.b16 %v6852
    %v7959 = vunpack.c.h.b16 %v6852
    %v7960 = vunpack.c.l.b16 %v6853
    %v7961 = vunpack.c.h.b16 %v6853
    %v7962 = vunpack.c.l.b16 %v6854
    %v7963 = vunpack.c.h.b16 %v6854
    %v7964 = vunpack.c.l.b16 %v6855
    %v7965 = vunpack.c.h.b16 %v6855
    %v7966 = vunpack.c.l.b16 %v6856
    %v7967 = vunpack.c.h.b16 %v6856
    %v7968 = vunpack.c.l.b16 %v6857
    %v7969 = vunpack.c.h.b16 %v6857
    %v7970 = vunpack.c.l.b16 %v6858
    %v7971 = vunpack.c.h.b16 %v6858
    %v7972 = vunpack.c.l.b16 %v6859
    %v7973 = vunpack.c.h.b16 %v6859
    %v7974 = vunpack.c.l.b16 %v6860
    %v7975 = vunpack.c.h.b16 %v6860
    %v7976 = vunpack.c.l.b16 %v6861
    %v7977 = vunpack.c.h.b16 %v6861
    %v7978 = vunpack.c.l.b16 %v6862
    %v7979 = vunpack.c.h.b16 %v6862
    %v7980 = vunpack.c.l.b16 %v6863
    %v7981 = vunpack.c.h.b16 %v6863
    %v7982 = vunpack.c.l.b16 %v6864
    %v7983 = vunpack.c.h.b16 %v6864
    %v7984 = vunpack.c.l.b16 %v6865
    %v7985 = vunpack.c.h.b16 %v6865
    %v7986 = vunpack.c.l.b16 %v6866
    %v7987 = vunpack.c.h.b16 %v6866
    %v7988 = vunpack.c.l.b16 %v6867
    %v7989 = vunpack.c.h.b16 %v6867
    %v7990 = vunpack.c.l.b16 %v6868
    %v7991 = vunpack.c.h.b16 %v6868
    %v7992 = vunpack.c.l.b16 %v6869
    %v7993 = vunpack.c.h.b16 %v6869
    %v7994 = vunpack.c.l.b16 %v6870
    %v7995 = vunpack.c.h.b16 %v6870
    %v7996 = vunpack.c.l.b16 %v6871
    %v7997 = vunpack.c.h.b16 %v6871
    %v7998 = vunpack.c.l.b16 %v6872
    %v7999 = vunpack.c.h.b16 %v6872
    %v8000 = vunpack.c.l.b16 %v6873
    %v8001 = vunpack.c.h.b16 %v6873
    %v8002 = vunpack.c.l.b16 %v6874
    %v8003 = vunpack.c.h.b16 %v6874
    %v8004 = vunpack.c.l.b16 %v6875
    %v8005 = vunpack.c.h.b16 %v6875
    %v8006 = vunpack.c.l.b16 %v6876
    %v8007 = vunpack.c.h.b16 %v6876
    %v8008 = vunpack.c.l.b16 %v6877
    %v8009 = vunpack.c.h.b16 %v6877
    %v8010 = vunpack.c.l.b16 %v6878
    %v8011 = vunpack.c.h.b16 %v6878
    %v8012 = vunpack.c.l.b16 %v6879
    %v8013 = vunpack.c.h.b16 %v6879
    %v8014 = vunpack.c.l.b16 %v6880
    %v8015 = vunpack.c.h.b16 %v6880
    %v8016 = vunpack.c.l.b16 %v6881
    %v8017 = vunpack.c.h.b16 %v6881
    %v8018 = vunpack.c.l.b16 %v6882
    %v8019 = vunpack.c.h.b16 %v6882
    %v8020 = vunpack.c.l.b16 %v6883
    %v8021 = vunpack.c.h.b16 %v6883
    %v8022 = vunpack.c.l.b16 %v6884
    %v8023 = vunpack.c.h.b16 %v6884
    %v8024 = vunpack.c.l.b16 %v6885
    %v8025 = vunpack.c.h.b16 %v6885
    %v8026 = vunpack.c.l.b16 %v6886
    %v8027 = vunpack.c.h.b16 %v6886
    %v8028 = vunpack.c.l.b16 %v6887
    %v8029 = vunpack.c.h.b16 %v6887
    %v8030 = vunpack.c.l.b16 %v6888
    %v8031 = vunpack.c.h.b16 %v6888
    %v8032 = vunpack.c.l.b16 %v6889
    %v8033 = vunpack.c.h.b16 %v6889
    %v8034 = vunpack.c.l.b16 %v6890
    %v8035 = vunpack.c.h.b16 %v6890
    %v8036 = vunpack.c.l.b16 %v6891
    %v8037 = vunpack.c.h.b16 %v6891
    %v8038 = vunpack.c.l.b16 %v6892
    %v8039 = vunpack.c.h.b16 %v6892
    %v8040 = vunpack.c.l.b16 %v6893
    %v8041 = vunpack.c.h.b16 %v6893
    %v8042 = vunpack.c.l.b16 %v6894
    %v8043 = vunpack.c.h.b16 %v6894
    %v8044 = vunpack.c.l.b16 %v6895
    %v8045 = vunpack.c.h.b16 %v6895
    %v8046 = vunpack.c.l.b16 %v6896
    %v8047 = vunpack.c.h.b16 %v6896
    %v8048 = vunpack.c.l.b16 %v6897
    %v8049 = vunpack.c.h.b16 %v6897
    %v8050 = vunpack.c.l.b16 %v6898
    %v8051 = vunpack.c.h.b16 %v6898
    %v8052 = vunpack.c.l.b16 %v6899
    %v8053 = vunpack.c.h.b16 %v6899
    %v8054 = vunpack.c.l.b16 %v6900
    %v8055 = vunpack.c.h.b16 %v6900
    %v8056 = vunpack.c.l.b16 %v6901
    %v8057 = vunpack.c.h.b16 %v6901
    %v8058 = vunpack.c.l.b16 %v6902
    %v8059 = vunpack.c.h.b16 %v6902
    %v8060 = vunpack.c.l.b16 %v6903
    %v8061 = vunpack.c.h.b16 %v6903
    %v8062 = vunpack.c.l.b16 %v6904
    %v8063 = vunpack.c.h.b16 %v6904
    %v8064 = vunpack.c.l.b16 %v6905
    %v8065 = vunpack.c.h.b16 %v6905
    %v8066 = vunpack.c.l.b16 %v6906
    %v8067 = vunpack.c.h.b16 %v6906
    %v8068 = vunpack.c.l.b16 %v6907
    %v8069 = vunpack.c.h.b16 %v6907
    %v8070 = vunpack.c.l.b16 %v6908
    %v8071 = vunpack.c.h.b16 %v6908
    %v8072 = vunpack.c.l.b16 %v6909
    %v8073 = vunpack.c.h.b16 %v6909
    %v8074 = vunpack.c.l.b16 %v6910
    %v8075 = vunpack.c.h.b16 %v6910
    %v8076 = vunpack.c.l.b16 %v6911
    %v8077 = vunpack.c.h.b16 %v6911
    %v8078 = vunpack.c.l.b16 %v6912
    %v8079 = vunpack.c.h.b16 %v6912
    %v8080 = vunpack.c.l.b16 %v6913
    %v8081 = vunpack.c.h.b16 %v6913
    %v8082 = vunpack.c.l.b16 %v6914
    %v8083 = vunpack.c.h.b16 %v6914
    %v8084 = vunpack.c.l.b16 %v6915
    %v8085 = vunpack.c.h.b16 %v6915
    %v8086 = vunpack.c.l.b16 %v6916
    %v8087 = vunpack.c.h.b16 %v6916
    %v8088 = vunpack.c.l.b16 %v6917
    %v8089 = vunpack.c.h.b16 %v6917
    %v8090 = vunpack.c.l.b16 %v6918
    %v8091 = vunpack.c.h.b16 %v6918
    %v8092 = vunpack.c.l.b16 %v6919
    %v8093 = vunpack.c.h.b16 %v6919
    %v8094 = vunpack.c.l.b16 %v6920
    %v8095 = vunpack.c.h.b16 %v6920
    %v8096 = vunpack.c.l.b16 %v6921
    %v8097 = vunpack.c.h.b16 %v6921
    %v8098 = vunpack.c.l.b16 %v6922
    %v8099 = vunpack.c.h.b16 %v6922
    %v8100 = vunpack.c.l.b16 %v6923
    %v8101 = vunpack.c.h.b16 %v6923
    %v8102 = vunpack.c.l.b16 %v6924
    %v8103 = vunpack.c.h.b16 %v6924
    %v8104 = vunpack.c.l.b16 %v6925
    %v8105 = vunpack.c.h.b16 %v6925
    %v8106 = vunpack.c.l.b16 %v6926
    %v8107 = vunpack.c.h.b16 %v6926
    %v8108 = vunpack.c.l.b16 %v6927
    %v8109 = vunpack.c.h.b16 %v6927
    %v8110 = vunpack.c.l.b16 %v6928
    %v8111 = vunpack.c.h.b16 %v6928
    %v8112 = vunpack.c.l.b16 %v6929
    %v8113 = vunpack.c.h.b16 %v6929
    %v8114 = vunpack.c.l.b16 %v6930
    %v8115 = vunpack.c.h.b16 %v6930
    %v8116 = vunpack.c.l.b16 %v6931
    %v8117 = vunpack.c.h.b16 %v6931
    %v8118 = vunpack.c.l.b16 %v6932
    %v8119 = vunpack.c.h.b16 %v6932
    %v8120 = vunpack.c.l.b16 %v6933
    %v8121 = vunpack.c.h.b16 %v6933
    %v8122 = vunpack.c.l.b16 %v6934
    %v8123 = vunpack.c.h.b16 %v6934
    %v8124 = vunpack.c.l.b16 %v6935
    %v8125 = vunpack.c.h.b16 %v6935
    %v8126 = vunpack.c.l.b16 %v6936
    %v8127 = vunpack.c.h.b16 %v6936
    %v8128 = vunpack.c.l.b16 %v6937
    %v8129 = vunpack.c.h.b16 %v6937
    %v8130 = vunpack.c.l.b16 %v6938
    %v8131 = vunpack.c.h.b16 %v6938
    %v8132 = vunpack.c.l.b16 %v6939
    %v8133 = vunpack.c.h.b16 %v6939
    %v8134 = vunpack.c.l.b16 %v6940
    %v8135 = vunpack.c.h.b16 %v6940
    %v8136 = vunpack.c.l.b16 %v6941
    %v8137 = vunpack.c.h.b16 %v6941
    %v8138 = vunpack.c.l.b16 %v6942
    %v8139 = vunpack.c.h.b16 %v6942
    %v8140 = vunpack.c.l.b16 %v6943
    %v8141 = vunpack.c.h.b16 %v6943
    %v8142 = vunpack.c.l.b16 %v6944
    %v8143 = vunpack.c.h.b16 %v6944
    %v8144 = vunpack.c.l.b16 %v6945
    %v8145 = vunpack.c.h.b16 %v6945
    %v8146 = vunpack.c.l.b16 %v6946
    %v8147 = vunpack.c.h.b16 %v6946
    %v8148 = vunpack.c.l.b16 %v6947
    %v8149 = vunpack.c.h.b16 %v6947
    %v8150 = vunpack.c.l.b16 %v6948
    %v8151 = vunpack.c.h.b16 %v6948
    %v8152 = vunpack.c.l.b16 %v6949
    %v8153 = vunpack.c.h.b16 %v6949
    %v8154 = vunpack.c.l.b16 %v6950
    %v8155 = vunpack.c.h.b16 %v6950
    %v8156 = vunpack.c.l.b16 %v6951
    %v8157 = vunpack.c.h.b16 %v6951
    %v8158 = vunpack.c.l.b16 %v6952
    %v8159 = vunpack.c.h.b16 %v6952
    %v8160 = vunpack.c.l.b16 %v6953
    %v8161 = vunpack.c.h.b16 %v6953
    %v8162 = vunpack.c.l.b16 %v6954
    %v8163 = vunpack.c.h.b16 %v6954
    %v8164 = vunpack.c.l.b16 %v6955
    %v8165 = vunpack.c.h.b16 %v6955
    %v8166 = vunpack.c.l.b16 %v6956
    %v8167 = vunpack.c.h.b16 %v6956
    %v8168 = vunpack.c.l.b16 %v6957
    %v8169 = vunpack.c.h.b16 %v6957
    %v8170 = vunpack.c.l.b16 %v6958
    %v8171 = vunpack.c.h.b16 %v6958
    %v8172 = vunpack.c.l.b16 %v6959
    %v8173 = vunpack.c.h.b16 %v6959
    %v8174 = vunpack.c.l.b16 %v6960
    %v8175 = vunpack.c.h.b16 %v6960
    %v8176 = vunpack.c.l.b16 %v6961
    %v8177 = vunpack.c.h.b16 %v6961
    %v8178 = vunpack.c.l.b16 %v6962
    %v8179 = vunpack.c.h.b16 %v6962
    %v8180 = vunpack.c.l.b16 %v6963
    %v8181 = vunpack.c.h.b16 %v6963
    %v8182 = vunpack.c.l.b16 %v6964
    %v8183 = vunpack.c.h.b16 %v6964
    %v8184 = vunpack.c.l.b16 %v6965
    %v8185 = vunpack.c.h.b16 %v6965
    %v8186 = vunpack.c.l.b16 %v6966
    %v8187 = vunpack.c.h.b16 %v6966
    %v8188 = vunpack.c.l.b16 %v6967
    %v8189 = vunpack.c.h.b16 %v6967
    %v8190 = vunpack.c.l.b16 %v6968
    %v8191 = vunpack.c.h.b16 %v6968
    %v8192 = vunpack.c.l.b16 %v6969
    %v8193 = vunpack.c.h.b16 %v6969
    %v8194 = vunpack.c.l.b16 %v6970
    %v8195 = vunpack.c.h.b16 %v6970
    %v8196 = vunpack.c.l.b16 %v6971
    %v8197 = vunpack.c.h.b16 %v6971
    %v8198 = vunpack.c.l.b16 %v6972
    %v8199 = vunpack.c.h.b16 %v6972
    %v8200 = vunpack.c.l.b16 %v6973
    %v8201 = vunpack.c.h.b16 %v6973
    %v8202 = vunpack.c.l.b16 %v6974
    %v8203 = vunpack.c.h.b16 %v6974
    %v8204 = vunpack.c.l.b16 %v6975
    %v8205 = vunpack.c.h.b16 %v6975
    %v8206 = vunpack.c.l.b16 %v6976
    %v8207 = vunpack.c.h.b16 %v6976
    %v8208 = vunpack.c.l.b16 %v6977
    %v8209 = vunpack.c.h.b16 %v6977
    %v8210 = vunpack.c.l.b16 %v6978
    %v8211 = vunpack.c.h.b16 %v6978
    %v8212 = vunpack.c.l.b16 %v6979
    %v8213 = vunpack.c.h.b16 %v6979
    %v8214 = vunpack.c.l.b16 %v6980
    %v8215 = vunpack.c.h.b16 %v6980
    %v8216 = vunpack.c.l.b16 %v6981
    %v8217 = vunpack.c.h.b16 %v6981
    %v8218 = vunpack.c.l.b16 %v6982
    %v8219 = vunpack.c.h.b16 %v6982
    %v8220 = vunpack.c.l.b16 %v6983
    %v8221 = vunpack.c.h.b16 %v6983
    %v8222 = vunpack.c.l.b16 %v6984
    %v8223 = vunpack.c.h.b16 %v6984
    %v8224 = vunpack.c.l.b16 %v6985
    %v8225 = vunpack.c.h.b16 %v6985
    %v8226 = vunpack.c.l.b16 %v6986
    %v8227 = vunpack.c.h.b16 %v6986
    %v8228 = vunpack.c.l.b16 %v6987
    %v8229 = vunpack.c.h.b16 %v6987
    %v8230 = vunpack.c.l.b16 %v6988
    %v8231 = vunpack.c.h.b16 %v6988
    %v8232 = vunpack.c.l.b16 %v6989
    %v8233 = vunpack.c.h.b16 %v6989
    %v8234 = vunpack.c.l.b16 %v6990
    %v8235 = vunpack.c.h.b16 %v6990
    %v8236 = vunpack.c.l.b16 %v6991
    %v8237 = vunpack.c.h.b16 %v6991
    %v8238 = vunpack.c.l.b16 %v6992
    %v8239 = vunpack.c.h.b16 %v6992
    %v8240 = vunpack.c.l.b16 %v6993
    %v8241 = vunpack.c.h.b16 %v6993
    %v8242 = vunpack.c.l.b16 %v6994
    %v8243 = vunpack.c.h.b16 %v6994
    %v8244 = vunpack.c.l.b16 %v6995
    %v8245 = vunpack.c.h.b16 %v6995
    %v8246 = vunpack.c.l.b16 %v6996
    %v8247 = vunpack.c.h.b16 %v6996
    %v8248 = vunpack.c.l.b16 %v6997
    %v8249 = vunpack.c.h.b16 %v6997
    %v8250 = vunpack.c.l.b16 %v6998
    %v8251 = vunpack.c.h.b16 %v6998
    %v8252 = vunpack.c.l.b16 %v6999
    %v8253 = vunpack.c.h.b16 %v6999
    %v8254 = vunpack.c.l.b16 %v7000
    %v8255 = vunpack.c.h.b16 %v7000
    %v8256 = vunpack.c.l.b16 %v7001
    %v8257 = vunpack.c.h.b16 %v7001
    %v8258 = vunpack.c.l.b16 %v7002
    %v8259 = vunpack.c.h.b16 %v7002
    %v8260 = vunpack.c.l.b16 %v7003
    %v8261 = vunpack.c.h.b16 %v7003
    %v8262 = vunpack.c.l.b16 %v7004
    %v8263 = vunpack.c.h.b16 %v7004
    %v8264 = vunpack.c.l.b16 %v7005
    %v8265 = vunpack.c.h.b16 %v7005
    %v8266 = vunpack.c.l.b16 %v7006
    %v8267 = vunpack.c.h.b16 %v7006
    %v8268 = vunpack.c.l.b16 %v7007
    %v8269 = vunpack.c.h.b16 %v7007
    %v8270 = vunpack.c.l.b16 %v7008
    %v8271 = vunpack.c.h.b16 %v7008
    %v8272 = vunpack.c.l.b16 %v7009
    %v8273 = vunpack.c.h.b16 %v7009
    %v8274 = vunpack.c.l.b16 %v7010
    %v8275 = vunpack.c.h.b16 %v7010
    %v8276 = vunpack.c.l.b16 %v7011
    %v8277 = vunpack.c.h.b16 %v7011
    %v8278 = vunpack.c.l.b16 %v7012
    %v8279 = vunpack.c.h.b16 %v7012
    %v8280 = vunpack.c.l.b16 %v7013
    %v8281 = vunpack.c.h.b16 %v7013
    %v8282 = vunpack.c.l.b16 %v7014
    %v8283 = vunpack.c.h.b16 %v7014
    %v8284 = vunpack.c.l.b16 %v7015
    %v8285 = vunpack.c.h.b16 %v7015
    %v8286 = vunpack.c.l.b16 %v7016
    %v8287 = vunpack.c.h.b16 %v7016
    %v8288 = vunpack.c.l.b16 %v7017
    %v8289 = vunpack.c.h.b16 %v7017
    %v8290 = vunpack.c.l.b16 %v7018
    %v8291 = vunpack.c.h.b16 %v7018
    %v8292 = vunpack.c.l.b16 %v7019
    %v8293 = vunpack.c.h.b16 %v7019
    %v8294 = vunpack.c.l.b16 %v7020
    %v8295 = vunpack.c.h.b16 %v7020
    %v8296 = vunpack.c.l.b16 %v7021
    %v8297 = vunpack.c.h.b16 %v7021
    %v8298 = vunpack.c.l.b16 %v7022
    %v8299 = vunpack.c.h.b16 %v7022
    %v8300 = vunpack.c.l.b16 %v7023
    %v8301 = vunpack.c.h.b16 %v7023
    %v8302 = vunpack.c.l.b16 %v7024
    %v8303 = vunpack.c.h.b16 %v7024
    %v8304 = vunpack.c.l.b16 %v7025
    %v8305 = vunpack.c.h.b16 %v7025
    %v8306 = vunpack.c.l.b16 %v7026
    %v8307 = vunpack.c.h.b16 %v7026
    %v8308 = vunpack.c.l.b16 %v7027
    %v8309 = vunpack.c.h.b16 %v7027
    %v8310 = vunpack.c.l.b16 %v7028
    %v8311 = vunpack.c.h.b16 %v7028
    %v8312 = vunpack.c.l.b16 %v7029
    %v8313 = vunpack.c.h.b16 %v7029
    %v8314 = vunpack.c.l.b16 %v7030
    %v8315 = vunpack.c.h.b16 %v7030
    %v8316 = vunpack.c.l.b16 %v7031
    %v8317 = vunpack.c.h.b16 %v7031
    %v8318 = vunpack.c.l.b16 %v7032
    %v8319 = vunpack.c.h.b16 %v7032
    %v8320 = vunpack.c.l.b16 %v7033
    %v8321 = vunpack.c.h.b16 %v7033
    %v8322 = vunpack.c.l.b16 %v7034
    %v8323 = vunpack.c.h.b16 %v7034
    %v8324 = vunpack.c.l.b16 %v7035
    %v8325 = vunpack.c.h.b16 %v7035
    %v8326 = vunpack.c.l.b16 %v7036
    %v8327 = vunpack.c.h.b16 %v7036
    %v8328 = vunpack.c.l.b16 %v7037
    %v8329 = vunpack.c.h.b16 %v7037
    %v8330 = vunpack.c.l.b16 %v7038
    %v8331 = vunpack.c.h.b16 %v7038
    %v8332 = vunpack.c.l.b16 %v7039
    %v8333 = vunpack.c.h.b16 %v7039
    %v8334 = vunpack.c.l.b16 %v7040
    %v8335 = vunpack.c.h.b16 %v7040
    %v8336 = vunpack.c.l.b16 %v7041
    %v8337 = vunpack.c.h.b16 %v7041
    %v8338 = vunpack.c.l.b16 %v7042
    %v8339 = vunpack.c.h.b16 %v7042
    %v8340 = vunpack.c.l.b16 %v7043
    %v8341 = vunpack.c.h.b16 %v7043
    %v8342 = vunpack.c.l.b16 %v7044
    %v8343 = vunpack.c.h.b16 %v7044
    %v8344 = vunpack.c.l.b16 %v7045
    %v8345 = vunpack.c.h.b16 %v7045
    %v8346 = vunpack.c.l.b16 %v7046
    %v8347 = vunpack.c.h.b16 %v7046
    %v8348 = vunpack.c.l.b16 %v7047
    %v8349 = vunpack.c.h.b16 %v7047
    %v8350 = vunpack.c.l.b16 %v7048
    %v8351 = vunpack.c.h.b16 %v7048
    %v8352 = vunpack.c.l.b16 %v7049
    %v8353 = vunpack.c.h.b16 %v7049
    %v8354 = vunpack.c.l.b16 %v7050
    %v8355 = vunpack.c.h.b16 %v7050
    %v8356 = vunpack.c.l.b16 %v7051
    %v8357 = vunpack.c.h.b16 %v7051
    %v8358 = vunpack.c.l.b16 %v7052
    %v8359 = vunpack.c.h.b16 %v7052
    %v8360 = vunpack.c.l.b16 %v7053
    %v8361 = vunpack.c.h.b16 %v7053
    %v8362 = vunpack.c.l.b16 %v7054
    %v8363 = vunpack.c.h.b16 %v7054
    %v8364 = vunpack.c.l.b16 %v7055
    %v8365 = vunpack.c.h.b16 %v7055
    %v8366 = vunpack.c.l.b16 %v7056
    %v8367 = vunpack.c.h.b16 %v7056
    %v8368 = vunpack.c.l.b16 %v7057
    %v8369 = vunpack.c.h.b16 %v7057
    %v8370 = vunpack.c.l.b16 %v7058
    %v8371 = vunpack.c.h.b16 %v7058
    %v8372 = vunpack.c.l.b16 %v7059
    %v8373 = vunpack.c.h.b16 %v7059
    %v8374 = vunpack.c.l.b16 %v7060
    %v8375 = vunpack.c.h.b16 %v7060
    %v8376 = vunpack.c.l.b16 %v7061
    %v8377 = vunpack.c.h.b16 %v7061
    %v8378 = vunpack.c.l.b16 %v7062
    %v8379 = vunpack.c.h.b16 %v7062
    %v8380 = vunpack.c.l.b16 %v7063
    %v8381 = vunpack.c.h.b16 %v7063
    %v8382 = vunpack.c.l.b16 %v7064
    %v8383 = vunpack.c.h.b16 %v7064
    %v8384 = vunpack.c.l.b16 %v7065
    %v8385 = vunpack.c.h.b16 %v7065
    %v8386 = vunpack.c.l.b16 %v7066
    %v8387 = vunpack.c.h.b16 %v7066
    %v8388 = vunpack.c.l.b16 %v7067
    %v8389 = vunpack.c.h.b16 %v7067
    %v8390 = vunpack.c.l.b16 %v7068
    %v8391 = vunpack.c.h.b16 %v7068
    %v8392 = vunpack.c.l.b16 %v7069
    %v8393 = vunpack.c.h.b16 %v7069
    %v8394 = vunpack.c.l.b16 %v7070
    %v8395 = vunpack.c.h.b16 %v7070
    %v8396 = vunpack.c.l.b16 %v7071
    %v8397 = vunpack.c.h.b16 %v7071
    %v8398 = vunpack.c.l.b16 %v7072
    %v8399 = vunpack.c.h.b16 %v7072
    %v8400 = vunpack.c.l.b16 %v7073
    %v8401 = vunpack.c.h.b16 %v7073
    %v8402 = vunpack.c.l.b16 %v7074
    %v8403 = vunpack.c.h.b16 %v7074
    %v8404 = vunpack.c.l.b16 %v7075
    %v8405 = vunpack.c.h.b16 %v7075
    %v8406 = vunpack.c.l.b16 %v7076
    %v8407 = vunpack.c.h.b16 %v7076
    %v8408 = vunpack.c.l.b16 %v7077
    %v8409 = vunpack.c.h.b16 %v7077
    %v8410 = vunpack.c.l.b16 %v7078
    %v8411 = vunpack.c.h.b16 %v7078
    %v8412 = vunpack.c.l.b16 %v7079
    %v8413 = vunpack.c.h.b16 %v7079
    %v8414 = vunpack.c.l.b16 %v7080
    %v8415 = vunpack.c.h.b16 %v7080
    %v8416 = vunpack.c.l.b16 %v7081
    %v8417 = vunpack.c.h.b16 %v7081
    %v8418 = vunpack.c.l.b16 %v7082
    %v8419 = vunpack.c.h.b16 %v7082
    %v8420 = vunpack.c.l.b16 %v7083
    %v8421 = vunpack.c.h.b16 %v7083
    %v8422 = vunpack.c.l.b16 %v7084
    %v8423 = vunpack.c.h.b16 %v7084
    %v8424 = vunpack.c.l.b16 %v7085
    %v8425 = vunpack.c.h.b16 %v7085
    %v8426 = vunpack.c.l.b16 %v7086
    %v8427 = vunpack.c.h.b16 %v7086
    %v8428 = vunpack.c.l.b16 %v7087
    %v8429 = vunpack.c.h.b16 %v7087
    %v8430 = vunpack.c.l.b16 %v7088
    %v8431 = vunpack.c.h.b16 %v7088
    %v8432 = vunpack.c.l.b16 %v7089
    %v8433 = vunpack.c.h.b16 %v7089
    %v8434 = vunpack.c.l.b16 %v7090
    %v8435 = vunpack.c.h.b16 %v7090
    %v8436 = vunpack.c.l.b16 %v7091
    %v8437 = vunpack.c.h.b16 %v7091
    %v8438 = vunpack.c.l.b16 %v7092
    %v8439 = vunpack.c.h.b16 %v7092
    %v8440 = vunpack.c.l.b16 %v7093
    %v8441 = vunpack.c.h.b16 %v7093
    %v8442 = vunpack.c.l.b16 %v7094
    %v8443 = vunpack.c.h.b16 %v7094
    %v8444 = vunpack.c.l.b16 %v7095
    %v8445 = vunpack.c.h.b16 %v7095
    %v8446 = vunpack.c.l.b16 %v7096
    %v8447 = vunpack.c.h.b16 %v7096
    %v8448 = vunpack.c.l.b16 %v7097
    %v8449 = vunpack.c.h.b16 %v7097
    %v8450 = vunpack.c.l.b16 %v7098
    %v8451 = vunpack.c.h.b16 %v7098
    %v8452 = vunpack.c.l.b16 %v7099
    %v8453 = vunpack.c.h.b16 %v7099
    %v8454 = vunpack.c.l.b16 %v7100
    %v8455 = vunpack.c.h.b16 %v7100
    %v8456 = vunpack.c.l.b16 %v7101
    %v8457 = vunpack.c.h.b16 %v7101
    %v8458 = vunpack.c.l.b16 %v7102
    %v8459 = vunpack.c.h.b16 %v7102
    %v8460 = vunpack.c.l.b16 %v7103
    %v8461 = vunpack.c.h.b16 %v7103
    %v8462 = vunpack.c.l.b16 %v7104
    %v8463 = vunpack.c.h.b16 %v7104
    %v8464 = vunpack.c.l.b16 %v7105
    %v8465 = vunpack.c.h.b16 %v7105
    %v8466 = vunpack.c.l.b16 %v7106
    %v8467 = vunpack.c.h.b16 %v7106
    %v8468 = vunpack.c.l.b16 %v7107
    %v8469 = vunpack.c.h.b16 %v7107
    %v8470 = vunpack.c.l.b16 %v7108
    %v8471 = vunpack.c.h.b16 %v7108
    %v8472 = vunpack.c.l.b16 %v7109
    %v8473 = vunpack.c.h.b16 %v7109
    %v8474 = vunpack.c.l.b16 %v7110
    %v8475 = vunpack.c.h.b16 %v7110
    %v8476 = vunpack.c.l.b16 %v7111
    %v8477 = vunpack.c.h.b16 %v7111
    %v8478 = vunpack.c.l.b16 %v7112
    %v8479 = vunpack.c.h.b16 %v7112
    %v8480 = vunpack.c.l.b16 %v7113
    %v8481 = vunpack.c.h.b16 %v7113
    %v8482 = vunpack.c.l.b16 %v7114
    %v8483 = vunpack.c.h.b16 %v7114
    %v8484 = vunpack.c.l.b16 %v7115
    %v8485 = vunpack.c.h.b16 %v7115
    %v8486 = vunpack.c.l.b16 %v7116
    %v8487 = vunpack.c.h.b16 %v7116
    %v8488 = vunpack.c.l.b16 %v7117
    %v8489 = vunpack.c.h.b16 %v7117
    %v8490 = vunpack.c.l.b16 %v7118
    %v8491 = vunpack.c.h.b16 %v7118
    %v8492 = vunpack.c.l.b16 %v7119
    %v8493 = vunpack.c.h.b16 %v7119
    %v8494 = vunpack.c.l.b16 %v7120
    %v8495 = vunpack.c.h.b16 %v7120
    %v8496 = vunpack.c.l.b16 %v7121
    %v8497 = vunpack.c.h.b16 %v7121
    %v8498 = vunpack.c.l.b16 %v7122
    %v8499 = vunpack.c.h.b16 %v7122
    %v8500 = vunpack.c.l.b16 %v7123
    %v8501 = vunpack.c.h.b16 %v7123
    %v8502 = vunpack.c.l.b16 %v7124
    %v8503 = vunpack.c.h.b16 %v7124
    %v8504 = vunpack.c.l.b16 %v7125
    %v8505 = vunpack.c.h.b16 %v7125
    %v8506 = vunpack.c.l.b16 %v7126
    %v8507 = vunpack.c.h.b16 %v7126
    %v8508 = vunpack.c.l.b16 %v7127
    %v8509 = vunpack.c.h.b16 %v7127
    %v8510 = vunpack.c.l.b16 %v7128
    %v8511 = vunpack.c.h.b16 %v7128
    %v8512 = vunpack.c.l.b16 %v7129
    %v8513 = vunpack.c.h.b16 %v7129
    %v8514 = vunpack.c.l.b16 %v7130
    %v8515 = vunpack.c.h.b16 %v7130
    %v8516 = vunpack.c.l.b16 %v7131
    %v8517 = vunpack.c.h.b16 %v7131
    %v8518 = vunpack.c.l.b16 %v7132
    %v8519 = vunpack.c.h.b16 %v7132
    %v8520 = vunpack.c.l.b16 %v7133
    %v8521 = vunpack.c.h.b16 %v7133
    %v8522 = vunpack.c.l.b16 %v7134
    %v8523 = vunpack.c.h.b16 %v7134
    %v8524 = vunpack.c.l.b16 %v7135
    %v8525 = vunpack.c.h.b16 %v7135
    %v8526 = vunpack.c.l.b16 %v7136
    %v8527 = vunpack.c.h.b16 %v7136
    %v8528 = vunpack.c.l.b16 %v7137
    %v8529 = vunpack.c.h.b16 %v7137
    %v8530 = vunpack.c.l.b16 %v7138
    %v8531 = vunpack.c.h.b16 %v7138
    %v8532 = vunpack.c.l.b16 %v7139
    %v8533 = vunpack.c.h.b16 %v7139
    %v8534 = vunpack.c.l.b16 %v7140
    %v8535 = vunpack.c.h.b16 %v7140
    %v8536 = vunpack.c.l.b16 %v7141
    %v8537 = vunpack.c.h.b16 %v7141
    %v8538 = vunpack.c.l.b16 %v7142
    %v8539 = vunpack.c.h.b16 %v7142
    %v8540 = vunpack.c.l.b16 %v7143
    %v8541 = vunpack.c.h.b16 %v7143
    %v8542 = vunpack.c.l.b16 %v7144
    %v8543 = vunpack.c.h.b16 %v7144
    %v8544 = vunpack.c.l.b16 %v7145
    %v8545 = vunpack.c.h.b16 %v7145
    %v8546 = vunpack.c.l.b16 %v7146
    %v8547 = vunpack.c.h.b16 %v7146
    %v8548 = vunpack.c.l.b16 %v7147
    %v8549 = vunpack.c.h.b16 %v7147
    %v8550 = vunpack.c.l.b16 %v7148
    %v8551 = vunpack.c.h.b16 %v7148
    %v8552 = vunpack.c.l.b16 %v7149
    %v8553 = vunpack.c.h.b16 %v7149
    %v8554 = vunpack.c.l.b16 %v7150
    %v8555 = vunpack.c.h.b16 %v7150
    %v8556 = vunpack.c.l.b16 %v7151
    %v8557 = vunpack.c.h.b16 %v7151
    %v8558 = vunpack.c.l.b16 %v7152
    %v8559 = vunpack.c.h.b16 %v7152
    %v8560 = vunpack.c.l.b16 %v7153
    %v8561 = vunpack.c.h.b16 %v7153
    %v8562 = vunpack.c.l.b16 %v7154
    %v8563 = vunpack.c.h.b16 %v7154
    %v8564 = vunpack.c.l.b16 %v7155
    %v8565 = vunpack.c.h.b16 %v7155
    %v8566 = vunpack.c.l.b16 %v7156
    %v8567 = vunpack.c.h.b16 %v7156
    %v8568 = vunpack.c.l.b16 %v7157
    %v8569 = vunpack.c.h.b16 %v7157
    %v8570 = vunpack.c.l.b16 %v7158
    %v8571 = vunpack.c.h.b16 %v7158
    %v8572 = vunpack.c.l.b16 %v7159
    %v8573 = vunpack.c.h.b16 %v7159
    %v8574 = vunpack.c.l.b16 %v7160
    %v8575 = vunpack.c.h.b16 %v7160
    %v8576 = vunpack.c.l.b16 %v7161
    %v8577 = vunpack.c.h.b16 %v7161
    %v8578 = vunpack.c.l.b16 %v7162
    %v8579 = vunpack.c.h.b16 %v7162
    %v8580 = vunpack.c.l.b16 %v7163
    %v8581 = vunpack.c.h.b16 %v7163
    %v8582 = vunpack.c.l.b16 %v7164
    %v8583 = vunpack.c.h.b16 %v7164
    %v8584 = vunpack.c.l.b16 %v7165
    %v8585 = vunpack.c.h.b16 %v7165
    %v8586 = vunpack.c.l.b16 %v7166
    %v8587 = vunpack.c.h.b16 %v7166
    %v8588 = vunpack.c.l.b16 %v7167
    %v8589 = vunpack.c.h.b16 %v7167
    %v8590 = vunpack.c.l.b16 %v7168
    %v8591 = vunpack.c.h.b16 %v7168
    %v8592 = vunpack.c.l.b16 %v7169
    %v8593 = vunpack.c.h.b16 %v7169
    %v8594 = vunpack.c.l.b16 %v7170
    %v8595 = vunpack.c.h.b16 %v7170
    %v8596 = vunpack.c.l.b16 %v7171
    %v8597 = vunpack.c.h.b16 %v7171
    %v8598 = vunpack.c.l.b16 %v7172
    %v8599 = vunpack.c.h.b16 %v7172
    %v8600 = vunpack.c.l.b16 %v7173
    %v8601 = vunpack.c.h.b16 %v7173
    %v8602 = vunpack.c.l.b16 %v7174
    %v8603 = vunpack.c.h.b16 %v7174
    %v8604 = vunpack.c.l.b16 %v7175
    %v8605 = vunpack.c.h.b16 %v7175
    %v8606 = vunpack.c.l.b16 %v7176
    %v8607 = vunpack.c.h.b16 %v7176
    %v8608 = vunpack.c.l.b16 %v7177
    %v8609 = vunpack.c.h.b16 %v7177
    %v8610 = vunpack.c.l.b16 %v7178
    %v8611 = vunpack.c.h.b16 %v7178
    %v8612 = vunpack.c.l.b16 %v7179
    %v8613 = vunpack.c.h.b16 %v7179
    %v8614 = vunpack.c.l.b16 %v7180
    %v8615 = vunpack.c.h.b16 %v7180
    %v8616 = vunpack.c.l.b16 %v7181
    %v8617 = vunpack.c.h.b16 %v7181
    %v8618 = vunpack.c.l.b16 %v7182
    %v8619 = vunpack.c.h.b16 %v7182
    %v8620 = vunpack.c.l.b16 %v7183
    %v8621 = vunpack.c.h.b16 %v7183
    %v8622 = vunpack.c.l.b16 %v7184
    %v8623 = vunpack.c.h.b16 %v7184
    %v8624 = vunpack.c.l.b16 %v7185
    %v8625 = vunpack.c.h.b16 %v7185
    %v8626 = vunpack.c.l.b16 %v7186
    %v8627 = vunpack.c.h.b16 %v7186
    %v8628 = vunpack.c.l.b16 %v7187
    %v8629 = vunpack.c.h.b16 %v7187
    %v8630 = vunpack.c.l.b16 %v7188
    %v8631 = vunpack.c.h.b16 %v7188
    %v8632 = vunpack.c.l.b16 %v7189
    %v8633 = vunpack.c.h.b16 %v7189
    %v8634 = vunpack.c.l.b16 %v7190
    %v8635 = vunpack.c.h.b16 %v7190
    %v8636 = vunpack.c.l.b16 %v7191
    %v8637 = vunpack.c.h.b16 %v7191
    %v8638 = vunpack.c.l.b16 %v7192
    %v8639 = vunpack.c.h.b16 %v7192
    %v8640 = vunpack.c.l.b16 %v7193
    %v8641 = vunpack.c.h.b16 %v7193
    %v8642 = vunpack.c.l.b16 %v7194
    %v8643 = vunpack.c.h.b16 %v7194
    %v8644 = vunpack.c.l.b16 %v7195
    %v8645 = vunpack.c.h.b16 %v7195
    %v8646 = vunpack.c.l.b16 %v7196
    %v8647 = vunpack.c.h.b16 %v7196
    %v8648 = vunpack.c.l.b16 %v7197
    %v8649 = vunpack.c.h.b16 %v7197
    %v8650 = vunpack.c.l.b16 %v7198
    %v8651 = vunpack.c.h.b16 %v7198
    %v8652 = vunpack.c.l.b16 %v7199
    %v8653 = vunpack.c.h.b16 %v7199
    %v8654 = vunpack.c.l.b16 %v7200
    %v8655 = vunpack.c.h.b16 %v7200
    %v8656 = vunpack.c.l.b16 %v7201
    %v8657 = vunpack.c.h.b16 %v7201
    %v8658 = vunpack.c.l.b16 %v7202
    %v8659 = vunpack.c.h.b16 %v7202
    %v8660 = vunpack.c.l.b16 %v7203
    %v8661 = vunpack.c.h.b16 %v7203
    %v8662 = vunpack.c.l.b16 %v7204
    %v8663 = vunpack.c.h.b16 %v7204
    %v8664 = vunpack.c.l.b16 %v7205
    %v8665 = vunpack.c.h.b16 %v7205
    %v8666 = vunpack.c.l.b16 %v7206
    %v8667 = vunpack.c.h.b16 %v7206
    %v8668 = vunpack.c.l.b16 %v7207
    %v8669 = vunpack.c.h.b16 %v7207
    %v8670 = vunpack.c.l.b16 %v7208
    %v8671 = vunpack.c.h.b16 %v7208
    %v8672 = vunpack.c.l.b16 %v7209
    %v8673 = vunpack.c.h.b16 %v7209
    %v8674 = vunpack.c.l.b16 %v7210
    %v8675 = vunpack.c.h.b16 %v7210
    %v8676 = vunpack.c.l.b16 %v7211
    %v8677 = vunpack.c.h.b16 %v7211
    %v8678 = vunpack.c.l.b16 %v7212
    %v8679 = vunpack.c.h.b16 %v7212
    %v8680 = vunpack.c.l.b16 %v7213
    %v8681 = vunpack.c.h.b16 %v7213
    %v8682 = vunpack.c.l.b16 %v7214
    %v8683 = vunpack.c.h.b16 %v7214
    %v8684 = vunpack.c.l.b16 %v7215
    %v8685 = vunpack.c.h.b16 %v7215
    %v8686 = vunpack.c.l.b16 %v7216
    %v8687 = vunpack.c.h.b16 %v7216
    %v8688 = vunpack.c.l.b16 %v7217
    %v8689 = vunpack.c.h.b16 %v7217
    %v8690 = vunpack.c.l.b16 %v7218
    %v8691 = vunpack.c.h.b16 %v7218
    %v8692 = vunpack.c.l.b16 %v7219
    %v8693 = vunpack.c.h.b16 %v7219
    %v8694 = vunpack.c.l.b16 %v7220
    %v8695 = vunpack.c.h.b16 %v7220
    %v8696 = vunpack.c.l.b16 %v7221
    %v8697 = vunpack.c.h.b16 %v7221
    %v8698 = vunpack.c.l.b16 %v7222
    %v8699 = vunpack.c.h.b16 %v7222
    %v8700 = vunpack.c.l.b16 %v7223
    %v8701 = vunpack.c.h.b16 %v7223
    %v8702 = vunpack.c.l.b16 %v7224
    %v8703 = vunpack.c.h.b16 %v7224
    %v8704 = vunpack.c.l.b16 %v7225
    %v8705 = vunpack.c.h.b16 %v7225
    %v8706 = vunpack.c.l.b16 %v7226
    %v8707 = vunpack.c.h.b16 %v7226
    %v8708 = vunpack.c.l.b16 %v7227
    %v8709 = vunpack.c.h.b16 %v7227
    %v8710 = vunpack.c.l.b16 %v7228
    %v8711 = vunpack.c.h.b16 %v7228
    %v8712 = vunpack.c.l.b16 %v7229
    %v8713 = vunpack.c.h.b16 %v7229
    %v8714 = vunpack.c.l.b16 %v7230
    %v8715 = vunpack.c.h.b16 %v7230
    %v8716 = vunpack.c.l.b16 %v7231
    %v8717 = vunpack.c.h.b16 %v7231
    %v8718 = vunpack.c.l.b16 %v7232
    %v8719 = vunpack.c.h.b16 %v7232
    %v8720 = vunpack.c.l.b16 %v7233
    %v8721 = vunpack.c.h.b16 %v7233
    %v8722 = vunpack.c.l.b16 %v7234
    %v8723 = vunpack.c.h.b16 %v7234
    %v8724 = vunpack.c.l.b16 %v7235
    %v8725 = vunpack.c.h.b16 %v7235
    %v8726 = vunpack.c.l.b16 %v7236
    %v8727 = vunpack.c.h.b16 %v7236
    %v8728 = vunpack.c.l.b16 %v7237
    %v8729 = vunpack.c.h.b16 %v7237
    %v8730 = vunpack.c.l.b16 %v7238
    %v8731 = vunpack.c.h.b16 %v7238
    %v8732 = vunpack.c.l.b16 %v7239
    %v8733 = vunpack.c.h.b16 %v7239
    %v8734 = vunpack.c.l.b16 %v7240
    %v8735 = vunpack.c.h.b16 %v7240
    %v8736 = vunpack.c.l.b16 %v7241
    %v8737 = vunpack.c.h.b16 %v7241
    %v8738 = vunpack.c.l.b16 %v7242
    %v8739 = vunpack.c.h.b16 %v7242
    %v8740 = vunpack.c.l.b16 %v7243
    %v8741 = vunpack.c.h.b16 %v7243
    %v8742 = vunpack.c.l.b16 %v7244
    %v8743 = vunpack.c.h.b16 %v7244
    %v8744 = vunpack.c.l.b16 %v7245
    %v8745 = vunpack.c.h.b16 %v7245
    %v8746 = vunpack.c.l.b16 %v7246
    %v8747 = vunpack.c.h.b16 %v7246
    %v8748 = vunpack.c.l.b16 %v7247
    %v8749 = vunpack.c.h.b16 %v7247
    %v8750 = vunpack.c.l.b16 %v7248
    %v8751 = vunpack.c.h.b16 %v7248
    %v8752 = vunpack.c.l.b16 %v7249
    %v8753 = vunpack.c.h.b16 %v7249
    %v8754 = vunpack.c.l.b16 %v7250
    %v8755 = vunpack.c.h.b16 %v7250
    %v8756 = vunpack.c.l.b16 %v7251
    %v8757 = vunpack.c.h.b16 %v7251
    %v8758 = vunpack.c.l.b16 %v7252
    %v8759 = vunpack.c.h.b16 %v7252
    %v8760 = vunpack.c.l.b16 %v7253
    %v8761 = vunpack.c.h.b16 %v7253
    %v8762 = vunpack.c.l.b16 %v7254
    %v8763 = vunpack.c.h.b16 %v7254
    %v8764 = vunpack.c.l.b16 %v7255
    %v8765 = vunpack.c.h.b16 %v7255
    %v8766 = vunpack.c.l.b16 %v7256
    %v8767 = vunpack.c.h.b16 %v7256
    %v8768 = vunpack.c.l.b16 %v7257
    %v8769 = vunpack.c.h.b16 %v7257
    %v8770 = vunpack.c.l.b16 %v7258
    %v8771 = vunpack.c.h.b16 %v7258
    %v8772 = vunpack.c.l.b16 %v7259
    %v8773 = vunpack.c.h.b16 %v7259
    %v8774 = vunpack.c.l.b16 %v7260
    %v8775 = vunpack.c.h.b16 %v7260
    %v8776 = vunpack.c.l.b16 %v7261
    %v8777 = vunpack.c.h.b16 %v7261
    %v8778 = vunpack.c.l.b16 %v7262
    %v8779 = vunpack.c.h.b16 %v7262
    %v8780 = vunpack.c.l.b16 %v7263
    %v8781 = vunpack.c.h.b16 %v7263
    %v8782 = vunpack.c.l.b16 %v7264
    %v8783 = vunpack.c.h.b16 %v7264
    %v8784 = vunpack.c.l.b16 %v7265
    %v8785 = vunpack.c.h.b16 %v7265
    %v8786 = vunpack.c.l.b16 %v7266
    %v8787 = vunpack.c.h.b16 %v7266
    %v8788 = vunpack.c.l.b16 %v7267
    %v8789 = vunpack.c.h.b16 %v7267
    %v8790 = vunpack.c.l.b16 %v7268
    %v8791 = vunpack.c.h.b16 %v7268
    %v8792 = vunpack.c.l.b16 %v7269
    %v8793 = vunpack.c.h.b16 %v7269
    %v8794 = vunpack.c.l.b16 %v7270
    %v8795 = vunpack.c.h.b16 %v7270
    %v8796 = vunpack.c.l.b16 %v7271
    %v8797 = vunpack.c.h.b16 %v7271
    %v8798 = vunpack.c.l.b16 %v7272
    %v8799 = vunpack.c.h.b16 %v7272
    %v8800 = vunpack.c.l.b16 %v7273
    %v8801 = vunpack.c.h.b16 %v7273
    %v8802 = vunpack.c.l.b16 %v7274
    %v8803 = vunpack.c.h.b16 %v7274
    %v8804 = vunpack.c.l.b16 %v7275
    %v8805 = vunpack.c.h.b16 %v7275
    %v8806 = vunpack.c.l.b16 %v7276
    %v8807 = vunpack.c.h.b16 %v7276
    %v8808 = vunpack.c.l.b16 %v7277
    %v8809 = vunpack.c.h.b16 %v7277
    %v8810 = vunpack.c.l.b16 %v7278
    %v8811 = vunpack.c.h.b16 %v7278
    %v8812 = vunpack.c.l.b16 %v7279
    %v8813 = vunpack.c.h.b16 %v7279
    %v8814 = vunpack.c.l.b16 %v7280
    %v8815 = vunpack.c.h.b16 %v7280
    %v8816 = vunpack.c.l.b16 %v7281
    %v8817 = vunpack.c.h.b16 %v7281
    %v8818 = vunpack.c.l.b16 %v7282
    %v8819 = vunpack.c.h.b16 %v7282
    %v8820 = vunpack.c.l.b16 %v7283
    %v8821 = vunpack.c.h.b16 %v7283
    %v8822 = vunpack.c.l.b16 %v7284
    %v8823 = vunpack.c.h.b16 %v7284
    %v8824 = vunpack.c.l.b16 %v7285
    %v8825 = vunpack.c.h.b16 %v7285
    %v8826 = vunpack.c.l.b16 %v7286
    %v8827 = vunpack.c.h.b16 %v7286
    %v8828 = vunpack.c.l.b16 %v7287
    %v8829 = vunpack.c.h.b16 %v7287
    %v8830 = vunpack.c.l.b16 %v7288
    %v8831 = vunpack.c.h.b16 %v7288
    %v8832 = vunpack.c.l.b16 %v7289
    %v8833 = vunpack.c.h.b16 %v7289
    %v8834 = vunpack.c.l.b16 %v7290
    %v8835 = vunpack.c.h.b16 %v7290
    %v8836 = vunpack.c.l.b16 %v7291
    %v8837 = vunpack.c.h.b16 %v7291
    %v8838 = vunpack.c.l.b16 %v7292
    %v8839 = vunpack.c.h.b16 %v7292
    %v8840 = vunpack.c.l.b16 %v7293
    %v8841 = vunpack.c.h.b16 %v7293
    %v8842 = vunpack.c.l.b16 %v7294
    %v8843 = vunpack.c.h.b16 %v7294
    %v8844 = vunpack.c.l.b16 %v7295
    %v8845 = vunpack.c.h.b16 %v7295
    %v8846 = vunpack.c.l.b16 %v7296
    %v8847 = vunpack.c.h.b16 %v7296
    %v8848 = vunpack.c.l.b16 %v7297
    %v8849 = vunpack.c.h.b16 %v7297
    %v8850 = vunpack.c.l.b16 %v7298
    %v8851 = vunpack.c.h.b16 %v7298
    %v8852 = vunpack.c.l.b16 %v7299
    %v8853 = vunpack.c.h.b16 %v7299
    %v8854 = vpack.c.b16 %v7838, %v7830
    %v8855 = vpack.c.b16 %v7839, %v7831
    %v8856 = vpack.c.b16 %v7840, %v7832
    %v8857 = vpack.c.b16 %v7841, %v7833
    %v8858 = vpack.c.b16 %v7842, %v7834
    %v8859 = vpack.c.b16 %v7843, %v7835
    %v8860 = vpack.c.b16 %v7844, %v7836
    %v8861 = vpack.c.b16 %v7845, %v7837
    %v8862 = vpack.c.b16 %v7854, %v7846
    %v8863 = vpack.c.b16 %v7855, %v7847
    %v8864 = vpack.c.b16 %v7856, %v7848
    %v8865 = vpack.c.b16 %v7857, %v7849
    %v8866 = vpack.c.b16 %v7858, %v7850
    %v8867 = vpack.c.b16 %v7859, %v7851
    %v8868 = vpack.c.b16 %v7860, %v7852
    %v8869 = vpack.c.b16 %v7861, %v7853
    %v8870 = vpack.c.b16 %v7870, %v7862
    %v8871 = vpack.c.b16 %v7871, %v7863
    %v8872 = vpack.c.b16 %v7872, %v7864
    %v8873 = vpack.c.b16 %v7873, %v7865
    %v8874 = vpack.c.b16 %v7874, %v7866
    %v8875 = vpack.c.b16 %v7875, %v7867
    %v8876 = vpack.c.b16 %v7876, %v7868
    %v8877 = vpack.c.b16 %v7877, %v7869
    %v8878 = vpack.c.b16 %v7886, %v7878
    %v8879 = vpack.c.b16 %v7887, %v7879
    %v8880 = vpack.c.b16 %v7888, %v7880
    %v8881 = vpack.c.b16 %v7889, %v7881
    %v8882 = vpack.c.b16 %v7890, %v7882
    %v8883 = vpack.c.b16 %v7891, %v7883
    %v8884 = vpack.c.b16 %v7892, %v7884
    %v8885 = vpack.c.b16 %v7893, %v7885
    %v8886 = vpack.c.b16 %v7902, %v7894
    %v8887 = vpack.c.b16 %v7903, %v7895
    %v8888 = vpack.c.b16 %v7904, %v7896
    %v8889 = vpack.c.b16 %v7905, %v7897
    %v8890 = vpack.c.b16 %v7906, %v7898
    %v8891 = vpack.c.b16 %v7907, %v7899
    %v8892 = vpack.c.b16 %v7908, %v7900
    %v8893 = vpack.c.b16 %v7909, %v7901
    %v8894 = vpack.c.b16 %v7918, %v7910
    %v8895 = vpack.c.b16 %v7919, %v7911
    %v8896 = vpack.c.b16 %v7920, %v7912
    %v8897 = vpack.c.b16 %v7921, %v7913
    %v8898 = vpack.c.b16 %v7922, %v7914
    %v8899 = vpack.c.b16 %v7923, %v7915
    %v8900 = vpack.c.b16 %v7924, %v7916
    %v8901 = vpack.c.b16 %v7925, %v7917
    %v8902 = vpack.c.b16 %v7934, %v7926
    %v8903 = vpack.c.b16 %v7935, %v7927
    %v8904 = vpack.c.b16 %v7936, %v7928
    %v8905 = vpack.c.b16 %v7937, %v7929
    %v8906 = vpack.c.b16 %v7938, %v7930
    %v8907 = vpack.c.b16 %v7939, %v7931
    %v8908 = vpack.c.b16 %v7940, %v7932
    %v8909 = vpack.c.b16 %v7941, %v7933
    %v8910 = vpack.c.b16 %v7950, %v7942
    %v8911 = vpack.c.b16 %v7951, %v7943
    %v8912 = vpack.c.b16 %v7952, %v7944
    %v8913 = vpack.c.b16 %v7953, %v7945
    %v8914 = vpack.c.b16 %v7954, %v7946
    %v8915 = vpack.c.b16 %v7955, %v7947
    %v8916 = vpack.c.b16 %v7956, %v7948
    %v8917 = vpack.c.b16 %v7957, %v7949
    %v8918 = vpack.c.b16 %v7966, %v7958
    %v8919 = vpack.c.b16 %v7967, %v7959
    %v8920 = vpack.c.b16 %v7968, %v7960
    %v8921 = vpack.c.b16 %v7969, %v7961
    %v8922 = vpack.c.b16 %v7970, %v7962
    %v8923 = vpack.c.b16 %v7971, %v7963
    %v8924 = vpack.c.b16 %v7972, %v7964
    %v8925 = vpack.c.b16 %v7973, %v7965
    %v8926 = vpack.c.b16 %v7982, %v7974
    %v8927 = vpack.c.b16 %v7983, %v7975
    %v8928 = vpack.c.b16 %v7984, %v7976
    %v8929 = vpack.c.b16 %v7985, %v7977
    %v8930 = vpack.c.b16 %v7986, %v7978
    %v8931 = vpack.c.b16 %v7987, %v7979
    %v8932 = vpack.c.b16 %v7988, %v7980
    %v8933 = vpack.c.b16 %v7989, %v7981
    %v8934 = vpack.c.b16 %v7998, %v7990
    %v8935 = vpack.c.b16 %v7999, %v7991
    %v8936 = vpack.c.b16 %v8000, %v7992
    %v8937 = vpack.c.b16 %v8001, %v7993
    %v8938 = vpack.c.b16 %v8002, %v7994
    %v8939 = vpack.c.b16 %v8003, %v7995
    %v8940 = vpack.c.b16 %v8004, %v7996
    %v8941 = vpack.c.b16 %v8005, %v7997
    %v8942 = vpack.c.b16 %v8014, %v8006
    %v8943 = vpack.c.b16 %v8015, %v8007
    %v8944 = vpack.c.b16 %v8016, %v8008
    %v8945 = vpack.c.b16 %v8017, %v8009
    %v8946 = vpack.c.b16 %v8018, %v8010
    %v8947 = vpack.c.b16 %v8019, %v8011
    %v8948 = vpack.c.b16 %v8020, %v8012
    %v8949 = vpack.c.b16 %v8021, %v8013
    %v8950 = vpack.c.b16 %v8030, %v8022
    %v8951 = vpack.c.b16 %v8031, %v8023
    %v8952 = vpack.c.b16 %v8032, %v8024
    %v8953 = vpack.c.b16 %v8033, %v8025
    %v8954 = vpack.c.b16 %v8034, %v8026
    %v8955 = vpack.c.b16 %v8035, %v8027
    %v8956 = vpack.c.b16 %v8036, %v8028
    %v8957 = vpack.c.b16 %v8037, %v8029
    %v8958 = vpack.c.b16 %v8046, %v8038
    %v8959 = vpack.c.b16 %v8047, %v8039
    %v8960 = vpack.c.b16 %v8048, %v8040
    %v8961 = vpack.c.b16 %v8049, %v8041
    %v8962 = vpack.c.b16 %v8050, %v8042
    %v8963 = vpack.c.b16 %v8051, %v8043
    %v8964 = vpack.c.b16 %v8052, %v8044
    %v8965 = vpack.c.b16 %v8053, %v8045
    %v8966 = vpack.c.b16 %v8062, %v8054
    %v8967 = vpack.c.b16 %v8063, %v8055
    %v8968 = vpack.c.b16 %v8064, %v8056
    %v8969 = vpack.c.b16 %v8065, %v8057
    %v8970 = vpack.c.b16 %v8066, %v8058
    %v8971 = vpack.c.b16 %v8067, %v8059
    %v8972 = vpack.c.b16 %v8068, %v8060
    %v8973 = vpack.c.b16 %v8069, %v8061
    %v8974 = vpack.c.b16 %v8078, %v8070
    %v8975 = vpack.c.b16 %v8079, %v8071
    %v8976 = vpack.c.b16 %v8080, %v8072
    %v8977 = vpack.c.b16 %v8081, %v8073
    %v8978 = vpack.c.b16 %v8082, %v8074
    %v8979 = vpack.c.b16 %v8083, %v8075
    %v8980 = vpack.c.b16 %v8084, %v8076
    %v8981 = vpack.c.b16 %v8085, %v8077
    %v8982 = vpack.c.b16 %v8094, %v8086
    %v8983 = vpack.c.b16 %v8095, %v8087
    %v8984 = vpack.c.b16 %v8096, %v8088
    %v8985 = vpack.c.b16 %v8097, %v8089
    %v8986 = vpack.c.b16 %v8098, %v8090
    %v8987 = vpack.c.b16 %v8099, %v8091
    %v8988 = vpack.c.b16 %v8100, %v8092
    %v8989 = vpack.c.b16 %v8101, %v8093
    %v8990 = vpack.c.b16 %v8110, %v8102
    %v8991 = vpack.c.b16 %v8111, %v8103
    %v8992 = vpack.c.b16 %v8112, %v8104
    %v8993 = vpack.c.b16 %v8113, %v8105
    %v8994 = vpack.c.b16 %v8114, %v8106
    %v8995 = vpack.c.b16 %v8115, %v8107
    %v8996 = vpack.c.b16 %v8116, %v8108
    %v8997 = vpack.c.b16 %v8117, %v8109
    %v8998 = vpack.c.b16 %v8126, %v8118
    %v8999 = vpack.c.b16 %v8127, %v8119
    %v9000 = vpack.c.b16 %v8128, %v8120
    %v9001 = vpack.c.b16 %v8129, %v8121
    %v9002 = vpack.c.b16 %v8130, %v8122
    %v9003 = vpack.c.b16 %v8131, %v8123
    %v9004 = vpack.c.b16 %v8132, %v8124
    %v9005 = vpack.c.b16 %v8133, %v8125
    %v9006 = vpack.c.b16 %v8142, %v8134
    %v9007 = vpack.c.b16 %v8143, %v8135
    %v9008 = vpack.c.b16 %v8144, %v8136
    %v9009 = vpack.c.b16 %v8145, %v8137
    %v9010 = vpack.c.b16 %v8146, %v8138
    %v9011 = vpack.c.b16 %v8147, %v8139
    %v9012 = vpack.c.b16 %v8148, %v8140
    %v9013 = vpack.c.b16 %v8149, %v8141
    %v9014 = vpack.c.b16 %v8158, %v8150
    %v9015 = vpack.c.b16 %v8159, %v8151
    %v9016 = vpack.c.b16 %v8160, %v8152
    %v9017 = vpack.c.b16 %v8161, %v8153
    %v9018 = vpack.c.b16 %v8162, %v8154
    %v9019 = vpack.c.b16 %v8163, %v8155
    %v9020 = vpack.c.b16 %v8164, %v8156
    %v9021 = vpack.c.b16 %v8165, %v8157
    %v9022 = vpack.c.b16 %v8174, %v8166
    %v9023 = vpack.c.b16 %v8175, %v8167
    %v9024 = vpack.c.b16 %v8176, %v8168
    %v9025 = vpack.c.b16 %v8177, %v8169
    %v9026 = vpack.c.b16 %v8178, %v8170
    %v9027 = vpack.c.b16 %v8179, %v8171
    %v9028 = vpack.c.b16 %v8180, %v8172
    %v9029 = vpack.c.b16 %v8181, %v8173
    %v9030 = vpack.c.b16 %v8190, %v8182
    %v9031 = vpack.c.b16 %v8191, %v8183
    %v9032 = vpack.c.b16 %v8192, %v8184
    %v9033 = vpack.c.b16 %v8193, %v8185
    %v9034 = vpack.c.b16 %v8194, %v8186
    %v9035 = vpack.c.b16 %v8195, %v8187
    %v9036 = vpack.c.b16 %v8196, %v8188
    %v9037 = vpack.c.b16 %v8197, %v8189
    %v9038 = vpack.c.b16 %v8206, %v8198
    %v9039 = vpack.c.b16 %v8207, %v8199
    %v9040 = vpack.c.b16 %v8208, %v8200
    %v9041 = vpack.c.b16 %v8209, %v8201
    %v9042 = vpack.c.b16 %v8210, %v8202
    %v9043 = vpack.c.b16 %v8211, %v8203
    %v9044 = vpack.c.b16 %v8212, %v8204
    %v9045 = vpack.c.b16 %v8213, %v8205
    %v9046 = vpack.c.b16 %v8222, %v8214
    %v9047 = vpack.c.b16 %v8223, %v8215
    %v9048 = vpack.c.b16 %v8224, %v8216
    %v9049 = vpack.c.b16 %v8225, %v8217
    %v9050 = vpack.c.b16 %v8226, %v8218
    %v9051 = vpack.c.b16 %v8227, %v8219
    %v9052 = vpack.c.b16 %v8228, %v8220
    %v9053 = vpack.c.b16 %v8229, %v8221
    %v9054 = vpack.c.b16 %v8238, %v8230
    %v9055 = vpack.c.b16 %v8239, %v8231
    %v9056 = vpack.c.b16 %v8240, %v8232
    %v9057 = vpack.c.b16 %v8241, %v8233
    %v9058 = vpack.c.b16 %v8242, %v8234
    %v9059 = vpack.c.b16 %v8243, %v8235
    %v9060 = vpack.c.b16 %v8244, %v8236
    %v9061 = vpack.c.b16 %v8245, %v8237
    %v9062 = vpack.c.b16 %v8254, %v8246
    %v9063 = vpack.c.b16 %v8255, %v8247
    %v9064 = vpack.c.b16 %v8256, %v8248
    %v9065 = vpack.c.b16 %v8257, %v8249
    %v9066 = vpack.c.b16 %v8258, %v8250
    %v9067 = vpack.c.b16 %v8259, %v8251
    %v9068 = vpack.c.b16 %v8260, %v8252
    %v9069 = vpack.c.b16 %v8261, %v8253
    %v9070 = vpack.c.b16 %v8270, %v8262
    %v9071 = vpack.c.b16 %v8271, %v8263
    %v9072 = vpack.c.b16 %v8272, %v8264
    %v9073 = vpack.c.b16 %v8273, %v8265
    %v9074 = vpack.c.b16 %v8274, %v8266
    %v9075 = vpack.c.b16 %v8275, %v8267
    %v9076 = vpack.c.b16 %v8276, %v8268
    %v9077 = vpack.c.b16 %v8277, %v8269
    %v9078 = vpack.c.b16 %v8286, %v8278
    %v9079 = vpack.c.b16 %v8287, %v8279
    %v9080 = vpack.c.b16 %v8288, %v8280
    %v9081 = vpack.c.b16 %v8289, %v8281
    %v9082 = vpack.c.b16 %v8290, %v8282
    %v9083 = vpack.c.b16 %v8291, %v8283
    %v9084 = vpack.c.b16 %v8292, %v8284
    %v9085 = vpack.c.b16 %v8293, %v8285
    %v9086 = vpack.c.b16 %v8302, %v8294
    %v9087 = vpack.c.b16 %v8303, %v8295
    %v9088 = vpack.c.b16 %v8304, %v8296
    %v9089 = vpack.c.b16 %v8305, %v8297
    %v9090 = vpack.c.b16 %v8306, %v8298
    %v9091 = vpack.c.b16 %v8307, %v8299
    %v9092 = vpack.c.b16 %v8308, %v8300
    %v9093 = vpack.c.b16 %v8309, %v8301
    %v9094 = vpack.c.b16 %v8318, %v8310
    %v9095 = vpack.c.b16 %v8319, %v8311
    %v9096 = vpack.c.b16 %v8320, %v8312
    %v9097 = vpack.c.b16 %v8321, %v8313
    %v9098 = vpack.c.b16 %v8322, %v8314
    %v9099 = vpack.c.b16 %v8323, %v8315
    %v9100 = vpack.c.b16 %v8324, %v8316
    %v9101 = vpack.c.b16 %v8325, %v8317
    %v9102 = vpack.c.b16 %v8334, %v8326
    %v9103 = vpack.c.b16 %v8335, %v8327
    %v9104 = vpack.c.b16 %v8336, %v8328
    %v9105 = vpack.c.b16 %v8337, %v8329
    %v9106 = vpack.c.b16 %v8338, %v8330
    %v9107 = vpack.c.b16 %v8339, %v8331
    %v9108 = vpack.c.b16 %v8340, %v8332
    %v9109 = vpack.c.b16 %v8341, %v8333
    %v9110 = vpack.c.b16 %v8350, %v8342
    %v9111 = vpack.c.b16 %v8351, %v8343
    %v9112 = vpack.c.b16 %v8352, %v8344
    %v9113 = vpack.c.b16 %v8353, %v8345
    %v9114 = vpack.c.b16 %v8354, %v8346
    %v9115 = vpack.c.b16 %v8355, %v8347
    %v9116 = vpack.c.b16 %v8356, %v8348
    %v9117 = vpack.c.b16 %v8357, %v8349
    %v9118 = vpack.c.b16 %v8366, %v8358
    %v9119 = vpack.c.b16 %v8367, %v8359
    %v9120 = vpack.c.b16 %v8368, %v8360
    %v9121 = vpack.c.b16 %v8369, %v8361
    %v9122 = vpack.c.b16 %v8370, %v8362
    %v9123 = vpack.c.b16 %v8371, %v8363
    %v9124 = vpack.c.b16 %v8372, %v8364
    %v9125 = vpack.c.b16 %v8373, %v8365
    %v9126 = vpack.c.b16 %v8382, %v8374
    %v9127 = vpack.c.b16 %v8383, %v8375
    %v9128 = vpack.c.b16 %v8384, %v8376
    %v9129 = vpack.c.b16 %v8385, %v8377
    %v9130 = vpack.c.b16 %v8386, %v8378
    %v9131 = vpack.c.b16 %v8387, %v8379
    %v9132 = vpack.c.b16 %v8388, %v8380
    %v9133 = vpack.c.b16 %v8389, %v8381
    %v9134 = vpack.c.b16 %v8398, %v8390
    %v9135 = vpack.c.b16 %v8399, %v8391
    %v9136 = vpack.c.b16 %v8400, %v8392
    %v9137 = vpack.c.b16 %v8401, %v8393
    %v9138 = vpack.c.b16 %v8402, %v8394
    %v9139 = vpack.c.b16 %v8403, %v8395
    %v9140 = vpack.c.b16 %v8404, %v8396
    %v9141 = vpack.c.b16 %v8405, %v8397
    %v9142 = vpack.c.b16 %v8414, %v8406
    %v9143 = vpack.c.b16 %v8415, %v8407
    %v9144 = vpack.c.b16 %v8416, %v8408
    %v9145 = vpack.c.b16 %v8417, %v8409
    %v9146 = vpack.c.b16 %v8418, %v8410
    %v9147 = vpack.c.b16 %v8419, %v8411
    %v9148 = vpack.c.b16 %v8420, %v8412
    %v9149 = vpack.c.b16 %v8421, %v8413
    %v9150 = vpack.c.b16 %v8430, %v8422
    %v9151 = vpack.c.b16 %v8431, %v8423
    %v9152 = vpack.c.b16 %v8432, %v8424
    %v9153 = vpack.c.b16 %v8433, %v8425
    %v9154 = vpack.c.b16 %v8434, %v8426
    %v9155 = vpack.c.b16 %v8435, %v8427
    %v9156 = vpack.c.b16 %v8436, %v8428
    %v9157 = vpack.c.b16 %v8437, %v8429
    %v9158 = vpack.c.b16 %v8446, %v8438
    %v9159 = vpack.c.b16 %v8447, %v8439
    %v9160 = vpack.c.b16 %v8448, %v8440
    %v9161 = vpack.c.b16 %v8449, %v8441
    %v9162 = vpack.c.b16 %v8450, %v8442
    %v9163 = vpack.c.b16 %v8451, %v8443
    %v9164 = vpack.c.b16 %v8452, %v8444
    %v9165 = vpack.c.b16 %v8453, %v8445
    %v9166 = vpack.c.b16 %v8462, %v8454
    %v9167 = vpack.c.b16 %v8463, %v8455
    %v9168 = vpack.c.b16 %v8464, %v8456
    %v9169 = vpack.c.b16 %v8465, %v8457
    %v9170 = vpack.c.b16 %v8466, %v8458
    %v9171 = vpack.c.b16 %v8467, %v8459
    %v9172 = vpack.c.b16 %v8468, %v8460
    %v9173 = vpack.c.b16 %v8469, %v8461
    %v9174 = vpack.c.b16 %v8478, %v8470
    %v9175 = vpack.c.b16 %v8479, %v8471
    %v9176 = vpack.c.b16 %v8480, %v8472
    %v9177 = vpack.c.b16 %v8481, %v8473
    %v9178 = vpack.c.b16 %v8482, %v8474
    %v9179 = vpack.c.b16 %v8483, %v8475
    %v9180 = vpack.c.b16 %v8484, %v8476
    %v9181 = vpack.c.b16 %v8485, %v8477
    %v9182 = vpack.c.b16 %v8494, %v8486
    %v9183 = vpack.c.b16 %v8495, %v8487
    %v9184 = vpack.c.b16 %v8496, %v8488
    %v9185 = vpack.c.b16 %v8497, %v8489
    %v9186 = vpack.c.b16 %v8498, %v8490
    %v9187 = vpack.c.b16 %v8499, %v8491
    %v9188 = vpack.c.b16 %v8500, %v8492
    %v9189 = vpack.c.b16 %v8501, %v8493
    %v9190 = vpack.c.b16 %v8510, %v8502
    %v9191 = vpack.c.b16 %v8511, %v8503
    %v9192 = vpack.c.b16 %v8512, %v8504
    %v9193 = vpack.c.b16 %v8513, %v8505
    %v9194 = vpack.c.b16 %v8514, %v8506
    %v9195 = vpack.c.b16 %v8515, %v8507
    %v9196 = vpack.c.b16 %v8516, %v8508
    %v9197 = vpack.c.b16 %v8517, %v8509
    %v9198 = vpack.c.b16 %v8526, %v8518
    %v9199 = vpack.c.b16 %v8527, %v8519
    %v9200 = vpack.c.b16 %v8528, %v8520
    %v9201 = vpack.c.b16 %v8529, %v8521
    %v9202 = vpack.c.b16 %v8530, %v8522
    %v9203 = vpack.c.b16 %v8531, %v8523
    %v9204 = vpack.c.b16 %v8532, %v8524
    %v9205 = vpack.c.b16 %v8533, %v8525
    %v9206 = vpack.c.b16 %v8542, %v8534
    %v9207 = vpack.c.b16 %v8543, %v8535
    %v9208 = vpack.c.b16 %v8544, %v8536
    %v9209 = vpack.c.b16 %v8545, %v8537
    %v9210 = vpack.c.b16 %v8546, %v8538
    %v9211 = vpack.c.b16 %v8547, %v8539
    %v9212 = vpack.c.b16 %v8548, %v8540
    %v9213 = vpack.c.b16 %v8549, %v8541
    %v9214 = vpack.c.b16 %v8558, %v8550
    %v9215 = vpack.c.b16 %v8559, %v8551
    %v9216 = vpack.c.b16 %v8560, %v8552
    %v9217 = vpack.c.b16 %v8561, %v8553
    %v9218 = vpack.c.b16 %v8562, %v8554
    %v9219 = vpack.c.b16 %v8563, %v8555
    %v9220 = vpack.c.b16 %v8564, %v8556
    %v9221 = vpack.c.b16 %v8565, %v8557
    %v9222 = vpack.c.b16 %v8574, %v8566
    %v9223 = vpack.c.b16 %v8575, %v8567
    %v9224 = vpack.c.b16 %v8576, %v8568
    %v9225 = vpack.c.b16 %v8577, %v8569
    %v9226 = vpack.c.b16 %v8578, %v8570
    %v9227 = vpack.c.b16 %v8579, %v8571
    %v9228 = vpack.c.b16 %v8580, %v8572
    %v9229 = vpack.c.b16 %v8581, %v8573
    %v9230 = vpack.c.b16 %v8590, %v8582
    %v9231 = vpack.c.b16 %v8591, %v8583
    %v9232 = vpack.c.b16 %v8592, %v8584
    %v9233 = vpack.c.b16 %v8593, %v8585
    %v9234 = vpack.c.b16 %v8594, %v8586
    %v9235 = vpack.c.b16 %v8595, %v8587
    %v9236 = vpack.c.b16 %v8596, %v8588
    %v9237 = vpack.c.b16 %v8597, %v8589
    %v9238 = vpack.c.b16 %v8606, %v8598
    %v9239 = vpack.c.b16 %v8607, %v8599
    %v9240 = vpack.c.b16 %v8608, %v8600
    %v9241 = vpack.c.b16 %v8609, %v8601
    %v9242 = vpack.c.b16 %v8610, %v8602
    %v9243 = vpack.c.b16 %v8611, %v8603
    %v9244 = vpack.c.b16 %v8612, %v8604
    %v9245 = vpack.c.b16 %v8613, %v8605
    %v9246 = vpack.c.b16 %v8622, %v8614
    %v9247 = vpack.c.b16 %v8623, %v8615
    %v9248 = vpack.c.b16 %v8624, %v8616
    %v9249 = vpack.c.b16 %v8625, %v8617
    %v9250 = vpack.c.b16 %v8626, %v8618
    %v9251 = vpack.c.b16 %v8627, %v8619
    %v9252 = vpack.c.b16 %v8628, %v8620
    %v9253 = vpack.c.b16 %v8629, %v8621
    %v9254 = vpack.c.b16 %v8638, %v8630
    %v9255 = vpack.c.b16 %v8639, %v8631
    %v9256 = vpack.c.b16 %v8640, %v8632
    %v9257 = vpack.c.b16 %v8641, %v8633
    %v9258 = vpack.c.b16 %v8642, %v8634
    %v9259 = vpack.c.b16 %v8643, %v8635
    %v9260 = vpack.c.b16 %v8644, %v8636
    %v9261 = vpack.c.b16 %v8645, %v8637
    %v9262 = vpack.c.b16 %v8654, %v8646
    %v9263 = vpack.c.b16 %v8655, %v8647
    %v9264 = vpack.c.b16 %v8656, %v8648
    %v9265 = vpack.c.b16 %v8657, %v8649
    %v9266 = vpack.c.b16 %v8658, %v8650
    %v9267 = vpack.c.b16 %v8659, %v8651
    %v9268 = vpack.c.b16 %v8660, %v8652
    %v9269 = vpack.c.b16 %v8661, %v8653
    %v9270 = vpack.c.b16 %v8670, %v8662
    %v9271 = vpack.c.b16 %v8671, %v8663
    %v9272 = vpack.c.b16 %v8672, %v8664
    %v9273 = vpack.c.b16 %v8673, %v8665
    %v9274 = vpack.c.b16 %v8674, %v8666
    %v9275 = vpack.c.b16 %v8675, %v8667
    %v9276 = vpack.c.b16 %v8676, %v8668
    %v9277 = vpack.c.b16 %v8677, %v8669
    %v9278 = vpack.c.b16 %v8686, %v8678
    %v9279 = vpack.c.b16 %v8687, %v8679
    %v9280 = vpack.c.b16 %v8688, %v8680
    %v9281 = vpack.c.b16 %v8689, %v8681
    %v9282 = vpack.c.b16 %v8690, %v8682
    %v9283 = vpack.c.b16 %v8691, %v8683
    %v9284 = vpack.c.b16 %v8692, %v8684
    %v9285 = vpack.c.b16 %v8693, %v8685
    %v9286 = vpack.c.b16 %v8702, %v8694
    %v9287 = vpack.c.b16 %v8703, %v8695
    %v9288 = vpack.c.b16 %v8704, %v8696
    %v9289 = vpack.c.b16 %v8705, %v8697
    %v9290 = vpack.c.b16 %v8706, %v8698
    %v9291 = vpack.c.b16 %v8707, %v8699
    %v9292 = vpack.c.b16 %v8708, %v8700
    %v9293 = vpack.c.b16 %v8709, %v8701
    %v9294 = vpack.c.b16 %v8718, %v8710
    %v9295 = vpack.c.b16 %v8719, %v8711
    %v9296 = vpack.c.b16 %v8720, %v8712
    %v9297 = vpack.c.b16 %v8721, %v8713
    %v9298 = vpack.c.b16 %v8722, %v8714
    %v9299 = vpack.c.b16 %v8723, %v8715
    %v9300 = vpack.c.b16 %v8724, %v8716
    %v9301 = vpack.c.b16 %v8725, %v8717
    %v9302 = vpack.c.b16 %v8734, %v8726
    %v9303 = vpack.c.b16 %v8735, %v8727
    %v9304 = vpack.c.b16 %v8736, %v8728
    %v9305 = vpack.c.b16 %v8737, %v8729
    %v9306 = vpack.c.b16 %v8738, %v8730
    %v9307 = vpack.c.b16 %v8739, %v8731
    %v9308 = vpack.c.b16 %v8740, %v8732
    %v9309 = vpack.c.b16 %v8741, %v8733
    %v9310 = vpack.c.b16 %v8750, %v8742
    %v9311 = vpack.c.b16 %v8751, %v8743
    %v9312 = vpack.c.b16 %v8752, %v8744
    %v9313 = vpack.c.b16 %v8753, %v8745
    %v9314 = vpack.c.b16 %v8754, %v8746
    %v9315 = vpack.c.b16 %v8755, %v8747
    %v9316 = vpack.c.b16 %v8756, %v8748
    %v9317 = vpack.c.b16 %v8757, %v8749
    %v9318 = vpack.c.b16 %v8766, %v8758
    %v9319 = vpack.c.b16 %v8767, %v8759
    %v9320 = vpack.c.b16 %v8768, %v8760
    %v9321 = vpack.c.b16 %v8769, %v8761
    %v9322 = vpack.c.b16 %v8770, %v8762
    %v9323 = vpack.c.b16 %v8771, %v8763
    %v9324 = vpack.c.b16 %v8772, %v8764
    %v9325 = vpack.c.b16 %v8773, %v8765
    %v9326 = vpack.c.b16 %v8782, %v8774
    %v9327 = vpack.c.b16 %v8783, %v8775
    %v9328 = vpack.c.b16 %v8784, %v8776
    %v9329 = vpack.c.b16 %v8785, %v8777
    %v9330 = vpack.c.b16 %v8786, %v8778
    %v9331 = vpack.c.b16 %v8787, %v8779
    %v9332 = vpack.c.b16 %v8788, %v8780
    %v9333 = vpack.c.b16 %v8789, %v8781
    %v9334 = vpack.c.b16 %v8798, %v8790
    %v9335 = vpack.c.b16 %v8799, %v8791
    %v9336 = vpack.c.b16 %v8800, %v8792
    %v9337 = vpack.c.b16 %v8801, %v8793
    %v9338 = vpack.c.b16 %v8802, %v8794
    %v9339 = vpack.c.b16 %v8803, %v8795
    %v9340 = vpack.c.b16 %v8804, %v8796
    %v9341 = vpack.c.b16 %v8805, %v8797
    %v9342 = vpack.c.b16 %v8814, %v8806
    %v9343 = vpack.c.b16 %v8815, %v8807
    %v9344 = vpack.c.b16 %v8816, %v8808
    %v9345 = vpack.c.b16 %v8817, %v8809
    %v9346 = vpack.c.b16 %v8818, %v8810
    %v9347 = vpack.c.b16 %v8819, %v8811
    %v9348 = vpack.c.b16 %v8820, %v8812
    %v9349 = vpack.c.b16 %v8821, %v8813
    %v9350 = vpack.c.b16 %v8830, %v8822
    %v9351 = vpack.c.b16 %v8831, %v8823
    %v9352 = vpack.c.b16 %v8832, %v8824
    %v9353 = vpack.c.b16 %v8833, %v8825
    %v9354 = vpack.c.b16 %v8834, %v8826
    %v9355 = vpack.c.b16 %v8835, %v8827
    %v9356 = vpack.c.b16 %v8836, %v8828
    %v9357 = vpack.c.b16 %v8837, %v8829
    %v9358 = vpack.c.b16 %v8846, %v8838
    %v9359 = vpack.c.b16 %v8847, %v8839
    %v9360 = vpack.c.b16 %v8848, %v8840
    %v9361 = vpack.c.b16 %v8849, %v8841
    %v9362 = vpack.c.b16 %v8850, %v8842
    %v9363 = vpack.c.b16 %v8851, %v8843
    %v9364 = vpack.c.b16 %v8852, %v8844
    %v9365 = vpack.c.b16 %v8853, %v8845
    %9878 = vmatpush.bf16.msra.mxu0 %v8910
    %9879 = vmatpush.bf16.msra.mxu0 %v8902
    %9880 = vmatpush.bf16.msra.mxu0 %v8894
    %9881 = vmatpush.bf16.msra.mxu0 %v8886
    %9882 = vmatpush.bf16.msra.mxu0 %v8878
    %9883 = vmatpush.bf16.msra.mxu0 %v8870
    %9884 = vmatpush.bf16.msra.mxu0 %v8862
    %9885 = vmatpush.bf16.msra.mxu0 %v8854
    %9886 = vmatmul.bf16.gmra.mxu0 %v6780
    %v9887 = vpop.f32.mrf.mxu0
    %v9888 = vadd.f32 %v7302, %v9887
    %v9889 = vpop.f32.mrf.mxu0
    %9890 = vdwg.mxu0
    %9891 = vmatpush.bf16.msra.mxu0 %v8974
    %9892 = vmatpush.bf16.msra.mxu0 %v8966
    %9893 = vmatpush.bf16.msra.mxu0 %v8958
    %9894 = vmatpush.bf16.msra.mxu0 %v8950
    %9895 = vmatpush.bf16.msra.mxu0 %v8942
    %9896 = vmatpush.bf16.msra.mxu0 %v8934
    %9897 = vmatpush.bf16.msra.mxu0 %v8926
    %9898 = vmatpush.bf16.msra.mxu0 %v8918
    %9899 = vmatmul.bf16.gmra.mxu0 %v6781
    %v9900 = vpop.f32.mrf.mxu0
    %v9901 = vadd.f32 %v9888, %v9900
    %v9902 = vpop.f32.mrf.mxu0
    %9903 = vdwg.mxu0
    %9904 = vmatpush.bf16.msra.mxu0 %v9038
    %9905 = vmatpush.bf16.msra.mxu0 %v9030
    %9906 = vmatpush.bf16.msra.mxu0 %v9022
    %9907 = vmatpush.bf16.msra.mxu0 %v9014
    %9908 = vmatpush.bf16.msra.mxu0 %v9006
    %9909 = vmatpush.bf16.msra.mxu0 %v8998
    %9910 = vmatpush.bf16.msra.mxu0 %v8990
    %9911 = vmatpush.bf16.msra.mxu0 %v8982
    %9912 = vmatmul.bf16.gmra.mxu0 %v6782
    %v9913 = vpop.f32.mrf.mxu0
    %v9914 = vadd.f32 %v9901, %v9913
    %v9915 = vpop.f32.mrf.mxu0
    %9916 = vdwg.mxu0
    %9917 = vmatpush.bf16.msra.mxu0 %v9102
    %9918 = vmatpush.bf16.msra.mxu0 %v9094
    %9919 = vmatpush.bf16.msra.mxu0 %v9086
    %9920 = vmatpush.bf16.msra.mxu0 %v9078
    %9921 = vmatpush.bf16.msra.mxu0 %v9070
    %9922 = vmatpush.bf16.msra.mxu0 %v9062
    %9923 = vmatpush.bf16.msra.mxu0 %v9054
    %9924 = vmatpush.bf16.msra.mxu0 %v9046
    %9925 = vmatmul.bf16.gmra.mxu0 %v6783
    %v9926 = vpop.f32.mrf.mxu0
    %v9927 = vadd.f32 %v9914, %v9926
    %v9928 = vpop.f32.mrf.mxu0
    %9929 = vdwg.mxu0
    %9930 = vmatpush.bf16.msra.mxu0 %v9166
    %9931 = vmatpush.bf16.msra.mxu0 %v9158
    %9932 = vmatpush.bf16.msra.mxu0 %v9150
    %9933 = vmatpush.bf16.msra.mxu0 %v9142
    %9934 = vmatpush.bf16.msra.mxu0 %v9134
    %9935 = vmatpush.bf16.msra.mxu0 %v9126
    %9936 = vmatpush.bf16.msra.mxu0 %v9118
    %9937 = vmatpush.bf16.msra.mxu0 %v9110
    %9938 = vmatmul.bf16.gmra.mxu0 %v6784
    %v9939 = vpop.f32.mrf.mxu0
    %v9940 = vadd.f32 %v9927, %v9939
    %v9941 = vpop.f32.mrf.mxu0
    %9942 = vdwg.mxu0
    %9943 = vmatpush.bf16.msra.mxu0 %v9230
    %9944 = vmatpush.bf16.msra.mxu0 %v9222
    %9945 = vmatpush.bf16.msra.mxu0 %v9214
    %9946 = vmatpush.bf16.msra.mxu0 %v9206
    %9947 = vmatpush.bf16.msra.mxu0 %v9198
    %9948 = vmatpush.bf16.msra.mxu0 %v9190
    %9949 = vmatpush.bf16.msra.mxu0 %v9182
    %9950 = vmatpush.bf16.msra.mxu0 %v9174
    %9951 = vmatmul.bf16.gmra.mxu0 %v6785
    %v9952 = vpop.f32.mrf.mxu0
    %v9953 = vadd.f32 %v9940, %v9952
    %v9954 = vpop.f32.mrf.mxu0
    %9955 = vdwg.mxu0
    %9956 = vmatpush.bf16.msra.mxu0 %v9294
    %9957 = vmatpush.bf16.msra.mxu0 %v9286
    %9958 = vmatpush.bf16.msra.mxu0 %v9278
    %9959 = vmatpush.bf16.msra.mxu0 %v9270
    %9960 = vmatpush.bf16.msra.mxu0 %v9262
    %9961 = vmatpush.bf16.msra.mxu0 %v9254
    %9962 = vmatpush.bf16.msra.mxu0 %v9246
    %9963 = vmatpush.bf16.msra.mxu0 %v9238
    %9964 = vmatmul.bf16.gmra.mxu0 %v6786
    %v9965 = vpop.f32.mrf.mxu0
    %v9966 = vadd.f32 %v9953, %v9965
    %v9967 = vpop.f32.mrf.mxu0
    %9968 = vdwg.mxu0
    %9969 = vmatpush.bf16.msra.mxu0 %v9358
    %9970 = vmatpush.bf16.msra.mxu0 %v9350
    %9971 = vmatpush.bf16.msra.mxu0 %v9342
    %9972 = vmatpush.bf16.msra.mxu0 %v9334
    %9973 = vmatpush.bf16.msra.mxu0 %v9326
    %9974 = vmatpush.bf16.msra.mxu0 %v9318
    %9975 = vmatpush.bf16.msra.mxu0 %v9310
    %9976 = vmatpush.bf16.msra.mxu0 %v9302
    %9977 = vmatmul.bf16.gmra.mxu0 %v6787
    %v9978 = vpop.f32.mrf.mxu0
    %v9979 = vadd.f32 %v9966, %v9978
    %v9980 = vpop.f32.mrf.mxu0
    %9981 = vdwg.mxu0
    %9982 = vmatpush.bf16.msra.mxu0 %v8911
    %9983 = vmatpush.bf16.msra.mxu0 %v8903
    %9984 = vmatpush.bf16.msra.mxu0 %v8895
    %9985 = vmatpush.bf16.msra.mxu0 %v8887
    %9986 = vmatpush.bf16.msra.mxu0 %v8879
    %9987 = vmatpush.bf16.msra.mxu0 %v8871
    %9988 = vmatpush.bf16.msra.mxu0 %v8863
    %9989 = vmatpush.bf16.msra.mxu0 %v8855
    %9990 = vmatmul.bf16.gmra.mxu0 %v6780
    %v9991 = vpop.f32.mrf.mxu0
    %v9992 = vadd.f32 %v7303, %v9991
    %v9993 = vpop.f32.mrf.mxu0
    %9994 = vdwg.mxu0
    %9995 = vmatpush.bf16.msra.mxu0 %v8975
    %9996 = vmatpush.bf16.msra.mxu0 %v8967
    %9997 = vmatpush.bf16.msra.mxu0 %v8959
    %9998 = vmatpush.bf16.msra.mxu0 %v8951
    %9999 = vmatpush.bf16.msra.mxu0 %v8943
    %10000 = vmatpush.bf16.msra.mxu0 %v8935
    %10001 = vmatpush.bf16.msra.mxu0 %v8927
    %10002 = vmatpush.bf16.msra.mxu0 %v8919
    %10003 = vmatmul.bf16.gmra.mxu0 %v6781
    %v10004 = vpop.f32.mrf.mxu0
    %v10005 = vadd.f32 %v9992, %v10004
    %v10006 = vpop.f32.mrf.mxu0
    %10007 = vdwg.mxu0
    %10008 = vmatpush.bf16.msra.mxu0 %v9039
    %10009 = vmatpush.bf16.msra.mxu0 %v9031
    %10010 = vmatpush.bf16.msra.mxu0 %v9023
    %10011 = vmatpush.bf16.msra.mxu0 %v9015
    %10012 = vmatpush.bf16.msra.mxu0 %v9007
    %10013 = vmatpush.bf16.msra.mxu0 %v8999
    %10014 = vmatpush.bf16.msra.mxu0 %v8991
    %10015 = vmatpush.bf16.msra.mxu0 %v8983
    %10016 = vmatmul.bf16.gmra.mxu0 %v6782
    %v10017 = vpop.f32.mrf.mxu0
    %v10018 = vadd.f32 %v10005, %v10017
    %v10019 = vpop.f32.mrf.mxu0
    %10020 = vdwg.mxu0
    %10021 = vmatpush.bf16.msra.mxu0 %v9103
    %10022 = vmatpush.bf16.msra.mxu0 %v9095
    %10023 = vmatpush.bf16.msra.mxu0 %v9087
    %10024 = vmatpush.bf16.msra.mxu0 %v9079
    %10025 = vmatpush.bf16.msra.mxu0 %v9071
    %10026 = vmatpush.bf16.msra.mxu0 %v9063
    %10027 = vmatpush.bf16.msra.mxu0 %v9055
    %10028 = vmatpush.bf16.msra.mxu0 %v9047
    %10029 = vmatmul.bf16.gmra.mxu0 %v6783
    %v10030 = vpop.f32.mrf.mxu0
    %v10031 = vadd.f32 %v10018, %v10030
    %v10032 = vpop.f32.mrf.mxu0
    %10033 = vdwg.mxu0
    %10034 = vmatpush.bf16.msra.mxu0 %v9167
    %10035 = vmatpush.bf16.msra.mxu0 %v9159
    %10036 = vmatpush.bf16.msra.mxu0 %v9151
    %10037 = vmatpush.bf16.msra.mxu0 %v9143
    %10038 = vmatpush.bf16.msra.mxu0 %v9135
    %10039 = vmatpush.bf16.msra.mxu0 %v9127
    %10040 = vmatpush.bf16.msra.mxu0 %v9119
    %10041 = vmatpush.bf16.msra.mxu0 %v9111
    %10042 = vmatmul.bf16.gmra.mxu0 %v6784
    %v10043 = vpop.f32.mrf.mxu0
    %v10044 = vadd.f32 %v10031, %v10043
    %v10045 = vpop.f32.mrf.mxu0
    %10046 = vdwg.mxu0
    %10047 = vmatpush.bf16.msra.mxu0 %v9231
    %10048 = vmatpush.bf16.msra.mxu0 %v9223
    %10049 = vmatpush.bf16.msra.mxu0 %v9215
    %10050 = vmatpush.bf16.msra.mxu0 %v9207
    %10051 = vmatpush.bf16.msra.mxu0 %v9199
    %10052 = vmatpush.bf16.msra.mxu0 %v9191
    %10053 = vmatpush.bf16.msra.mxu0 %v9183
    %10054 = vmatpush.bf16.msra.mxu0 %v9175
    %10055 = vmatmul.bf16.gmra.mxu0 %v6785
    %v10056 = vpop.f32.mrf.mxu0
    %v10057 = vadd.f32 %v10044, %v10056
    %v10058 = vpop.f32.mrf.mxu0
    %10059 = vdwg.mxu0
    %10060 = vmatpush.bf16.msra.mxu0 %v9295
    %10061 = vmatpush.bf16.msra.mxu0 %v9287
    %10062 = vmatpush.bf16.msra.mxu0 %v9279
    %10063 = vmatpush.bf16.msra.mxu0 %v9271
    %10064 = vmatpush.bf16.msra.mxu0 %v9263
    %10065 = vmatpush.bf16.msra.mxu0 %v9255
    %10066 = vmatpush.bf16.msra.mxu0 %v9247
    %10067 = vmatpush.bf16.msra.mxu0 %v9239
    %10068 = vmatmul.bf16.gmra.mxu0 %v6786
    %v10069 = vpop.f32.mrf.mxu0
    %v10070 = vadd.f32 %v10057, %v10069
    %v10071 = vpop.f32.mrf.mxu0
    %10072 = vdwg.mxu0
    %10073 = vmatpush.bf16.msra.mxu0 %v9359
    %10074 = vmatpush.bf16.msra.mxu0 %v9351
    %10075 = vmatpush.bf16.msra.mxu0 %v9343
    %10076 = vmatpush.bf16.msra.mxu0 %v9335
    %10077 = vmatpush.bf16.msra.mxu0 %v9327
    %10078 = vmatpush.bf16.msra.mxu0 %v9319
    %10079 = vmatpush.bf16.msra.mxu0 %v9311
    %10080 = vmatpush.bf16.msra.mxu0 %v9303
    %10081 = vmatmul.bf16.gmra.mxu0 %v6787
    %v10082 = vpop.f32.mrf.mxu0
    %v10083 = vadd.f32 %v10070, %v10082
    %v10084 = vpop.f32.mrf.mxu0
    %10085 = vdwg.mxu0
    %10086 = vmatpush.bf16.msra.mxu0 %v8912
    %10087 = vmatpush.bf16.msra.mxu0 %v8904
    %10088 = vmatpush.bf16.msra.mxu0 %v8896
    %10089 = vmatpush.bf16.msra.mxu0 %v8888
    %10090 = vmatpush.bf16.msra.mxu0 %v8880
    %10091 = vmatpush.bf16.msra.mxu0 %v8872
    %10092 = vmatpush.bf16.msra.mxu0 %v8864
    %10093 = vmatpush.bf16.msra.mxu0 %v8856
    %10094 = vmatmul.bf16.gmra.mxu0 %v6780
    %v10095 = vpop.f32.mrf.mxu0
    %v10096 = vadd.f32 %v7304, %v10095
    %v10097 = vpop.f32.mrf.mxu0
    %10098 = vdwg.mxu0
    %10099 = vmatpush.bf16.msra.mxu0 %v8976
    %10100 = vmatpush.bf16.msra.mxu0 %v8968
    %10101 = vmatpush.bf16.msra.mxu0 %v8960
    %10102 = vmatpush.bf16.msra.mxu0 %v8952
    %10103 = vmatpush.bf16.msra.mxu0 %v8944
    %10104 = vmatpush.bf16.msra.mxu0 %v8936
    %10105 = vmatpush.bf16.msra.mxu0 %v8928
    %10106 = vmatpush.bf16.msra.mxu0 %v8920
    %10107 = vmatmul.bf16.gmra.mxu0 %v6781
    %v10108 = vpop.f32.mrf.mxu0
    %v10109 = vadd.f32 %v10096, %v10108
    %v10110 = vpop.f32.mrf.mxu0
    %10111 = vdwg.mxu0
    %10112 = vmatpush.bf16.msra.mxu0 %v9040
    %10113 = vmatpush.bf16.msra.mxu0 %v9032
    %10114 = vmatpush.bf16.msra.mxu0 %v9024
    %10115 = vmatpush.bf16.msra.mxu0 %v9016
    %10116 = vmatpush.bf16.msra.mxu0 %v9008
    %10117 = vmatpush.bf16.msra.mxu0 %v9000
    %10118 = vmatpush.bf16.msra.mxu0 %v8992
    %10119 = vmatpush.bf16.msra.mxu0 %v8984
    %10120 = vmatmul.bf16.gmra.mxu0 %v6782
    %v10121 = vpop.f32.mrf.mxu0
    %v10122 = vadd.f32 %v10109, %v10121
    %v10123 = vpop.f32.mrf.mxu0
    %10124 = vdwg.mxu0
    %10125 = vmatpush.bf16.msra.mxu0 %v9104
    %10126 = vmatpush.bf16.msra.mxu0 %v9096
    %10127 = vmatpush.bf16.msra.mxu0 %v9088
    %10128 = vmatpush.bf16.msra.mxu0 %v9080
    %10129 = vmatpush.bf16.msra.mxu0 %v9072
    %10130 = vmatpush.bf16.msra.mxu0 %v9064
    %10131 = vmatpush.bf16.msra.mxu0 %v9056
    %10132 = vmatpush.bf16.msra.mxu0 %v9048
    %10133 = vmatmul.bf16.gmra.mxu0 %v6783
    %v10134 = vpop.f32.mrf.mxu0
    %v10135 = vadd.f32 %v10122, %v10134
    %v10136 = vpop.f32.mrf.mxu0
    %10137 = vdwg.mxu0
    %10138 = vmatpush.bf16.msra.mxu0 %v9168
    %10139 = vmatpush.bf16.msra.mxu0 %v9160
    %10140 = vmatpush.bf16.msra.mxu0 %v9152
    %10141 = vmatpush.bf16.msra.mxu0 %v9144
    %10142 = vmatpush.bf16.msra.mxu0 %v9136
    %10143 = vmatpush.bf16.msra.mxu0 %v9128
    %10144 = vmatpush.bf16.msra.mxu0 %v9120
    %10145 = vmatpush.bf16.msra.mxu0 %v9112
    %10146 = vmatmul.bf16.gmra.mxu0 %v6784
    %v10147 = vpop.f32.mrf.mxu0
    %v10148 = vadd.f32 %v10135, %v10147
    %v10149 = vpop.f32.mrf.mxu0
    %10150 = vdwg.mxu0
    %10151 = vmatpush.bf16.msra.mxu0 %v9232
    %10152 = vmatpush.bf16.msra.mxu0 %v9224
    %10153 = vmatpush.bf16.msra.mxu0 %v9216
    %10154 = vmatpush.bf16.msra.mxu0 %v9208
    %10155 = vmatpush.bf16.msra.mxu0 %v9200
    %10156 = vmatpush.bf16.msra.mxu0 %v9192
    %10157 = vmatpush.bf16.msra.mxu0 %v9184
    %10158 = vmatpush.bf16.msra.mxu0 %v9176
    %10159 = vmatmul.bf16.gmra.mxu0 %v6785
    %v10160 = vpop.f32.mrf.mxu0
    %v10161 = vadd.f32 %v10148, %v10160
    %v10162 = vpop.f32.mrf.mxu0
    %10163 = vdwg.mxu0
    %10164 = vmatpush.bf16.msra.mxu0 %v9296
    %10165 = vmatpush.bf16.msra.mxu0 %v9288
    %10166 = vmatpush.bf16.msra.mxu0 %v9280
    %10167 = vmatpush.bf16.msra.mxu0 %v9272
    %10168 = vmatpush.bf16.msra.mxu0 %v9264
    %10169 = vmatpush.bf16.msra.mxu0 %v9256
    %10170 = vmatpush.bf16.msra.mxu0 %v9248
    %10171 = vmatpush.bf16.msra.mxu0 %v9240
    %10172 = vmatmul.bf16.gmra.mxu0 %v6786
    %v10173 = vpop.f32.mrf.mxu0
    %v10174 = vadd.f32 %v10161, %v10173
    %v10175 = vpop.f32.mrf.mxu0
    %10176 = vdwg.mxu0
    %10177 = vmatpush.bf16.msra.mxu0 %v9360
    %10178 = vmatpush.bf16.msra.mxu0 %v9352
    %10179 = vmatpush.bf16.msra.mxu0 %v9344
    %10180 = vmatpush.bf16.msra.mxu0 %v9336
    %10181 = vmatpush.bf16.msra.mxu0 %v9328
    %10182 = vmatpush.bf16.msra.mxu0 %v9320
    %10183 = vmatpush.bf16.msra.mxu0 %v9312
    %10184 = vmatpush.bf16.msra.mxu0 %v9304
    %10185 = vmatmul.bf16.gmra.mxu0 %v6787
    %v10186 = vpop.f32.mrf.mxu0
    %v10187 = vadd.f32 %v10174, %v10186
    %v10188 = vpop.f32.mrf.mxu0
    %10189 = vdwg.mxu0
    %10190 = vmatpush.bf16.msra.mxu0 %v8913
    %10191 = vmatpush.bf16.msra.mxu0 %v8905
    %10192 = vmatpush.bf16.msra.mxu0 %v8897
    %10193 = vmatpush.bf16.msra.mxu0 %v8889
    %10194 = vmatpush.bf16.msra.mxu0 %v8881
    %10195 = vmatpush.bf16.msra.mxu0 %v8873
    %10196 = vmatpush.bf16.msra.mxu0 %v8865
    %10197 = vmatpush.bf16.msra.mxu0 %v8857
    %10198 = vmatmul.bf16.gmra.mxu0 %v6780
    %v10199 = vpop.f32.mrf.mxu0
    %v10200 = vadd.f32 %v7305, %v10199
    %v10201 = vpop.f32.mrf.mxu0
    %10202 = vdwg.mxu0
    %10203 = vmatpush.bf16.msra.mxu0 %v8977
    %10204 = vmatpush.bf16.msra.mxu0 %v8969
    %10205 = vmatpush.bf16.msra.mxu0 %v8961
    %10206 = vmatpush.bf16.msra.mxu0 %v8953
    %10207 = vmatpush.bf16.msra.mxu0 %v8945
    %10208 = vmatpush.bf16.msra.mxu0 %v8937
    %10209 = vmatpush.bf16.msra.mxu0 %v8929
    %10210 = vmatpush.bf16.msra.mxu0 %v8921
    %10211 = vmatmul.bf16.gmra.mxu0 %v6781
    %v10212 = vpop.f32.mrf.mxu0
    %v10213 = vadd.f32 %v10200, %v10212
    %v10214 = vpop.f32.mrf.mxu0
    %10215 = vdwg.mxu0
    %10216 = vmatpush.bf16.msra.mxu0 %v9041
    %10217 = vmatpush.bf16.msra.mxu0 %v9033
    %10218 = vmatpush.bf16.msra.mxu0 %v9025
    %10219 = vmatpush.bf16.msra.mxu0 %v9017
    %10220 = vmatpush.bf16.msra.mxu0 %v9009
    %10221 = vmatpush.bf16.msra.mxu0 %v9001
    %10222 = vmatpush.bf16.msra.mxu0 %v8993
    %10223 = vmatpush.bf16.msra.mxu0 %v8985
    %10224 = vmatmul.bf16.gmra.mxu0 %v6782
    %v10225 = vpop.f32.mrf.mxu0
    %v10226 = vadd.f32 %v10213, %v10225
    %v10227 = vpop.f32.mrf.mxu0
    %10228 = vdwg.mxu0
    %10229 = vmatpush.bf16.msra.mxu0 %v9105
    %10230 = vmatpush.bf16.msra.mxu0 %v9097
    %10231 = vmatpush.bf16.msra.mxu0 %v9089
    %10232 = vmatpush.bf16.msra.mxu0 %v9081
    %10233 = vmatpush.bf16.msra.mxu0 %v9073
    %10234 = vmatpush.bf16.msra.mxu0 %v9065
    %10235 = vmatpush.bf16.msra.mxu0 %v9057
    %10236 = vmatpush.bf16.msra.mxu0 %v9049
    %10237 = vmatmul.bf16.gmra.mxu0 %v6783
    %v10238 = vpop.f32.mrf.mxu0
    %v10239 = vadd.f32 %v10226, %v10238
    %v10240 = vpop.f32.mrf.mxu0
    %10241 = vdwg.mxu0
    %10242 = vmatpush.bf16.msra.mxu0 %v9169
    %10243 = vmatpush.bf16.msra.mxu0 %v9161
    %10244 = vmatpush.bf16.msra.mxu0 %v9153
    %10245 = vmatpush.bf16.msra.mxu0 %v9145
    %10246 = vmatpush.bf16.msra.mxu0 %v9137
    %10247 = vmatpush.bf16.msra.mxu0 %v9129
    %10248 = vmatpush.bf16.msra.mxu0 %v9121
    %10249 = vmatpush.bf16.msra.mxu0 %v9113
    %10250 = vmatmul.bf16.gmra.mxu0 %v6784
    %v10251 = vpop.f32.mrf.mxu0
    %v10252 = vadd.f32 %v10239, %v10251
    %v10253 = vpop.f32.mrf.mxu0
    %10254 = vdwg.mxu0
    %10255 = vmatpush.bf16.msra.mxu0 %v9233
    %10256 = vmatpush.bf16.msra.mxu0 %v9225
    %10257 = vmatpush.bf16.msra.mxu0 %v9217
    %10258 = vmatpush.bf16.msra.mxu0 %v9209
    %10259 = vmatpush.bf16.msra.mxu0 %v9201
    %10260 = vmatpush.bf16.msra.mxu0 %v9193
    %10261 = vmatpush.bf16.msra.mxu0 %v9185
    %10262 = vmatpush.bf16.msra.mxu0 %v9177
    %10263 = vmatmul.bf16.gmra.mxu0 %v6785
    %v10264 = vpop.f32.mrf.mxu0
    %v10265 = vadd.f32 %v10252, %v10264
    %v10266 = vpop.f32.mrf.mxu0
    %10267 = vdwg.mxu0
    %10268 = vmatpush.bf16.msra.mxu0 %v9297
    %10269 = vmatpush.bf16.msra.mxu0 %v9289
    %10270 = vmatpush.bf16.msra.mxu0 %v9281
    %10271 = vmatpush.bf16.msra.mxu0 %v9273
    %10272 = vmatpush.bf16.msra.mxu0 %v9265
    %10273 = vmatpush.bf16.msra.mxu0 %v9257
    %10274 = vmatpush.bf16.msra.mxu0 %v9249
    %10275 = vmatpush.bf16.msra.mxu0 %v9241
    %10276 = vmatmul.bf16.gmra.mxu0 %v6786
    %v10277 = vpop.f32.mrf.mxu0
    %v10278 = vadd.f32 %v10265, %v10277
    %v10279 = vpop.f32.mrf.mxu0
    %10280 = vdwg.mxu0
    %10281 = vmatpush.bf16.msra.mxu0 %v9361
    %10282 = vmatpush.bf16.msra.mxu0 %v9353
    %10283 = vmatpush.bf16.msra.mxu0 %v9345
    %10284 = vmatpush.bf16.msra.mxu0 %v9337
    %10285 = vmatpush.bf16.msra.mxu0 %v9329
    %10286 = vmatpush.bf16.msra.mxu0 %v9321
    %10287 = vmatpush.bf16.msra.mxu0 %v9313
    %10288 = vmatpush.bf16.msra.mxu0 %v9305
    %10289 = vmatmul.bf16.gmra.mxu0 %v6787
    %v10290 = vpop.f32.mrf.mxu0
    %v10291 = vadd.f32 %v10278, %v10290
    %v10292 = vpop.f32.mrf.mxu0
    %10293 = vdwg.mxu0
    %10294 = vmatpush.bf16.msra.mxu0 %v8914
    %10295 = vmatpush.bf16.msra.mxu0 %v8906
    %10296 = vmatpush.bf16.msra.mxu0 %v8898
    %10297 = vmatpush.bf16.msra.mxu0 %v8890
    %10298 = vmatpush.bf16.msra.mxu0 %v8882
    %10299 = vmatpush.bf16.msra.mxu0 %v8874
    %10300 = vmatpush.bf16.msra.mxu0 %v8866
    %10301 = vmatpush.bf16.msra.mxu0 %v8858
    %10302 = vmatmul.bf16.gmra.mxu0 %v6780
    %v10303 = vpop.f32.mrf.mxu0
    %v10304 = vadd.f32 %v7306, %v10303
    %v10305 = vpop.f32.mrf.mxu0
    %10306 = vdwg.mxu0
    %10307 = vmatpush.bf16.msra.mxu0 %v8978
    %10308 = vmatpush.bf16.msra.mxu0 %v8970
    %10309 = vmatpush.bf16.msra.mxu0 %v8962
    %10310 = vmatpush.bf16.msra.mxu0 %v8954
    %10311 = vmatpush.bf16.msra.mxu0 %v8946
    %10312 = vmatpush.bf16.msra.mxu0 %v8938
    %10313 = vmatpush.bf16.msra.mxu0 %v8930
    %10314 = vmatpush.bf16.msra.mxu0 %v8922
    %10315 = vmatmul.bf16.gmra.mxu0 %v6781
    %v10316 = vpop.f32.mrf.mxu0
    %v10317 = vadd.f32 %v10304, %v10316
    %v10318 = vpop.f32.mrf.mxu0
    %10319 = vdwg.mxu0
    %10320 = vmatpush.bf16.msra.mxu0 %v9042
    %10321 = vmatpush.bf16.msra.mxu0 %v9034
    %10322 = vmatpush.bf16.msra.mxu0 %v9026
    %10323 = vmatpush.bf16.msra.mxu0 %v9018
    %10324 = vmatpush.bf16.msra.mxu0 %v9010
    %10325 = vmatpush.bf16.msra.mxu0 %v9002
    %10326 = vmatpush.bf16.msra.mxu0 %v8994
    %10327 = vmatpush.bf16.msra.mxu0 %v8986
    %10328 = vmatmul.bf16.gmra.mxu0 %v6782
    %v10329 = vpop.f32.mrf.mxu0
    %v10330 = vadd.f32 %v10317, %v10329
    %v10331 = vpop.f32.mrf.mxu0
    %10332 = vdwg.mxu0
    %10333 = vmatpush.bf16.msra.mxu0 %v9106
    %10334 = vmatpush.bf16.msra.mxu0 %v9098
    %10335 = vmatpush.bf16.msra.mxu0 %v9090
    %10336 = vmatpush.bf16.msra.mxu0 %v9082
    %10337 = vmatpush.bf16.msra.mxu0 %v9074
    %10338 = vmatpush.bf16.msra.mxu0 %v9066
    %10339 = vmatpush.bf16.msra.mxu0 %v9058
    %10340 = vmatpush.bf16.msra.mxu0 %v9050
    %10341 = vmatmul.bf16.gmra.mxu0 %v6783
    %v10342 = vpop.f32.mrf.mxu0
    %v10343 = vadd.f32 %v10330, %v10342
    %v10344 = vpop.f32.mrf.mxu0
    %10345 = vdwg.mxu0
    %10346 = vmatpush.bf16.msra.mxu0 %v9170
    %10347 = vmatpush.bf16.msra.mxu0 %v9162
    %10348 = vmatpush.bf16.msra.mxu0 %v9154
    %10349 = vmatpush.bf16.msra.mxu0 %v9146
    %10350 = vmatpush.bf16.msra.mxu0 %v9138
    %10351 = vmatpush.bf16.msra.mxu0 %v9130
    %10352 = vmatpush.bf16.msra.mxu0 %v9122
    %10353 = vmatpush.bf16.msra.mxu0 %v9114
    %10354 = vmatmul.bf16.gmra.mxu0 %v6784
    %v10355 = vpop.f32.mrf.mxu0
    %v10356 = vadd.f32 %v10343, %v10355
    %v10357 = vpop.f32.mrf.mxu0
    %10358 = vdwg.mxu0
    %10359 = vmatpush.bf16.msra.mxu0 %v9234
    %10360 = vmatpush.bf16.msra.mxu0 %v9226
    %10361 = vmatpush.bf16.msra.mxu0 %v9218
    %10362 = vmatpush.bf16.msra.mxu0 %v9210
    %10363 = vmatpush.bf16.msra.mxu0 %v9202
    %10364 = vmatpush.bf16.msra.mxu0 %v9194
    %10365 = vmatpush.bf16.msra.mxu0 %v9186
    %10366 = vmatpush.bf16.msra.mxu0 %v9178
    %10367 = vmatmul.bf16.gmra.mxu0 %v6785
    %v10368 = vpop.f32.mrf.mxu0
    %v10369 = vadd.f32 %v10356, %v10368
    %v10370 = vpop.f32.mrf.mxu0
    %10371 = vdwg.mxu0
    %10372 = vmatpush.bf16.msra.mxu0 %v9298
    %10373 = vmatpush.bf16.msra.mxu0 %v9290
    %10374 = vmatpush.bf16.msra.mxu0 %v9282
    %10375 = vmatpush.bf16.msra.mxu0 %v9274
    %10376 = vmatpush.bf16.msra.mxu0 %v9266
    %10377 = vmatpush.bf16.msra.mxu0 %v9258
    %10378 = vmatpush.bf16.msra.mxu0 %v9250
    %10379 = vmatpush.bf16.msra.mxu0 %v9242
    %10380 = vmatmul.bf16.gmra.mxu0 %v6786
    %v10381 = vpop.f32.mrf.mxu0
    %v10382 = vadd.f32 %v10369, %v10381
    %v10383 = vpop.f32.mrf.mxu0
    %10384 = vdwg.mxu0
    %10385 = vmatpush.bf16.msra.mxu0 %v9362
    %10386 = vmatpush.bf16.msra.mxu0 %v9354
    %10387 = vmatpush.bf16.msra.mxu0 %v9346
    %10388 = vmatpush.bf16.msra.mxu0 %v9338
    %10389 = vmatpush.bf16.msra.mxu0 %v9330
    %10390 = vmatpush.bf16.msra.mxu0 %v9322
    %10391 = vmatpush.bf16.msra.mxu0 %v9314
    %10392 = vmatpush.bf16.msra.mxu0 %v9306
    %10393 = vmatmul.bf16.gmra.mxu0 %v6787
    %v10394 = vpop.f32.mrf.mxu0
    %v10395 = vadd.f32 %v10382, %v10394
    %v10396 = vpop.f32.mrf.mxu0
    %10397 = vdwg.mxu0
    %10398 = vmatpush.bf16.msra.mxu0 %v8915
    %10399 = vmatpush.bf16.msra.mxu0 %v8907
    %10400 = vmatpush.bf16.msra.mxu0 %v8899
    %10401 = vmatpush.bf16.msra.mxu0 %v8891
    %10402 = vmatpush.bf16.msra.mxu0 %v8883
    %10403 = vmatpush.bf16.msra.mxu0 %v8875
    %10404 = vmatpush.bf16.msra.mxu0 %v8867
    %10405 = vmatpush.bf16.msra.mxu0 %v8859
    %10406 = vmatmul.bf16.gmra.mxu0 %v6780
    %v10407 = vpop.f32.mrf.mxu0
    %v10408 = vadd.f32 %v7307, %v10407
    %v10409 = vpop.f32.mrf.mxu0
    %10410 = vdwg.mxu0
    %10411 = vmatpush.bf16.msra.mxu0 %v8979
    %10412 = vmatpush.bf16.msra.mxu0 %v8971
    %10413 = vmatpush.bf16.msra.mxu0 %v8963
    %10414 = vmatpush.bf16.msra.mxu0 %v8955
    %10415 = vmatpush.bf16.msra.mxu0 %v8947
    %10416 = vmatpush.bf16.msra.mxu0 %v8939
    %10417 = vmatpush.bf16.msra.mxu0 %v8931
    %10418 = vmatpush.bf16.msra.mxu0 %v8923
    %10419 = vmatmul.bf16.gmra.mxu0 %v6781
    %v10420 = vpop.f32.mrf.mxu0
    %v10421 = vadd.f32 %v10408, %v10420
    %v10422 = vpop.f32.mrf.mxu0
    %10423 = vdwg.mxu0
    %10424 = vmatpush.bf16.msra.mxu0 %v9043
    %10425 = vmatpush.bf16.msra.mxu0 %v9035
    %10426 = vmatpush.bf16.msra.mxu0 %v9027
    %10427 = vmatpush.bf16.msra.mxu0 %v9019
    %10428 = vmatpush.bf16.msra.mxu0 %v9011
    %10429 = vmatpush.bf16.msra.mxu0 %v9003
    %10430 = vmatpush.bf16.msra.mxu0 %v8995
    %10431 = vmatpush.bf16.msra.mxu0 %v8987
    %10432 = vmatmul.bf16.gmra.mxu0 %v6782
    %v10433 = vpop.f32.mrf.mxu0
    %v10434 = vadd.f32 %v10421, %v10433
    %v10435 = vpop.f32.mrf.mxu0
    %10436 = vdwg.mxu0
    %10437 = vmatpush.bf16.msra.mxu0 %v9107
    %10438 = vmatpush.bf16.msra.mxu0 %v9099
    %10439 = vmatpush.bf16.msra.mxu0 %v9091
    %10440 = vmatpush.bf16.msra.mxu0 %v9083
    %10441 = vmatpush.bf16.msra.mxu0 %v9075
    %10442 = vmatpush.bf16.msra.mxu0 %v9067
    %10443 = vmatpush.bf16.msra.mxu0 %v9059
    %10444 = vmatpush.bf16.msra.mxu0 %v9051
    %10445 = vmatmul.bf16.gmra.mxu0 %v6783
    %v10446 = vpop.f32.mrf.mxu0
    %v10447 = vadd.f32 %v10434, %v10446
    %v10448 = vpop.f32.mrf.mxu0
    %10449 = vdwg.mxu0
    %10450 = vmatpush.bf16.msra.mxu0 %v9171
    %10451 = vmatpush.bf16.msra.mxu0 %v9163
    %10452 = vmatpush.bf16.msra.mxu0 %v9155
    %10453 = vmatpush.bf16.msra.mxu0 %v9147
    %10454 = vmatpush.bf16.msra.mxu0 %v9139
    %10455 = vmatpush.bf16.msra.mxu0 %v9131
    %10456 = vmatpush.bf16.msra.mxu0 %v9123
    %10457 = vmatpush.bf16.msra.mxu0 %v9115
    %10458 = vmatmul.bf16.gmra.mxu0 %v6784
    %v10459 = vpop.f32.mrf.mxu0
    %v10460 = vadd.f32 %v10447, %v10459
    %v10461 = vpop.f32.mrf.mxu0
    %10462 = vdwg.mxu0
    %10463 = vmatpush.bf16.msra.mxu0 %v9235
    %10464 = vmatpush.bf16.msra.mxu0 %v9227
    %10465 = vmatpush.bf16.msra.mxu0 %v9219
    %10466 = vmatpush.bf16.msra.mxu0 %v9211
    %10467 = vmatpush.bf16.msra.mxu0 %v9203
    %10468 = vmatpush.bf16.msra.mxu0 %v9195
    %10469 = vmatpush.bf16.msra.mxu0 %v9187
    %10470 = vmatpush.bf16.msra.mxu0 %v9179
    %10471 = vmatmul.bf16.gmra.mxu0 %v6785
    %v10472 = vpop.f32.mrf.mxu0
    %v10473 = vadd.f32 %v10460, %v10472
    %v10474 = vpop.f32.mrf.mxu0
    %10475 = vdwg.mxu0
    %10476 = vmatpush.bf16.msra.mxu0 %v9299
    %10477 = vmatpush.bf16.msra.mxu0 %v9291
    %10478 = vmatpush.bf16.msra.mxu0 %v9283
    %10479 = vmatpush.bf16.msra.mxu0 %v9275
    %10480 = vmatpush.bf16.msra.mxu0 %v9267
    %10481 = vmatpush.bf16.msra.mxu0 %v9259
    %10482 = vmatpush.bf16.msra.mxu0 %v9251
    %10483 = vmatpush.bf16.msra.mxu0 %v9243
    %10484 = vmatmul.bf16.gmra.mxu0 %v6786
    %v10485 = vpop.f32.mrf.mxu0
    %v10486 = vadd.f32 %v10473, %v10485
    %v10487 = vpop.f32.mrf.mxu0
    %10488 = vdwg.mxu0
    %10489 = vmatpush.bf16.msra.mxu0 %v9363
    %10490 = vmatpush.bf16.msra.mxu0 %v9355
    %10491 = vmatpush.bf16.msra.mxu0 %v9347
    %10492 = vmatpush.bf16.msra.mxu0 %v9339
    %10493 = vmatpush.bf16.msra.mxu0 %v9331
    %10494 = vmatpush.bf16.msra.mxu0 %v9323
    %10495 = vmatpush.bf16.msra.mxu0 %v9315
    %10496 = vmatpush.bf16.msra.mxu0 %v9307
    %10497 = vmatmul.bf16.gmra.mxu0 %v6787
    %v10498 = vpop.f32.mrf.mxu0
    %v10499 = vadd.f32 %v10486, %v10498
    %v10500 = vpop.f32.mrf.mxu0
    %10501 = vdwg.mxu0
    %10502 = vmatpush.bf16.msra.mxu0 %v8916
    %10503 = vmatpush.bf16.msra.mxu0 %v8908
    %10504 = vmatpush.bf16.msra.mxu0 %v8900
    %10505 = vmatpush.bf16.msra.mxu0 %v8892
    %10506 = vmatpush.bf16.msra.mxu0 %v8884
    %10507 = vmatpush.bf16.msra.mxu0 %v8876
    %10508 = vmatpush.bf16.msra.mxu0 %v8868
    %10509 = vmatpush.bf16.msra.mxu0 %v8860
    %10510 = vmatmul.bf16.gmra.mxu0 %v6780
    %v10511 = vpop.f32.mrf.mxu0
    %v10512 = vadd.f32 %v7308, %v10511
    %v10513 = vpop.f32.mrf.mxu0
    %10514 = vdwg.mxu0
    %10515 = vmatpush.bf16.msra.mxu0 %v8980
    %10516 = vmatpush.bf16.msra.mxu0 %v8972
    %10517 = vmatpush.bf16.msra.mxu0 %v8964
    %10518 = vmatpush.bf16.msra.mxu0 %v8956
    %10519 = vmatpush.bf16.msra.mxu0 %v8948
    %10520 = vmatpush.bf16.msra.mxu0 %v8940
    %10521 = vmatpush.bf16.msra.mxu0 %v8932
    %10522 = vmatpush.bf16.msra.mxu0 %v8924
    %10523 = vmatmul.bf16.gmra.mxu0 %v6781
    %v10524 = vpop.f32.mrf.mxu0
    %v10525 = vadd.f32 %v10512, %v10524
    %v10526 = vpop.f32.mrf.mxu0
    %10527 = vdwg.mxu0
    %10528 = vmatpush.bf16.msra.mxu0 %v9044
    %10529 = vmatpush.bf16.msra.mxu0 %v9036
    %10530 = vmatpush.bf16.msra.mxu0 %v9028
    %10531 = vmatpush.bf16.msra.mxu0 %v9020
    %10532 = vmatpush.bf16.msra.mxu0 %v9012
    %10533 = vmatpush.bf16.msra.mxu0 %v9004
    %10534 = vmatpush.bf16.msra.mxu0 %v8996
    %10535 = vmatpush.bf16.msra.mxu0 %v8988
    %10536 = vmatmul.bf16.gmra.mxu0 %v6782
    %v10537 = vpop.f32.mrf.mxu0
    %v10538 = vadd.f32 %v10525, %v10537
    %v10539 = vpop.f32.mrf.mxu0
    %10540 = vdwg.mxu0
    %10541 = vmatpush.bf16.msra.mxu0 %v9108
    %10542 = vmatpush.bf16.msra.mxu0 %v9100
    %10543 = vmatpush.bf16.msra.mxu0 %v9092
    %10544 = vmatpush.bf16.msra.mxu0 %v9084
    %10545 = vmatpush.bf16.msra.mxu0 %v9076
    %10546 = vmatpush.bf16.msra.mxu0 %v9068
    %10547 = vmatpush.bf16.msra.mxu0 %v9060
    %10548 = vmatpush.bf16.msra.mxu0 %v9052
    %10549 = vmatmul.bf16.gmra.mxu0 %v6783
    %v10550 = vpop.f32.mrf.mxu0
    %v10551 = vadd.f32 %v10538, %v10550
    %v10552 = vpop.f32.mrf.mxu0
    %10553 = vdwg.mxu0
    %10554 = vmatpush.bf16.msra.mxu0 %v9172
    %10555 = vmatpush.bf16.msra.mxu0 %v9164
    %10556 = vmatpush.bf16.msra.mxu0 %v9156
    %10557 = vmatpush.bf16.msra.mxu0 %v9148
    %10558 = vmatpush.bf16.msra.mxu0 %v9140
    %10559 = vmatpush.bf16.msra.mxu0 %v9132
    %10560 = vmatpush.bf16.msra.mxu0 %v9124
    %10561 = vmatpush.bf16.msra.mxu0 %v9116
    %10562 = vmatmul.bf16.gmra.mxu0 %v6784
    %v10563 = vpop.f32.mrf.mxu0
    %v10564 = vadd.f32 %v10551, %v10563
    %v10565 = vpop.f32.mrf.mxu0
    %10566 = vdwg.mxu0
    %10567 = vmatpush.bf16.msra.mxu0 %v9236
    %10568 = vmatpush.bf16.msra.mxu0 %v9228
    %10569 = vmatpush.bf16.msra.mxu0 %v9220
    %10570 = vmatpush.bf16.msra.mxu0 %v9212
    %10571 = vmatpush.bf16.msra.mxu0 %v9204
    %10572 = vmatpush.bf16.msra.mxu0 %v9196
    %10573 = vmatpush.bf16.msra.mxu0 %v9188
    %10574 = vmatpush.bf16.msra.mxu0 %v9180
    %10575 = vmatmul.bf16.gmra.mxu0 %v6785
    %v10576 = vpop.f32.mrf.mxu0
    %v10577 = vadd.f32 %v10564, %v10576
    %v10578 = vpop.f32.mrf.mxu0
    %10579 = vdwg.mxu0
    %10580 = vmatpush.bf16.msra.mxu0 %v9300
    %10581 = vmatpush.bf16.msra.mxu0 %v9292
    %10582 = vmatpush.bf16.msra.mxu0 %v9284
    %10583 = vmatpush.bf16.msra.mxu0 %v9276
    %10584 = vmatpush.bf16.msra.mxu0 %v9268
    %10585 = vmatpush.bf16.msra.mxu0 %v9260
    %10586 = vmatpush.bf16.msra.mxu0 %v9252
    %10587 = vmatpush.bf16.msra.mxu0 %v9244
    %10588 = vmatmul.bf16.gmra.mxu0 %v6786
    %v10589 = vpop.f32.mrf.mxu0
    %v10590 = vadd.f32 %v10577, %v10589
    %v10591 = vpop.f32.mrf.mxu0
    %10592 = vdwg.mxu0
    %10593 = vmatpush.bf16.msra.mxu0 %v9364
    %10594 = vmatpush.bf16.msra.mxu0 %v9356
    %10595 = vmatpush.bf16.msra.mxu0 %v9348
    %10596 = vmatpush.bf16.msra.mxu0 %v9340
    %10597 = vmatpush.bf16.msra.mxu0 %v9332
    %10598 = vmatpush.bf16.msra.mxu0 %v9324
    %10599 = vmatpush.bf16.msra.mxu0 %v9316
    %10600 = vmatpush.bf16.msra.mxu0 %v9308
    %10601 = vmatmul.bf16.gmra.mxu0 %v6787
    %v10602 = vpop.f32.mrf.mxu0
    %v10603 = vadd.f32 %v10590, %v10602
    %v10604 = vpop.f32.mrf.mxu0
    %10605 = vdwg.mxu0
    %10606 = vmatpush.bf16.msra.mxu0 %v8917
    %10607 = vmatpush.bf16.msra.mxu0 %v8909
    %10608 = vmatpush.bf16.msra.mxu0 %v8901
    %10609 = vmatpush.bf16.msra.mxu0 %v8893
    %10610 = vmatpush.bf16.msra.mxu0 %v8885
    %10611 = vmatpush.bf16.msra.mxu0 %v8877
    %10612 = vmatpush.bf16.msra.mxu0 %v8869
    %10613 = vmatpush.bf16.msra.mxu0 %v8861
    %10614 = vmatmul.bf16.gmra.mxu0 %v6780
    %v10615 = vpop.f32.mrf.mxu0
    %v10616 = vadd.f32 %v7309, %v10615
    %v10617 = vpop.f32.mrf.mxu0
    %10618 = vdwg.mxu0
    %10619 = vmatpush.bf16.msra.mxu0 %v8981
    %10620 = vmatpush.bf16.msra.mxu0 %v8973
    %10621 = vmatpush.bf16.msra.mxu0 %v8965
    %10622 = vmatpush.bf16.msra.mxu0 %v8957
    %10623 = vmatpush.bf16.msra.mxu0 %v8949
    %10624 = vmatpush.bf16.msra.mxu0 %v8941
    %10625 = vmatpush.bf16.msra.mxu0 %v8933
    %10626 = vmatpush.bf16.msra.mxu0 %v8925
    %10627 = vmatmul.bf16.gmra.mxu0 %v6781
    %v10628 = vpop.f32.mrf.mxu0
    %v10629 = vadd.f32 %v10616, %v10628
    %v10630 = vpop.f32.mrf.mxu0
    %10631 = vdwg.mxu0
    %10632 = vmatpush.bf16.msra.mxu0 %v9045
    %10633 = vmatpush.bf16.msra.mxu0 %v9037
    %10634 = vmatpush.bf16.msra.mxu0 %v9029
    %10635 = vmatpush.bf16.msra.mxu0 %v9021
    %10636 = vmatpush.bf16.msra.mxu0 %v9013
    %10637 = vmatpush.bf16.msra.mxu0 %v9005
    %10638 = vmatpush.bf16.msra.mxu0 %v8997
    %10639 = vmatpush.bf16.msra.mxu0 %v8989
    %10640 = vmatmul.bf16.gmra.mxu0 %v6782
    %v10641 = vpop.f32.mrf.mxu0
    %v10642 = vadd.f32 %v10629, %v10641
    %v10643 = vpop.f32.mrf.mxu0
    %10644 = vdwg.mxu0
    %10645 = vmatpush.bf16.msra.mxu0 %v9109
    %10646 = vmatpush.bf16.msra.mxu0 %v9101
    %10647 = vmatpush.bf16.msra.mxu0 %v9093
    %10648 = vmatpush.bf16.msra.mxu0 %v9085
    %10649 = vmatpush.bf16.msra.mxu0 %v9077
    %10650 = vmatpush.bf16.msra.mxu0 %v9069
    %10651 = vmatpush.bf16.msra.mxu0 %v9061
    %10652 = vmatpush.bf16.msra.mxu0 %v9053
    %10653 = vmatmul.bf16.gmra.mxu0 %v6783
    %v10654 = vpop.f32.mrf.mxu0
    %v10655 = vadd.f32 %v10642, %v10654
    %v10656 = vpop.f32.mrf.mxu0
    %10657 = vdwg.mxu0
    %10658 = vmatpush.bf16.msra.mxu0 %v9173
    %10659 = vmatpush.bf16.msra.mxu0 %v9165
    %10660 = vmatpush.bf16.msra.mxu0 %v9157
    %10661 = vmatpush.bf16.msra.mxu0 %v9149
    %10662 = vmatpush.bf16.msra.mxu0 %v9141
    %10663 = vmatpush.bf16.msra.mxu0 %v9133
    %10664 = vmatpush.bf16.msra.mxu0 %v9125
    %10665 = vmatpush.bf16.msra.mxu0 %v9117
    %10666 = vmatmul.bf16.gmra.mxu0 %v6784
    %v10667 = vpop.f32.mrf.mxu0
    %v10668 = vadd.f32 %v10655, %v10667
    %v10669 = vpop.f32.mrf.mxu0
    %10670 = vdwg.mxu0
    %10671 = vmatpush.bf16.msra.mxu0 %v9237
    %10672 = vmatpush.bf16.msra.mxu0 %v9229
    %10673 = vmatpush.bf16.msra.mxu0 %v9221
    %10674 = vmatpush.bf16.msra.mxu0 %v9213
    %10675 = vmatpush.bf16.msra.mxu0 %v9205
    %10676 = vmatpush.bf16.msra.mxu0 %v9197
    %10677 = vmatpush.bf16.msra.mxu0 %v9189
    %10678 = vmatpush.bf16.msra.mxu0 %v9181
    %10679 = vmatmul.bf16.gmra.mxu0 %v6785
    %v10680 = vpop.f32.mrf.mxu0
    %v10681 = vadd.f32 %v10668, %v10680
    %v10682 = vpop.f32.mrf.mxu0
    %10683 = vdwg.mxu0
    %10684 = vmatpush.bf16.msra.mxu0 %v9301
    %10685 = vmatpush.bf16.msra.mxu0 %v9293
    %10686 = vmatpush.bf16.msra.mxu0 %v9285
    %10687 = vmatpush.bf16.msra.mxu0 %v9277
    %10688 = vmatpush.bf16.msra.mxu0 %v9269
    %10689 = vmatpush.bf16.msra.mxu0 %v9261
    %10690 = vmatpush.bf16.msra.mxu0 %v9253
    %10691 = vmatpush.bf16.msra.mxu0 %v9245
    %10692 = vmatmul.bf16.gmra.mxu0 %v6786
    %v10693 = vpop.f32.mrf.mxu0
    %v10694 = vadd.f32 %v10681, %v10693
    %v10695 = vpop.f32.mrf.mxu0
    %10696 = vdwg.mxu0
    %10697 = vmatpush.bf16.msra.mxu0 %v9365
    %10698 = vmatpush.bf16.msra.mxu0 %v9357
    %10699 = vmatpush.bf16.msra.mxu0 %v9349
    %10700 = vmatpush.bf16.msra.mxu0 %v9341
    %10701 = vmatpush.bf16.msra.mxu0 %v9333
    %10702 = vmatpush.bf16.msra.mxu0 %v9325
    %10703 = vmatpush.bf16.msra.mxu0 %v9317
    %10704 = vmatpush.bf16.msra.mxu0 %v9309
    %10705 = vmatmul.bf16.gmra.mxu0 %v6787
    %v10706 = vpop.f32.mrf.mxu0
    %v10707 = vadd.f32 %v10694, %v10706
    %v10708 = vpop.f32.mrf.mxu0
    %10709 = vdwg.mxu0
    %v10710 = vmax.f32 %v9979, 0.0
    %v10711 = vmax.f32 %v10083, 0.0
    %v10712 = vmax.f32 %v10187, 0.0
    %v10713 = vmax.f32 %v10291, 0.0
    %v10714 = vmax.f32 %v10395, 0.0
    %v10715 = vmax.f32 %v10499, 0.0
    %v10716 = vmax.f32 %v10603, 0.0
    %v10717 = vmax.f32 %v10707, 0.0
    %v10718 = vpack.c.bf16 %v10710, %v10710
    %v10719 = vpack.c.bf16 %v10711, %v10711
    %v10720 = vpack.c.bf16 %v10712, %v10712
    %v10721 = vpack.c.bf16 %v10713, %v10713
    %v10722 = vpack.c.bf16 %v10714, %v10714
    %v10723 = vpack.c.bf16 %v10715, %v10715
    %v10724 = vpack.c.bf16 %v10716, %v10716
    %v10725 = vpack.c.bf16 %v10717, %v10717
    %v10726 = vld [vmem:[%s11] sm:$0xf]
    %v10727 = vld [vmem:[%s11 + $0x4] sm:$0xf]
    %v10728 = vld [vmem:[%s11 + $0x8] sm:$0xf]
    %v10729 = vld [vmem:[%s11 + $0xc] sm:$0xf]
    %v10730 = vld [vmem:[%s11 + $0x10] sm:$0xf]
    %v10731 = vld [vmem:[%s11 + $0x14] sm:$0xf]
    %v10732 = vld [vmem:[%s11 + $0x18] sm:$0xf]
    %v10733 = vld [vmem:[%s11 + $0x1c] sm:$0xf]
    %v10734 = vld [vmem:[%s11 + $0x20] sm:$0xf]
    %v10735 = vld [vmem:[%s11 + $0x24] sm:$0xf]
    %v10736 = vld [vmem:[%s11 + $0x28] sm:$0xf]
    %v10737 = vld [vmem:[%s11 + $0x2c] sm:$0xf]
    %v10738 = vld [vmem:[%s11 + $0x30] sm:$0xf]
    %v10739 = vld [vmem:[%s11 + $0x34] sm:$0xf]
    %v10740 = vld [vmem:[%s11 + $0x38] sm:$0xf]
    %v10741 = vld [vmem:[%s11 + $0x3c] sm:$0xf]
    %v10742 = vld [vmem:[%s11 + $0x40] sm:$0xf]
    %v10743 = vld [vmem:[%s11 + $0x44] sm:$0xf]
    %v10744 = vld [vmem:[%s11 + $0x48] sm:$0xf]
    %v10745 = vld [vmem:[%s11 + $0x4c] sm:$0xf]
    %v10746 = vld [vmem:[%s11 + $0x50] sm:$0xf]
    %v10747 = vld [vmem:[%s11 + $0x54] sm:$0xf]
    %v10748 = vld [vmem:[%s11 + $0x58] sm:$0xf]
    %v10749 = vld [vmem:[%s11 + $0x5c] sm:$0xf]
    %v10750 = vld [vmem:[%s11 + $0x60] sm:$0xf]
    %v10751 = vld [vmem:[%s11 + $0x64] sm:$0xf]
    %v10752 = vld [vmem:[%s11 + $0x68] sm:$0xf]
    %v10753 = vld [vmem:[%s11 + $0x6c] sm:$0xf]
    %v10754 = vld [vmem:[%s11 + $0x70] sm:$0xf]
    %v10755 = vld [vmem:[%s11 + $0x74] sm:$0xf]
    %v10756 = vld [vmem:[%s11 + $0x78] sm:$0xf]
    %v10757 = vld [vmem:[%s11 + $0x7c] sm:$0xf]
    %v10758 = vld [vmem:[%s11 + $0x80] sm:$0xf]
    %v10759 = vld [vmem:[%s11 + $0x84] sm:$0xf]
    %v10760 = vld [vmem:[%s11 + $0x88] sm:$0xf]
    %v10761 = vld [vmem:[%s11 + $0x8c] sm:$0xf]
    %v10762 = vld [vmem:[%s11 + $0x90] sm:$0xf]
    %v10763 = vld [vmem:[%s11 + $0x94] sm:$0xf]
    %v10764 = vld [vmem:[%s11 + $0x98] sm:$0xf]
    %v10765 = vld [vmem:[%s11 + $0x9c] sm:$0xf]
    %v10766 = vld [vmem:[%s11 + $0xa0] sm:$0xf]
    %v10767 = vld [vmem:[%s11 + $0xa4] sm:$0xf]
    %v10768 = vld [vmem:[%s11 + $0xa8] sm:$0xf]
    %v10769 = vld [vmem:[%s11 + $0xac] sm:$0xf]
    %v10770 = vld [vmem:[%s11 + $0xb0] sm:$0xf]
    %v10771 = vld [vmem:[%s11 + $0xb4] sm:$0xf]
    %v10772 = vld [vmem:[%s11 + $0xb8] sm:$0xf]
    %v10773 = vld [vmem:[%s11 + $0xbc] sm:$0xf]
    %v10774 = vld [vmem:[%s11 + $0xc0] sm:$0xf]
    %v10775 = vld [vmem:[%s11 + $0xc4] sm:$0xf]
    %v10776 = vld [vmem:[%s11 + $0xc8] sm:$0xf]
    %v10777 = vld [vmem:[%s11 + $0xcc] sm:$0xf]
    %v10778 = vld [vmem:[%s11 + $0xd0] sm:$0xf]
    %v10779 = vld [vmem:[%s11 + $0xd4] sm:$0xf]
    %v10780 = vld [vmem:[%s11 + $0xd8] sm:$0xf]
    %v10781 = vld [vmem:[%s11 + $0xdc] sm:$0xf]
    %v10782 = vld [vmem:[%s11 + $0xe0] sm:$0xf]
    %v10783 = vld [vmem:[%s11 + $0xe4] sm:$0xf]
    %v10784 = vld [vmem:[%s11 + $0xe8] sm:$0xf]
    %v10785 = vld [vmem:[%s11 + $0xec] sm:$0xf]
    %v10786 = vld [vmem:[%s11 + $0xf0] sm:$0xf]
    %v10787 = vld [vmem:[%s11 + $0xf4] sm:$0xf]
    %v10788 = vld [vmem:[%s11 + $0xf8] sm:$0xf]
    %v10789 = vld [vmem:[%s11 + $0xfc] sm:$0xf]
    %v10790 = vld [vmem:[%s11 + $0x100] sm:$0xf]
    %v10791 = vld [vmem:[%s11 + $0x104] sm:$0xf]
    %v10792 = vld [vmem:[%s11 + $0x108] sm:$0xf]
    %v10793 = vld [vmem:[%s11 + $0x10c] sm:$0xf]
    %v10794 = vld [vmem:[%s11 + $0x110] sm:$0xf]
    %v10795 = vld [vmem:[%s11 + $0x114] sm:$0xf]
    %v10796 = vld [vmem:[%s11 + $0x118] sm:$0xf]
    %v10797 = vld [vmem:[%s11 + $0x11c] sm:$0xf]
    %v10798 = vld [vmem:[%s11 + $0x120] sm:$0xf]
    %v10799 = vld [vmem:[%s11 + $0x124] sm:$0xf]
    %v10800 = vld [vmem:[%s11 + $0x128] sm:$0xf]
    %v10801 = vld [vmem:[%s11 + $0x12c] sm:$0xf]
    %v10802 = vld [vmem:[%s11 + $0x130] sm:$0xf]
    %v10803 = vld [vmem:[%s11 + $0x134] sm:$0xf]
    %v10804 = vld [vmem:[%s11 + $0x138] sm:$0xf]
    %v10805 = vld [vmem:[%s11 + $0x13c] sm:$0xf]
    %v10806 = vld [vmem:[%s11 + $0x140] sm:$0xf]
    %v10807 = vld [vmem:[%s11 + $0x144] sm:$0xf]
    %v10808 = vld [vmem:[%s11 + $0x148] sm:$0xf]
    %v10809 = vld [vmem:[%s11 + $0x14c] sm:$0xf]
    %v10810 = vld [vmem:[%s11 + $0x150] sm:$0xf]
    %v10811 = vld [vmem:[%s11 + $0x154] sm:$0xf]
    %v10812 = vld [vmem:[%s11 + $0x158] sm:$0xf]
    %v10813 = vld [vmem:[%s11 + $0x15c] sm:$0xf]
    %v10814 = vld [vmem:[%s11 + $0x160] sm:$0xf]
    %v10815 = vld [vmem:[%s11 + $0x164] sm:$0xf]
    %v10816 = vld [vmem:[%s11 + $0x168] sm:$0xf]
    %v10817 = vld [vmem:[%s11 + $0x16c] sm:$0xf]
    %v10818 = vld [vmem:[%s11 + $0x170] sm:$0xf]
    %v10819 = vld [vmem:[%s11 + $0x174] sm:$0xf]
    %v10820 = vld [vmem:[%s11 + $0x178] sm:$0xf]
    %v10821 = vld [vmem:[%s11 + $0x17c] sm:$0xf]
    %v10822 = vld [vmem:[%s11 + $0x180] sm:$0xf]
    %v10823 = vld [vmem:[%s11 + $0x184] sm:$0xf]
    %v10824 = vld [vmem:[%s11 + $0x188] sm:$0xf]
    %v10825 = vld [vmem:[%s11 + $0x18c] sm:$0xf]
    %v10826 = vld [vmem:[%s11 + $0x190] sm:$0xf]
    %v10827 = vld [vmem:[%s11 + $0x194] sm:$0xf]
    %v10828 = vld [vmem:[%s11 + $0x198] sm:$0xf]
    %v10829 = vld [vmem:[%s11 + $0x19c] sm:$0xf]
    %v10830 = vld [vmem:[%s11 + $0x1a0] sm:$0xf]
    %v10831 = vld [vmem:[%s11 + $0x1a4] sm:$0xf]
    %v10832 = vld [vmem:[%s11 + $0x1a8] sm:$0xf]
    %v10833 = vld [vmem:[%s11 + $0x1ac] sm:$0xf]
    %v10834 = vld [vmem:[%s11 + $0x1b0] sm:$0xf]
    %v10835 = vld [vmem:[%s11 + $0x1b4] sm:$0xf]
    %v10836 = vld [vmem:[%s11 + $0x1b8] sm:$0xf]
    %v10837 = vld [vmem:[%s11 + $0x1bc] sm:$0xf]
    %v10838 = vld [vmem:[%s11 + $0x1c0] sm:$0xf]
    %v10839 = vld [vmem:[%s11 + $0x1c4] sm:$0xf]
    %v10840 = vld [vmem:[%s11 + $0x1c8] sm:$0xf]
    %v10841 = vld [vmem:[%s11 + $0x1cc] sm:$0xf]
    %v10842 = vld [vmem:[%s11 + $0x1d0] sm:$0xf]
    %v10843 = vld [vmem:[%s11 + $0x1d4] sm:$0xf]
    %v10844 = vld [vmem:[%s11 + $0x1d8] sm:$0xf]
    %v10845 = vld [vmem:[%s11 + $0x1dc] sm:$0xf]
    %v10846 = vld [vmem:[%s11 + $0x1e0] sm:$0xf]
    %v10847 = vld [vmem:[%s11 + $0x1e4] sm:$0xf]
    %v10848 = vld [vmem:[%s11 + $0x1e8] sm:$0xf]
    %v10849 = vld [vmem:[%s11 + $0x1ec] sm:$0xf]
    %v10850 = vld [vmem:[%s11 + $0x1f0] sm:$0xf]
    %v10851 = vld [vmem:[%s11 + $0x1f4] sm:$0xf]
    %v10852 = vld [vmem:[%s11 + $0x1f8] sm:$0xf]
    %v10853 = vld [vmem:[%s11 + $0x1fc] sm:$0xf]
    %v10854 = vld [vmem:[#allocation19] sm:$0x1]
    %v10856 = vperm.slane %v10854, 0
    %v10986 = vunpack.c.l.b16 %v10726
    %v10987 = vunpack.c.l.b16 %v10727
    %v10988 = vunpack.c.l.b16 %v10728
    %v10989 = vunpack.c.l.b16 %v10729
    %v10990 = vunpack.c.l.b16 %v10730
    %v10991 = vunpack.c.l.b16 %v10731
    %v10992 = vunpack.c.l.b16 %v10732
    %v10993 = vunpack.c.l.b16 %v10733
    %v10994 = vunpack.c.l.b16 %v10734
    %v10995 = vunpack.c.l.b16 %v10735
    %v10996 = vunpack.c.l.b16 %v10736
    %v10997 = vunpack.c.l.b16 %v10737
    %v10998 = vunpack.c.l.b16 %v10738
    %v10999 = vunpack.c.l.b16 %v10739
    %v11000 = vunpack.c.l.b16 %v10740
    %v11001 = vunpack.c.l.b16 %v10741
    %v11002 = vunpack.c.l.b16 %v10742
    %v11003 = vunpack.c.l.b16 %v10743
    %v11004 = vunpack.c.l.b16 %v10744
    %v11005 = vunpack.c.l.b16 %v10745
    %v11006 = vunpack.c.l.b16 %v10746
    %v11007 = vunpack.c.l.b16 %v10747
    %v11008 = vunpack.c.l.b16 %v10748
    %v11009 = vunpack.c.l.b16 %v10749
    %v11010 = vunpack.c.l.b16 %v10750
    %v11011 = vunpack.c.l.b16 %v10751
    %v11012 = vunpack.c.l.b16 %v10752
    %v11013 = vunpack.c.l.b16 %v10753
    %v11014 = vunpack.c.l.b16 %v10754
    %v11015 = vunpack.c.l.b16 %v10755
    %v11016 = vunpack.c.l.b16 %v10756
    %v11017 = vunpack.c.l.b16 %v10757
    %v11018 = vunpack.c.l.b16 %v10758
    %v11019 = vunpack.c.l.b16 %v10759
    %v11020 = vunpack.c.l.b16 %v10760
    %v11021 = vunpack.c.l.b16 %v10761
    %v11022 = vunpack.c.l.b16 %v10762
    %v11023 = vunpack.c.l.b16 %v10763
    %v11024 = vunpack.c.l.b16 %v10764
    %v11025 = vunpack.c.l.b16 %v10765
    %v11026 = vunpack.c.l.b16 %v10766
    %v11027 = vunpack.c.l.b16 %v10767
    %v11028 = vunpack.c.l.b16 %v10768
    %v11029 = vunpack.c.l.b16 %v10769
    %v11030 = vunpack.c.l.b16 %v10770
    %v11031 = vunpack.c.l.b16 %v10771
    %v11032 = vunpack.c.l.b16 %v10772
    %v11033 = vunpack.c.l.b16 %v10773
    %v11034 = vunpack.c.l.b16 %v10774
    %v11035 = vunpack.c.l.b16 %v10775
    %v11036 = vunpack.c.l.b16 %v10776
    %v11037 = vunpack.c.l.b16 %v10777
    %v11038 = vunpack.c.l.b16 %v10778
    %v11039 = vunpack.c.l.b16 %v10779
    %v11040 = vunpack.c.l.b16 %v10780
    %v11041 = vunpack.c.l.b16 %v10781
    %v11042 = vunpack.c.l.b16 %v10782
    %v11043 = vunpack.c.l.b16 %v10783
    %v11044 = vunpack.c.l.b16 %v10784
    %v11045 = vunpack.c.l.b16 %v10785
    %v11046 = vunpack.c.l.b16 %v10786
    %v11047 = vunpack.c.l.b16 %v10787
    %v11048 = vunpack.c.l.b16 %v10788
    %v11049 = vunpack.c.l.b16 %v10789
    %v11050 = vunpack.c.l.b16 %v10790
    %v11051 = vunpack.c.l.b16 %v10791
    %v11052 = vunpack.c.l.b16 %v10792
    %v11053 = vunpack.c.l.b16 %v10793
    %v11054 = vunpack.c.l.b16 %v10794
    %v11055 = vunpack.c.l.b16 %v10795
    %v11056 = vunpack.c.l.b16 %v10796
    %v11057 = vunpack.c.l.b16 %v10797
    %v11058 = vunpack.c.l.b16 %v10798
    %v11059 = vunpack.c.l.b16 %v10799
    %v11060 = vunpack.c.l.b16 %v10800
    %v11061 = vunpack.c.l.b16 %v10801
    %v11062 = vunpack.c.l.b16 %v10802
    %v11063 = vunpack.c.l.b16 %v10803
    %v11064 = vunpack.c.l.b16 %v10804
    %v11065 = vunpack.c.l.b16 %v10805
    %v11066 = vunpack.c.l.b16 %v10806
    %v11067 = vunpack.c.l.b16 %v10807
    %v11068 = vunpack.c.l.b16 %v10808
    %v11069 = vunpack.c.l.b16 %v10809
    %v11070 = vunpack.c.l.b16 %v10810
    %v11071 = vunpack.c.l.b16 %v10811
    %v11072 = vunpack.c.l.b16 %v10812
    %v11073 = vunpack.c.l.b16 %v10813
    %v11074 = vunpack.c.l.b16 %v10814
    %v11075 = vunpack.c.l.b16 %v10815
    %v11076 = vunpack.c.l.b16 %v10816
    %v11077 = vunpack.c.l.b16 %v10817
    %v11078 = vunpack.c.l.b16 %v10818
    %v11079 = vunpack.c.l.b16 %v10819
    %v11080 = vunpack.c.l.b16 %v10820
    %v11081 = vunpack.c.l.b16 %v10821
    %v11082 = vunpack.c.l.b16 %v10822
    %v11083 = vunpack.c.l.b16 %v10823
    %v11084 = vunpack.c.l.b16 %v10824
    %v11085 = vunpack.c.l.b16 %v10825
    %v11086 = vunpack.c.l.b16 %v10826
    %v11087 = vunpack.c.l.b16 %v10827
    %v11088 = vunpack.c.l.b16 %v10828
    %v11089 = vunpack.c.l.b16 %v10829
    %v11090 = vunpack.c.l.b16 %v10830
    %v11091 = vunpack.c.l.b16 %v10831
    %v11092 = vunpack.c.l.b16 %v10832
    %v11093 = vunpack.c.l.b16 %v10833
    %v11094 = vunpack.c.l.b16 %v10834
    %v11095 = vunpack.c.l.b16 %v10835
    %v11096 = vunpack.c.l.b16 %v10836
    %v11097 = vunpack.c.l.b16 %v10837
    %v11098 = vunpack.c.l.b16 %v10838
    %v11099 = vunpack.c.l.b16 %v10839
    %v11100 = vunpack.c.l.b16 %v10840
    %v11101 = vunpack.c.l.b16 %v10841
    %v11102 = vunpack.c.l.b16 %v10842
    %v11103 = vunpack.c.l.b16 %v10843
    %v11104 = vunpack.c.l.b16 %v10844
    %v11105 = vunpack.c.l.b16 %v10845
    %v11106 = vunpack.c.l.b16 %v10846
    %v11107 = vunpack.c.l.b16 %v10847
    %v11108 = vunpack.c.l.b16 %v10848
    %v11109 = vunpack.c.l.b16 %v10849
    %v11110 = vunpack.c.l.b16 %v10850
    %v11111 = vunpack.c.l.b16 %v10851
    %v11112 = vunpack.c.l.b16 %v10852
    %v11113 = vunpack.c.l.b16 %v10853
    %v11114 = vpack.c.b16 %v10987, %v10986
    %v11115 = vpack.c.b16 %v10989, %v10988
    %v11116 = vpack.c.b16 %v10991, %v10990
    %v11117 = vpack.c.b16 %v10993, %v10992
    %v11118 = vpack.c.b16 %v10995, %v10994
    %v11119 = vpack.c.b16 %v10997, %v10996
    %v11120 = vpack.c.b16 %v10999, %v10998
    %v11121 = vpack.c.b16 %v11001, %v11000
    %v11122 = vpack.c.b16 %v11003, %v11002
    %v11123 = vpack.c.b16 %v11005, %v11004
    %v11124 = vpack.c.b16 %v11007, %v11006
    %v11125 = vpack.c.b16 %v11009, %v11008
    %v11126 = vpack.c.b16 %v11011, %v11010
    %v11127 = vpack.c.b16 %v11013, %v11012
    %v11128 = vpack.c.b16 %v11015, %v11014
    %v11129 = vpack.c.b16 %v11017, %v11016
    %v11130 = vpack.c.b16 %v11019, %v11018
    %v11131 = vpack.c.b16 %v11021, %v11020
    %v11132 = vpack.c.b16 %v11023, %v11022
    %v11133 = vpack.c.b16 %v11025, %v11024
    %v11134 = vpack.c.b16 %v11027, %v11026
    %v11135 = vpack.c.b16 %v11029, %v11028
    %v11136 = vpack.c.b16 %v11031, %v11030
    %v11137 = vpack.c.b16 %v11033, %v11032
    %v11138 = vpack.c.b16 %v11035, %v11034
    %v11139 = vpack.c.b16 %v11037, %v11036
    %v11140 = vpack.c.b16 %v11039, %v11038
    %v11141 = vpack.c.b16 %v11041, %v11040
    %v11142 = vpack.c.b16 %v11043, %v11042
    %v11143 = vpack.c.b16 %v11045, %v11044
    %v11144 = vpack.c.b16 %v11047, %v11046
    %v11145 = vpack.c.b16 %v11049, %v11048
    %v11146 = vpack.c.b16 %v11051, %v11050
    %v11147 = vpack.c.b16 %v11053, %v11052
    %v11148 = vpack.c.b16 %v11055, %v11054
    %v11149 = vpack.c.b16 %v11057, %v11056
    %v11150 = vpack.c.b16 %v11059, %v11058
    %v11151 = vpack.c.b16 %v11061, %v11060
    %v11152 = vpack.c.b16 %v11063, %v11062
    %v11153 = vpack.c.b16 %v11065, %v11064
    %v11154 = vpack.c.b16 %v11067, %v11066
    %v11155 = vpack.c.b16 %v11069, %v11068
    %v11156 = vpack.c.b16 %v11071, %v11070
    %v11157 = vpack.c.b16 %v11073, %v11072
    %v11158 = vpack.c.b16 %v11075, %v11074
    %v11159 = vpack.c.b16 %v11077, %v11076
    %v11160 = vpack.c.b16 %v11079, %v11078
    %v11161 = vpack.c.b16 %v11081, %v11080
    %v11162 = vpack.c.b16 %v11083, %v11082
    %v11163 = vpack.c.b16 %v11085, %v11084
    %v11164 = vpack.c.b16 %v11087, %v11086
    %v11165 = vpack.c.b16 %v11089, %v11088
    %v11166 = vpack.c.b16 %v11091, %v11090
    %v11167 = vpack.c.b16 %v11093, %v11092
    %v11168 = vpack.c.b16 %v11095, %v11094
    %v11169 = vpack.c.b16 %v11097, %v11096
    %v11170 = vpack.c.b16 %v11099, %v11098
    %v11171 = vpack.c.b16 %v11101, %v11100
    %v11172 = vpack.c.b16 %v11103, %v11102
    %v11173 = vpack.c.b16 %v11105, %v11104
    %v11174 = vpack.c.b16 %v11107, %v11106
    %v11175 = vpack.c.b16 %v11109, %v11108
    %v11176 = vpack.c.b16 %v11111, %v11110
    %v11177 = vpack.c.b16 %v11113, %v11112
    %11242 = vmatpush.bf16.msra.mxu0 %v11121
    %11243 = vmatpush.bf16.msra.mxu0 %v11120
    %11244 = vmatpush.bf16.msra.mxu0 %v11119
    %11245 = vmatpush.bf16.msra.mxu0 %v11118
    %11246 = vmatpush.bf16.msra.mxu0 %v11117
    %11247 = vmatpush.bf16.msra.mxu0 %v11116
    %11248 = vmatpush.bf16.msra.mxu0 %v11115
    %11249 = vmatpush.bf16.msra.mxu0 %v11114
    %11250 = vmatmul.bf16.gmra.mxu0 %v10718
    %v11251 = vpop.f32.mrf.mxu0
    %v11252 = vadd.f32 %v10856, %v11251
    %v11253 = vpop.f32.mrf.mxu0
    %11254 = vdwg.mxu0
    %11255 = vmatpush.bf16.msra.mxu0 %v11129
    %11256 = vmatpush.bf16.msra.mxu0 %v11128
    %11257 = vmatpush.bf16.msra.mxu0 %v11127
    %11258 = vmatpush.bf16.msra.mxu0 %v11126
    %11259 = vmatpush.bf16.msra.mxu0 %v11125
    %11260 = vmatpush.bf16.msra.mxu0 %v11124
    %11261 = vmatpush.bf16.msra.mxu0 %v11123
    %11262 = vmatpush.bf16.msra.mxu0 %v11122
    %11263 = vmatmul.bf16.gmra.mxu0 %v10719
    %v11264 = vpop.f32.mrf.mxu0
    %v11265 = vadd.f32 %v11252, %v11264
    %v11266 = vpop.f32.mrf.mxu0
    %11267 = vdwg.mxu0
    %11268 = vmatpush.bf16.msra.mxu0 %v11137
    %11269 = vmatpush.bf16.msra.mxu0 %v11136
    %11270 = vmatpush.bf16.msra.mxu0 %v11135
    %11271 = vmatpush.bf16.msra.mxu0 %v11134
    %11272 = vmatpush.bf16.msra.mxu0 %v11133
    %11273 = vmatpush.bf16.msra.mxu0 %v11132
    %11274 = vmatpush.bf16.msra.mxu0 %v11131
    %11275 = vmatpush.bf16.msra.mxu0 %v11130
    %11276 = vmatmul.bf16.gmra.mxu0 %v10720
    %v11277 = vpop.f32.mrf.mxu0
    %v11278 = vadd.f32 %v11265, %v11277
    %v11279 = vpop.f32.mrf.mxu0
    %11280 = vdwg.mxu0
    %11281 = vmatpush.bf16.msra.mxu0 %v11145
    %11282 = vmatpush.bf16.msra.mxu0 %v11144
    %11283 = vmatpush.bf16.msra.mxu0 %v11143
    %11284 = vmatpush.bf16.msra.mxu0 %v11142
    %11285 = vmatpush.bf16.msra.mxu0 %v11141
    %11286 = vmatpush.bf16.msra.mxu0 %v11140
    %11287 = vmatpush.bf16.msra.mxu0 %v11139
    %11288 = vmatpush.bf16.msra.mxu0 %v11138
    %11289 = vmatmul.bf16.gmra.mxu0 %v10721
    %v11290 = vpop.f32.mrf.mxu0
    %v11291 = vadd.f32 %v11278, %v11290
    %v11292 = vpop.f32.mrf.mxu0
    %11293 = vdwg.mxu0
    %11294 = vmatpush.bf16.msra.mxu0 %v11153
    %11295 = vmatpush.bf16.msra.mxu0 %v11152
    %11296 = vmatpush.bf16.msra.mxu0 %v11151
    %11297 = vmatpush.bf16.msra.mxu0 %v11150
    %11298 = vmatpush.bf16.msra.mxu0 %v11149
    %11299 = vmatpush.bf16.msra.mxu0 %v11148
    %11300 = vmatpush.bf16.msra.mxu0 %v11147
    %11301 = vmatpush.bf16.msra.mxu0 %v11146
    %11302 = vmatmul.bf16.gmra.mxu0 %v10722
    %v11303 = vpop.f32.mrf.mxu0
    %v11304 = vadd.f32 %v11291, %v11303
    %v11305 = vpop.f32.mrf.mxu0
    %11306 = vdwg.mxu0
    %11307 = vmatpush.bf16.msra.mxu0 %v11161
    %11308 = vmatpush.bf16.msra.mxu0 %v11160
    %11309 = vmatpush.bf16.msra.mxu0 %v11159
    %11310 = vmatpush.bf16.msra.mxu0 %v11158
    %11311 = vmatpush.bf16.msra.mxu0 %v11157
    %11312 = vmatpush.bf16.msra.mxu0 %v11156
    %11313 = vmatpush.bf16.msra.mxu0 %v11155
    %11314 = vmatpush.bf16.msra.mxu0 %v11154
    %11315 = vmatmul.bf16.gmra.mxu0 %v10723
    %v11316 = vpop.f32.mrf.mxu0
    %v11317 = vadd.f32 %v11304, %v11316
    %v11318 = vpop.f32.mrf.mxu0
    %11319 = vdwg.mxu0
    %11320 = vmatpush.bf16.msra.mxu0 %v11169
    %11321 = vmatpush.bf16.msra.mxu0 %v11168
    %11322 = vmatpush.bf16.msra.mxu0 %v11167
    %11323 = vmatpush.bf16.msra.mxu0 %v11166
    %11324 = vmatpush.bf16.msra.mxu0 %v11165
    %11325 = vmatpush.bf16.msra.mxu0 %v11164
    %11326 = vmatpush.bf16.msra.mxu0 %v11163
    %11327 = vmatpush.bf16.msra.mxu0 %v11162
    %11328 = vmatmul.bf16.gmra.mxu0 %v10724
    %v11329 = vpop.f32.mrf.mxu0
    %v11330 = vadd.f32 %v11317, %v11329
    %v11331 = vpop.f32.mrf.mxu0
    %11332 = vdwg.mxu0
    %11333 = vmatpush.bf16.msra.mxu0 %v11177
    %11334 = vmatpush.bf16.msra.mxu0 %v11176
    %11335 = vmatpush.bf16.msra.mxu0 %v11175
    %11336 = vmatpush.bf16.msra.mxu0 %v11174
    %11337 = vmatpush.bf16.msra.mxu0 %v11173
    %11338 = vmatpush.bf16.msra.mxu0 %v11172
    %11339 = vmatpush.bf16.msra.mxu0 %v11171
    %11340 = vmatpush.bf16.msra.mxu0 %v11170
    %11341 = vmatmul.bf16.gmra.mxu0 %v10725
    %v11342 = vpop.f32.mrf.mxu0
    %v11343 = vadd.f32 %v11330, %v11342
    %v11344 = vpop.f32.mrf.mxu0
    %11345 = vdwg.mxu0
    %vm11346 = vcmask 80896
    %11347 = vst.msk [vmem:[#allocation20] sm:$0xff] %vm11346, %v11343
    // Predicated region
    $region98: #{tpu_custom_call.1} parent=1 // pred_check
      _
    $region99: #{tpu_custom_call.1} parent=1 // pred_check_branch
      %11349 = sbr.rel (0) target = $region101
    $region100: #{tpu_custom_call.1} parent=1 // pred_region
      _
    $region101: #{tpu_custom_call.1} parent=1 // pred_fallthru
      _
    // Predicated region
    $region102: #{tpu_custom_call.1} parent=1 // pred_check
      _
    $region103: #{tpu_custom_call.1} parent=1 // pred_check_branch
      %11351 = sbr.rel (0) target = $region105
    $region104: #{tpu_custom_call.1} parent=1 // pred_region
      %11353 = vsyncadd [#allocation4], 0
      %s11355 = sshll.u32 [#allocation20], 4
      %s11356 = int_to_ptr.vmem [resolvable:$true] %s11355
      %s11357 = sshll.u32 %s14, 4
      %s11358 = int_to_ptr.hbm [resolvable:$true] %s11357
      %11360 = dma.vmem_to_hbm [thread:$0]  %s11356, 128, %s11358, [#allocation4]
    $region105: #{tpu_custom_call.1} parent=1 // pred_fallthru
      _
    // Predicated region
    $region106: #{tpu_custom_call.1} parent=1 // pred_check
      _
    $region107: #{tpu_custom_call.1} parent=1 // pred_check_branch
      %11362 = sbr.rel (0) target = $region109
    $region108: #{tpu_custom_call.1} parent=1 // pred_region
      _
    $region109: #{tpu_custom_call.1} parent=1 // pred_fallthru
      _
    // Predicated region
    $region110: #{tpu_custom_call.1} parent=1 // pred_check
      _
    $region111: #{tpu_custom_call.1} parent=1 // pred_check_branch
      %11364 = sbr.rel (0) target = $region113
    $region112: #{tpu_custom_call.1} parent=1 // pred_region
      %11366 = dma.done [#allocation4], 128
    $region113: #{tpu_custom_call.1} parent=1 // pred_fallthru
      _
    %11367 = vsyncpa [#allocation3], 1
    %11368 = vsyncpa [#allocation6], 1
    %11369 = vsyncpa [#allocation9], 1
    %11370 = vsyncpa [#allocation12], 1
    %11371 = vsyncpa [#allocation15], 1
    %11372 = vsyncpa [#allocation18], 1
    %11373 = vsyncpa [#allocation4], 1

</llo_original>
